<compile_context>
chip_gen: v7x
topology: tpu7x:2x2x1
jax: 0.10.0
libtpu: 0.0.40
codegen_flags: <defaults>
</compile_context>

<pallas_src>
import numpy as np
import jax
import jax.numpy as jnp
from jax import lax
from jax.experimental import pallas as pl
from jax.experimental.pallas import tpu as pltpu

BN_EPS = 1e-5  # PyTorch nn.BatchNorm3d default


# ---------------------------------------------------------------------------
# Kernel
# ---------------------------------------------------------------------------
def basic_block3d_kernel(x_ref, bw1_ref, b1_ref, bw2_ref, b2_ref, out_ref,
                         xpad_ref, acc_ref):
    """Fused conv1+BN1+ReLU+conv2+BN2+residual+ReLU for the whole (small) batch.

    x_ref   : (N, D, H, W*C)   f32  unpadded input, channels packed into the lane dim
    bw1_ref : (9, W*C, W*C)    bf16 conv1 block-banded weights (BN1 scale folded in)
    b1_ref  : (1, W*C)         f32  BN1 bias, tiled across W
    bw2_ref : (9, W*C, W*C)    bf16 conv2 block-banded weights (BN2 scale folded in)
    b2_ref  : (1, W*C)         f32  BN2 bias, tiled across W
    out_ref : (N, D, H, W*C)   f32
    xpad_ref: VMEM (N, D+2, H+2, W*C) bf16 scratch — (D,H)-zero-padded conv input,
              reused for the padded conv2 intermediate.
    acc_ref : VMEM (N*D*H, W*C) f32 scratch — MXU accumulator, reused for both convs.
    """
    N, D, H, WC = out_ref.shape
    M = N * D * H

    # Zero the (D, H) halo once (interior is fully overwritten below; W padding is folded
    # into the banded weights, so the minor dim needs no halo -> lane-full stores only).
    xpad_ref[...] = jnp.zeros_like(xpad_ref)
    xpad_ref[:, 1:D + 1, 1:H + 1, :] = x_ref[...].astype(xpad_ref.dtype)

    def conv_banded(bw_ref):
        # 9 lane-dense MXU matmuls (one per (kd, kh)); kw taps + W edge clipping live in
        # the block-banded weight.  bf16 x bf16 -> f32 accumulation in a VMEM scratch ref.
        first = True
        for kd in range(3):
            for kh in range(3):
                slab = xpad_ref[:, kd:kd + D, kh:kh + H, :].reshape(M, WC)
                contrib = jnp.dot(slab, bw_ref[kd * 3 + kh],
                                  preferred_element_type=jnp.float32)
                if first:
                    acc_ref[...] = contrib
                    first = False
                else:
                    acc_ref[...] += contrib
        return acc_ref[...]

    # conv1 (+ folded BN1 scale) -> + BN1 bias -> ReLU           (f32 epilogue)
    h1 = jnp.maximum(conv_banded(bw1_ref) + b1_ref[...], 0.0)

    # Re-pad the intermediate for conv2 (halo already zero; interior overwritten).
    xpad_ref[:, 1:D + 1, 1:H + 1, :] = h1.reshape(N, D, H, WC).astype(xpad_ref.dtype)

    # conv2 (+ folded BN2 scale) -> + BN2 bias -> residual add -> ReLU
    y = conv_banded(bw2_ref) + b2_ref[...]
    identity = x_ref[...].reshape(M, WC)                     # pre-BN identity (f32)
    out = jnp.maximum(y + identity, 0.0)
    out_ref[...] = out.reshape(N, D, H, WC).astype(out_ref.dtype)


def make_basic_block3d_call(N, D, H, WC, dtype):
    # grid=() : single invocation, everything resident in VMEM (~3 MB total at this size);
    # batch is folded into the matmul M dim instead of a serial grid loop.
    return pl.pallas_call(
        basic_block3d_kernel,
        out_shape=jax.ShapeDtypeStruct((N, D, H, WC), dtype),
        scratch_shapes=[
            pltpu.VMEM((N, D + 2, H + 2, WC), jnp.bfloat16),   # padded activation (reused)
            pltpu.VMEM((N * D * H, WC), jnp.float32),          # f32 accumulator (reused)
        ],
    )


# ---------------------------------------------------------------------------
# Parameter preparation (host-side, one-time)
# ---------------------------------------------------------------------------
def fold_bn(gamma, beta, mean, var, eps=BN_EPS):
    """Eval-mode BN folded into per-channel scale / bias: y = x * s + b."""
    s = gamma * lax.rsqrt(var + eps)
    b = beta - mean * s
    return s, b


def build_banded_weight(w, scale, W):
    """Fold kw taps, W zero-padding and the BN scale into block-banded matmul weights.

    w     : (3, 3, 3, Cin, Cout) conv weight, tap order (kd, kh, kw)
    scale : (Cout,) folded BN scale
    Returns (9, W*Cin, W*Cout) bf16 where, for tap pair t = kd*3 + kh,
        B[t, wi*Cin + ci, wo*Cout + co] = w[kd, kh, wo - wi + 1, ci, co]   if |wo - wi| <= 1
    so  out[:, wo*Cout + co] = sum_wi,ci  slab[:, wi*Cin + ci] * B[t, ...]
    reproduces the W-direction of the 3x3x3 convolution including edge clipping.
    """
    ws = np.asarray(w, np.float32) * np.asarray(scale, np.float32)  # scale over Cout
    Ci, Co = ws.shape[3], ws.shape[4]
    B = np.zeros((9, W * Ci, W * Co), np.float32)
    for kd in range(3):
        for kh in range(3):
            t = kd * 3 + kh
            for kw in range(3):
                blk = ws[kd, kh, kw]                      # (Cin, Cout)
                for wo in range(W):
                    wi = wo + kw - 1                      # input W position for output wo
                    if 0 <= wi < W:
                        B[t, wi * Ci:(wi + 1) * Ci, wo * Co:(wo + 1) * Co] = blk
    return jnp.asarray(B).astype(jnp.bfloat16)


def init_params(key, C, W):
    """Deterministic parameters for inplanes = planes = C (Kaiming-style conv init)."""
    ks = jax.random.split(key, 10)
    fan_in = C * 27
    std = (2.0 / fan_in) ** 0.5
    w1 = std * jax.random.normal(ks[0], (3, 3, 3, C, C), jnp.float32)  # (kd,kh,kw,Ci,Co)
    w2 = std * jax.random.normal(ks[1], (3, 3, 3, C, C), jnp.float32)

    g1 = 1.0 + 0.1 * jax.random.normal(ks[2], (C,), jnp.float32)
    be1 = 0.1 * jax.random.normal(ks[3], (C,), jnp.float32)
    m1 = 0.1 * jax.random.normal(ks[4], (C,), jnp.float32)
    v1 = jax.random.uniform(ks[5], (C,), jnp.float32, minval=0.5, maxval=1.5)
    g2 = 1.0 + 0.1 * jax.random.normal(ks[6], (C,), jnp.float32)
    be2 = 0.1 * jax.random.normal(ks[7], (C,), jnp.float32)
    m2 = 0.1 * jax.random.normal(ks[8], (C,), jnp.float32)
    v2 = jax.random.uniform(ks[9], (C,), jnp.float32, minval=0.5, maxval=1.5)

    s1, b1 = fold_bn(g1, be1, m1, v1)
    s2, b2 = fold_bn(g2, be2, m2, v2)

    return dict(
        bw1=build_banded_weight(w1, s1, W),
        bw2=build_banded_weight(w2, s2, W),
        b1p=jnp.tile(b1, W).reshape(1, W * C),
        b2p=jnp.tile(b2, W).reshape(1, W * C),
        # dense f32 copies kept only for the pure-JAX reference check
        w1=w1, w2=w2, s1=s1, s2=s2, b1=b1, b2=b2,
    )


# ---------------------------------------------------------------------------
# Forward wrapper + reference
# ---------------------------------------------------------------------------
def basic_block3d_forward(x, params):
    """x: (N, C, D, H, W) PyTorch NCDHW layout; returns the same layout."""
    N, C, D, H, W = x.shape
    # One layout pass: channels-last with W and C packed into a 256-wide lane dim.
    # (No jnp.pad here — the conv halo is created inside the kernel in VMEM.)
    xcl = jnp.transpose(x, (0, 2, 3, 4, 1)).reshape(N, D, H, W * C)
    call = make_basic_block3d_call(N, D, H, W * C, x.dtype)
    out = call(xcl, params["bw1"], params["b1p"], params["bw2"], params["b2p"])
    return jnp.transpose(out.reshape(N, D, H, W, C), (0, 4, 1, 2, 3))


def reference_forward(x, params):
    """Pure-JAX reference with the same bf16-operand / f32-accumulate precision."""
    def conv3d_bf16(inp, w, scale):
        wb = (w * scale).astype(jnp.bfloat16).astype(jnp.float32)
        ib = inp.astype(jnp.bfloat16).astype(jnp.float32)
        return lax.conv_general_dilated(
            ib, wb, window_strides=(1, 1, 1),
            padding=((1, 1), (1, 1), (1, 1)),
            dimension_numbers=("NDHWC", "DHWIO", "NDHWC"))

    xcl = jnp.transpose(x, (0, 2, 3, 4, 1))
    h1 = jnp.maximum(conv3d_bf16(xcl, params["w1"], params["s1"]) + params["b1"], 0.0)
    y = conv3d_bf16(h1, params["w2"], params["s2"]) + params["b2"]
    out = jnp.maximum(y + xcl, 0.0)
    return jnp.transpose(out, (0, 4, 1, 2, 3))


# ---------------------------------------------------------------------------
if __name__ == "__main__":
    # small config: inplanes = planes = 32, clip of 4 frames at 8x8  -> W*C = 256 lanes
    N, C, D, H, W = 2, 32, 4, 8, 8

    key = jax.random.PRNGKey(0)
    kx, kp = jax.random.split(key)

    x = jax.random.normal(kx, (N, C, D, H, W), jnp.float32)
    params = init_params(kp, C, W)

    out = jax.block_until_ready(basic_block3d_forward(x, params))

    assert out.shape == (N, C, D, H, W), out.shape
    assert bool(jnp.all(jnp.isfinite(out)))
    assert bool(jnp.all(out >= 0.0))          # final ReLU

    ref = jax.block_until_ready(reference_forward(x, params))
    max_err = float(jnp.max(jnp.abs(out - ref)))
    assert bool(jnp.allclose(out, ref, rtol=1e-2, atol=1e-2)), max_err

    print("KERNEL_OK")
</pallas_src>

<mosaic_0001>
module attributes {stable_mosaic.version = 11 : i64} {
  func.func @basic_block3d_kernel(%arg0: memref<2x4x8x256xf32, #tpu.memory_space<vmem>>, %arg1: memref<9x256x256xbf16, #tpu.memory_space<vmem>>, %arg2: memref<1x256xf32, #tpu.memory_space<vmem>>, %arg3: memref<9x256x256xbf16, #tpu.memory_space<vmem>>, %arg4: memref<1x256xf32, #tpu.memory_space<vmem>>, %arg5: memref<2x4x8x256xf32, #tpu.memory_space<vmem>>, %arg6: memref<2x6x10x256xbf16, #tpu.memory_space<vmem>>, %arg7: memref<64x256xf32, #tpu.memory_space<vmem>>) attributes {dimension_semantics = [], scalar_prefetch = 0 : i64, scratch_operands = 2 : i64, tpu.core_type = #tpu.core_type<tc>} {
    %cst = arith.constant 0.000000e+00 : bf16
    %0 = vector.broadcast %cst : bf16 to vector<2x6x10x256xbf16>
    %c0 = arith.constant 0 : index
    %c0_0 = arith.constant 0 : index
    %c0_1 = arith.constant 0 : index
    %c0_2 = arith.constant 0 : index
    %1 = vector.load %arg6[%c0, %c0_0, %c0_1, %c0_2] : memref<2x6x10x256xbf16, #tpu.memory_space<vmem>>, vector<2x6x10x256xbf16>
    tpu.vector_store %arg6[%c0, %c0_0, %c0_1, %c0_2], %0 {strides = array<i32>} : memref<2x6x10x256xbf16, #tpu.memory_space<vmem>>, vector<2x6x10x256xbf16>,
    %c0_3 = arith.constant 0 : index
    %c0_4 = arith.constant 0 : index
    %c0_5 = arith.constant 0 : index
    %c0_6 = arith.constant 0 : index
    %2 = vector.load %arg0[%c0_3, %c0_4, %c0_5, %c0_6] : memref<2x4x8x256xf32, #tpu.memory_space<vmem>>, vector<2x4x8x256xf32>
    %3 = arith.truncf %2 : vector<2x4x8x256xf32> to vector<2x4x8x256xbf16>
    %c0_7 = arith.constant 0 : index
    %c1 = arith.constant 1 : index
    %c1_8 = arith.constant 1 : index
    %c0_9 = arith.constant 0 : index
    %4 = vector.load %arg6[%c0_7, %c1, %c1_8, %c0_9] : memref<2x6x10x256xbf16, #tpu.memory_space<vmem>>, vector<2x4x8x256xbf16>
    tpu.vector_store %arg6[%c0_7, %c1, %c1_8, %c0_9], %3 {strides = array<i32>} : memref<2x6x10x256xbf16, #tpu.memory_space<vmem>>, vector<2x4x8x256xbf16>,
    %c0_10 = arith.constant 0 : index
    %c0_11 = arith.constant 0 : index
    %c0_12 = arith.constant 0 : index
    %c0_13 = arith.constant 0 : index
    %5 = vector.load %arg6[%c0_10, %c0_11, %c0_12, %c0_13] : memref<2x6x10x256xbf16, #tpu.memory_space<vmem>>, vector<2x4x8x256xbf16>
    %6 = vector.shape_cast %5 : vector<2x4x8x256xbf16> to vector<64x256xbf16>
    %c0_14 = arith.constant 0 : index
    %c0_15 = arith.constant 0 : index
    %c0_16 = arith.constant 0 : index
    %7 = vector.load %arg1[%c0_14, %c0_15, %c0_16] : memref<9x256x256xbf16, #tpu.memory_space<vmem>>, vector<1x256x256xbf16>
    %8 = vector.shape_cast %7 : vector<1x256x256xbf16> to vector<256x256xbf16>
    %cst_17 = arith.constant dense<0.000000e+00> : vector<64x256xf32>
    %9 = tpu.matmul %6, %8, %cst_17 {dimension_numbers = #tpu.dot_dimension_numbers<[1], [0], [0], [1], [0, 0, 1, 1], [], []>} : vector<64x256xbf16>, vector<256x256xbf16>, vector<64x256xf32> -> vector<64x256xf32>
    %c0_18 = arith.constant 0 : index
    %c0_19 = arith.constant 0 : index
    %10 = vector.load %arg7[%c0_18, %c0_19] : memref<64x256xf32, #tpu.memory_space<vmem>>, vector<64x256xf32>
    tpu.vector_store %arg7[%c0_18, %c0_19], %9 {strides = array<i32>} : memref<64x256xf32, #tpu.memory_space<vmem>>, vector<64x256xf32>,
    %c0_20 = arith.constant 0 : index
    %c0_21 = arith.constant 0 : index
    %c1_22 = arith.constant 1 : index
    %c0_23 = arith.constant 0 : index
    %11 = vector.load %arg6[%c0_20, %c0_21, %c1_22, %c0_23] : memref<2x6x10x256xbf16, #tpu.memory_space<vmem>>, vector<2x4x8x256xbf16>
    %12 = vector.shape_cast %11 : vector<2x4x8x256xbf16> to vector<64x256xbf16>
    %c1_24 = arith.constant 1 : index
    %c0_25 = arith.constant 0 : index
    %c0_26 = arith.constant 0 : index
    %13 = vector.load %arg1[%c1_24, %c0_25, %c0_26] : memref<9x256x256xbf16, #tpu.memory_space<vmem>>, vector<1x256x256xbf16>
    %14 = vector.shape_cast %13 : vector<1x256x256xbf16> to vector<256x256xbf16>
    %cst_27 = arith.constant dense<0.000000e+00> : vector<64x256xf32>
    %15 = tpu.matmul %12, %14, %cst_27 {dimension_numbers = #tpu.dot_dimension_numbers<[1], [0], [0], [1], [0, 0, 1, 1], [], []>} : vector<64x256xbf16>, vector<256x256xbf16>, vector<64x256xf32> -> vector<64x256xf32>
    %c0_28 = arith.constant 0 : index
    %c0_29 = arith.constant 0 : index
    %16 = vector.load %arg7[%c0_28, %c0_29] : memref<64x256xf32, #tpu.memory_space<vmem>>, vector<64x256xf32>
    %17 = arith.addf %16, %15 : vector<64x256xf32>
    %c0_30 = arith.constant 0 : index
    %c0_31 = arith.constant 0 : index
    %18 = vector.load %arg7[%c0_30, %c0_31] : memref<64x256xf32, #tpu.memory_space<vmem>>, vector<64x256xf32>
    tpu.vector_store %arg7[%c0_30, %c0_31], %17 {strides = array<i32>} : memref<64x256xf32, #tpu.memory_space<vmem>>, vector<64x256xf32>,
    %c0_32 = arith.constant 0 : index
    %c0_33 = arith.constant 0 : index
    %c2 = arith.constant 2 : index
    %c0_34 = arith.constant 0 : index
    %19 = vector.load %arg6[%c0_32, %c0_33, %c2, %c0_34] : memref<2x6x10x256xbf16, #tpu.memory_space<vmem>>, vector<2x4x8x256xbf16>
    %20 = vector.shape_cast %19 : vector<2x4x8x256xbf16> to vector<64x256xbf16>
    %c2_35 = arith.constant 2 : index
    %c0_36 = arith.constant 0 : index
    %c0_37 = arith.constant 0 : index
    %21 = vector.load %arg1[%c2_35, %c0_36, %c0_37] : memref<9x256x256xbf16, #tpu.memory_space<vmem>>, vector<1x256x256xbf16>
    %22 = vector.shape_cast %21 : vector<1x256x256xbf16> to vector<256x256xbf16>
    %cst_38 = arith.constant dense<0.000000e+00> : vector<64x256xf32>
    %23 = tpu.matmul %20, %22, %cst_38 {dimension_numbers = #tpu.dot_dimension_numbers<[1], [0], [0], [1], [0, 0, 1, 1], [], []>} : vector<64x256xbf16>, vector<256x256xbf16>, vector<64x256xf32> -> vector<64x256xf32>
    %c0_39 = arith.constant 0 : index
    %c0_40 = arith.constant 0 : index
    %24 = vector.load %arg7[%c0_39, %c0_40] : memref<64x256xf32, #tpu.memory_space<vmem>>, vector<64x256xf32>
    %25 = arith.addf %24, %23 : vector<64x256xf32>
    %c0_41 = arith.constant 0 : index
    %c0_42 = arith.constant 0 : index
    %26 = vector.load %arg7[%c0_41, %c0_42] : memref<64x256xf32, #tpu.memory_space<vmem>>, vector<64x256xf32>
    tpu.vector_store %arg7[%c0_41, %c0_42], %25 {strides = array<i32>} : memref<64x256xf32, #tpu.memory_space<vmem>>, vector<64x256xf32>,
    %c0_43 = arith.constant 0 : index
    %c1_44 = arith.constant 1 : index
    %c0_45 = arith.constant 0 : index
    %c0_46 = arith.constant 0 : index
    %27 = vector.load %arg6[%c0_43, %c1_44, %c0_45, %c0_46] : memref<2x6x10x256xbf16, #tpu.memory_space<vmem>>, vector<2x4x8x256xbf16>
    %28 = vector.shape_cast %27 : vector<2x4x8x256xbf16> to vector<64x256xbf16>
    %c3 = arith.constant 3 : index
    %c0_47 = arith.constant 0 : index
    %c0_48 = arith.constant 0 : index
    %29 = vector.load %arg1[%c3, %c0_47, %c0_48] : memref<9x256x256xbf16, #tpu.memory_space<vmem>>, vector<1x256x256xbf16>
    %30 = vector.shape_cast %29 : vector<1x256x256xbf16> to vector<256x256xbf16>
    %cst_49 = arith.constant dense<0.000000e+00> : vector<64x256xf32>
    %31 = tpu.matmul %28, %30, %cst_49 {dimension_numbers = #tpu.dot_dimension_numbers<[1], [0], [0], [1], [0, 0, 1, 1], [], []>} : vector<64x256xbf16>, vector<256x256xbf16>, vector<64x256xf32> -> vector<64x256xf32>
    %c0_50 = arith.constant 0 : index
    %c0_51 = arith.constant 0 : index
    %32 = vector.load %arg7[%c0_50, %c0_51] : memref<64x256xf32, #tpu.memory_space<vmem>>, vector<64x256xf32>
    %33 = arith.addf %32, %31 : vector<64x256xf32>
    %c0_52 = arith.constant 0 : index
    %c0_53 = arith.constant 0 : index
    %34 = vector.load %arg7[%c0_52, %c0_53] : memref<64x256xf32, #tpu.memory_space<vmem>>, vector<64x256xf32>
    tpu.vector_store %arg7[%c0_52, %c0_53], %33 {strides = array<i32>} : memref<64x256xf32, #tpu.memory_space<vmem>>, vector<64x256xf32>,
    %c0_54 = arith.constant 0 : index
    %c1_55 = arith.constant 1 : index
    %c1_56 = arith.constant 1 : index
    %c0_57 = arith.constant 0 : index
    %35 = vector.load %arg6[%c0_54, %c1_55, %c1_56, %c0_57] : memref<2x6x10x256xbf16, #tpu.memory_space<vmem>>, vector<2x4x8x256xbf16>
    %36 = vector.shape_cast %35 : vector<2x4x8x256xbf16> to vector<64x256xbf16>
    %c4 = arith.constant 4 : index
    %c0_58 = arith.constant 0 : index
    %c0_59 = arith.constant 0 : index
    %37 = vector.load %arg1[%c4, %c0_58, %c0_59] : memref<9x256x256xbf16, #tpu.memory_space<vmem>>, vector<1x256x256xbf16>
    %38 = vector.shape_cast %37 : vector<1x256x256xbf16> to vector<256x256xbf16>
    %cst_60 = arith.constant dense<0.000000e+00> : vector<64x256xf32>
    %39 = tpu.matmul %36, %38, %cst_60 {dimension_numbers = #tpu.dot_dimension_numbers<[1], [0], [0], [1], [0, 0, 1, 1], [], []>} : vector<64x256xbf16>, vector<256x256xbf16>, vector<64x256xf32> -> vector<64x256xf32>
    %c0_61 = arith.constant 0 : index
    %c0_62 = arith.constant 0 : index
    %40 = vector.load %arg7[%c0_61, %c0_62] : memref<64x256xf32, #tpu.memory_space<vmem>>, vector<64x256xf32>
    %41 = arith.addf %40, %39 : vector<64x256xf32>
    %c0_63 = arith.constant 0 : index
    %c0_64 = arith.constant 0 : index
    %42 = vector.load %arg7[%c0_63, %c0_64] : memref<64x256xf32, #tpu.memory_space<vmem>>, vector<64x256xf32>
    tpu.vector_store %arg7[%c0_63, %c0_64], %41 {strides = array<i32>} : memref<64x256xf32, #tpu.memory_space<vmem>>, vector<64x256xf32>,
    %c0_65 = arith.constant 0 : index
    %c1_66 = arith.constant 1 : index
    %c2_67 = arith.constant 2 : index
    %c0_68 = arith.constant 0 : index
    %43 = vector.load %arg6[%c0_65, %c1_66, %c2_67, %c0_68] : memref<2x6x10x256xbf16, #tpu.memory_space<vmem>>, vector<2x4x8x256xbf16>
    %44 = vector.shape_cast %43 : vector<2x4x8x256xbf16> to vector<64x256xbf16>
    %c5 = arith.constant 5 : index
    %c0_69 = arith.constant 0 : index
    %c0_70 = arith.constant 0 : index
    %45 = vector.load %arg1[%c5, %c0_69, %c0_70] : memref<9x256x256xbf16, #tpu.memory_space<vmem>>, vector<1x256x256xbf16>
    %46 = vector.shape_cast %45 : vector<1x256x256xbf16> to vector<256x256xbf16>
    %cst_71 = arith.constant dense<0.000000e+00> : vector<64x256xf32>
    %47 = tpu.matmul %44, %46, %cst_71 {dimension_numbers = #tpu.dot_dimension_numbers<[1], [0], [0], [1], [0, 0, 1, 1], [], []>} : vector<64x256xbf16>, vector<256x256xbf16>, vector<64x256xf32> -> vector<64x256xf32>
    %c0_72 = arith.constant 0 : index
    %c0_73 = arith.constant 0 : index
    %48 = vector.load %arg7[%c0_72, %c0_73] : memref<64x256xf32, #tpu.memory_space<vmem>>, vector<64x256xf32>
    %49 = arith.addf %48, %47 : vector<64x256xf32>
    %c0_74 = arith.constant 0 : index
    %c0_75 = arith.constant 0 : index
    %50 = vector.load %arg7[%c0_74, %c0_75] : memref<64x256xf32, #tpu.memory_space<vmem>>, vector<64x256xf32>
    tpu.vector_store %arg7[%c0_74, %c0_75], %49 {strides = array<i32>} : memref<64x256xf32, #tpu.memory_space<vmem>>, vector<64x256xf32>,
    %c0_76 = arith.constant 0 : index
    %c2_77 = arith.constant 2 : index
    %c0_78 = arith.constant 0 : index
    %c0_79 = arith.constant 0 : index
    %51 = vector.load %arg6[%c0_76, %c2_77, %c0_78, %c0_79] : memref<2x6x10x256xbf16, #tpu.memory_space<vmem>>, vector<2x4x8x256xbf16>
    %52 = vector.shape_cast %51 : vector<2x4x8x256xbf16> to vector<64x256xbf16>
    %c6 = arith.constant 6 : index
    %c0_80 = arith.constant 0 : index
    %c0_81 = arith.constant 0 : index
    %53 = vector.load %arg1[%c6, %c0_80, %c0_81] : memref<9x256x256xbf16, #tpu.memory_space<vmem>>, vector<1x256x256xbf16>
    %54 = vector.shape_cast %53 : vector<1x256x256xbf16> to vector<256x256xbf16>
    %cst_82 = arith.constant dense<0.000000e+00> : vector<64x256xf32>
    %55 = tpu.matmul %52, %54, %cst_82 {dimension_numbers = #tpu.dot_dimension_numbers<[1], [0], [0], [1], [0, 0, 1, 1], [], []>} : vector<64x256xbf16>, vector<256x256xbf16>, vector<64x256xf32> -> vector<64x256xf32>
    %c0_83 = arith.constant 0 : index
    %c0_84 = arith.constant 0 : index
    %56 = vector.load %arg7[%c0_83, %c0_84] : memref<64x256xf32, #tpu.memory_space<vmem>>, vector<64x256xf32>
    %57 = arith.addf %56, %55 : vector<64x256xf32>
    %c0_85 = arith.constant 0 : index
    %c0_86 = arith.constant 0 : index
    %58 = vector.load %arg7[%c0_85, %c0_86] : memref<64x256xf32, #tpu.memory_space<vmem>>, vector<64x256xf32>
    tpu.vector_store %arg7[%c0_85, %c0_86], %57 {strides = array<i32>} : memref<64x256xf32, #tpu.memory_space<vmem>>, vector<64x256xf32>,
    %c0_87 = arith.constant 0 : index
    %c2_88 = arith.constant 2 : index
    %c1_89 = arith.constant 1 : index
    %c0_90 = arith.constant 0 : index
    %59 = vector.load %arg6[%c0_87, %c2_88, %c1_89, %c0_90] : memref<2x6x10x256xbf16, #tpu.memory_space<vmem>>, vector<2x4x8x256xbf16>
    %60 = vector.shape_cast %59 : vector<2x4x8x256xbf16> to vector<64x256xbf16>
    %c7 = arith.constant 7 : index
    %c0_91 = arith.constant 0 : index
    %c0_92 = arith.constant 0 : index
    %61 = vector.load %arg1[%c7, %c0_91, %c0_92] : memref<9x256x256xbf16, #tpu.memory_space<vmem>>, vector<1x256x256xbf16>
    %62 = vector.shape_cast %61 : vector<1x256x256xbf16> to vector<256x256xbf16>
    %cst_93 = arith.constant dense<0.000000e+00> : vector<64x256xf32>
    %63 = tpu.matmul %60, %62, %cst_93 {dimension_numbers = #tpu.dot_dimension_numbers<[1], [0], [0], [1], [0, 0, 1, 1], [], []>} : vector<64x256xbf16>, vector<256x256xbf16>, vector<64x256xf32> -> vector<64x256xf32>
    %c0_94 = arith.constant 0 : index
    %c0_95 = arith.constant 0 : index
    %64 = vector.load %arg7[%c0_94, %c0_95] : memref<64x256xf32, #tpu.memory_space<vmem>>, vector<64x256xf32>
    %65 = arith.addf %64, %63 : vector<64x256xf32>
    %c0_96 = arith.constant 0 : index
    %c0_97 = arith.constant 0 : index
    %66 = vector.load %arg7[%c0_96, %c0_97] : memref<64x256xf32, #tpu.memory_space<vmem>>, vector<64x256xf32>
    tpu.vector_store %arg7[%c0_96, %c0_97], %65 {strides = array<i32>} : memref<64x256xf32, #tpu.memory_space<vmem>>, vector<64x256xf32>,
    %c0_98 = arith.constant 0 : index
    %c2_99 = arith.constant 2 : index
    %c2_100 = arith.constant 2 : index
    %c0_101 = arith.constant 0 : index
    %67 = vector.load %arg6[%c0_98, %c2_99, %c2_100, %c0_101] : memref<2x6x10x256xbf16, #tpu.memory_space<vmem>>, vector<2x4x8x256xbf16>
    %68 = vector.shape_cast %67 : vector<2x4x8x256xbf16> to vector<64x256xbf16>
    %c8 = arith.constant 8 : index
    %c0_102 = arith.constant 0 : index
    %c0_103 = arith.constant 0 : index
    %69 = vector.load %arg1[%c8, %c0_102, %c0_103] : memref<9x256x256xbf16, #tpu.memory_space<vmem>>, vector<1x256x256xbf16>
    %70 = vector.shape_cast %69 : vector<1x256x256xbf16> to vector<256x256xbf16>
    %cst_104 = arith.constant dense<0.000000e+00> : vector<64x256xf32>
    %71 = tpu.matmul %68, %70, %cst_104 {dimension_numbers = #tpu.dot_dimension_numbers<[1], [0], [0], [1], [0, 0, 1, 1], [], []>} : vector<64x256xbf16>, vector<256x256xbf16>, vector<64x256xf32> -> vector<64x256xf32>
    %c0_105 = arith.constant 0 : index
    %c0_106 = arith.constant 0 : index
    %72 = vector.load %arg7[%c0_105, %c0_106] : memref<64x256xf32, #tpu.memory_space<vmem>>, vector<64x256xf32>
    %73 = arith.addf %72, %71 : vector<64x256xf32>
    %c0_107 = arith.constant 0 : index
    %c0_108 = arith.constant 0 : index
    %74 = vector.load %arg7[%c0_107, %c0_108] : memref<64x256xf32, #tpu.memory_space<vmem>>, vector<64x256xf32>
    tpu.vector_store %arg7[%c0_107, %c0_108], %73 {strides = array<i32>} : memref<64x256xf32, #tpu.memory_space<vmem>>, vector<64x256xf32>,
    %c0_109 = arith.constant 0 : index
    %c0_110 = arith.constant 0 : index
    %75 = vector.load %arg7[%c0_109, %c0_110] : memref<64x256xf32, #tpu.memory_space<vmem>>, vector<64x256xf32>
    %c0_111 = arith.constant 0 : index
    %c0_112 = arith.constant 0 : index
    %76 = vector.load %arg2[%c0_111, %c0_112] : memref<1x256xf32, #tpu.memory_space<vmem>>, vector<1x256xf32>
    %77 = vector.broadcast %76 : vector<1x256xf32> to vector<64x256xf32>
    %78 = arith.addf %75, %77 : vector<64x256xf32>
    %cst_113 = arith.constant 0.000000e+00 : f32
    %79 = vector.broadcast %cst_113 : f32 to vector<64x256xf32>
    %80 = arith.maximumf %78, %79 : vector<64x256xf32>
    %81 = vector.shape_cast %80 : vector<64x256xf32> to vector<2x4x8x256xf32>
    %82 = arith.truncf %81 : vector<2x4x8x256xf32> to vector<2x4x8x256xbf16>
    %c0_114 = arith.constant 0 : index
    %c1_115 = arith.constant 1 : index
    %c1_116 = arith.constant 1 : index
    %c0_117 = arith.constant 0 : index
    %83 = vector.load %arg6[%c0_114, %c1_115, %c1_116, %c0_117] : memref<2x6x10x256xbf16, #tpu.memory_space<vmem>>, vector<2x4x8x256xbf16>
    tpu.vector_store %arg6[%c0_114, %c1_115, %c1_116, %c0_117], %82 {strides = array<i32>} : memref<2x6x10x256xbf16, #tpu.memory_space<vmem>>, vector<2x4x8x256xbf16>,
    %c0_118 = arith.constant 0 : index
    %c0_119 = arith.constant 0 : index
    %c0_120 = arith.constant 0 : index
    %c0_121 = arith.constant 0 : index
    %84 = vector.load %arg6[%c0_118, %c0_119, %c0_120, %c0_121] : memref<2x6x10x256xbf16, #tpu.memory_space<vmem>>, vector<2x4x8x256xbf16>
    %85 = vector.shape_cast %84 : vector<2x4x8x256xbf16> to vector<64x256xbf16>
    %c0_122 = arith.constant 0 : index
    %c0_123 = arith.constant 0 : index
    %c0_124 = arith.constant 0 : index
    %86 = vector.load %arg3[%c0_122, %c0_123, %c0_124] : memref<9x256x256xbf16, #tpu.memory_space<vmem>>, vector<1x256x256xbf16>
    %87 = vector.shape_cast %86 : vector<1x256x256xbf16> to vector<256x256xbf16>
    %cst_125 = arith.constant dense<0.000000e+00> : vector<64x256xf32>
    %88 = tpu.matmul %85, %87, %cst_125 {dimension_numbers = #tpu.dot_dimension_numbers<[1], [0], [0], [1], [0, 0, 1, 1], [], []>} : vector<64x256xbf16>, vector<256x256xbf16>, vector<64x256xf32> -> vector<64x256xf32>
    %c0_126 = arith.constant 0 : index
    %c0_127 = arith.constant 0 : index
    %89 = vector.load %arg7[%c0_126, %c0_127] : memref<64x256xf32, #tpu.memory_space<vmem>>, vector<64x256xf32>
    tpu.vector_store %arg7[%c0_126, %c0_127], %88 {strides = array<i32>} : memref<64x256xf32, #tpu.memory_space<vmem>>, vector<64x256xf32>,
    %c0_128 = arith.constant 0 : index
    %c0_129 = arith.constant 0 : index
    %c1_130 = arith.constant 1 : index
    %c0_131 = arith.constant 0 : index
    %90 = vector.load %arg6[%c0_128, %c0_129, %c1_130, %c0_131] : memref<2x6x10x256xbf16, #tpu.memory_space<vmem>>, vector<2x4x8x256xbf16>
    %91 = vector.shape_cast %90 : vector<2x4x8x256xbf16> to vector<64x256xbf16>
    %c1_132 = arith.constant 1 : index
    %c0_133 = arith.constant 0 : index
    %c0_134 = arith.constant 0 : index
    %92 = vector.load %arg3[%c1_132, %c0_133, %c0_134] : memref<9x256x256xbf16, #tpu.memory_space<vmem>>, vector<1x256x256xbf16>
    %93 = vector.shape_cast %92 : vector<1x256x256xbf16> to vector<256x256xbf16>
    %cst_135 = arith.constant dense<0.000000e+00> : vector<64x256xf32>
    %94 = tpu.matmul %91, %93, %cst_135 {dimension_numbers = #tpu.dot_dimension_numbers<[1], [0], [0], [1], [0, 0, 1, 1], [], []>} : vector<64x256xbf16>, vector<256x256xbf16>, vector<64x256xf32> -> vector<64x256xf32>
    %c0_136 = arith.constant 0 : index
    %c0_137 = arith.constant 0 : index
    %95 = vector.load %arg7[%c0_136, %c0_137] : memref<64x256xf32, #tpu.memory_space<vmem>>, vector<64x256xf32>
    %96 = arith.addf %95, %94 : vector<64x256xf32>
    %c0_138 = arith.constant 0 : index
    %c0_139 = arith.constant 0 : index
    %97 = vector.load %arg7[%c0_138, %c0_139] : memref<64x256xf32, #tpu.memory_space<vmem>>, vector<64x256xf32>
    tpu.vector_store %arg7[%c0_138, %c0_139], %96 {strides = array<i32>} : memref<64x256xf32, #tpu.memory_space<vmem>>, vector<64x256xf32>,
    %c0_140 = arith.constant 0 : index
    %c0_141 = arith.constant 0 : index
    %c2_142 = arith.constant 2 : index
    %c0_143 = arith.constant 0 : index
    %98 = vector.load %arg6[%c0_140, %c0_141, %c2_142, %c0_143] : memref<2x6x10x256xbf16, #tpu.memory_space<vmem>>, vector<2x4x8x256xbf16>
    %99 = vector.shape_cast %98 : vector<2x4x8x256xbf16> to vector<64x256xbf16>
    %c2_144 = arith.constant 2 : index
    %c0_145 = arith.constant 0 : index
    %c0_146 = arith.constant 0 : index
    %100 = vector.load %arg3[%c2_144, %c0_145, %c0_146] : memref<9x256x256xbf16, #tpu.memory_space<vmem>>, vector<1x256x256xbf16>
    %101 = vector.shape_cast %100 : vector<1x256x256xbf16> to vector<256x256xbf16>
    %cst_147 = arith.constant dense<0.000000e+00> : vector<64x256xf32>
    %102 = tpu.matmul %99, %101, %cst_147 {dimension_numbers = #tpu.dot_dimension_numbers<[1], [0], [0], [1], [0, 0, 1, 1], [], []>} : vector<64x256xbf16>, vector<256x256xbf16>, vector<64x256xf32> -> vector<64x256xf32>
    %c0_148 = arith.constant 0 : index
    %c0_149 = arith.constant 0 : index
    %103 = vector.load %arg7[%c0_148, %c0_149] : memref<64x256xf32, #tpu.memory_space<vmem>>, vector<64x256xf32>
    %104 = arith.addf %103, %102 : vector<64x256xf32>
    %c0_150 = arith.constant 0 : index
    %c0_151 = arith.constant 0 : index
    %105 = vector.load %arg7[%c0_150, %c0_151] : memref<64x256xf32, #tpu.memory_space<vmem>>, vector<64x256xf32>
    tpu.vector_store %arg7[%c0_150, %c0_151], %104 {strides = array<i32>} : memref<64x256xf32, #tpu.memory_space<vmem>>, vector<64x256xf32>,
    %c0_152 = arith.constant 0 : index
    %c1_153 = arith.constant 1 : index
    %c0_154 = arith.constant 0 : index
    %c0_155 = arith.constant 0 : index
    %106 = vector.load %arg6[%c0_152, %c1_153, %c0_154, %c0_155] : memref<2x6x10x256xbf16, #tpu.memory_space<vmem>>, vector<2x4x8x256xbf16>
    %107 = vector.shape_cast %106 : vector<2x4x8x256xbf16> to vector<64x256xbf16>
    %c3_156 = arith.constant 3 : index
    %c0_157 = arith.constant 0 : index
    %c0_158 = arith.constant 0 : index
    %108 = vector.load %arg3[%c3_156, %c0_157, %c0_158] : memref<9x256x256xbf16, #tpu.memory_space<vmem>>, vector<1x256x256xbf16>
    %109 = vector.shape_cast %108 : vector<1x256x256xbf16> to vector<256x256xbf16>
    %cst_159 = arith.constant dense<0.000000e+00> : vector<64x256xf32>
    %110 = tpu.matmul %107, %109, %cst_159 {dimension_numbers = #tpu.dot_dimension_numbers<[1], [0], [0], [1], [0, 0, 1, 1], [], []>} : vector<64x256xbf16>, vector<256x256xbf16>, vector<64x256xf32> -> vector<64x256xf32>
    %c0_160 = arith.constant 0 : index
    %c0_161 = arith.constant 0 : index
    %111 = vector.load %arg7[%c0_160, %c0_161] : memref<64x256xf32, #tpu.memory_space<vmem>>, vector<64x256xf32>
    %112 = arith.addf %111, %110 : vector<64x256xf32>
    %c0_162 = arith.constant 0 : index
    %c0_163 = arith.constant 0 : index
    %113 = vector.load %arg7[%c0_162, %c0_163] : memref<64x256xf32, #tpu.memory_space<vmem>>, vector<64x256xf32>
    tpu.vector_store %arg7[%c0_162, %c0_163], %112 {strides = array<i32>} : memref<64x256xf32, #tpu.memory_space<vmem>>, vector<64x256xf32>,
    %c0_164 = arith.constant 0 : index
    %c1_165 = arith.constant 1 : index
    %c1_166 = arith.constant 1 : index
    %c0_167 = arith.constant 0 : index
    %114 = vector.load %arg6[%c0_164, %c1_165, %c1_166, %c0_167] : memref<2x6x10x256xbf16, #tpu.memory_space<vmem>>, vector<2x4x8x256xbf16>
    %115 = vector.shape_cast %114 : vector<2x4x8x256xbf16> to vector<64x256xbf16>
    %c4_168 = arith.constant 4 : index
    %c0_169 = arith.constant 0 : index
    %c0_170 = arith.constant 0 : index
    %116 = vector.load %arg3[%c4_168, %c0_169, %c0_170] : memref<9x256x256xbf16, #tpu.memory_space<vmem>>, vector<1x256x256xbf16>
    %117 = vector.shape_cast %116 : vector<1x256x256xbf16> to vector<256x256xbf16>
    %cst_171 = arith.constant dense<0.000000e+00> : vector<64x256xf32>
    %118 = tpu.matmul %115, %117, %cst_171 {dimension_numbers = #tpu.dot_dimension_numbers<[1], [0], [0], [1], [0, 0, 1, 1], [], []>} : vector<64x256xbf16>, vector<256x256xbf16>, vector<64x256xf32> -> vector<64x256xf32>
    %c0_172 = arith.constant 0 : index
    %c0_173 = arith.constant 0 : index
    %119 = vector.load %arg7[%c0_172, %c0_173] : memref<64x256xf32, #tpu.memory_space<vmem>>, vector<64x256xf32>
    %120 = arith.addf %119, %118 : vector<64x256xf32>
    %c0_174 = arith.constant 0 : index
    %c0_175 = arith.constant 0 : index
    %121 = vector.load %arg7[%c0_174, %c0_175] : memref<64x256xf32, #tpu.memory_space<vmem>>, vector<64x256xf32>
    tpu.vector_store %arg7[%c0_174, %c0_175], %120 {strides = array<i32>} : memref<64x256xf32, #tpu.memory_space<vmem>>, vector<64x256xf32>,
    %c0_176 = arith.constant 0 : index
    %c1_177 = arith.constant 1 : index
    %c2_178 = arith.constant 2 : index
    %c0_179 = arith.constant 0 : index
    %122 = vector.load %arg6[%c0_176, %c1_177, %c2_178, %c0_179] : memref<2x6x10x256xbf16, #tpu.memory_space<vmem>>, vector<2x4x8x256xbf16>
    %123 = vector.shape_cast %122 : vector<2x4x8x256xbf16> to vector<64x256xbf16>
    %c5_180 = arith.constant 5 : index
    %c0_181 = arith.constant 0 : index
    %c0_182 = arith.constant 0 : index
    %124 = vector.load %arg3[%c5_180, %c0_181, %c0_182] : memref<9x256x256xbf16, #tpu.memory_space<vmem>>, vector<1x256x256xbf16>
    %125 = vector.shape_cast %124 : vector<1x256x256xbf16> to vector<256x256xbf16>
    %cst_183 = arith.constant dense<0.000000e+00> : vector<64x256xf32>
    %126 = tpu.matmul %123, %125, %cst_183 {dimension_numbers = #tpu.dot_dimension_numbers<[1], [0], [0], [1], [0, 0, 1, 1], [], []>} : vector<64x256xbf16>, vector<256x256xbf16>, vector<64x256xf32> -> vector<64x256xf32>
    %c0_184 = arith.constant 0 : index
    %c0_185 = arith.constant 0 : index
    %127 = vector.load %arg7[%c0_184, %c0_185] : memref<64x256xf32, #tpu.memory_space<vmem>>, vector<64x256xf32>
    %128 = arith.addf %127, %126 : vector<64x256xf32>
    %c0_186 = arith.constant 0 : index
    %c0_187 = arith.constant 0 : index
    %129 = vector.load %arg7[%c0_186, %c0_187] : memref<64x256xf32, #tpu.memory_space<vmem>>, vector<64x256xf32>
    tpu.vector_store %arg7[%c0_186, %c0_187], %128 {strides = array<i32>} : memref<64x256xf32, #tpu.memory_space<vmem>>, vector<64x256xf32>,
    %c0_188 = arith.constant 0 : index
    %c2_189 = arith.constant 2 : index
    %c0_190 = arith.constant 0 : index
    %c0_191 = arith.constant 0 : index
    %130 = vector.load %arg6[%c0_188, %c2_189, %c0_190, %c0_191] : memref<2x6x10x256xbf16, #tpu.memory_space<vmem>>, vector<2x4x8x256xbf16>
    %131 = vector.shape_cast %130 : vector<2x4x8x256xbf16> to vector<64x256xbf16>
    %c6_192 = arith.constant 6 : index
    %c0_193 = arith.constant 0 : index
    %c0_194 = arith.constant 0 : index
    %132 = vector.load %arg3[%c6_192, %c0_193, %c0_194] : memref<9x256x256xbf16, #tpu.memory_space<vmem>>, vector<1x256x256xbf16>
    %133 = vector.shape_cast %132 : vector<1x256x256xbf16> to vector<256x256xbf16>
    %cst_195 = arith.constant dense<0.000000e+00> : vector<64x256xf32>
    %134 = tpu.matmul %131, %133, %cst_195 {dimension_numbers = #tpu.dot_dimension_numbers<[1], [0], [0], [1], [0, 0, 1, 1], [], []>} : vector<64x256xbf16>, vector<256x256xbf16>, vector<64x256xf32> -> vector<64x256xf32>
    %c0_196 = arith.constant 0 : index
    %c0_197 = arith.constant 0 : index
    %135 = vector.load %arg7[%c0_196, %c0_197] : memref<64x256xf32, #tpu.memory_space<vmem>>, vector<64x256xf32>
    %136 = arith.addf %135, %134 : vector<64x256xf32>
    %c0_198 = arith.constant 0 : index
    %c0_199 = arith.constant 0 : index
    %137 = vector.load %arg7[%c0_198, %c0_199] : memref<64x256xf32, #tpu.memory_space<vmem>>, vector<64x256xf32>
    tpu.vector_store %arg7[%c0_198, %c0_199], %136 {strides = array<i32>} : memref<64x256xf32, #tpu.memory_space<vmem>>, vector<64x256xf32>,
    %c0_200 = arith.constant 0 : index
    %c2_201 = arith.constant 2 : index
    %c1_202 = arith.constant 1 : index
    %c0_203 = arith.constant 0 : index
    %138 = vector.load %arg6[%c0_200, %c2_201, %c1_202, %c0_203] : memref<2x6x10x256xbf16, #tpu.memory_space<vmem>>, vector<2x4x8x256xbf16>
    %139 = vector.shape_cast %138 : vector<2x4x8x256xbf16> to vector<64x256xbf16>
    %c7_204 = arith.constant 7 : index
    %c0_205 = arith.constant 0 : index
    %c0_206 = arith.constant 0 : index
    %140 = vector.load %arg3[%c7_204, %c0_205, %c0_206] : memref<9x256x256xbf16, #tpu.memory_space<vmem>>, vector<1x256x256xbf16>
    %141 = vector.shape_cast %140 : vector<1x256x256xbf16> to vector<256x256xbf16>
    %cst_207 = arith.constant dense<0.000000e+00> : vector<64x256xf32>
    %142 = tpu.matmul %139, %141, %cst_207 {dimension_numbers = #tpu.dot_dimension_numbers<[1], [0], [0], [1], [0, 0, 1, 1], [], []>} : vector<64x256xbf16>, vector<256x256xbf16>, vector<64x256xf32> -> vector<64x256xf32>
    %c0_208 = arith.constant 0 : index
    %c0_209 = arith.constant 0 : index
    %143 = vector.load %arg7[%c0_208, %c0_209] : memref<64x256xf32, #tpu.memory_space<vmem>>, vector<64x256xf32>
    %144 = arith.addf %143, %142 : vector<64x256xf32>
    %c0_210 = arith.constant 0 : index
    %c0_211 = arith.constant 0 : index
    %145 = vector.load %arg7[%c0_210, %c0_211] : memref<64x256xf32, #tpu.memory_space<vmem>>, vector<64x256xf32>
    tpu.vector_store %arg7[%c0_210, %c0_211], %144 {strides = array<i32>} : memref<64x256xf32, #tpu.memory_space<vmem>>, vector<64x256xf32>,
    %c0_212 = arith.constant 0 : index
    %c2_213 = arith.constant 2 : index
    %c2_214 = arith.constant 2 : index
    %c0_215 = arith.constant 0 : index
    %146 = vector.load %arg6[%c0_212, %c2_213, %c2_214, %c0_215] : memref<2x6x10x256xbf16, #tpu.memory_space<vmem>>, vector<2x4x8x256xbf16>
    %147 = vector.shape_cast %146 : vector<2x4x8x256xbf16> to vector<64x256xbf16>
    %c8_216 = arith.constant 8 : index
    %c0_217 = arith.constant 0 : index
    %c0_218 = arith.constant 0 : index
    %148 = vector.load %arg3[%c8_216, %c0_217, %c0_218] : memref<9x256x256xbf16, #tpu.memory_space<vmem>>, vector<1x256x256xbf16>
    %149 = vector.shape_cast %148 : vector<1x256x256xbf16> to vector<256x256xbf16>
    %cst_219 = arith.constant dense<0.000000e+00> : vector<64x256xf32>
    %150 = tpu.matmul %147, %149, %cst_219 {dimension_numbers = #tpu.dot_dimension_numbers<[1], [0], [0], [1], [0, 0, 1, 1], [], []>} : vector<64x256xbf16>, vector<256x256xbf16>, vector<64x256xf32> -> vector<64x256xf32>
    %c0_220 = arith.constant 0 : index
    %c0_221 = arith.constant 0 : index
    %151 = vector.load %arg7[%c0_220, %c0_221] : memref<64x256xf32, #tpu.memory_space<vmem>>, vector<64x256xf32>
    %152 = arith.addf %151, %150 : vector<64x256xf32>
    %c0_222 = arith.constant 0 : index
    %c0_223 = arith.constant 0 : index
    %153 = vector.load %arg7[%c0_222, %c0_223] : memref<64x256xf32, #tpu.memory_space<vmem>>, vector<64x256xf32>
    tpu.vector_store %arg7[%c0_222, %c0_223], %152 {strides = array<i32>} : memref<64x256xf32, #tpu.memory_space<vmem>>, vector<64x256xf32>,
    %c0_224 = arith.constant 0 : index
    %c0_225 = arith.constant 0 : index
    %154 = vector.load %arg7[%c0_224, %c0_225] : memref<64x256xf32, #tpu.memory_space<vmem>>, vector<64x256xf32>
    %c0_226 = arith.constant 0 : index
    %c0_227 = arith.constant 0 : index
    %155 = vector.load %arg4[%c0_226, %c0_227] : memref<1x256xf32, #tpu.memory_space<vmem>>, vector<1x256xf32>
    %156 = vector.broadcast %155 : vector<1x256xf32> to vector<64x256xf32>
    %157 = arith.addf %154, %156 : vector<64x256xf32>
    %c0_228 = arith.constant 0 : index
    %c0_229 = arith.constant 0 : index
    %c0_230 = arith.constant 0 : index
    %c0_231 = arith.constant 0 : index
    %158 = vector.load %arg0[%c0_228, %c0_229, %c0_230, %c0_231] : memref<2x4x8x256xf32, #tpu.memory_space<vmem>>, vector<2x4x8x256xf32>
    %159 = vector.shape_cast %158 : vector<2x4x8x256xf32> to vector<64x256xf32>
    %160 = arith.addf %157, %159 : vector<64x256xf32>
    %cst_232 = arith.constant 0.000000e+00 : f32
    %161 = vector.broadcast %cst_232 : f32 to vector<64x256xf32>
    %162 = arith.maximumf %160, %161 : vector<64x256xf32>
    %163 = vector.shape_cast %162 : vector<64x256xf32> to vector<2x4x8x256xf32>
    %c0_233 = arith.constant 0 : index
    %c0_234 = arith.constant 0 : index
    %c0_235 = arith.constant 0 : index
    %c0_236 = arith.constant 0 : index
    %164 = vector.load %arg5[%c0_233, %c0_234, %c0_235, %c0_236] : memref<2x4x8x256xf32, #tpu.memory_space<vmem>>, vector<2x4x8x256xf32>
    tpu.vector_store %arg5[%c0_233, %c0_234, %c0_235, %c0_236], %163 {strides = array<i32>} : memref<2x4x8x256xf32, #tpu.memory_space<vmem>>, vector<2x4x8x256xf32>,
    return
  }
}

</mosaic_0001>

<llo_original>
// kernel: tpu_custom_call.1
$region0: #{tpu_custom_call.1}
  #allocation0 [shape = 'u32[]', space=smem, size = 0x4, offset = 0x4, fixed_abs, tag = 'smem constant byte address 0x4 - core index']
  #allocation1 [shape = 'u32[144,128]{1,0:T(1,128)}', space=vmem, size = 0x12000, scoped, tag = 'internal scratch']
  #allocation2 [shape = 'bf16[2,6,10,256]{3,2,1,0:T(8,128)(2,1)}', space=vmem, size = 0x18000, scoped, tag = 'scratch operand']
  #allocation3 [shape = 'f32[64,256]{1,0:T(8,128)}', space=vmem, size = 0x10000, scoped, tag = 'scratch operand']
  %s0 = inlined_call_operand.hbm [shape: f32[2,4,8,256], index: 0, kind: input, shape index: {}]
  %s1 = inlined_call_operand.hbm [shape: bf16[9,256,256], index: 1, kind: input, shape index: {}]
  %s2 = inlined_call_operand.hbm [shape: f32[1,256], index: 2, kind: input, shape index: {}]
  %s3 = inlined_call_operand.hbm [shape: bf16[9,256,256], index: 3, kind: input, shape index: {}]
  %s4 = inlined_call_operand.hbm [shape: f32[1,256], index: 4, kind: input, shape index: {}]
  %s5 = inlined_call_operand.hbm [shape: f32[2,4,8,256], index: 5, kind: output, shape index: {}]
  %s6 = sld [smem:[#allocation0]]
  $region50: #{tpu_custom_call.1} parent=0
    _
  %s8 = ssub.s32 1, %s6
  %s9 = scalar_select 0, %s8, %s6
  $region1: #{tpu_custom_call.1} parent=0
    #allocation4 [shape = 'u8[65536]{0}', space=vmem, size = 0x10000, scoped, tag = 'input window, operand 0, single buffered']
    #allocation5 [shape = 's32[1]{0}', space=sflag, size = 0x4, scoped, tag = 'scoped memory for tpu_custom_call.1']
    #allocation6 [shape = 's32[1]{0}', space=sflag, size = 0x4, scoped, tag = 'scoped memory for tpu_custom_call.1']
    #allocation7 [shape = 'u8[1179648]{0}', space=vmem, size = 0x120000, scoped, tag = 'input window, operand 1, single buffered']
    #allocation8 [shape = 's32[1]{0}', space=sflag, size = 0x4, scoped, tag = 'scoped memory for tpu_custom_call.1']
    #allocation9 [shape = 'u8[1024]{0}', space=vmem, size = 0x400, scoped, tag = 'input window, operand 2, single buffered']
    #allocation10 [shape = 'u8[1179648]{0}', space=vmem, size = 0x120000, scoped, tag = 'input window, operand 3, single buffered']
    #allocation11 [shape = 's32[1]{0}', space=sflag, size = 0x4, scoped, tag = 'scoped memory for tpu_custom_call.1']
    #allocation12 [shape = 'u8[1024]{0}', space=vmem, size = 0x400, scoped, tag = 'input window, operand 4, single buffered']
    #allocation13 [shape = 'u8[65536]{0}', space=vmem, size = 0x10000, scoped, tag = 'output window, operand 0, single buffered']
    %10 = vsyncpa [#allocation5], 0
    %11 = vsyncpa [#allocation8], 0
    %12 = vsyncpa [#allocation11], 0
    %13 = vsyncpa [#allocation6], 0
    // Predicated region
    $region2: #{tpu_custom_call.1} parent=1 // pred_check
      _
    $region3: #{tpu_custom_call.1} parent=1 // pred_check_branch
      %15 = sbr.rel (0) target = $region5
    $region4: #{tpu_custom_call.1} parent=1 // pred_region
      %s17 = ssub.s32 2048, 2048
      %18 = vsyncadd [#allocation5], %s17
      %s19 = sshll.u32 [#allocation4], 4
      %s20 = int_to_ptr.vmem [resolvable:$true] %s19
      %25 = dma.hbm_to_vmem [thread:$0]  %s0, 2048, %s20, [#allocation5], 256, 256, 16
    $region5: #{tpu_custom_call.1} parent=1 // pred_fallthru
      _
    // Predicated region
    $region6: #{tpu_custom_call.1} parent=1 // pred_check
      _
    $region7: #{tpu_custom_call.1} parent=1 // pred_check_branch
      %27 = sbr.rel (0) target = $region9
    $region8: #{tpu_custom_call.1} parent=1 // pred_region
      %s29 = ssub.s32 36864, 36864
      %30 = vsyncadd [#allocation8], %s29
      %s31 = sshll.u32 [#allocation7], 4
      %s32 = int_to_ptr.vmem [resolvable:$true] %s31
      %37 = dma.hbm_to_vmem [thread:$0]  %s1, 36864, %s32, [#allocation8], 128, 128, 8
    $region9: #{tpu_custom_call.1} parent=1 // pred_fallthru
      _
    // Predicated region
    $region10: #{tpu_custom_call.1} parent=1 // pred_check
      _
    $region11: #{tpu_custom_call.1} parent=1 // pred_check_branch
      %39 = sbr.rel (0) target = $region13
    $region12: #{tpu_custom_call.1} parent=1 // pred_region
      %s41 = ssub.s32 32, 32
      %42 = vsyncadd [#allocation8], %s41
      %s44 = sshll.u32 [#allocation9], 4
      %s45 = int_to_ptr.vmem [resolvable:$true] %s44
      %47 = dma.hbm_to_vmem [thread:$0]  %s2, 32, %s45, [#allocation8]
    $region13: #{tpu_custom_call.1} parent=1 // pred_fallthru
      _
    // Predicated region
    $region14: #{tpu_custom_call.1} parent=1 // pred_check
      _
    $region15: #{tpu_custom_call.1} parent=1 // pred_check_branch
      %49 = sbr.rel (0) target = $region17
    $region16: #{tpu_custom_call.1} parent=1 // pred_region
      %s51 = ssub.s32 36864, 36864
      %52 = vsyncadd [#allocation11], %s51
      %s53 = sshll.u32 [#allocation10], 4
      %s54 = int_to_ptr.vmem [resolvable:$true] %s53
      %59 = dma.hbm_to_vmem [thread:$0]  %s3, 36864, %s54, [#allocation11], 128, 128, 8
    $region17: #{tpu_custom_call.1} parent=1 // pred_fallthru
      _
    // Predicated region
    $region18: #{tpu_custom_call.1} parent=1 // pred_check
      _
    $region19: #{tpu_custom_call.1} parent=1 // pred_check_branch
      %61 = sbr.rel (0) target = $region21
    $region20: #{tpu_custom_call.1} parent=1 // pred_region
      %s63 = ssub.s32 32, 32
      %64 = vsyncadd [#allocation11], %s63
      %s66 = sshll.u32 [#allocation12], 4
      %s67 = int_to_ptr.vmem [resolvable:$true] %s66
      %69 = dma.hbm_to_vmem [thread:$0]  %s4, 32, %s67, [#allocation11]
    $region21: #{tpu_custom_call.1} parent=1 // pred_fallthru
      _
    // Predicated region
    $region22: #{tpu_custom_call.1} parent=1 // pred_check
      _
    $region23: #{tpu_custom_call.1} parent=1 // pred_check_branch
      %71 = sbr.rel (0) target = $region25
    $region24: #{tpu_custom_call.1} parent=1 // pred_region
      %72 = dma.done [#allocation5], 2048
    $region25: #{tpu_custom_call.1} parent=1 // pred_fallthru
      _
    // Predicated region
    $region26: #{tpu_custom_call.1} parent=1 // pred_check
      _
    $region27: #{tpu_custom_call.1} parent=1 // pred_check_branch
      %74 = sbr.rel (0) target = $region29
    $region28: #{tpu_custom_call.1} parent=1 // pred_region
      %75 = dma.done [#allocation8], 36864
    $region29: #{tpu_custom_call.1} parent=1 // pred_fallthru
      _
    // Predicated region
    $region30: #{tpu_custom_call.1} parent=1 // pred_check
      _
    $region31: #{tpu_custom_call.1} parent=1 // pred_check_branch
      %77 = sbr.rel (0) target = $region33
    $region32: #{tpu_custom_call.1} parent=1 // pred_region
      %78 = dma.done [#allocation8], 32
    $region33: #{tpu_custom_call.1} parent=1 // pred_fallthru
      _
    // Predicated region
    $region34: #{tpu_custom_call.1} parent=1 // pred_check
      _
    $region35: #{tpu_custom_call.1} parent=1 // pred_check_branch
      %80 = sbr.rel (0) target = $region37
    $region36: #{tpu_custom_call.1} parent=1 // pred_region
      %81 = dma.done [#allocation11], 36864
    $region37: #{tpu_custom_call.1} parent=1 // pred_fallthru
      _
    // Predicated region
    $region38: #{tpu_custom_call.1} parent=1 // pred_check
      _
    $region39: #{tpu_custom_call.1} parent=1 // pred_check_branch
      %83 = sbr.rel (0) target = $region41
    $region40: #{tpu_custom_call.1} parent=1 // pred_region
      %84 = dma.done [#allocation11], 32
    $region41: #{tpu_custom_call.1} parent=1 // pred_fallthru
      _
    %86 = vst [vmem:[#allocation2] sm:$0xff] 0
    %87 = vst [vmem:[#allocation2 + $0x8] sm:$0x11] 0
    %88 = vst [vmem:[#allocation2 + $0x10] sm:$0xff] 0
    %89 = vst [vmem:[#allocation2 + $0x18] sm:$0x11] 0
    %90 = vst [vmem:[#allocation2 + $0x20] sm:$0xff] 0
    %91 = vst [vmem:[#allocation2 + $0x28] sm:$0x11] 0
    %92 = vst [vmem:[#allocation2 + $0x30] sm:$0xff] 0
    %93 = vst [vmem:[#allocation2 + $0x38] sm:$0x11] 0
    %94 = vst [vmem:[#allocation2 + $0x40] sm:$0xff] 0
    %95 = vst [vmem:[#allocation2 + $0x48] sm:$0x11] 0
    %96 = vst [vmem:[#allocation2 + $0x50] sm:$0xff] 0
    %97 = vst [vmem:[#allocation2 + $0x58] sm:$0x11] 0
    %98 = vst [vmem:[#allocation2 + $0x60] sm:$0xff] 0
    %99 = vst [vmem:[#allocation2 + $0x68] sm:$0x11] 0
    %100 = vst [vmem:[#allocation2 + $0x70] sm:$0xff] 0
    %101 = vst [vmem:[#allocation2 + $0x78] sm:$0x11] 0
    %102 = vst [vmem:[#allocation2 + $0x80] sm:$0xff] 0
    %103 = vst [vmem:[#allocation2 + $0x88] sm:$0x11] 0
    %104 = vst [vmem:[#allocation2 + $0x90] sm:$0xff] 0
    %105 = vst [vmem:[#allocation2 + $0x98] sm:$0x11] 0
    %106 = vst [vmem:[#allocation2 + $0xa0] sm:$0xff] 0
    %107 = vst [vmem:[#allocation2 + $0xa8] sm:$0x11] 0
    %108 = vst [vmem:[#allocation2 + $0xb0] sm:$0xff] 0
    %109 = vst [vmem:[#allocation2 + $0xb8] sm:$0x11] 0
    %v110 = vld [vmem:[#allocation4] sm:$0xff]
    %v111 = vld [vmem:[#allocation4 + $0x8] sm:$0xff]
    %v112 = vld [vmem:[#allocation4 + $0x10] sm:$0xff]
    %v113 = vld [vmem:[#allocation4 + $0x18] sm:$0xff]
    %v114 = vld [vmem:[#allocation4 + $0x20] sm:$0xff]
    %v115 = vld [vmem:[#allocation4 + $0x28] sm:$0xff]
    %v116 = vld [vmem:[#allocation4 + $0x30] sm:$0xff]
    %v117 = vld [vmem:[#allocation4 + $0x38] sm:$0xff]
    %v118 = vld [vmem:[#allocation4 + $0x40] sm:$0xff]
    %v119 = vld [vmem:[#allocation4 + $0x48] sm:$0xff]
    %v120 = vld [vmem:[#allocation4 + $0x50] sm:$0xff]
    %v121 = vld [vmem:[#allocation4 + $0x58] sm:$0xff]
    %v122 = vld [vmem:[#allocation4 + $0x60] sm:$0xff]
    %v123 = vld [vmem:[#allocation4 + $0x68] sm:$0xff]
    %v124 = vld [vmem:[#allocation4 + $0x70] sm:$0xff]
    %v125 = vld [vmem:[#allocation4 + $0x78] sm:$0xff]
    %v126 = vpack.c.bf16 %v110, %v110
    %v127 = vpack.c.bf16 %v111, %v111
    %v128 = vpack.c.bf16 %v112, %v112
    %v129 = vpack.c.bf16 %v113, %v113
    %v130 = vpack.c.bf16 %v114, %v114
    %v131 = vpack.c.bf16 %v115, %v115
    %v132 = vpack.c.bf16 %v116, %v116
    %v133 = vpack.c.bf16 %v117, %v117
    %v134 = vpack.c.bf16 %v118, %v118
    %v135 = vpack.c.bf16 %v119, %v119
    %v136 = vpack.c.bf16 %v120, %v120
    %v137 = vpack.c.bf16 %v121, %v121
    %v138 = vpack.c.bf16 %v122, %v122
    %v139 = vpack.c.bf16 %v123, %v123
    %v140 = vpack.c.bf16 %v124, %v124
    %v141 = vpack.c.bf16 %v125, %v125
    %v158 = vunpack.c.l.b16 %v126
    %v159 = vunpack.c.l.b16 %v127
    %v160 = vunpack.c.l.b16 %v128
    %v161 = vunpack.c.l.b16 %v129
    %v162 = vunpack.c.l.b16 %v130
    %v163 = vunpack.c.l.b16 %v131
    %v164 = vunpack.c.l.b16 %v132
    %v165 = vunpack.c.l.b16 %v133
    %v166 = vunpack.c.l.b16 %v134
    %v167 = vunpack.c.l.b16 %v135
    %v168 = vunpack.c.l.b16 %v136
    %v169 = vunpack.c.l.b16 %v137
    %v170 = vunpack.c.l.b16 %v138
    %v171 = vunpack.c.l.b16 %v139
    %v172 = vunpack.c.l.b16 %v140
    %v173 = vunpack.c.l.b16 %v141
    %v174 = vpack.c.b16 %v159, %v158
    %v175 = vpack.c.b16 %v161, %v160
    %v176 = vpack.c.b16 %v163, %v162
    %v177 = vpack.c.b16 %v165, %v164
    %v178 = vpack.c.b16 %v167, %v166
    %v179 = vpack.c.b16 %v169, %v168
    %v180 = vpack.c.b16 %v171, %v170
    %v181 = vpack.c.b16 %v173, %v172
    %v183 = vshrl.u32 %v174, 16
    %v185 = vrot.slane %v183, 7
    %v186 = vshll.u32 %v174, 16
    %v188 = vor.u32 %v185, %v186
    %v189 = vrot.slane %v185, 4
    %v191 = vshrl.u32 %v175, 16
    %v193 = vrot.slane %v191, 7
    %v194 = vshll.u32 %v175, 16
    %v196 = vor.u32 %v193, %v194
    %v197 = vrot.slane %v193, 4
    %v199 = vshrl.u32 %v176, 16
    %v201 = vrot.slane %v199, 7
    %v202 = vshll.u32 %v176, 16
    %v204 = vor.u32 %v201, %v202
    %v205 = vrot.slane %v201, 4
    %v207 = vshrl.u32 %v177, 16
    %v209 = vrot.slane %v207, 7
    %v210 = vshll.u32 %v177, 16
    %v212 = vor.u32 %v209, %v210
    %v213 = vrot.slane %v209, 4
    %v215 = vshrl.u32 %v178, 16
    %v217 = vrot.slane %v215, 7
    %v218 = vshll.u32 %v178, 16
    %v220 = vor.u32 %v217, %v218
    %v221 = vrot.slane %v217, 4
    %v223 = vshrl.u32 %v179, 16
    %v225 = vrot.slane %v223, 7
    %v226 = vshll.u32 %v179, 16
    %v228 = vor.u32 %v225, %v226
    %v229 = vrot.slane %v225, 4
    %v231 = vshrl.u32 %v180, 16
    %v233 = vrot.slane %v231, 7
    %v234 = vshll.u32 %v180, 16
    %v236 = vor.u32 %v233, %v234
    %v237 = vrot.slane %v233, 4
    %v239 = vshrl.u32 %v181, 16
    %v241 = vrot.slane %v239, 7
    %v242 = vshll.u32 %v181, 16
    %v244 = vor.u32 %v241, %v242
    %v245 = vrot.slane %v241, 4
    %s262 = scalar_lea.vmem [#allocation2], 16
    %vm263 = vcmask 1043456
    %vm264 = vsmask.f32 7938
    %vm265 = vmand %vm263, %vm264
    %vm266 = vcmask 1047556
    %vm267 = vsmask.f32 7954
    %vm268 = vmand %vm266, %vm267
    %vm269 = vmor %vm268, %vm265
    %v270 = vld [vmem:[%s262] sm:$0xff]
    %v271 = vsel %vm269, %v188, %v270
    %272 = vst [vmem:[%s262] sm:$0xff] %v271
    %vm273 = vcmask 1040384
    %vm274 = vsmask.f32 256
    %vm275 = vmand %vm273, %vm274
    %vm276 = vcmask 1044484
    %vm277 = vsmask.f32 4352
    %vm278 = vmand %vm276, %vm277
    %vm279 = vmor %vm278, %vm275
    %v280 = vld [vmem:[%s262 + $0x8] sm:$0x11]
    %v281 = vsel %vm279, %v189, %v280
    %282 = vst [vmem:[%s262 + $0x8] sm:$0x11] %v281
    %v283 = vld [vmem:[%s262 + $0x10] sm:$0xff]
    %v284 = vsel %vm269, %v196, %v283
    %285 = vst [vmem:[%s262 + $0x10] sm:$0xff] %v284
    %v286 = vld [vmem:[%s262 + $0x18] sm:$0x11]
    %v287 = vsel %vm279, %v197, %v286
    %288 = vst [vmem:[%s262 + $0x18] sm:$0x11] %v287
    %v289 = vld [vmem:[%s262 + $0x20] sm:$0xff]
    %v290 = vsel %vm269, %v204, %v289
    %291 = vst [vmem:[%s262 + $0x20] sm:$0xff] %v290
    %v292 = vld [vmem:[%s262 + $0x28] sm:$0x11]
    %v293 = vsel %vm279, %v205, %v292
    %294 = vst [vmem:[%s262 + $0x28] sm:$0x11] %v293
    %v295 = vld [vmem:[%s262 + $0x30] sm:$0xff]
    %v296 = vsel %vm269, %v212, %v295
    %297 = vst [vmem:[%s262 + $0x30] sm:$0xff] %v296
    %v298 = vld [vmem:[%s262 + $0x38] sm:$0x11]
    %v299 = vsel %vm279, %v213, %v298
    %300 = vst [vmem:[%s262 + $0x38] sm:$0x11] %v299
    %v301 = vld [vmem:[%s262 + $0x60] sm:$0xff]
    %v302 = vsel %vm269, %v220, %v301
    %303 = vst [vmem:[%s262 + $0x60] sm:$0xff] %v302
    %v304 = vld [vmem:[%s262 + $0x68] sm:$0x11]
    %v305 = vsel %vm279, %v221, %v304
    %306 = vst [vmem:[%s262 + $0x68] sm:$0x11] %v305
    %v307 = vld [vmem:[%s262 + $0x70] sm:$0xff]
    %v308 = vsel %vm269, %v228, %v307
    %309 = vst [vmem:[%s262 + $0x70] sm:$0xff] %v308
    %v310 = vld [vmem:[%s262 + $0x78] sm:$0x11]
    %v311 = vsel %vm279, %v229, %v310
    %312 = vst [vmem:[%s262 + $0x78] sm:$0x11] %v311
    %v313 = vld [vmem:[%s262 + $0x80] sm:$0xff]
    %v314 = vsel %vm269, %v236, %v313
    %315 = vst [vmem:[%s262 + $0x80] sm:$0xff] %v314
    %v316 = vld [vmem:[%s262 + $0x88] sm:$0x11]
    %v317 = vsel %vm279, %v237, %v316
    %318 = vst [vmem:[%s262 + $0x88] sm:$0x11] %v317
    %v319 = vld [vmem:[%s262 + $0x90] sm:$0xff]
    %v320 = vsel %vm269, %v244, %v319
    %321 = vst [vmem:[%s262 + $0x90] sm:$0xff] %v320
    %v322 = vld [vmem:[%s262 + $0x98] sm:$0x11]
    %v323 = vsel %vm279, %v245, %v322
    %324 = vst [vmem:[%s262 + $0x98] sm:$0x11] %v323
    %v325 = vld [vmem:[#allocation2] sm:$0xff]
    %v326 = vld [vmem:[#allocation2 + $0x10] sm:$0xff]
    %v327 = vld [vmem:[#allocation2 + $0x20] sm:$0xff]
    %v328 = vld [vmem:[#allocation2 + $0x30] sm:$0xff]
    %v329 = vld [vmem:[#allocation2 + $0x60] sm:$0xff]
    %v330 = vld [vmem:[#allocation2 + $0x70] sm:$0xff]
    %v331 = vld [vmem:[#allocation2 + $0x80] sm:$0xff]
    %v332 = vld [vmem:[#allocation2 + $0x90] sm:$0xff]
    %v333 = vld [vmem:[#allocation7] sm:$0xff]
    %v334 = vld [vmem:[#allocation7 + $0x8] sm:$0xff]
    %v335 = vld [vmem:[#allocation7 + $0x10] sm:$0xff]
    %v336 = vld [vmem:[#allocation7 + $0x18] sm:$0xff]
    %v337 = vld [vmem:[#allocation7 + $0x20] sm:$0xff]
    %v338 = vld [vmem:[#allocation7 + $0x28] sm:$0xff]
    %v339 = vld [vmem:[#allocation7 + $0x30] sm:$0xff]
    %v340 = vld [vmem:[#allocation7 + $0x38] sm:$0xff]
    %v341 = vld [vmem:[#allocation7 + $0x40] sm:$0xff]
    %v342 = vld [vmem:[#allocation7 + $0x48] sm:$0xff]
    %v343 = vld [vmem:[#allocation7 + $0x50] sm:$0xff]
    %v344 = vld [vmem:[#allocation7 + $0x58] sm:$0xff]
    %v345 = vld [vmem:[#allocation7 + $0x60] sm:$0xff]
    %v346 = vld [vmem:[#allocation7 + $0x68] sm:$0xff]
    %v347 = vld [vmem:[#allocation7 + $0x70] sm:$0xff]
    %v348 = vld [vmem:[#allocation7 + $0x78] sm:$0xff]
    %v349 = vld [vmem:[#allocation7 + $0x80] sm:$0xff]
    %v350 = vld [vmem:[#allocation7 + $0x88] sm:$0xff]
    %v351 = vld [vmem:[#allocation7 + $0x90] sm:$0xff]
    %v352 = vld [vmem:[#allocation7 + $0x98] sm:$0xff]
    %v353 = vld [vmem:[#allocation7 + $0xa0] sm:$0xff]
    %v354 = vld [vmem:[#allocation7 + $0xa8] sm:$0xff]
    %v355 = vld [vmem:[#allocation7 + $0xb0] sm:$0xff]
    %v356 = vld [vmem:[#allocation7 + $0xb8] sm:$0xff]
    %v357 = vld [vmem:[#allocation7 + $0xc0] sm:$0xff]
    %v358 = vld [vmem:[#allocation7 + $0xc8] sm:$0xff]
    %v359 = vld [vmem:[#allocation7 + $0xd0] sm:$0xff]
    %v360 = vld [vmem:[#allocation7 + $0xd8] sm:$0xff]
    %v361 = vld [vmem:[#allocation7 + $0xe0] sm:$0xff]
    %v362 = vld [vmem:[#allocation7 + $0xe8] sm:$0xff]
    %v363 = vld [vmem:[#allocation7 + $0xf0] sm:$0xff]
    %v364 = vld [vmem:[#allocation7 + $0xf8] sm:$0xff]
    %v373 = vunpack.c.l.b16 %v325
    %v374 = vunpack.c.h.b16 %v325
    %v375 = vunpack.c.l.b16 %v326
    %v376 = vunpack.c.h.b16 %v326
    %v377 = vunpack.c.l.b16 %v327
    %v378 = vunpack.c.h.b16 %v327
    %v379 = vunpack.c.l.b16 %v328
    %v380 = vunpack.c.h.b16 %v328
    %v381 = vunpack.c.l.b16 %v329
    %v382 = vunpack.c.h.b16 %v329
    %v383 = vunpack.c.l.b16 %v330
    %v384 = vunpack.c.h.b16 %v330
    %v385 = vunpack.c.l.b16 %v331
    %v386 = vunpack.c.h.b16 %v331
    %v387 = vunpack.c.l.b16 %v332
    %v388 = vunpack.c.h.b16 %v332
    %v389 = vpack.c.b16 %v375, %v373
    %v390 = vpack.c.b16 %v376, %v374
    %v391 = vpack.c.b16 %v379, %v377
    %v392 = vpack.c.b16 %v380, %v378
    %v393 = vpack.c.b16 %v383, %v381
    %v394 = vpack.c.b16 %v384, %v382
    %v395 = vpack.c.b16 %v387, %v385
    %v396 = vpack.c.b16 %v388, %v386
    %v437 = vunpack.c.l.b16 %v333
    %v438 = vunpack.c.h.b16 %v333
    %v439 = vunpack.c.l.b16 %v334
    %v440 = vunpack.c.h.b16 %v334
    %v441 = vunpack.c.l.b16 %v335
    %v442 = vunpack.c.h.b16 %v335
    %v443 = vunpack.c.l.b16 %v336
    %v444 = vunpack.c.h.b16 %v336
    %v445 = vunpack.c.l.b16 %v337
    %v446 = vunpack.c.h.b16 %v337
    %v447 = vunpack.c.l.b16 %v338
    %v448 = vunpack.c.h.b16 %v338
    %v449 = vunpack.c.l.b16 %v339
    %v450 = vunpack.c.h.b16 %v339
    %v451 = vunpack.c.l.b16 %v340
    %v452 = vunpack.c.h.b16 %v340
    %v453 = vunpack.c.l.b16 %v341
    %v454 = vunpack.c.h.b16 %v341
    %v455 = vunpack.c.l.b16 %v342
    %v456 = vunpack.c.h.b16 %v342
    %v457 = vunpack.c.l.b16 %v343
    %v458 = vunpack.c.h.b16 %v343
    %v459 = vunpack.c.l.b16 %v344
    %v460 = vunpack.c.h.b16 %v344
    %v461 = vunpack.c.l.b16 %v345
    %v462 = vunpack.c.h.b16 %v345
    %v463 = vunpack.c.l.b16 %v346
    %v464 = vunpack.c.h.b16 %v346
    %v465 = vunpack.c.l.b16 %v347
    %v466 = vunpack.c.h.b16 %v347
    %v467 = vunpack.c.l.b16 %v348
    %v468 = vunpack.c.h.b16 %v348
    %v469 = vunpack.c.l.b16 %v349
    %v470 = vunpack.c.h.b16 %v349
    %v471 = vunpack.c.l.b16 %v350
    %v472 = vunpack.c.h.b16 %v350
    %v473 = vunpack.c.l.b16 %v351
    %v474 = vunpack.c.h.b16 %v351
    %v475 = vunpack.c.l.b16 %v352
    %v476 = vunpack.c.h.b16 %v352
    %v477 = vunpack.c.l.b16 %v353
    %v478 = vunpack.c.h.b16 %v353
    %v479 = vunpack.c.l.b16 %v354
    %v480 = vunpack.c.h.b16 %v354
    %v481 = vunpack.c.l.b16 %v355
    %v482 = vunpack.c.h.b16 %v355
    %v483 = vunpack.c.l.b16 %v356
    %v484 = vunpack.c.h.b16 %v356
    %v485 = vunpack.c.l.b16 %v357
    %v486 = vunpack.c.h.b16 %v357
    %v487 = vunpack.c.l.b16 %v358
    %v488 = vunpack.c.h.b16 %v358
    %v489 = vunpack.c.l.b16 %v359
    %v490 = vunpack.c.h.b16 %v359
    %v491 = vunpack.c.l.b16 %v360
    %v492 = vunpack.c.h.b16 %v360
    %v493 = vunpack.c.l.b16 %v361
    %v494 = vunpack.c.h.b16 %v361
    %v495 = vunpack.c.l.b16 %v362
    %v496 = vunpack.c.h.b16 %v362
    %v497 = vunpack.c.l.b16 %v363
    %v498 = vunpack.c.h.b16 %v363
    %v499 = vunpack.c.l.b16 %v364
    %v500 = vunpack.c.h.b16 %v364
    %v501 = vpack.c.b16 %v439, %v437
    %v502 = vpack.c.b16 %v440, %v438
    %v503 = vpack.c.b16 %v443, %v441
    %v504 = vpack.c.b16 %v444, %v442
    %v505 = vpack.c.b16 %v447, %v445
    %v506 = vpack.c.b16 %v448, %v446
    %v507 = vpack.c.b16 %v451, %v449
    %v508 = vpack.c.b16 %v452, %v450
    %v509 = vpack.c.b16 %v455, %v453
    %v510 = vpack.c.b16 %v456, %v454
    %v511 = vpack.c.b16 %v459, %v457
    %v512 = vpack.c.b16 %v460, %v458
    %v513 = vpack.c.b16 %v463, %v461
    %v514 = vpack.c.b16 %v464, %v462
    %v515 = vpack.c.b16 %v467, %v465
    %v516 = vpack.c.b16 %v468, %v466
    %v517 = vpack.c.b16 %v471, %v469
    %v518 = vpack.c.b16 %v472, %v470
    %v519 = vpack.c.b16 %v475, %v473
    %v520 = vpack.c.b16 %v476, %v474
    %v521 = vpack.c.b16 %v479, %v477
    %v522 = vpack.c.b16 %v480, %v478
    %v523 = vpack.c.b16 %v483, %v481
    %v524 = vpack.c.b16 %v484, %v482
    %v525 = vpack.c.b16 %v487, %v485
    %v526 = vpack.c.b16 %v488, %v486
    %v527 = vpack.c.b16 %v491, %v489
    %v528 = vpack.c.b16 %v492, %v490
    %v529 = vpack.c.b16 %v495, %v493
    %v530 = vpack.c.b16 %v496, %v494
    %v531 = vpack.c.b16 %v499, %v497
    %v532 = vpack.c.b16 %v500, %v498
    %565 = vmatprep.subr.bf16.mxu0 %v502
    %566 = vmatpush1.bf16.msra.mxu0 %v501
    %567 = vmatprep.subr.bf16.mxu0 %v504
    %568 = vmatpush1.bf16.msra.mxu0 %v503
    %569 = vmatprep.subr.bf16.mxu0 %v506
    %570 = vmatpush1.bf16.msra.mxu0 %v505
    %571 = vmatprep.subr.bf16.mxu0 %v508
    %572 = vmatpush1.bf16.msra.mxu0 %v507
    %573 = vmatprep.subr.bf16.mxu0 %v510
    %574 = vmatpush1.bf16.msra.mxu0 %v509
    %575 = vmatprep.subr.bf16.mxu0 %v512
    %576 = vmatpush1.bf16.msra.mxu0 %v511
    %577 = vmatprep.subr.bf16.mxu0 %v514
    %578 = vmatpush1.bf16.msra.mxu0 %v513
    %579 = vmatprep.subr.bf16.mxu0 %v516
    %580 = vmatpush1.bf16.msra.mxu0 %v515
    %581 = vmatprep.subr.bf16.mxu0 %v518
    %582 = vmatpush1.bf16.msra.mxu0 %v517
    %583 = vmatprep.subr.bf16.mxu0 %v520
    %584 = vmatpush1.bf16.msra.mxu0 %v519
    %585 = vmatprep.subr.bf16.mxu0 %v522
    %586 = vmatpush1.bf16.msra.mxu0 %v521
    %587 = vmatprep.subr.bf16.mxu0 %v524
    %588 = vmatpush1.bf16.msra.mxu0 %v523
    %589 = vmatprep.subr.bf16.mxu0 %v526
    %590 = vmatpush1.bf16.msra.mxu0 %v525
    %591 = vmatprep.subr.bf16.mxu0 %v528
    %592 = vmatpush1.bf16.msra.mxu0 %v527
    %593 = vmatprep.subr.bf16.mxu0 %v530
    %594 = vmatpush1.bf16.msra.mxu0 %v529
    %595 = vmatprep.subr.bf16.mxu0 %v532
    %596 = vmatpush1.bf16.msra.mxu0 %v531
    %597 = vmatprep.mubr.bf16.mxu0 %v390
    %598 = vmatmul.mubr.bf16.gmra.mrb[0].mxu0 %v389
    %v599 = vpop.f32.mrb[0].mxu0
    %v600 = vadd.f32 0.0, %v599
    %v601 = vpop.f32.mrb[0].mxu0
    %v602 = vadd.f32 0.0, %v601
    %v603 = vpop.f32.mrb[0].mxu0
    %v604 = vadd.f32 0.0, %v603
    %v605 = vpop.f32.mrb[0].mxu0
    %v606 = vadd.f32 0.0, %v605
    %607 = vmatprep.mubr.bf16.mxu0 %v392
    %608 = vmatmul.mubr.bf16.gmra.mrb[0].mxu0 %v391
    %v609 = vpop.f32.mrb[0].mxu0
    %v610 = vadd.f32 0.0, %v609
    %v611 = vpop.f32.mrb[0].mxu0
    %v612 = vadd.f32 0.0, %v611
    %v613 = vpop.f32.mrb[0].mxu0
    %v614 = vadd.f32 0.0, %v613
    %v615 = vpop.f32.mrb[0].mxu0
    %v616 = vadd.f32 0.0, %v615
    %617 = vmatprep.mubr.bf16.mxu0 %v394
    %618 = vmatmul.mubr.bf16.gmra.mrb[0].mxu0 %v393
    %v619 = vpop.f32.mrb[0].mxu0
    %v620 = vadd.f32 0.0, %v619
    %v621 = vpop.f32.mrb[0].mxu0
    %v622 = vadd.f32 0.0, %v621
    %v623 = vpop.f32.mrb[0].mxu0
    %v624 = vadd.f32 0.0, %v623
    %v625 = vpop.f32.mrb[0].mxu0
    %v626 = vadd.f32 0.0, %v625
    %627 = vmatprep.mubr.bf16.mxu0 %v396
    %628 = vmatmul.mubr.bf16.gmra.mrb[0].mxu0 %v395
    %v629 = vpop.f32.mrb[0].mxu0
    %v630 = vadd.f32 0.0, %v629
    %v631 = vpop.f32.mrb[0].mxu0
    %v632 = vadd.f32 0.0, %v631
    %v633 = vpop.f32.mrb[0].mxu0
    %v634 = vadd.f32 0.0, %v633
    %v635 = vpop.f32.mrb[0].mxu0
    %v636 = vadd.f32 0.0, %v635
    %637 = vdwg.mxu0
    %638 = vst [vmem:[#allocation3] sm:$0xff] %v600
    %639 = vst [vmem:[#allocation3 + $0x8] sm:$0xff] %v602
    %640 = vst [vmem:[#allocation3 + $0x10] sm:$0xff] %v604
    %641 = vst [vmem:[#allocation3 + $0x18] sm:$0xff] %v606
    %642 = vst [vmem:[#allocation3 + $0x20] sm:$0xff] %v610
    %643 = vst [vmem:[#allocation3 + $0x28] sm:$0xff] %v612
    %644 = vst [vmem:[#allocation3 + $0x30] sm:$0xff] %v614
    %645 = vst [vmem:[#allocation3 + $0x38] sm:$0xff] %v616
    %646 = vst [vmem:[#allocation3 + $0x40] sm:$0xff] %v620
    %647 = vst [vmem:[#allocation3 + $0x48] sm:$0xff] %v622
    %648 = vst [vmem:[#allocation3 + $0x50] sm:$0xff] %v624
    %649 = vst [vmem:[#allocation3 + $0x58] sm:$0xff] %v626
    %650 = vst [vmem:[#allocation3 + $0x60] sm:$0xff] %v630
    %651 = vst [vmem:[#allocation3 + $0x68] sm:$0xff] %v632
    %652 = vst [vmem:[#allocation3 + $0x70] sm:$0xff] %v634
    %653 = vst [vmem:[#allocation3 + $0x78] sm:$0xff] %v636
    %v654 = vld [vmem:[#allocation2] sm:$0xff]
    %v655 = vld [vmem:[#allocation2 + $0x8] sm:$0x11]
    %v656 = vld [vmem:[#allocation2 + $0x10] sm:$0xff]
    %v657 = vld [vmem:[#allocation2 + $0x18] sm:$0x11]
    %v658 = vld [vmem:[#allocation2 + $0x20] sm:$0xff]
    %v659 = vld [vmem:[#allocation2 + $0x28] sm:$0x11]
    %v660 = vld [vmem:[#allocation2 + $0x30] sm:$0xff]
    %v661 = vld [vmem:[#allocation2 + $0x38] sm:$0x11]
    %v662 = vld [vmem:[#allocation2 + $0x60] sm:$0xff]
    %v663 = vld [vmem:[#allocation2 + $0x68] sm:$0x11]
    %v664 = vld [vmem:[#allocation2 + $0x70] sm:$0xff]
    %v665 = vld [vmem:[#allocation2 + $0x78] sm:$0x11]
    %v666 = vld [vmem:[#allocation2 + $0x80] sm:$0xff]
    %v667 = vld [vmem:[#allocation2 + $0x88] sm:$0x11]
    %v668 = vld [vmem:[#allocation2 + $0x90] sm:$0xff]
    %v669 = vld [vmem:[#allocation2 + $0x98] sm:$0x11]
    %vm670 = vsmask.f32 3328
    %vm671 = vsmask.f32 7440
    %vm672 = vmor %vm670, %vm671
    %v674 = vshrl.u32 %v654, 16
    %v676 = vrot.slane %v674, 4
    %v677 = vshll.u32 %v654, 16
    %v679 = vrot.slane %v677, 5
    %v680 = vor.u32 %v676, %v679
    %v681 = vrot.slane %v680, 4
    %v683 = vshll.u32 %v655, 16
    %v685 = vrot.slane %v683, 5
    %v686 = vsel %vm672, %v681, %v685
    %v688 = vshrl.u32 %v656, 16
    %v690 = vrot.slane %v688, 4
    %v691 = vshll.u32 %v656, 16
    %v693 = vrot.slane %v691, 5
    %v694 = vor.u32 %v690, %v693
    %v695 = vrot.slane %v694, 4
    %v697 = vshll.u32 %v657, 16
    %v699 = vrot.slane %v697, 5
    %v700 = vsel %vm672, %v695, %v699
    %v702 = vshrl.u32 %v658, 16
    %v704 = vrot.slane %v702, 4
    %v705 = vshll.u32 %v658, 16
    %v707 = vrot.slane %v705, 5
    %v708 = vor.u32 %v704, %v707
    %v709 = vrot.slane %v708, 4
    %v711 = vshll.u32 %v659, 16
    %v713 = vrot.slane %v711, 5
    %v714 = vsel %vm672, %v709, %v713
    %v716 = vshrl.u32 %v660, 16
    %v718 = vrot.slane %v716, 4
    %v719 = vshll.u32 %v660, 16
    %v721 = vrot.slane %v719, 5
    %v722 = vor.u32 %v718, %v721
    %v723 = vrot.slane %v722, 4
    %v725 = vshll.u32 %v661, 16
    %v727 = vrot.slane %v725, 5
    %v728 = vsel %vm672, %v723, %v727
    %v730 = vshrl.u32 %v662, 16
    %v732 = vrot.slane %v730, 4
    %v733 = vshll.u32 %v662, 16
    %v735 = vrot.slane %v733, 5
    %v736 = vor.u32 %v732, %v735
    %v737 = vrot.slane %v736, 4
    %v739 = vshll.u32 %v663, 16
    %v741 = vrot.slane %v739, 5
    %v742 = vsel %vm672, %v737, %v741
    %v744 = vshrl.u32 %v664, 16
    %v746 = vrot.slane %v744, 4
    %v747 = vshll.u32 %v664, 16
    %v749 = vrot.slane %v747, 5
    %v750 = vor.u32 %v746, %v749
    %v751 = vrot.slane %v750, 4
    %v753 = vshll.u32 %v665, 16
    %v755 = vrot.slane %v753, 5
    %v756 = vsel %vm672, %v751, %v755
    %v758 = vshrl.u32 %v666, 16
    %v760 = vrot.slane %v758, 4
    %v761 = vshll.u32 %v666, 16
    %v763 = vrot.slane %v761, 5
    %v764 = vor.u32 %v760, %v763
    %v765 = vrot.slane %v764, 4
    %v767 = vshll.u32 %v667, 16
    %v769 = vrot.slane %v767, 5
    %v770 = vsel %vm672, %v765, %v769
    %v772 = vshrl.u32 %v668, 16
    %v774 = vrot.slane %v772, 4
    %v775 = vshll.u32 %v668, 16
    %v777 = vrot.slane %v775, 5
    %v778 = vor.u32 %v774, %v777
    %v779 = vrot.slane %v778, 4
    %v781 = vshll.u32 %v669, 16
    %v783 = vrot.slane %v781, 5
    %v784 = vsel %vm672, %v779, %v783
    %s785 = scalar_lea.vmem [#allocation7], 256
    %v786 = vld [vmem:[%s785] sm:$0xff]
    %v787 = vld [vmem:[%s785 + $0x8] sm:$0xff]
    %v788 = vld [vmem:[%s785 + $0x10] sm:$0xff]
    %v789 = vld [vmem:[%s785 + $0x18] sm:$0xff]
    %v790 = vld [vmem:[%s785 + $0x20] sm:$0xff]
    %v791 = vld [vmem:[%s785 + $0x28] sm:$0xff]
    %v792 = vld [vmem:[%s785 + $0x30] sm:$0xff]
    %v793 = vld [vmem:[%s785 + $0x38] sm:$0xff]
    %v794 = vld [vmem:[%s785 + $0x40] sm:$0xff]
    %v795 = vld [vmem:[%s785 + $0x48] sm:$0xff]
    %v796 = vld [vmem:[%s785 + $0x50] sm:$0xff]
    %v797 = vld [vmem:[%s785 + $0x58] sm:$0xff]
    %v798 = vld [vmem:[%s785 + $0x60] sm:$0xff]
    %v799 = vld [vmem:[%s785 + $0x68] sm:$0xff]
    %v800 = vld [vmem:[%s785 + $0x70] sm:$0xff]
    %v801 = vld [vmem:[%s785 + $0x78] sm:$0xff]
    %v802 = vld [vmem:[%s785 + $0x80] sm:$0xff]
    %v803 = vld [vmem:[%s785 + $0x88] sm:$0xff]
    %v804 = vld [vmem:[%s785 + $0x90] sm:$0xff]
    %v805 = vld [vmem:[%s785 + $0x98] sm:$0xff]
    %v806 = vld [vmem:[%s785 + $0xa0] sm:$0xff]
    %v807 = vld [vmem:[%s785 + $0xa8] sm:$0xff]
    %v808 = vld [vmem:[%s785 + $0xb0] sm:$0xff]
    %v809 = vld [vmem:[%s785 + $0xb8] sm:$0xff]
    %v810 = vld [vmem:[%s785 + $0xc0] sm:$0xff]
    %v811 = vld [vmem:[%s785 + $0xc8] sm:$0xff]
    %v812 = vld [vmem:[%s785 + $0xd0] sm:$0xff]
    %v813 = vld [vmem:[%s785 + $0xd8] sm:$0xff]
    %v814 = vld [vmem:[%s785 + $0xe0] sm:$0xff]
    %v815 = vld [vmem:[%s785 + $0xe8] sm:$0xff]
    %v816 = vld [vmem:[%s785 + $0xf0] sm:$0xff]
    %v817 = vld [vmem:[%s785 + $0xf8] sm:$0xff]
    %v818 = vunpack.c.l.b16 %v686
    %v819 = vunpack.c.h.b16 %v686
    %v820 = vunpack.c.l.b16 %v700
    %v821 = vunpack.c.h.b16 %v700
    %v822 = vunpack.c.l.b16 %v714
    %v823 = vunpack.c.h.b16 %v714
    %v824 = vunpack.c.l.b16 %v728
    %v825 = vunpack.c.h.b16 %v728
    %v826 = vunpack.c.l.b16 %v742
    %v827 = vunpack.c.h.b16 %v742
    %v828 = vunpack.c.l.b16 %v756
    %v829 = vunpack.c.h.b16 %v756
    %v830 = vunpack.c.l.b16 %v770
    %v831 = vunpack.c.h.b16 %v770
    %v832 = vunpack.c.l.b16 %v784
    %v833 = vunpack.c.h.b16 %v784
    %v834 = vpack.c.b16 %v820, %v818
    %v835 = vpack.c.b16 %v821, %v819
    %v836 = vpack.c.b16 %v824, %v822
    %v837 = vpack.c.b16 %v825, %v823
    %v838 = vpack.c.b16 %v828, %v826
    %v839 = vpack.c.b16 %v829, %v827
    %v840 = vpack.c.b16 %v832, %v830
    %v841 = vpack.c.b16 %v833, %v831
    %v882 = vunpack.c.l.b16 %v786
    %v883 = vunpack.c.h.b16 %v786
    %v884 = vunpack.c.l.b16 %v787
    %v885 = vunpack.c.h.b16 %v787
    %v886 = vunpack.c.l.b16 %v788
    %v887 = vunpack.c.h.b16 %v788
    %v888 = vunpack.c.l.b16 %v789
    %v889 = vunpack.c.h.b16 %v789
    %v890 = vunpack.c.l.b16 %v790
    %v891 = vunpack.c.h.b16 %v790
    %v892 = vunpack.c.l.b16 %v791
    %v893 = vunpack.c.h.b16 %v791
    %v894 = vunpack.c.l.b16 %v792
    %v895 = vunpack.c.h.b16 %v792
    %v896 = vunpack.c.l.b16 %v793
    %v897 = vunpack.c.h.b16 %v793
    %v898 = vunpack.c.l.b16 %v794
    %v899 = vunpack.c.h.b16 %v794
    %v900 = vunpack.c.l.b16 %v795
    %v901 = vunpack.c.h.b16 %v795
    %v902 = vunpack.c.l.b16 %v796
    %v903 = vunpack.c.h.b16 %v796
    %v904 = vunpack.c.l.b16 %v797
    %v905 = vunpack.c.h.b16 %v797
    %v906 = vunpack.c.l.b16 %v798
    %v907 = vunpack.c.h.b16 %v798
    %v908 = vunpack.c.l.b16 %v799
    %v909 = vunpack.c.h.b16 %v799
    %v910 = vunpack.c.l.b16 %v800
    %v911 = vunpack.c.h.b16 %v800
    %v912 = vunpack.c.l.b16 %v801
    %v913 = vunpack.c.h.b16 %v801
    %v914 = vunpack.c.l.b16 %v802
    %v915 = vunpack.c.h.b16 %v802
    %v916 = vunpack.c.l.b16 %v803
    %v917 = vunpack.c.h.b16 %v803
    %v918 = vunpack.c.l.b16 %v804
    %v919 = vunpack.c.h.b16 %v804
    %v920 = vunpack.c.l.b16 %v805
    %v921 = vunpack.c.h.b16 %v805
    %v922 = vunpack.c.l.b16 %v806
    %v923 = vunpack.c.h.b16 %v806
    %v924 = vunpack.c.l.b16 %v807
    %v925 = vunpack.c.h.b16 %v807
    %v926 = vunpack.c.l.b16 %v808
    %v927 = vunpack.c.h.b16 %v808
    %v928 = vunpack.c.l.b16 %v809
    %v929 = vunpack.c.h.b16 %v809
    %v930 = vunpack.c.l.b16 %v810
    %v931 = vunpack.c.h.b16 %v810
    %v932 = vunpack.c.l.b16 %v811
    %v933 = vunpack.c.h.b16 %v811
    %v934 = vunpack.c.l.b16 %v812
    %v935 = vunpack.c.h.b16 %v812
    %v936 = vunpack.c.l.b16 %v813
    %v937 = vunpack.c.h.b16 %v813
    %v938 = vunpack.c.l.b16 %v814
    %v939 = vunpack.c.h.b16 %v814
    %v940 = vunpack.c.l.b16 %v815
    %v941 = vunpack.c.h.b16 %v815
    %v942 = vunpack.c.l.b16 %v816
    %v943 = vunpack.c.h.b16 %v816
    %v944 = vunpack.c.l.b16 %v817
    %v945 = vunpack.c.h.b16 %v817
    %v946 = vpack.c.b16 %v884, %v882
    %v947 = vpack.c.b16 %v885, %v883
    %v948 = vpack.c.b16 %v888, %v886
    %v949 = vpack.c.b16 %v889, %v887
    %v950 = vpack.c.b16 %v892, %v890
    %v951 = vpack.c.b16 %v893, %v891
    %v952 = vpack.c.b16 %v896, %v894
    %v953 = vpack.c.b16 %v897, %v895
    %v954 = vpack.c.b16 %v900, %v898
    %v955 = vpack.c.b16 %v901, %v899
    %v956 = vpack.c.b16 %v904, %v902
    %v957 = vpack.c.b16 %v905, %v903
    %v958 = vpack.c.b16 %v908, %v906
    %v959 = vpack.c.b16 %v909, %v907
    %v960 = vpack.c.b16 %v912, %v910
    %v961 = vpack.c.b16 %v913, %v911
    %v962 = vpack.c.b16 %v916, %v914
    %v963 = vpack.c.b16 %v917, %v915
    %v964 = vpack.c.b16 %v920, %v918
    %v965 = vpack.c.b16 %v921, %v919
    %v966 = vpack.c.b16 %v924, %v922
    %v967 = vpack.c.b16 %v925, %v923
    %v968 = vpack.c.b16 %v928, %v926
    %v969 = vpack.c.b16 %v929, %v927
    %v970 = vpack.c.b16 %v932, %v930
    %v971 = vpack.c.b16 %v933, %v931
    %v972 = vpack.c.b16 %v936, %v934
    %v973 = vpack.c.b16 %v937, %v935
    %v974 = vpack.c.b16 %v940, %v938
    %v975 = vpack.c.b16 %v941, %v939
    %v976 = vpack.c.b16 %v944, %v942
    %v977 = vpack.c.b16 %v945, %v943
    %1010 = vmatprep.subr.bf16.mxu0 %v947
    %1011 = vmatpush1.bf16.msra.mxu0 %v946
    %1012 = vmatprep.subr.bf16.mxu0 %v949
    %1013 = vmatpush1.bf16.msra.mxu0 %v948
    %1014 = vmatprep.subr.bf16.mxu0 %v951
    %1015 = vmatpush1.bf16.msra.mxu0 %v950
    %1016 = vmatprep.subr.bf16.mxu0 %v953
    %1017 = vmatpush1.bf16.msra.mxu0 %v952
    %1018 = vmatprep.subr.bf16.mxu0 %v955
    %1019 = vmatpush1.bf16.msra.mxu0 %v954
    %1020 = vmatprep.subr.bf16.mxu0 %v957
    %1021 = vmatpush1.bf16.msra.mxu0 %v956
    %1022 = vmatprep.subr.bf16.mxu0 %v959
    %1023 = vmatpush1.bf16.msra.mxu0 %v958
    %1024 = vmatprep.subr.bf16.mxu0 %v961
    %1025 = vmatpush1.bf16.msra.mxu0 %v960
    %1026 = vmatprep.subr.bf16.mxu0 %v963
    %1027 = vmatpush1.bf16.msra.mxu0 %v962
    %1028 = vmatprep.subr.bf16.mxu0 %v965
    %1029 = vmatpush1.bf16.msra.mxu0 %v964
    %1030 = vmatprep.subr.bf16.mxu0 %v967
    %1031 = vmatpush1.bf16.msra.mxu0 %v966
    %1032 = vmatprep.subr.bf16.mxu0 %v969
    %1033 = vmatpush1.bf16.msra.mxu0 %v968
    %1034 = vmatprep.subr.bf16.mxu0 %v971
    %1035 = vmatpush1.bf16.msra.mxu0 %v970
    %1036 = vmatprep.subr.bf16.mxu0 %v973
    %1037 = vmatpush1.bf16.msra.mxu0 %v972
    %1038 = vmatprep.subr.bf16.mxu0 %v975
    %1039 = vmatpush1.bf16.msra.mxu0 %v974
    %1040 = vmatprep.subr.bf16.mxu0 %v977
    %1041 = vmatpush1.bf16.msra.mxu0 %v976
    %1042 = vmatprep.mubr.bf16.mxu0 %v835
    %1043 = vmatmul.mubr.bf16.gmra.mrb[0].mxu0 %v834
    %v1044 = vpop.f32.mrb[0].mxu0
    %v1045 = vadd.f32 0.0, %v1044
    %v1046 = vpop.f32.mrb[0].mxu0
    %v1047 = vadd.f32 0.0, %v1046
    %v1048 = vpop.f32.mrb[0].mxu0
    %v1049 = vadd.f32 0.0, %v1048
    %v1050 = vpop.f32.mrb[0].mxu0
    %v1051 = vadd.f32 0.0, %v1050
    %1052 = vmatprep.mubr.bf16.mxu0 %v837
    %1053 = vmatmul.mubr.bf16.gmra.mrb[0].mxu0 %v836
    %v1054 = vpop.f32.mrb[0].mxu0
    %v1055 = vadd.f32 0.0, %v1054
    %v1056 = vpop.f32.mrb[0].mxu0
    %v1057 = vadd.f32 0.0, %v1056
    %v1058 = vpop.f32.mrb[0].mxu0
    %v1059 = vadd.f32 0.0, %v1058
    %v1060 = vpop.f32.mrb[0].mxu0
    %v1061 = vadd.f32 0.0, %v1060
    %1062 = vmatprep.mubr.bf16.mxu0 %v839
    %1063 = vmatmul.mubr.bf16.gmra.mrb[0].mxu0 %v838
    %v1064 = vpop.f32.mrb[0].mxu0
    %v1065 = vadd.f32 0.0, %v1064
    %v1066 = vpop.f32.mrb[0].mxu0
    %v1067 = vadd.f32 0.0, %v1066
    %v1068 = vpop.f32.mrb[0].mxu0
    %v1069 = vadd.f32 0.0, %v1068
    %v1070 = vpop.f32.mrb[0].mxu0
    %v1071 = vadd.f32 0.0, %v1070
    %1072 = vmatprep.mubr.bf16.mxu0 %v841
    %1073 = vmatmul.mubr.bf16.gmra.mrb[0].mxu0 %v840
    %v1074 = vpop.f32.mrb[0].mxu0
    %v1075 = vadd.f32 0.0, %v1074
    %v1076 = vpop.f32.mrb[0].mxu0
    %v1077 = vadd.f32 0.0, %v1076
    %v1078 = vpop.f32.mrb[0].mxu0
    %v1079 = vadd.f32 0.0, %v1078
    %v1080 = vpop.f32.mrb[0].mxu0
    %v1081 = vadd.f32 0.0, %v1080
    %1082 = vdwg.mxu0
    %v1083 = vld [vmem:[#allocation3] sm:$0xff]
    %v1084 = vld [vmem:[#allocation3 + $0x8] sm:$0xff]
    %v1085 = vld [vmem:[#allocation3 + $0x10] sm:$0xff]
    %v1086 = vld [vmem:[#allocation3 + $0x18] sm:$0xff]
    %v1087 = vld [vmem:[#allocation3 + $0x20] sm:$0xff]
    %v1088 = vld [vmem:[#allocation3 + $0x28] sm:$0xff]
    %v1089 = vld [vmem:[#allocation3 + $0x30] sm:$0xff]
    %v1090 = vld [vmem:[#allocation3 + $0x38] sm:$0xff]
    %v1091 = vld [vmem:[#allocation3 + $0x40] sm:$0xff]
    %v1092 = vld [vmem:[#allocation3 + $0x48] sm:$0xff]
    %v1093 = vld [vmem:[#allocation3 + $0x50] sm:$0xff]
    %v1094 = vld [vmem:[#allocation3 + $0x58] sm:$0xff]
    %v1095 = vld [vmem:[#allocation3 + $0x60] sm:$0xff]
    %v1096 = vld [vmem:[#allocation3 + $0x68] sm:$0xff]
    %v1097 = vld [vmem:[#allocation3 + $0x70] sm:$0xff]
    %v1098 = vld [vmem:[#allocation3 + $0x78] sm:$0xff]
    %v1099 = vadd.f32 %v1083, %v1045
    %v1100 = vadd.f32 %v1084, %v1047
    %v1101 = vadd.f32 %v1085, %v1049
    %v1102 = vadd.f32 %v1086, %v1051
    %v1103 = vadd.f32 %v1087, %v1055
    %v1104 = vadd.f32 %v1088, %v1057
    %v1105 = vadd.f32 %v1089, %v1059
    %v1106 = vadd.f32 %v1090, %v1061
    %v1107 = vadd.f32 %v1091, %v1065
    %v1108 = vadd.f32 %v1092, %v1067
    %v1109 = vadd.f32 %v1093, %v1069
    %v1110 = vadd.f32 %v1094, %v1071
    %v1111 = vadd.f32 %v1095, %v1075
    %v1112 = vadd.f32 %v1096, %v1077
    %v1113 = vadd.f32 %v1097, %v1079
    %v1114 = vadd.f32 %v1098, %v1081
    %1115 = vst [vmem:[#allocation3] sm:$0xff] %v1099
    %1116 = vst [vmem:[#allocation3 + $0x8] sm:$0xff] %v1100
    %1117 = vst [vmem:[#allocation3 + $0x10] sm:$0xff] %v1101
    %1118 = vst [vmem:[#allocation3 + $0x18] sm:$0xff] %v1102
    %1119 = vst [vmem:[#allocation3 + $0x20] sm:$0xff] %v1103
    %1120 = vst [vmem:[#allocation3 + $0x28] sm:$0xff] %v1104
    %1121 = vst [vmem:[#allocation3 + $0x30] sm:$0xff] %v1105
    %1122 = vst [vmem:[#allocation3 + $0x38] sm:$0xff] %v1106
    %1123 = vst [vmem:[#allocation3 + $0x40] sm:$0xff] %v1107
    %1124 = vst [vmem:[#allocation3 + $0x48] sm:$0xff] %v1108
    %1125 = vst [vmem:[#allocation3 + $0x50] sm:$0xff] %v1109
    %1126 = vst [vmem:[#allocation3 + $0x58] sm:$0xff] %v1110
    %1127 = vst [vmem:[#allocation3 + $0x60] sm:$0xff] %v1111
    %1128 = vst [vmem:[#allocation3 + $0x68] sm:$0xff] %v1112
    %1129 = vst [vmem:[#allocation3 + $0x70] sm:$0xff] %v1113
    %1130 = vst [vmem:[#allocation3 + $0x78] sm:$0xff] %v1114
    %v1131 = vld [vmem:[#allocation2] sm:$0xee]
    %v1132 = vld [vmem:[#allocation2 + $0x8] sm:$0x11]
    %v1133 = vld [vmem:[#allocation2 + $0x10] sm:$0xee]
    %v1134 = vld [vmem:[#allocation2 + $0x18] sm:$0x11]
    %v1135 = vld [vmem:[#allocation2 + $0x20] sm:$0xee]
    %v1136 = vld [vmem:[#allocation2 + $0x28] sm:$0x11]
    %v1137 = vld [vmem:[#allocation2 + $0x30] sm:$0xee]
    %v1138 = vld [vmem:[#allocation2 + $0x38] sm:$0x11]
    %v1139 = vld [vmem:[#allocation2 + $0x60] sm:$0xee]
    %v1140 = vld [vmem:[#allocation2 + $0x68] sm:$0x11]
    %v1141 = vld [vmem:[#allocation2 + $0x70] sm:$0xee]
    %v1142 = vld [vmem:[#allocation2 + $0x78] sm:$0x11]
    %v1143 = vld [vmem:[#allocation2 + $0x80] sm:$0xee]
    %v1144 = vld [vmem:[#allocation2 + $0x88] sm:$0x11]
    %v1145 = vld [vmem:[#allocation2 + $0x90] sm:$0xee]
    %v1146 = vld [vmem:[#allocation2 + $0x98] sm:$0x11]
    %vm1163 = vcmask 1042432
    %vm1164 = vcmask 1046532
    %vm1165 = vmor %vm1163, %vm1164
    %v1166 = vrot.slane %v1131, 5
    %v1167 = vrot.slane %v1166, 4
    %v1168 = vrot.slane %v1132, 5
    %v1169 = vsel %vm1165, %v1167, %v1168
    %v1170 = vrot.slane %v1133, 5
    %v1171 = vrot.slane %v1170, 4
    %v1172 = vrot.slane %v1134, 5
    %v1173 = vsel %vm1165, %v1171, %v1172
    %v1174 = vrot.slane %v1135, 5
    %v1175 = vrot.slane %v1174, 4
    %v1176 = vrot.slane %v1136, 5
    %v1177 = vsel %vm1165, %v1175, %v1176
    %v1178 = vrot.slane %v1137, 5
    %v1179 = vrot.slane %v1178, 4
    %v1180 = vrot.slane %v1138, 5
    %v1181 = vsel %vm1165, %v1179, %v1180
    %v1182 = vrot.slane %v1139, 5
    %v1183 = vrot.slane %v1182, 4
    %v1184 = vrot.slane %v1140, 5
    %v1185 = vsel %vm1165, %v1183, %v1184
    %v1186 = vrot.slane %v1141, 5
    %v1187 = vrot.slane %v1186, 4
    %v1188 = vrot.slane %v1142, 5
    %v1189 = vsel %vm1165, %v1187, %v1188
    %v1190 = vrot.slane %v1143, 5
    %v1191 = vrot.slane %v1190, 4
    %v1192 = vrot.slane %v1144, 5
    %v1193 = vsel %vm1165, %v1191, %v1192
    %v1194 = vrot.slane %v1145, 5
    %v1195 = vrot.slane %v1194, 4
    %v1196 = vrot.slane %v1146, 5
    %v1197 = vsel %vm1165, %v1195, %v1196
    %s1198 = scalar_lea.vmem [#allocation7], 512
    %v1199 = vld [vmem:[%s1198] sm:$0xff]
    %v1200 = vld [vmem:[%s1198 + $0x8] sm:$0xff]
    %v1201 = vld [vmem:[%s1198 + $0x10] sm:$0xff]
    %v1202 = vld [vmem:[%s1198 + $0x18] sm:$0xff]
    %v1203 = vld [vmem:[%s1198 + $0x20] sm:$0xff]
    %v1204 = vld [vmem:[%s1198 + $0x28] sm:$0xff]
    %v1205 = vld [vmem:[%s1198 + $0x30] sm:$0xff]
    %v1206 = vld [vmem:[%s1198 + $0x38] sm:$0xff]
    %v1207 = vld [vmem:[%s1198 + $0x40] sm:$0xff]
    %v1208 = vld [vmem:[%s1198 + $0x48] sm:$0xff]
    %v1209 = vld [vmem:[%s1198 + $0x50] sm:$0xff]
    %v1210 = vld [vmem:[%s1198 + $0x58] sm:$0xff]
    %v1211 = vld [vmem:[%s1198 + $0x60] sm:$0xff]
    %v1212 = vld [vmem:[%s1198 + $0x68] sm:$0xff]
    %v1213 = vld [vmem:[%s1198 + $0x70] sm:$0xff]
    %v1214 = vld [vmem:[%s1198 + $0x78] sm:$0xff]
    %v1215 = vld [vmem:[%s1198 + $0x80] sm:$0xff]
    %v1216 = vld [vmem:[%s1198 + $0x88] sm:$0xff]
    %v1217 = vld [vmem:[%s1198 + $0x90] sm:$0xff]
    %v1218 = vld [vmem:[%s1198 + $0x98] sm:$0xff]
    %v1219 = vld [vmem:[%s1198 + $0xa0] sm:$0xff]
    %v1220 = vld [vmem:[%s1198 + $0xa8] sm:$0xff]
    %v1221 = vld [vmem:[%s1198 + $0xb0] sm:$0xff]
    %v1222 = vld [vmem:[%s1198 + $0xb8] sm:$0xff]
    %v1223 = vld [vmem:[%s1198 + $0xc0] sm:$0xff]
    %v1224 = vld [vmem:[%s1198 + $0xc8] sm:$0xff]
    %v1225 = vld [vmem:[%s1198 + $0xd0] sm:$0xff]
    %v1226 = vld [vmem:[%s1198 + $0xd8] sm:$0xff]
    %v1227 = vld [vmem:[%s1198 + $0xe0] sm:$0xff]
    %v1228 = vld [vmem:[%s1198 + $0xe8] sm:$0xff]
    %v1229 = vld [vmem:[%s1198 + $0xf0] sm:$0xff]
    %v1230 = vld [vmem:[%s1198 + $0xf8] sm:$0xff]
    %v1231 = vunpack.c.l.b16 %v1169
    %v1232 = vunpack.c.h.b16 %v1169
    %v1233 = vunpack.c.l.b16 %v1173
    %v1234 = vunpack.c.h.b16 %v1173
    %v1235 = vunpack.c.l.b16 %v1177
    %v1236 = vunpack.c.h.b16 %v1177
    %v1237 = vunpack.c.l.b16 %v1181
    %v1238 = vunpack.c.h.b16 %v1181
    %v1239 = vunpack.c.l.b16 %v1185
    %v1240 = vunpack.c.h.b16 %v1185
    %v1241 = vunpack.c.l.b16 %v1189
    %v1242 = vunpack.c.h.b16 %v1189
    %v1243 = vunpack.c.l.b16 %v1193
    %v1244 = vunpack.c.h.b16 %v1193
    %v1245 = vunpack.c.l.b16 %v1197
    %v1246 = vunpack.c.h.b16 %v1197
    %v1247 = vpack.c.b16 %v1233, %v1231
    %v1248 = vpack.c.b16 %v1234, %v1232
    %v1249 = vpack.c.b16 %v1237, %v1235
    %v1250 = vpack.c.b16 %v1238, %v1236
    %v1251 = vpack.c.b16 %v1241, %v1239
    %v1252 = vpack.c.b16 %v1242, %v1240
    %v1253 = vpack.c.b16 %v1245, %v1243
    %v1254 = vpack.c.b16 %v1246, %v1244
    %v1295 = vunpack.c.l.b16 %v1199
    %v1296 = vunpack.c.h.b16 %v1199
    %v1297 = vunpack.c.l.b16 %v1200
    %v1298 = vunpack.c.h.b16 %v1200
    %v1299 = vunpack.c.l.b16 %v1201
    %v1300 = vunpack.c.h.b16 %v1201
    %v1301 = vunpack.c.l.b16 %v1202
    %v1302 = vunpack.c.h.b16 %v1202
    %v1303 = vunpack.c.l.b16 %v1203
    %v1304 = vunpack.c.h.b16 %v1203
    %v1305 = vunpack.c.l.b16 %v1204
    %v1306 = vunpack.c.h.b16 %v1204
    %v1307 = vunpack.c.l.b16 %v1205
    %v1308 = vunpack.c.h.b16 %v1205
    %v1309 = vunpack.c.l.b16 %v1206
    %v1310 = vunpack.c.h.b16 %v1206
    %v1311 = vunpack.c.l.b16 %v1207
    %v1312 = vunpack.c.h.b16 %v1207
    %v1313 = vunpack.c.l.b16 %v1208
    %v1314 = vunpack.c.h.b16 %v1208
    %v1315 = vunpack.c.l.b16 %v1209
    %v1316 = vunpack.c.h.b16 %v1209
    %v1317 = vunpack.c.l.b16 %v1210
    %v1318 = vunpack.c.h.b16 %v1210
    %v1319 = vunpack.c.l.b16 %v1211
    %v1320 = vunpack.c.h.b16 %v1211
    %v1321 = vunpack.c.l.b16 %v1212
    %v1322 = vunpack.c.h.b16 %v1212
    %v1323 = vunpack.c.l.b16 %v1213
    %v1324 = vunpack.c.h.b16 %v1213
    %v1325 = vunpack.c.l.b16 %v1214
    %v1326 = vunpack.c.h.b16 %v1214
    %v1327 = vunpack.c.l.b16 %v1215
    %v1328 = vunpack.c.h.b16 %v1215
    %v1329 = vunpack.c.l.b16 %v1216
    %v1330 = vunpack.c.h.b16 %v1216
    %v1331 = vunpack.c.l.b16 %v1217
    %v1332 = vunpack.c.h.b16 %v1217
    %v1333 = vunpack.c.l.b16 %v1218
    %v1334 = vunpack.c.h.b16 %v1218
    %v1335 = vunpack.c.l.b16 %v1219
    %v1336 = vunpack.c.h.b16 %v1219
    %v1337 = vunpack.c.l.b16 %v1220
    %v1338 = vunpack.c.h.b16 %v1220
    %v1339 = vunpack.c.l.b16 %v1221
    %v1340 = vunpack.c.h.b16 %v1221
    %v1341 = vunpack.c.l.b16 %v1222
    %v1342 = vunpack.c.h.b16 %v1222
    %v1343 = vunpack.c.l.b16 %v1223
    %v1344 = vunpack.c.h.b16 %v1223
    %v1345 = vunpack.c.l.b16 %v1224
    %v1346 = vunpack.c.h.b16 %v1224
    %v1347 = vunpack.c.l.b16 %v1225
    %v1348 = vunpack.c.h.b16 %v1225
    %v1349 = vunpack.c.l.b16 %v1226
    %v1350 = vunpack.c.h.b16 %v1226
    %v1351 = vunpack.c.l.b16 %v1227
    %v1352 = vunpack.c.h.b16 %v1227
    %v1353 = vunpack.c.l.b16 %v1228
    %v1354 = vunpack.c.h.b16 %v1228
    %v1355 = vunpack.c.l.b16 %v1229
    %v1356 = vunpack.c.h.b16 %v1229
    %v1357 = vunpack.c.l.b16 %v1230
    %v1358 = vunpack.c.h.b16 %v1230
    %v1359 = vpack.c.b16 %v1297, %v1295
    %v1360 = vpack.c.b16 %v1298, %v1296
    %v1361 = vpack.c.b16 %v1301, %v1299
    %v1362 = vpack.c.b16 %v1302, %v1300
    %v1363 = vpack.c.b16 %v1305, %v1303
    %v1364 = vpack.c.b16 %v1306, %v1304
    %v1365 = vpack.c.b16 %v1309, %v1307
    %v1366 = vpack.c.b16 %v1310, %v1308
    %v1367 = vpack.c.b16 %v1313, %v1311
    %v1368 = vpack.c.b16 %v1314, %v1312
    %v1369 = vpack.c.b16 %v1317, %v1315
    %v1370 = vpack.c.b16 %v1318, %v1316
    %v1371 = vpack.c.b16 %v1321, %v1319
    %v1372 = vpack.c.b16 %v1322, %v1320
    %v1373 = vpack.c.b16 %v1325, %v1323
    %v1374 = vpack.c.b16 %v1326, %v1324
    %v1375 = vpack.c.b16 %v1329, %v1327
    %v1376 = vpack.c.b16 %v1330, %v1328
    %v1377 = vpack.c.b16 %v1333, %v1331
    %v1378 = vpack.c.b16 %v1334, %v1332
    %v1379 = vpack.c.b16 %v1337, %v1335
    %v1380 = vpack.c.b16 %v1338, %v1336
    %v1381 = vpack.c.b16 %v1341, %v1339
    %v1382 = vpack.c.b16 %v1342, %v1340
    %v1383 = vpack.c.b16 %v1345, %v1343
    %v1384 = vpack.c.b16 %v1346, %v1344
    %v1385 = vpack.c.b16 %v1349, %v1347
    %v1386 = vpack.c.b16 %v1350, %v1348
    %v1387 = vpack.c.b16 %v1353, %v1351
    %v1388 = vpack.c.b16 %v1354, %v1352
    %v1389 = vpack.c.b16 %v1357, %v1355
    %v1390 = vpack.c.b16 %v1358, %v1356
    %1423 = vmatprep.subr.bf16.mxu0 %v1360
    %1424 = vmatpush1.bf16.msra.mxu0 %v1359
    %1425 = vmatprep.subr.bf16.mxu0 %v1362
    %1426 = vmatpush1.bf16.msra.mxu0 %v1361
    %1427 = vmatprep.subr.bf16.mxu0 %v1364
    %1428 = vmatpush1.bf16.msra.mxu0 %v1363
    %1429 = vmatprep.subr.bf16.mxu0 %v1366
    %1430 = vmatpush1.bf16.msra.mxu0 %v1365
    %1431 = vmatprep.subr.bf16.mxu0 %v1368
    %1432 = vmatpush1.bf16.msra.mxu0 %v1367
    %1433 = vmatprep.subr.bf16.mxu0 %v1370
    %1434 = vmatpush1.bf16.msra.mxu0 %v1369
    %1435 = vmatprep.subr.bf16.mxu0 %v1372
    %1436 = vmatpush1.bf16.msra.mxu0 %v1371
    %1437 = vmatprep.subr.bf16.mxu0 %v1374
    %1438 = vmatpush1.bf16.msra.mxu0 %v1373
    %1439 = vmatprep.subr.bf16.mxu0 %v1376
    %1440 = vmatpush1.bf16.msra.mxu0 %v1375
    %1441 = vmatprep.subr.bf16.mxu0 %v1378
    %1442 = vmatpush1.bf16.msra.mxu0 %v1377
    %1443 = vmatprep.subr.bf16.mxu0 %v1380
    %1444 = vmatpush1.bf16.msra.mxu0 %v1379
    %1445 = vmatprep.subr.bf16.mxu0 %v1382
    %1446 = vmatpush1.bf16.msra.mxu0 %v1381
    %1447 = vmatprep.subr.bf16.mxu0 %v1384
    %1448 = vmatpush1.bf16.msra.mxu0 %v1383
    %1449 = vmatprep.subr.bf16.mxu0 %v1386
    %1450 = vmatpush1.bf16.msra.mxu0 %v1385
    %1451 = vmatprep.subr.bf16.mxu0 %v1388
    %1452 = vmatpush1.bf16.msra.mxu0 %v1387
    %1453 = vmatprep.subr.bf16.mxu0 %v1390
    %1454 = vmatpush1.bf16.msra.mxu0 %v1389
    %1455 = vmatprep.mubr.bf16.mxu0 %v1248
    %1456 = vmatmul.mubr.bf16.gmra.mrb[0].mxu0 %v1247
    %v1457 = vpop.f32.mrb[0].mxu0
    %v1458 = vadd.f32 0.0, %v1457
    %v1459 = vpop.f32.mrb[0].mxu0
    %v1460 = vadd.f32 0.0, %v1459
    %v1461 = vpop.f32.mrb[0].mxu0
    %v1462 = vadd.f32 0.0, %v1461
    %v1463 = vpop.f32.mrb[0].mxu0
    %v1464 = vadd.f32 0.0, %v1463
    %1465 = vmatprep.mubr.bf16.mxu0 %v1250
    %1466 = vmatmul.mubr.bf16.gmra.mrb[0].mxu0 %v1249
    %v1467 = vpop.f32.mrb[0].mxu0
    %v1468 = vadd.f32 0.0, %v1467
    %v1469 = vpop.f32.mrb[0].mxu0
    %v1470 = vadd.f32 0.0, %v1469
    %v1471 = vpop.f32.mrb[0].mxu0
    %v1472 = vadd.f32 0.0, %v1471
    %v1473 = vpop.f32.mrb[0].mxu0
    %v1474 = vadd.f32 0.0, %v1473
    %1475 = vmatprep.mubr.bf16.mxu0 %v1252
    %1476 = vmatmul.mubr.bf16.gmra.mrb[0].mxu0 %v1251
    %v1477 = vpop.f32.mrb[0].mxu0
    %v1478 = vadd.f32 0.0, %v1477
    %v1479 = vpop.f32.mrb[0].mxu0
    %v1480 = vadd.f32 0.0, %v1479
    %v1481 = vpop.f32.mrb[0].mxu0
    %v1482 = vadd.f32 0.0, %v1481
    %v1483 = vpop.f32.mrb[0].mxu0
    %v1484 = vadd.f32 0.0, %v1483
    %1485 = vmatprep.mubr.bf16.mxu0 %v1254
    %1486 = vmatmul.mubr.bf16.gmra.mrb[0].mxu0 %v1253
    %v1487 = vpop.f32.mrb[0].mxu0
    %v1488 = vadd.f32 0.0, %v1487
    %v1489 = vpop.f32.mrb[0].mxu0
    %v1490 = vadd.f32 0.0, %v1489
    %v1491 = vpop.f32.mrb[0].mxu0
    %v1492 = vadd.f32 0.0, %v1491
    %v1493 = vpop.f32.mrb[0].mxu0
    %v1494 = vadd.f32 0.0, %v1493
    %1495 = vdwg.mxu0
    %v1496 = vld [vmem:[#allocation3] sm:$0xff]
    %v1497 = vld [vmem:[#allocation3 + $0x8] sm:$0xff]
    %v1498 = vld [vmem:[#allocation3 + $0x10] sm:$0xff]
    %v1499 = vld [vmem:[#allocation3 + $0x18] sm:$0xff]
    %v1500 = vld [vmem:[#allocation3 + $0x20] sm:$0xff]
    %v1501 = vld [vmem:[#allocation3 + $0x28] sm:$0xff]
    %v1502 = vld [vmem:[#allocation3 + $0x30] sm:$0xff]
    %v1503 = vld [vmem:[#allocation3 + $0x38] sm:$0xff]
    %v1504 = vld [vmem:[#allocation3 + $0x40] sm:$0xff]
    %v1505 = vld [vmem:[#allocation3 + $0x48] sm:$0xff]
    %v1506 = vld [vmem:[#allocation3 + $0x50] sm:$0xff]
    %v1507 = vld [vmem:[#allocation3 + $0x58] sm:$0xff]
    %v1508 = vld [vmem:[#allocation3 + $0x60] sm:$0xff]
    %v1509 = vld [vmem:[#allocation3 + $0x68] sm:$0xff]
    %v1510 = vld [vmem:[#allocation3 + $0x70] sm:$0xff]
    %v1511 = vld [vmem:[#allocation3 + $0x78] sm:$0xff]
    %v1512 = vadd.f32 %v1496, %v1458
    %v1513 = vadd.f32 %v1497, %v1460
    %v1514 = vadd.f32 %v1498, %v1462
    %v1515 = vadd.f32 %v1499, %v1464
    %v1516 = vadd.f32 %v1500, %v1468
    %v1517 = vadd.f32 %v1501, %v1470
    %v1518 = vadd.f32 %v1502, %v1472
    %v1519 = vadd.f32 %v1503, %v1474
    %v1520 = vadd.f32 %v1504, %v1478
    %v1521 = vadd.f32 %v1505, %v1480
    %v1522 = vadd.f32 %v1506, %v1482
    %v1523 = vadd.f32 %v1507, %v1484
    %v1524 = vadd.f32 %v1508, %v1488
    %v1525 = vadd.f32 %v1509, %v1490
    %v1526 = vadd.f32 %v1510, %v1492
    %v1527 = vadd.f32 %v1511, %v1494
    %1528 = vst [vmem:[#allocation3] sm:$0xff] %v1512
    %1529 = vst [vmem:[#allocation3 + $0x8] sm:$0xff] %v1513
    %1530 = vst [vmem:[#allocation3 + $0x10] sm:$0xff] %v1514
    %1531 = vst [vmem:[#allocation3 + $0x18] sm:$0xff] %v1515
    %1532 = vst [vmem:[#allocation3 + $0x20] sm:$0xff] %v1516
    %1533 = vst [vmem:[#allocation3 + $0x28] sm:$0xff] %v1517
    %1534 = vst [vmem:[#allocation3 + $0x30] sm:$0xff] %v1518
    %1535 = vst [vmem:[#allocation3 + $0x38] sm:$0xff] %v1519
    %1536 = vst [vmem:[#allocation3 + $0x40] sm:$0xff] %v1520
    %1537 = vst [vmem:[#allocation3 + $0x48] sm:$0xff] %v1521
    %1538 = vst [vmem:[#allocation3 + $0x50] sm:$0xff] %v1522
    %1539 = vst [vmem:[#allocation3 + $0x58] sm:$0xff] %v1523
    %1540 = vst [vmem:[#allocation3 + $0x60] sm:$0xff] %v1524
    %1541 = vst [vmem:[#allocation3 + $0x68] sm:$0xff] %v1525
    %1542 = vst [vmem:[#allocation3 + $0x70] sm:$0xff] %v1526
    %1543 = vst [vmem:[#allocation3 + $0x78] sm:$0xff] %v1527
    %v1544 = vld [vmem:[%s262] sm:$0xff]
    %v1545 = vld [vmem:[%s262 + $0x10] sm:$0xff]
    %v1546 = vld [vmem:[%s262 + $0x20] sm:$0xff]
    %v1547 = vld [vmem:[%s262 + $0x30] sm:$0xff]
    %v1548 = vld [vmem:[%s262 + $0x60] sm:$0xff]
    %v1549 = vld [vmem:[%s262 + $0x70] sm:$0xff]
    %v1550 = vld [vmem:[%s262 + $0x80] sm:$0xff]
    %v1551 = vld [vmem:[%s262 + $0x90] sm:$0xff]
    %s1552 = scalar_lea.vmem [#allocation7], 768
    %v1553 = vld [vmem:[%s1552] sm:$0xff]
    %v1554 = vld [vmem:[%s1552 + $0x8] sm:$0xff]
    %v1555 = vld [vmem:[%s1552 + $0x10] sm:$0xff]
    %v1556 = vld [vmem:[%s1552 + $0x18] sm:$0xff]
    %v1557 = vld [vmem:[%s1552 + $0x20] sm:$0xff]
    %v1558 = vld [vmem:[%s1552 + $0x28] sm:$0xff]
    %v1559 = vld [vmem:[%s1552 + $0x30] sm:$0xff]
    %v1560 = vld [vmem:[%s1552 + $0x38] sm:$0xff]
    %v1561 = vld [vmem:[%s1552 + $0x40] sm:$0xff]
    %v1562 = vld [vmem:[%s1552 + $0x48] sm:$0xff]
    %v1563 = vld [vmem:[%s1552 + $0x50] sm:$0xff]
    %v1564 = vld [vmem:[%s1552 + $0x58] sm:$0xff]
    %v1565 = vld [vmem:[%s1552 + $0x60] sm:$0xff]
    %v1566 = vld [vmem:[%s1552 + $0x68] sm:$0xff]
    %v1567 = vld [vmem:[%s1552 + $0x70] sm:$0xff]
    %v1568 = vld [vmem:[%s1552 + $0x78] sm:$0xff]
    %v1569 = vld [vmem:[%s1552 + $0x80] sm:$0xff]
    %v1570 = vld [vmem:[%s1552 + $0x88] sm:$0xff]
    %v1571 = vld [vmem:[%s1552 + $0x90] sm:$0xff]
    %v1572 = vld [vmem:[%s1552 + $0x98] sm:$0xff]
    %v1573 = vld [vmem:[%s1552 + $0xa0] sm:$0xff]
    %v1574 = vld [vmem:[%s1552 + $0xa8] sm:$0xff]
    %v1575 = vld [vmem:[%s1552 + $0xb0] sm:$0xff]
    %v1576 = vld [vmem:[%s1552 + $0xb8] sm:$0xff]
    %v1577 = vld [vmem:[%s1552 + $0xc0] sm:$0xff]
    %v1578 = vld [vmem:[%s1552 + $0xc8] sm:$0xff]
    %v1579 = vld [vmem:[%s1552 + $0xd0] sm:$0xff]
    %v1580 = vld [vmem:[%s1552 + $0xd8] sm:$0xff]
    %v1581 = vld [vmem:[%s1552 + $0xe0] sm:$0xff]
    %v1582 = vld [vmem:[%s1552 + $0xe8] sm:$0xff]
    %v1583 = vld [vmem:[%s1552 + $0xf0] sm:$0xff]
    %v1584 = vld [vmem:[%s1552 + $0xf8] sm:$0xff]
    %v1593 = vunpack.c.l.b16 %v1544
    %v1594 = vunpack.c.h.b16 %v1544
    %v1595 = vunpack.c.l.b16 %v1545
    %v1596 = vunpack.c.h.b16 %v1545
    %v1597 = vunpack.c.l.b16 %v1546
    %v1598 = vunpack.c.h.b16 %v1546
    %v1599 = vunpack.c.l.b16 %v1547
    %v1600 = vunpack.c.h.b16 %v1547
    %v1601 = vunpack.c.l.b16 %v1548
    %v1602 = vunpack.c.h.b16 %v1548
    %v1603 = vunpack.c.l.b16 %v1549
    %v1604 = vunpack.c.h.b16 %v1549
    %v1605 = vunpack.c.l.b16 %v1550
    %v1606 = vunpack.c.h.b16 %v1550
    %v1607 = vunpack.c.l.b16 %v1551
    %v1608 = vunpack.c.h.b16 %v1551
    %v1609 = vpack.c.b16 %v1595, %v1593
    %v1610 = vpack.c.b16 %v1596, %v1594
    %v1611 = vpack.c.b16 %v1599, %v1597
    %v1612 = vpack.c.b16 %v1600, %v1598
    %v1613 = vpack.c.b16 %v1603, %v1601
    %v1614 = vpack.c.b16 %v1604, %v1602
    %v1615 = vpack.c.b16 %v1607, %v1605
    %v1616 = vpack.c.b16 %v1608, %v1606
    %v1657 = vunpack.c.l.b16 %v1553
    %v1658 = vunpack.c.h.b16 %v1553
    %v1659 = vunpack.c.l.b16 %v1554
    %v1660 = vunpack.c.h.b16 %v1554
    %v1661 = vunpack.c.l.b16 %v1555
    %v1662 = vunpack.c.h.b16 %v1555
    %v1663 = vunpack.c.l.b16 %v1556
    %v1664 = vunpack.c.h.b16 %v1556
    %v1665 = vunpack.c.l.b16 %v1557
    %v1666 = vunpack.c.h.b16 %v1557
    %v1667 = vunpack.c.l.b16 %v1558
    %v1668 = vunpack.c.h.b16 %v1558
    %v1669 = vunpack.c.l.b16 %v1559
    %v1670 = vunpack.c.h.b16 %v1559
    %v1671 = vunpack.c.l.b16 %v1560
    %v1672 = vunpack.c.h.b16 %v1560
    %v1673 = vunpack.c.l.b16 %v1561
    %v1674 = vunpack.c.h.b16 %v1561
    %v1675 = vunpack.c.l.b16 %v1562
    %v1676 = vunpack.c.h.b16 %v1562
    %v1677 = vunpack.c.l.b16 %v1563
    %v1678 = vunpack.c.h.b16 %v1563
    %v1679 = vunpack.c.l.b16 %v1564
    %v1680 = vunpack.c.h.b16 %v1564
    %v1681 = vunpack.c.l.b16 %v1565
    %v1682 = vunpack.c.h.b16 %v1565
    %v1683 = vunpack.c.l.b16 %v1566
    %v1684 = vunpack.c.h.b16 %v1566
    %v1685 = vunpack.c.l.b16 %v1567
    %v1686 = vunpack.c.h.b16 %v1567
    %v1687 = vunpack.c.l.b16 %v1568
    %v1688 = vunpack.c.h.b16 %v1568
    %v1689 = vunpack.c.l.b16 %v1569
    %v1690 = vunpack.c.h.b16 %v1569
    %v1691 = vunpack.c.l.b16 %v1570
    %v1692 = vunpack.c.h.b16 %v1570
    %v1693 = vunpack.c.l.b16 %v1571
    %v1694 = vunpack.c.h.b16 %v1571
    %v1695 = vunpack.c.l.b16 %v1572
    %v1696 = vunpack.c.h.b16 %v1572
    %v1697 = vunpack.c.l.b16 %v1573
    %v1698 = vunpack.c.h.b16 %v1573
    %v1699 = vunpack.c.l.b16 %v1574
    %v1700 = vunpack.c.h.b16 %v1574
    %v1701 = vunpack.c.l.b16 %v1575
    %v1702 = vunpack.c.h.b16 %v1575
    %v1703 = vunpack.c.l.b16 %v1576
    %v1704 = vunpack.c.h.b16 %v1576
    %v1705 = vunpack.c.l.b16 %v1577
    %v1706 = vunpack.c.h.b16 %v1577
    %v1707 = vunpack.c.l.b16 %v1578
    %v1708 = vunpack.c.h.b16 %v1578
    %v1709 = vunpack.c.l.b16 %v1579
    %v1710 = vunpack.c.h.b16 %v1579
    %v1711 = vunpack.c.l.b16 %v1580
    %v1712 = vunpack.c.h.b16 %v1580
    %v1713 = vunpack.c.l.b16 %v1581
    %v1714 = vunpack.c.h.b16 %v1581
    %v1715 = vunpack.c.l.b16 %v1582
    %v1716 = vunpack.c.h.b16 %v1582
    %v1717 = vunpack.c.l.b16 %v1583
    %v1718 = vunpack.c.h.b16 %v1583
    %v1719 = vunpack.c.l.b16 %v1584
    %v1720 = vunpack.c.h.b16 %v1584
    %v1721 = vpack.c.b16 %v1659, %v1657
    %v1722 = vpack.c.b16 %v1660, %v1658
    %v1723 = vpack.c.b16 %v1663, %v1661
    %v1724 = vpack.c.b16 %v1664, %v1662
    %v1725 = vpack.c.b16 %v1667, %v1665
    %v1726 = vpack.c.b16 %v1668, %v1666
    %v1727 = vpack.c.b16 %v1671, %v1669
    %v1728 = vpack.c.b16 %v1672, %v1670
    %v1729 = vpack.c.b16 %v1675, %v1673
    %v1730 = vpack.c.b16 %v1676, %v1674
    %v1731 = vpack.c.b16 %v1679, %v1677
    %v1732 = vpack.c.b16 %v1680, %v1678
    %v1733 = vpack.c.b16 %v1683, %v1681
    %v1734 = vpack.c.b16 %v1684, %v1682
    %v1735 = vpack.c.b16 %v1687, %v1685
    %v1736 = vpack.c.b16 %v1688, %v1686
    %v1737 = vpack.c.b16 %v1691, %v1689
    %v1738 = vpack.c.b16 %v1692, %v1690
    %v1739 = vpack.c.b16 %v1695, %v1693
    %v1740 = vpack.c.b16 %v1696, %v1694
    %v1741 = vpack.c.b16 %v1699, %v1697
    %v1742 = vpack.c.b16 %v1700, %v1698
    %v1743 = vpack.c.b16 %v1703, %v1701
    %v1744 = vpack.c.b16 %v1704, %v1702
    %v1745 = vpack.c.b16 %v1707, %v1705
    %v1746 = vpack.c.b16 %v1708, %v1706
    %v1747 = vpack.c.b16 %v1711, %v1709
    %v1748 = vpack.c.b16 %v1712, %v1710
    %v1749 = vpack.c.b16 %v1715, %v1713
    %v1750 = vpack.c.b16 %v1716, %v1714
    %v1751 = vpack.c.b16 %v1719, %v1717
    %v1752 = vpack.c.b16 %v1720, %v1718
    %1785 = vmatprep.subr.bf16.mxu0 %v1722
    %1786 = vmatpush1.bf16.msra.mxu0 %v1721
    %1787 = vmatprep.subr.bf16.mxu0 %v1724
    %1788 = vmatpush1.bf16.msra.mxu0 %v1723
    %1789 = vmatprep.subr.bf16.mxu0 %v1726
    %1790 = vmatpush1.bf16.msra.mxu0 %v1725
    %1791 = vmatprep.subr.bf16.mxu0 %v1728
    %1792 = vmatpush1.bf16.msra.mxu0 %v1727
    %1793 = vmatprep.subr.bf16.mxu0 %v1730
    %1794 = vmatpush1.bf16.msra.mxu0 %v1729
    %1795 = vmatprep.subr.bf16.mxu0 %v1732
    %1796 = vmatpush1.bf16.msra.mxu0 %v1731
    %1797 = vmatprep.subr.bf16.mxu0 %v1734
    %1798 = vmatpush1.bf16.msra.mxu0 %v1733
    %1799 = vmatprep.subr.bf16.mxu0 %v1736
    %1800 = vmatpush1.bf16.msra.mxu0 %v1735
    %1801 = vmatprep.subr.bf16.mxu0 %v1738
    %1802 = vmatpush1.bf16.msra.mxu0 %v1737
    %1803 = vmatprep.subr.bf16.mxu0 %v1740
    %1804 = vmatpush1.bf16.msra.mxu0 %v1739
    %1805 = vmatprep.subr.bf16.mxu0 %v1742
    %1806 = vmatpush1.bf16.msra.mxu0 %v1741
    %1807 = vmatprep.subr.bf16.mxu0 %v1744
    %1808 = vmatpush1.bf16.msra.mxu0 %v1743
    %1809 = vmatprep.subr.bf16.mxu0 %v1746
    %1810 = vmatpush1.bf16.msra.mxu0 %v1745
    %1811 = vmatprep.subr.bf16.mxu0 %v1748
    %1812 = vmatpush1.bf16.msra.mxu0 %v1747
    %1813 = vmatprep.subr.bf16.mxu0 %v1750
    %1814 = vmatpush1.bf16.msra.mxu0 %v1749
    %1815 = vmatprep.subr.bf16.mxu0 %v1752
    %1816 = vmatpush1.bf16.msra.mxu0 %v1751
    %1817 = vmatprep.mubr.bf16.mxu0 %v1610
    %1818 = vmatmul.mubr.bf16.gmra.mrb[0].mxu0 %v1609
    %v1819 = vpop.f32.mrb[0].mxu0
    %v1820 = vadd.f32 0.0, %v1819
    %v1821 = vpop.f32.mrb[0].mxu0
    %v1822 = vadd.f32 0.0, %v1821
    %v1823 = vpop.f32.mrb[0].mxu0
    %v1824 = vadd.f32 0.0, %v1823
    %v1825 = vpop.f32.mrb[0].mxu0
    %v1826 = vadd.f32 0.0, %v1825
    %1827 = vmatprep.mubr.bf16.mxu0 %v1612
    %1828 = vmatmul.mubr.bf16.gmra.mrb[0].mxu0 %v1611
    %v1829 = vpop.f32.mrb[0].mxu0
    %v1830 = vadd.f32 0.0, %v1829
    %v1831 = vpop.f32.mrb[0].mxu0
    %v1832 = vadd.f32 0.0, %v1831
    %v1833 = vpop.f32.mrb[0].mxu0
    %v1834 = vadd.f32 0.0, %v1833
    %v1835 = vpop.f32.mrb[0].mxu0
    %v1836 = vadd.f32 0.0, %v1835
    %1837 = vmatprep.mubr.bf16.mxu0 %v1614
    %1838 = vmatmul.mubr.bf16.gmra.mrb[0].mxu0 %v1613
    %v1839 = vpop.f32.mrb[0].mxu0
    %v1840 = vadd.f32 0.0, %v1839
    %v1841 = vpop.f32.mrb[0].mxu0
    %v1842 = vadd.f32 0.0, %v1841
    %v1843 = vpop.f32.mrb[0].mxu0
    %v1844 = vadd.f32 0.0, %v1843
    %v1845 = vpop.f32.mrb[0].mxu0
    %v1846 = vadd.f32 0.0, %v1845
    %1847 = vmatprep.mubr.bf16.mxu0 %v1616
    %1848 = vmatmul.mubr.bf16.gmra.mrb[0].mxu0 %v1615
    %v1849 = vpop.f32.mrb[0].mxu0
    %v1850 = vadd.f32 0.0, %v1849
    %v1851 = vpop.f32.mrb[0].mxu0
    %v1852 = vadd.f32 0.0, %v1851
    %v1853 = vpop.f32.mrb[0].mxu0
    %v1854 = vadd.f32 0.0, %v1853
    %v1855 = vpop.f32.mrb[0].mxu0
    %v1856 = vadd.f32 0.0, %v1855
    %1857 = vdwg.mxu0
    %v1858 = vld [vmem:[#allocation3] sm:$0xff]
    %v1859 = vld [vmem:[#allocation3 + $0x8] sm:$0xff]
    %v1860 = vld [vmem:[#allocation3 + $0x10] sm:$0xff]
    %v1861 = vld [vmem:[#allocation3 + $0x18] sm:$0xff]
    %v1862 = vld [vmem:[#allocation3 + $0x20] sm:$0xff]
    %v1863 = vld [vmem:[#allocation3 + $0x28] sm:$0xff]
    %v1864 = vld [vmem:[#allocation3 + $0x30] sm:$0xff]
    %v1865 = vld [vmem:[#allocation3 + $0x38] sm:$0xff]
    %v1866 = vld [vmem:[#allocation3 + $0x40] sm:$0xff]
    %v1867 = vld [vmem:[#allocation3 + $0x48] sm:$0xff]
    %v1868 = vld [vmem:[#allocation3 + $0x50] sm:$0xff]
    %v1869 = vld [vmem:[#allocation3 + $0x58] sm:$0xff]
    %v1870 = vld [vmem:[#allocation3 + $0x60] sm:$0xff]
    %v1871 = vld [vmem:[#allocation3 + $0x68] sm:$0xff]
    %v1872 = vld [vmem:[#allocation3 + $0x70] sm:$0xff]
    %v1873 = vld [vmem:[#allocation3 + $0x78] sm:$0xff]
    %v1874 = vadd.f32 %v1858, %v1820
    %v1875 = vadd.f32 %v1859, %v1822
    %v1876 = vadd.f32 %v1860, %v1824
    %v1877 = vadd.f32 %v1861, %v1826
    %v1878 = vadd.f32 %v1862, %v1830
    %v1879 = vadd.f32 %v1863, %v1832
    %v1880 = vadd.f32 %v1864, %v1834
    %v1881 = vadd.f32 %v1865, %v1836
    %v1882 = vadd.f32 %v1866, %v1840
    %v1883 = vadd.f32 %v1867, %v1842
    %v1884 = vadd.f32 %v1868, %v1844
    %v1885 = vadd.f32 %v1869, %v1846
    %v1886 = vadd.f32 %v1870, %v1850
    %v1887 = vadd.f32 %v1871, %v1852
    %v1888 = vadd.f32 %v1872, %v1854
    %v1889 = vadd.f32 %v1873, %v1856
    %1890 = vst [vmem:[#allocation3] sm:$0xff] %v1874
    %1891 = vst [vmem:[#allocation3 + $0x8] sm:$0xff] %v1875
    %1892 = vst [vmem:[#allocation3 + $0x10] sm:$0xff] %v1876
    %1893 = vst [vmem:[#allocation3 + $0x18] sm:$0xff] %v1877
    %1894 = vst [vmem:[#allocation3 + $0x20] sm:$0xff] %v1878
    %1895 = vst [vmem:[#allocation3 + $0x28] sm:$0xff] %v1879
    %1896 = vst [vmem:[#allocation3 + $0x30] sm:$0xff] %v1880
    %1897 = vst [vmem:[#allocation3 + $0x38] sm:$0xff] %v1881
    %1898 = vst [vmem:[#allocation3 + $0x40] sm:$0xff] %v1882
    %1899 = vst [vmem:[#allocation3 + $0x48] sm:$0xff] %v1883
    %1900 = vst [vmem:[#allocation3 + $0x50] sm:$0xff] %v1884
    %1901 = vst [vmem:[#allocation3 + $0x58] sm:$0xff] %v1885
    %1902 = vst [vmem:[#allocation3 + $0x60] sm:$0xff] %v1886
    %1903 = vst [vmem:[#allocation3 + $0x68] sm:$0xff] %v1887
    %1904 = vst [vmem:[#allocation3 + $0x70] sm:$0xff] %v1888
    %1905 = vst [vmem:[#allocation3 + $0x78] sm:$0xff] %v1889
    %v1906 = vld [vmem:[%s262] sm:$0xff]
    %v1907 = vld [vmem:[%s262 + $0x8] sm:$0x11]
    %v1908 = vld [vmem:[%s262 + $0x10] sm:$0xff]
    %v1909 = vld [vmem:[%s262 + $0x18] sm:$0x11]
    %v1910 = vld [vmem:[%s262 + $0x20] sm:$0xff]
    %v1911 = vld [vmem:[%s262 + $0x28] sm:$0x11]
    %v1912 = vld [vmem:[%s262 + $0x30] sm:$0xff]
    %v1913 = vld [vmem:[%s262 + $0x38] sm:$0x11]
    %v1914 = vld [vmem:[%s262 + $0x60] sm:$0xff]
    %v1915 = vld [vmem:[%s262 + $0x68] sm:$0x11]
    %v1916 = vld [vmem:[%s262 + $0x70] sm:$0xff]
    %v1917 = vld [vmem:[%s262 + $0x78] sm:$0x11]
    %v1918 = vld [vmem:[%s262 + $0x80] sm:$0xff]
    %v1919 = vld [vmem:[%s262 + $0x88] sm:$0x11]
    %v1920 = vld [vmem:[%s262 + $0x90] sm:$0xff]
    %v1921 = vld [vmem:[%s262 + $0x98] sm:$0x11]
    %v1923 = vshrl.u32 %v1906, 16
    %v1925 = vrot.slane %v1923, 4
    %v1926 = vshll.u32 %v1906, 16
    %v1928 = vrot.slane %v1926, 5
    %v1929 = vor.u32 %v1925, %v1928
    %v1930 = vrot.slane %v1929, 4
    %v1932 = vshll.u32 %v1907, 16
    %v1934 = vrot.slane %v1932, 5
    %v1935 = vsel %vm672, %v1930, %v1934
    %v1937 = vshrl.u32 %v1908, 16
    %v1939 = vrot.slane %v1937, 4
    %v1940 = vshll.u32 %v1908, 16
    %v1942 = vrot.slane %v1940, 5
    %v1943 = vor.u32 %v1939, %v1942
    %v1944 = vrot.slane %v1943, 4
    %v1946 = vshll.u32 %v1909, 16
    %v1948 = vrot.slane %v1946, 5
    %v1949 = vsel %vm672, %v1944, %v1948
    %v1951 = vshrl.u32 %v1910, 16
    %v1953 = vrot.slane %v1951, 4
    %v1954 = vshll.u32 %v1910, 16
    %v1956 = vrot.slane %v1954, 5
    %v1957 = vor.u32 %v1953, %v1956
    %v1958 = vrot.slane %v1957, 4
    %v1960 = vshll.u32 %v1911, 16
    %v1962 = vrot.slane %v1960, 5
    %v1963 = vsel %vm672, %v1958, %v1962
    %v1965 = vshrl.u32 %v1912, 16
    %v1967 = vrot.slane %v1965, 4
    %v1968 = vshll.u32 %v1912, 16
    %v1970 = vrot.slane %v1968, 5
    %v1971 = vor.u32 %v1967, %v1970
    %v1972 = vrot.slane %v1971, 4
    %v1974 = vshll.u32 %v1913, 16
    %v1976 = vrot.slane %v1974, 5
    %v1977 = vsel %vm672, %v1972, %v1976
    %v1979 = vshrl.u32 %v1914, 16
    %v1981 = vrot.slane %v1979, 4
    %v1982 = vshll.u32 %v1914, 16
    %v1984 = vrot.slane %v1982, 5
    %v1985 = vor.u32 %v1981, %v1984
    %v1986 = vrot.slane %v1985, 4
    %v1988 = vshll.u32 %v1915, 16
    %v1990 = vrot.slane %v1988, 5
    %v1991 = vsel %vm672, %v1986, %v1990
    %v1993 = vshrl.u32 %v1916, 16
    %v1995 = vrot.slane %v1993, 4
    %v1996 = vshll.u32 %v1916, 16
    %v1998 = vrot.slane %v1996, 5
    %v1999 = vor.u32 %v1995, %v1998
    %v2000 = vrot.slane %v1999, 4
    %v2002 = vshll.u32 %v1917, 16
    %v2004 = vrot.slane %v2002, 5
    %v2005 = vsel %vm672, %v2000, %v2004
    %v2007 = vshrl.u32 %v1918, 16
    %v2009 = vrot.slane %v2007, 4
    %v2010 = vshll.u32 %v1918, 16
    %v2012 = vrot.slane %v2010, 5
    %v2013 = vor.u32 %v2009, %v2012
    %v2014 = vrot.slane %v2013, 4
    %v2016 = vshll.u32 %v1919, 16
    %v2018 = vrot.slane %v2016, 5
    %v2019 = vsel %vm672, %v2014, %v2018
    %v2021 = vshrl.u32 %v1920, 16
    %v2023 = vrot.slane %v2021, 4
    %v2024 = vshll.u32 %v1920, 16
    %v2026 = vrot.slane %v2024, 5
    %v2027 = vor.u32 %v2023, %v2026
    %v2028 = vrot.slane %v2027, 4
    %v2030 = vshll.u32 %v1921, 16
    %v2032 = vrot.slane %v2030, 5
    %v2033 = vsel %vm672, %v2028, %v2032
    %s2034 = scalar_lea.vmem [#allocation7], 1024
    %v2035 = vld [vmem:[%s2034] sm:$0xff]
    %v2036 = vld [vmem:[%s2034 + $0x8] sm:$0xff]
    %v2037 = vld [vmem:[%s2034 + $0x10] sm:$0xff]
    %v2038 = vld [vmem:[%s2034 + $0x18] sm:$0xff]
    %v2039 = vld [vmem:[%s2034 + $0x20] sm:$0xff]
    %v2040 = vld [vmem:[%s2034 + $0x28] sm:$0xff]
    %v2041 = vld [vmem:[%s2034 + $0x30] sm:$0xff]
    %v2042 = vld [vmem:[%s2034 + $0x38] sm:$0xff]
    %v2043 = vld [vmem:[%s2034 + $0x40] sm:$0xff]
    %v2044 = vld [vmem:[%s2034 + $0x48] sm:$0xff]
    %v2045 = vld [vmem:[%s2034 + $0x50] sm:$0xff]
    %v2046 = vld [vmem:[%s2034 + $0x58] sm:$0xff]
    %v2047 = vld [vmem:[%s2034 + $0x60] sm:$0xff]
    %v2048 = vld [vmem:[%s2034 + $0x68] sm:$0xff]
    %v2049 = vld [vmem:[%s2034 + $0x70] sm:$0xff]
    %v2050 = vld [vmem:[%s2034 + $0x78] sm:$0xff]
    %v2051 = vld [vmem:[%s2034 + $0x80] sm:$0xff]
    %v2052 = vld [vmem:[%s2034 + $0x88] sm:$0xff]
    %v2053 = vld [vmem:[%s2034 + $0x90] sm:$0xff]
    %v2054 = vld [vmem:[%s2034 + $0x98] sm:$0xff]
    %v2055 = vld [vmem:[%s2034 + $0xa0] sm:$0xff]
    %v2056 = vld [vmem:[%s2034 + $0xa8] sm:$0xff]
    %v2057 = vld [vmem:[%s2034 + $0xb0] sm:$0xff]
    %v2058 = vld [vmem:[%s2034 + $0xb8] sm:$0xff]
    %v2059 = vld [vmem:[%s2034 + $0xc0] sm:$0xff]
    %v2060 = vld [vmem:[%s2034 + $0xc8] sm:$0xff]
    %v2061 = vld [vmem:[%s2034 + $0xd0] sm:$0xff]
    %v2062 = vld [vmem:[%s2034 + $0xd8] sm:$0xff]
    %v2063 = vld [vmem:[%s2034 + $0xe0] sm:$0xff]
    %v2064 = vld [vmem:[%s2034 + $0xe8] sm:$0xff]
    %v2065 = vld [vmem:[%s2034 + $0xf0] sm:$0xff]
    %v2066 = vld [vmem:[%s2034 + $0xf8] sm:$0xff]
    %v2067 = vunpack.c.l.b16 %v1935
    %v2068 = vunpack.c.h.b16 %v1935
    %v2069 = vunpack.c.l.b16 %v1949
    %v2070 = vunpack.c.h.b16 %v1949
    %v2071 = vunpack.c.l.b16 %v1963
    %v2072 = vunpack.c.h.b16 %v1963
    %v2073 = vunpack.c.l.b16 %v1977
    %v2074 = vunpack.c.h.b16 %v1977
    %v2075 = vunpack.c.l.b16 %v1991
    %v2076 = vunpack.c.h.b16 %v1991
    %v2077 = vunpack.c.l.b16 %v2005
    %v2078 = vunpack.c.h.b16 %v2005
    %v2079 = vunpack.c.l.b16 %v2019
    %v2080 = vunpack.c.h.b16 %v2019
    %v2081 = vunpack.c.l.b16 %v2033
    %v2082 = vunpack.c.h.b16 %v2033
    %v2083 = vpack.c.b16 %v2069, %v2067
    %v2084 = vpack.c.b16 %v2070, %v2068
    %v2085 = vpack.c.b16 %v2073, %v2071
    %v2086 = vpack.c.b16 %v2074, %v2072
    %v2087 = vpack.c.b16 %v2077, %v2075
    %v2088 = vpack.c.b16 %v2078, %v2076
    %v2089 = vpack.c.b16 %v2081, %v2079
    %v2090 = vpack.c.b16 %v2082, %v2080
    %v2131 = vunpack.c.l.b16 %v2035
    %v2132 = vunpack.c.h.b16 %v2035
    %v2133 = vunpack.c.l.b16 %v2036
    %v2134 = vunpack.c.h.b16 %v2036
    %v2135 = vunpack.c.l.b16 %v2037
    %v2136 = vunpack.c.h.b16 %v2037
    %v2137 = vunpack.c.l.b16 %v2038
    %v2138 = vunpack.c.h.b16 %v2038
    %v2139 = vunpack.c.l.b16 %v2039
    %v2140 = vunpack.c.h.b16 %v2039
    %v2141 = vunpack.c.l.b16 %v2040
    %v2142 = vunpack.c.h.b16 %v2040
    %v2143 = vunpack.c.l.b16 %v2041
    %v2144 = vunpack.c.h.b16 %v2041
    %v2145 = vunpack.c.l.b16 %v2042
    %v2146 = vunpack.c.h.b16 %v2042
    %v2147 = vunpack.c.l.b16 %v2043
    %v2148 = vunpack.c.h.b16 %v2043
    %v2149 = vunpack.c.l.b16 %v2044
    %v2150 = vunpack.c.h.b16 %v2044
    %v2151 = vunpack.c.l.b16 %v2045
    %v2152 = vunpack.c.h.b16 %v2045
    %v2153 = vunpack.c.l.b16 %v2046
    %v2154 = vunpack.c.h.b16 %v2046
    %v2155 = vunpack.c.l.b16 %v2047
    %v2156 = vunpack.c.h.b16 %v2047
    %v2157 = vunpack.c.l.b16 %v2048
    %v2158 = vunpack.c.h.b16 %v2048
    %v2159 = vunpack.c.l.b16 %v2049
    %v2160 = vunpack.c.h.b16 %v2049
    %v2161 = vunpack.c.l.b16 %v2050
    %v2162 = vunpack.c.h.b16 %v2050
    %v2163 = vunpack.c.l.b16 %v2051
    %v2164 = vunpack.c.h.b16 %v2051
    %v2165 = vunpack.c.l.b16 %v2052
    %v2166 = vunpack.c.h.b16 %v2052
    %v2167 = vunpack.c.l.b16 %v2053
    %v2168 = vunpack.c.h.b16 %v2053
    %v2169 = vunpack.c.l.b16 %v2054
    %v2170 = vunpack.c.h.b16 %v2054
    %v2171 = vunpack.c.l.b16 %v2055
    %v2172 = vunpack.c.h.b16 %v2055
    %v2173 = vunpack.c.l.b16 %v2056
    %v2174 = vunpack.c.h.b16 %v2056
    %v2175 = vunpack.c.l.b16 %v2057
    %v2176 = vunpack.c.h.b16 %v2057
    %v2177 = vunpack.c.l.b16 %v2058
    %v2178 = vunpack.c.h.b16 %v2058
    %v2179 = vunpack.c.l.b16 %v2059
    %v2180 = vunpack.c.h.b16 %v2059
    %v2181 = vunpack.c.l.b16 %v2060
    %v2182 = vunpack.c.h.b16 %v2060
    %v2183 = vunpack.c.l.b16 %v2061
    %v2184 = vunpack.c.h.b16 %v2061
    %v2185 = vunpack.c.l.b16 %v2062
    %v2186 = vunpack.c.h.b16 %v2062
    %v2187 = vunpack.c.l.b16 %v2063
    %v2188 = vunpack.c.h.b16 %v2063
    %v2189 = vunpack.c.l.b16 %v2064
    %v2190 = vunpack.c.h.b16 %v2064
    %v2191 = vunpack.c.l.b16 %v2065
    %v2192 = vunpack.c.h.b16 %v2065
    %v2193 = vunpack.c.l.b16 %v2066
    %v2194 = vunpack.c.h.b16 %v2066
    %v2195 = vpack.c.b16 %v2133, %v2131
    %v2196 = vpack.c.b16 %v2134, %v2132
    %v2197 = vpack.c.b16 %v2137, %v2135
    %v2198 = vpack.c.b16 %v2138, %v2136
    %v2199 = vpack.c.b16 %v2141, %v2139
    %v2200 = vpack.c.b16 %v2142, %v2140
    %v2201 = vpack.c.b16 %v2145, %v2143
    %v2202 = vpack.c.b16 %v2146, %v2144
    %v2203 = vpack.c.b16 %v2149, %v2147
    %v2204 = vpack.c.b16 %v2150, %v2148
    %v2205 = vpack.c.b16 %v2153, %v2151
    %v2206 = vpack.c.b16 %v2154, %v2152
    %v2207 = vpack.c.b16 %v2157, %v2155
    %v2208 = vpack.c.b16 %v2158, %v2156
    %v2209 = vpack.c.b16 %v2161, %v2159
    %v2210 = vpack.c.b16 %v2162, %v2160
    %v2211 = vpack.c.b16 %v2165, %v2163
    %v2212 = vpack.c.b16 %v2166, %v2164
    %v2213 = vpack.c.b16 %v2169, %v2167
    %v2214 = vpack.c.b16 %v2170, %v2168
    %v2215 = vpack.c.b16 %v2173, %v2171
    %v2216 = vpack.c.b16 %v2174, %v2172
    %v2217 = vpack.c.b16 %v2177, %v2175
    %v2218 = vpack.c.b16 %v2178, %v2176
    %v2219 = vpack.c.b16 %v2181, %v2179
    %v2220 = vpack.c.b16 %v2182, %v2180
    %v2221 = vpack.c.b16 %v2185, %v2183
    %v2222 = vpack.c.b16 %v2186, %v2184
    %v2223 = vpack.c.b16 %v2189, %v2187
    %v2224 = vpack.c.b16 %v2190, %v2188
    %v2225 = vpack.c.b16 %v2193, %v2191
    %v2226 = vpack.c.b16 %v2194, %v2192
    %2259 = vmatprep.subr.bf16.mxu0 %v2196
    %2260 = vmatpush1.bf16.msra.mxu0 %v2195
    %2261 = vmatprep.subr.bf16.mxu0 %v2198
    %2262 = vmatpush1.bf16.msra.mxu0 %v2197
    %2263 = vmatprep.subr.bf16.mxu0 %v2200
    %2264 = vmatpush1.bf16.msra.mxu0 %v2199
    %2265 = vmatprep.subr.bf16.mxu0 %v2202
    %2266 = vmatpush1.bf16.msra.mxu0 %v2201
    %2267 = vmatprep.subr.bf16.mxu0 %v2204
    %2268 = vmatpush1.bf16.msra.mxu0 %v2203
    %2269 = vmatprep.subr.bf16.mxu0 %v2206
    %2270 = vmatpush1.bf16.msra.mxu0 %v2205
    %2271 = vmatprep.subr.bf16.mxu0 %v2208
    %2272 = vmatpush1.bf16.msra.mxu0 %v2207
    %2273 = vmatprep.subr.bf16.mxu0 %v2210
    %2274 = vmatpush1.bf16.msra.mxu0 %v2209
    %2275 = vmatprep.subr.bf16.mxu0 %v2212
    %2276 = vmatpush1.bf16.msra.mxu0 %v2211
    %2277 = vmatprep.subr.bf16.mxu0 %v2214
    %2278 = vmatpush1.bf16.msra.mxu0 %v2213
    %2279 = vmatprep.subr.bf16.mxu0 %v2216
    %2280 = vmatpush1.bf16.msra.mxu0 %v2215
    %2281 = vmatprep.subr.bf16.mxu0 %v2218
    %2282 = vmatpush1.bf16.msra.mxu0 %v2217
    %2283 = vmatprep.subr.bf16.mxu0 %v2220
    %2284 = vmatpush1.bf16.msra.mxu0 %v2219
    %2285 = vmatprep.subr.bf16.mxu0 %v2222
    %2286 = vmatpush1.bf16.msra.mxu0 %v2221
    %2287 = vmatprep.subr.bf16.mxu0 %v2224
    %2288 = vmatpush1.bf16.msra.mxu0 %v2223
    %2289 = vmatprep.subr.bf16.mxu0 %v2226
    %2290 = vmatpush1.bf16.msra.mxu0 %v2225
    %2291 = vmatprep.mubr.bf16.mxu0 %v2084
    %2292 = vmatmul.mubr.bf16.gmra.mrb[0].mxu0 %v2083
    %v2293 = vpop.f32.mrb[0].mxu0
    %v2294 = vadd.f32 0.0, %v2293
    %v2295 = vpop.f32.mrb[0].mxu0
    %v2296 = vadd.f32 0.0, %v2295
    %v2297 = vpop.f32.mrb[0].mxu0
    %v2298 = vadd.f32 0.0, %v2297
    %v2299 = vpop.f32.mrb[0].mxu0
    %v2300 = vadd.f32 0.0, %v2299
    %2301 = vmatprep.mubr.bf16.mxu0 %v2086
    %2302 = vmatmul.mubr.bf16.gmra.mrb[0].mxu0 %v2085
    %v2303 = vpop.f32.mrb[0].mxu0
    %v2304 = vadd.f32 0.0, %v2303
    %v2305 = vpop.f32.mrb[0].mxu0
    %v2306 = vadd.f32 0.0, %v2305
    %v2307 = vpop.f32.mrb[0].mxu0
    %v2308 = vadd.f32 0.0, %v2307
    %v2309 = vpop.f32.mrb[0].mxu0
    %v2310 = vadd.f32 0.0, %v2309
    %2311 = vmatprep.mubr.bf16.mxu0 %v2088
    %2312 = vmatmul.mubr.bf16.gmra.mrb[0].mxu0 %v2087
    %v2313 = vpop.f32.mrb[0].mxu0
    %v2314 = vadd.f32 0.0, %v2313
    %v2315 = vpop.f32.mrb[0].mxu0
    %v2316 = vadd.f32 0.0, %v2315
    %v2317 = vpop.f32.mrb[0].mxu0
    %v2318 = vadd.f32 0.0, %v2317
    %v2319 = vpop.f32.mrb[0].mxu0
    %v2320 = vadd.f32 0.0, %v2319
    %2321 = vmatprep.mubr.bf16.mxu0 %v2090
    %2322 = vmatmul.mubr.bf16.gmra.mrb[0].mxu0 %v2089
    %v2323 = vpop.f32.mrb[0].mxu0
    %v2324 = vadd.f32 0.0, %v2323
    %v2325 = vpop.f32.mrb[0].mxu0
    %v2326 = vadd.f32 0.0, %v2325
    %v2327 = vpop.f32.mrb[0].mxu0
    %v2328 = vadd.f32 0.0, %v2327
    %v2329 = vpop.f32.mrb[0].mxu0
    %v2330 = vadd.f32 0.0, %v2329
    %2331 = vdwg.mxu0
    %v2332 = vld [vmem:[#allocation3] sm:$0xff]
    %v2333 = vld [vmem:[#allocation3 + $0x8] sm:$0xff]
    %v2334 = vld [vmem:[#allocation3 + $0x10] sm:$0xff]
    %v2335 = vld [vmem:[#allocation3 + $0x18] sm:$0xff]
    %v2336 = vld [vmem:[#allocation3 + $0x20] sm:$0xff]
    %v2337 = vld [vmem:[#allocation3 + $0x28] sm:$0xff]
    %v2338 = vld [vmem:[#allocation3 + $0x30] sm:$0xff]
    %v2339 = vld [vmem:[#allocation3 + $0x38] sm:$0xff]
    %v2340 = vld [vmem:[#allocation3 + $0x40] sm:$0xff]
    %v2341 = vld [vmem:[#allocation3 + $0x48] sm:$0xff]
    %v2342 = vld [vmem:[#allocation3 + $0x50] sm:$0xff]
    %v2343 = vld [vmem:[#allocation3 + $0x58] sm:$0xff]
    %v2344 = vld [vmem:[#allocation3 + $0x60] sm:$0xff]
    %v2345 = vld [vmem:[#allocation3 + $0x68] sm:$0xff]
    %v2346 = vld [vmem:[#allocation3 + $0x70] sm:$0xff]
    %v2347 = vld [vmem:[#allocation3 + $0x78] sm:$0xff]
    %v2348 = vadd.f32 %v2332, %v2294
    %v2349 = vadd.f32 %v2333, %v2296
    %v2350 = vadd.f32 %v2334, %v2298
    %v2351 = vadd.f32 %v2335, %v2300
    %v2352 = vadd.f32 %v2336, %v2304
    %v2353 = vadd.f32 %v2337, %v2306
    %v2354 = vadd.f32 %v2338, %v2308
    %v2355 = vadd.f32 %v2339, %v2310
    %v2356 = vadd.f32 %v2340, %v2314
    %v2357 = vadd.f32 %v2341, %v2316
    %v2358 = vadd.f32 %v2342, %v2318
    %v2359 = vadd.f32 %v2343, %v2320
    %v2360 = vadd.f32 %v2344, %v2324
    %v2361 = vadd.f32 %v2345, %v2326
    %v2362 = vadd.f32 %v2346, %v2328
    %v2363 = vadd.f32 %v2347, %v2330
    %2364 = vst [vmem:[#allocation3] sm:$0xff] %v2348
    %2365 = vst [vmem:[#allocation3 + $0x8] sm:$0xff] %v2349
    %2366 = vst [vmem:[#allocation3 + $0x10] sm:$0xff] %v2350
    %2367 = vst [vmem:[#allocation3 + $0x18] sm:$0xff] %v2351
    %2368 = vst [vmem:[#allocation3 + $0x20] sm:$0xff] %v2352
    %2369 = vst [vmem:[#allocation3 + $0x28] sm:$0xff] %v2353
    %2370 = vst [vmem:[#allocation3 + $0x30] sm:$0xff] %v2354
    %2371 = vst [vmem:[#allocation3 + $0x38] sm:$0xff] %v2355
    %2372 = vst [vmem:[#allocation3 + $0x40] sm:$0xff] %v2356
    %2373 = vst [vmem:[#allocation3 + $0x48] sm:$0xff] %v2357
    %2374 = vst [vmem:[#allocation3 + $0x50] sm:$0xff] %v2358
    %2375 = vst [vmem:[#allocation3 + $0x58] sm:$0xff] %v2359
    %2376 = vst [vmem:[#allocation3 + $0x60] sm:$0xff] %v2360
    %2377 = vst [vmem:[#allocation3 + $0x68] sm:$0xff] %v2361
    %2378 = vst [vmem:[#allocation3 + $0x70] sm:$0xff] %v2362
    %2379 = vst [vmem:[#allocation3 + $0x78] sm:$0xff] %v2363
    %v2380 = vld [vmem:[%s262] sm:$0xee]
    %v2381 = vld [vmem:[%s262 + $0x8] sm:$0x11]
    %v2382 = vld [vmem:[%s262 + $0x10] sm:$0xee]
    %v2383 = vld [vmem:[%s262 + $0x18] sm:$0x11]
    %v2384 = vld [vmem:[%s262 + $0x20] sm:$0xee]
    %v2385 = vld [vmem:[%s262 + $0x28] sm:$0x11]
    %v2386 = vld [vmem:[%s262 + $0x30] sm:$0xee]
    %v2387 = vld [vmem:[%s262 + $0x38] sm:$0x11]
    %v2388 = vld [vmem:[%s262 + $0x60] sm:$0xee]
    %v2389 = vld [vmem:[%s262 + $0x68] sm:$0x11]
    %v2390 = vld [vmem:[%s262 + $0x70] sm:$0xee]
    %v2391 = vld [vmem:[%s262 + $0x78] sm:$0x11]
    %v2392 = vld [vmem:[%s262 + $0x80] sm:$0xee]
    %v2393 = vld [vmem:[%s262 + $0x88] sm:$0x11]
    %v2394 = vld [vmem:[%s262 + $0x90] sm:$0xee]
    %v2395 = vld [vmem:[%s262 + $0x98] sm:$0x11]
    %v2412 = vrot.slane %v2380, 5
    %v2413 = vrot.slane %v2412, 4
    %v2414 = vrot.slane %v2381, 5
    %v2415 = vsel %vm1165, %v2413, %v2414
    %v2416 = vrot.slane %v2382, 5
    %v2417 = vrot.slane %v2416, 4
    %v2418 = vrot.slane %v2383, 5
    %v2419 = vsel %vm1165, %v2417, %v2418
    %v2420 = vrot.slane %v2384, 5
    %v2421 = vrot.slane %v2420, 4
    %v2422 = vrot.slane %v2385, 5
    %v2423 = vsel %vm1165, %v2421, %v2422
    %v2424 = vrot.slane %v2386, 5
    %v2425 = vrot.slane %v2424, 4
    %v2426 = vrot.slane %v2387, 5
    %v2427 = vsel %vm1165, %v2425, %v2426
    %v2428 = vrot.slane %v2388, 5
    %v2429 = vrot.slane %v2428, 4
    %v2430 = vrot.slane %v2389, 5
    %v2431 = vsel %vm1165, %v2429, %v2430
    %v2432 = vrot.slane %v2390, 5
    %v2433 = vrot.slane %v2432, 4
    %v2434 = vrot.slane %v2391, 5
    %v2435 = vsel %vm1165, %v2433, %v2434
    %v2436 = vrot.slane %v2392, 5
    %v2437 = vrot.slane %v2436, 4
    %v2438 = vrot.slane %v2393, 5
    %v2439 = vsel %vm1165, %v2437, %v2438
    %v2440 = vrot.slane %v2394, 5
    %v2441 = vrot.slane %v2440, 4
    %v2442 = vrot.slane %v2395, 5
    %v2443 = vsel %vm1165, %v2441, %v2442
    %s2444 = scalar_lea.vmem [#allocation7], 1280
    %v2445 = vld [vmem:[%s2444] sm:$0xff]
    %v2446 = vld [vmem:[%s2444 + $0x8] sm:$0xff]
    %v2447 = vld [vmem:[%s2444 + $0x10] sm:$0xff]
    %v2448 = vld [vmem:[%s2444 + $0x18] sm:$0xff]
    %v2449 = vld [vmem:[%s2444 + $0x20] sm:$0xff]
    %v2450 = vld [vmem:[%s2444 + $0x28] sm:$0xff]
    %v2451 = vld [vmem:[%s2444 + $0x30] sm:$0xff]
    %v2452 = vld [vmem:[%s2444 + $0x38] sm:$0xff]
    %v2453 = vld [vmem:[%s2444 + $0x40] sm:$0xff]
    %v2454 = vld [vmem:[%s2444 + $0x48] sm:$0xff]
    %v2455 = vld [vmem:[%s2444 + $0x50] sm:$0xff]
    %v2456 = vld [vmem:[%s2444 + $0x58] sm:$0xff]
    %v2457 = vld [vmem:[%s2444 + $0x60] sm:$0xff]
    %v2458 = vld [vmem:[%s2444 + $0x68] sm:$0xff]
    %v2459 = vld [vmem:[%s2444 + $0x70] sm:$0xff]
    %v2460 = vld [vmem:[%s2444 + $0x78] sm:$0xff]
    %v2461 = vld [vmem:[%s2444 + $0x80] sm:$0xff]
    %v2462 = vld [vmem:[%s2444 + $0x88] sm:$0xff]
    %v2463 = vld [vmem:[%s2444 + $0x90] sm:$0xff]
    %v2464 = vld [vmem:[%s2444 + $0x98] sm:$0xff]
    %v2465 = vld [vmem:[%s2444 + $0xa0] sm:$0xff]
    %v2466 = vld [vmem:[%s2444 + $0xa8] sm:$0xff]
    %v2467 = vld [vmem:[%s2444 + $0xb0] sm:$0xff]
    %v2468 = vld [vmem:[%s2444 + $0xb8] sm:$0xff]
    %v2469 = vld [vmem:[%s2444 + $0xc0] sm:$0xff]
    %v2470 = vld [vmem:[%s2444 + $0xc8] sm:$0xff]
    %v2471 = vld [vmem:[%s2444 + $0xd0] sm:$0xff]
    %v2472 = vld [vmem:[%s2444 + $0xd8] sm:$0xff]
    %v2473 = vld [vmem:[%s2444 + $0xe0] sm:$0xff]
    %v2474 = vld [vmem:[%s2444 + $0xe8] sm:$0xff]
    %v2475 = vld [vmem:[%s2444 + $0xf0] sm:$0xff]
    %v2476 = vld [vmem:[%s2444 + $0xf8] sm:$0xff]
    %v2477 = vunpack.c.l.b16 %v2415
    %v2478 = vunpack.c.h.b16 %v2415
    %v2479 = vunpack.c.l.b16 %v2419
    %v2480 = vunpack.c.h.b16 %v2419
    %v2481 = vunpack.c.l.b16 %v2423
    %v2482 = vunpack.c.h.b16 %v2423
    %v2483 = vunpack.c.l.b16 %v2427
    %v2484 = vunpack.c.h.b16 %v2427
    %v2485 = vunpack.c.l.b16 %v2431
    %v2486 = vunpack.c.h.b16 %v2431
    %v2487 = vunpack.c.l.b16 %v2435
    %v2488 = vunpack.c.h.b16 %v2435
    %v2489 = vunpack.c.l.b16 %v2439
    %v2490 = vunpack.c.h.b16 %v2439
    %v2491 = vunpack.c.l.b16 %v2443
    %v2492 = vunpack.c.h.b16 %v2443
    %v2493 = vpack.c.b16 %v2479, %v2477
    %v2494 = vpack.c.b16 %v2480, %v2478
    %v2495 = vpack.c.b16 %v2483, %v2481
    %v2496 = vpack.c.b16 %v2484, %v2482
    %v2497 = vpack.c.b16 %v2487, %v2485
    %v2498 = vpack.c.b16 %v2488, %v2486
    %v2499 = vpack.c.b16 %v2491, %v2489
    %v2500 = vpack.c.b16 %v2492, %v2490
    %v2541 = vunpack.c.l.b16 %v2445
    %v2542 = vunpack.c.h.b16 %v2445
    %v2543 = vunpack.c.l.b16 %v2446
    %v2544 = vunpack.c.h.b16 %v2446
    %v2545 = vunpack.c.l.b16 %v2447
    %v2546 = vunpack.c.h.b16 %v2447
    %v2547 = vunpack.c.l.b16 %v2448
    %v2548 = vunpack.c.h.b16 %v2448
    %v2549 = vunpack.c.l.b16 %v2449
    %v2550 = vunpack.c.h.b16 %v2449
    %v2551 = vunpack.c.l.b16 %v2450
    %v2552 = vunpack.c.h.b16 %v2450
    %v2553 = vunpack.c.l.b16 %v2451
    %v2554 = vunpack.c.h.b16 %v2451
    %v2555 = vunpack.c.l.b16 %v2452
    %v2556 = vunpack.c.h.b16 %v2452
    %v2557 = vunpack.c.l.b16 %v2453
    %v2558 = vunpack.c.h.b16 %v2453
    %v2559 = vunpack.c.l.b16 %v2454
    %v2560 = vunpack.c.h.b16 %v2454
    %v2561 = vunpack.c.l.b16 %v2455
    %v2562 = vunpack.c.h.b16 %v2455
    %v2563 = vunpack.c.l.b16 %v2456
    %v2564 = vunpack.c.h.b16 %v2456
    %v2565 = vunpack.c.l.b16 %v2457
    %v2566 = vunpack.c.h.b16 %v2457
    %v2567 = vunpack.c.l.b16 %v2458
    %v2568 = vunpack.c.h.b16 %v2458
    %v2569 = vunpack.c.l.b16 %v2459
    %v2570 = vunpack.c.h.b16 %v2459
    %v2571 = vunpack.c.l.b16 %v2460
    %v2572 = vunpack.c.h.b16 %v2460
    %v2573 = vunpack.c.l.b16 %v2461
    %v2574 = vunpack.c.h.b16 %v2461
    %v2575 = vunpack.c.l.b16 %v2462
    %v2576 = vunpack.c.h.b16 %v2462
    %v2577 = vunpack.c.l.b16 %v2463
    %v2578 = vunpack.c.h.b16 %v2463
    %v2579 = vunpack.c.l.b16 %v2464
    %v2580 = vunpack.c.h.b16 %v2464
    %v2581 = vunpack.c.l.b16 %v2465
    %v2582 = vunpack.c.h.b16 %v2465
    %v2583 = vunpack.c.l.b16 %v2466
    %v2584 = vunpack.c.h.b16 %v2466
    %v2585 = vunpack.c.l.b16 %v2467
    %v2586 = vunpack.c.h.b16 %v2467
    %v2587 = vunpack.c.l.b16 %v2468
    %v2588 = vunpack.c.h.b16 %v2468
    %v2589 = vunpack.c.l.b16 %v2469
    %v2590 = vunpack.c.h.b16 %v2469
    %v2591 = vunpack.c.l.b16 %v2470
    %v2592 = vunpack.c.h.b16 %v2470
    %v2593 = vunpack.c.l.b16 %v2471
    %v2594 = vunpack.c.h.b16 %v2471
    %v2595 = vunpack.c.l.b16 %v2472
    %v2596 = vunpack.c.h.b16 %v2472
    %v2597 = vunpack.c.l.b16 %v2473
    %v2598 = vunpack.c.h.b16 %v2473
    %v2599 = vunpack.c.l.b16 %v2474
    %v2600 = vunpack.c.h.b16 %v2474
    %v2601 = vunpack.c.l.b16 %v2475
    %v2602 = vunpack.c.h.b16 %v2475
    %v2603 = vunpack.c.l.b16 %v2476
    %v2604 = vunpack.c.h.b16 %v2476
    %v2605 = vpack.c.b16 %v2543, %v2541
    %v2606 = vpack.c.b16 %v2544, %v2542
    %v2607 = vpack.c.b16 %v2547, %v2545
    %v2608 = vpack.c.b16 %v2548, %v2546
    %v2609 = vpack.c.b16 %v2551, %v2549
    %v2610 = vpack.c.b16 %v2552, %v2550
    %v2611 = vpack.c.b16 %v2555, %v2553
    %v2612 = vpack.c.b16 %v2556, %v2554
    %v2613 = vpack.c.b16 %v2559, %v2557
    %v2614 = vpack.c.b16 %v2560, %v2558
    %v2615 = vpack.c.b16 %v2563, %v2561
    %v2616 = vpack.c.b16 %v2564, %v2562
    %v2617 = vpack.c.b16 %v2567, %v2565
    %v2618 = vpack.c.b16 %v2568, %v2566
    %v2619 = vpack.c.b16 %v2571, %v2569
    %v2620 = vpack.c.b16 %v2572, %v2570
    %v2621 = vpack.c.b16 %v2575, %v2573
    %v2622 = vpack.c.b16 %v2576, %v2574
    %v2623 = vpack.c.b16 %v2579, %v2577
    %v2624 = vpack.c.b16 %v2580, %v2578
    %v2625 = vpack.c.b16 %v2583, %v2581
    %v2626 = vpack.c.b16 %v2584, %v2582
    %v2627 = vpack.c.b16 %v2587, %v2585
    %v2628 = vpack.c.b16 %v2588, %v2586
    %v2629 = vpack.c.b16 %v2591, %v2589
    %v2630 = vpack.c.b16 %v2592, %v2590
    %v2631 = vpack.c.b16 %v2595, %v2593
    %v2632 = vpack.c.b16 %v2596, %v2594
    %v2633 = vpack.c.b16 %v2599, %v2597
    %v2634 = vpack.c.b16 %v2600, %v2598
    %v2635 = vpack.c.b16 %v2603, %v2601
    %v2636 = vpack.c.b16 %v2604, %v2602
    %2669 = vmatprep.subr.bf16.mxu0 %v2606
    %2670 = vmatpush1.bf16.msra.mxu0 %v2605
    %2671 = vmatprep.subr.bf16.mxu0 %v2608
    %2672 = vmatpush1.bf16.msra.mxu0 %v2607
    %2673 = vmatprep.subr.bf16.mxu0 %v2610
    %2674 = vmatpush1.bf16.msra.mxu0 %v2609
    %2675 = vmatprep.subr.bf16.mxu0 %v2612
    %2676 = vmatpush1.bf16.msra.mxu0 %v2611
    %2677 = vmatprep.subr.bf16.mxu0 %v2614
    %2678 = vmatpush1.bf16.msra.mxu0 %v2613
    %2679 = vmatprep.subr.bf16.mxu0 %v2616
    %2680 = vmatpush1.bf16.msra.mxu0 %v2615
    %2681 = vmatprep.subr.bf16.mxu0 %v2618
    %2682 = vmatpush1.bf16.msra.mxu0 %v2617
    %2683 = vmatprep.subr.bf16.mxu0 %v2620
    %2684 = vmatpush1.bf16.msra.mxu0 %v2619
    %2685 = vmatprep.subr.bf16.mxu0 %v2622
    %2686 = vmatpush1.bf16.msra.mxu0 %v2621
    %2687 = vmatprep.subr.bf16.mxu0 %v2624
    %2688 = vmatpush1.bf16.msra.mxu0 %v2623
    %2689 = vmatprep.subr.bf16.mxu0 %v2626
    %2690 = vmatpush1.bf16.msra.mxu0 %v2625
    %2691 = vmatprep.subr.bf16.mxu0 %v2628
    %2692 = vmatpush1.bf16.msra.mxu0 %v2627
    %2693 = vmatprep.subr.bf16.mxu0 %v2630
    %2694 = vmatpush1.bf16.msra.mxu0 %v2629
    %2695 = vmatprep.subr.bf16.mxu0 %v2632
    %2696 = vmatpush1.bf16.msra.mxu0 %v2631
    %2697 = vmatprep.subr.bf16.mxu0 %v2634
    %2698 = vmatpush1.bf16.msra.mxu0 %v2633
    %2699 = vmatprep.subr.bf16.mxu0 %v2636
    %2700 = vmatpush1.bf16.msra.mxu0 %v2635
    %2701 = vmatprep.mubr.bf16.mxu0 %v2494
    %2702 = vmatmul.mubr.bf16.gmra.mrb[0].mxu0 %v2493
    %v2703 = vpop.f32.mrb[0].mxu0
    %v2704 = vadd.f32 0.0, %v2703
    %v2705 = vpop.f32.mrb[0].mxu0
    %v2706 = vadd.f32 0.0, %v2705
    %v2707 = vpop.f32.mrb[0].mxu0
    %v2708 = vadd.f32 0.0, %v2707
    %v2709 = vpop.f32.mrb[0].mxu0
    %v2710 = vadd.f32 0.0, %v2709
    %2711 = vmatprep.mubr.bf16.mxu0 %v2496
    %2712 = vmatmul.mubr.bf16.gmra.mrb[0].mxu0 %v2495
    %v2713 = vpop.f32.mrb[0].mxu0
    %v2714 = vadd.f32 0.0, %v2713
    %v2715 = vpop.f32.mrb[0].mxu0
    %v2716 = vadd.f32 0.0, %v2715
    %v2717 = vpop.f32.mrb[0].mxu0
    %v2718 = vadd.f32 0.0, %v2717
    %v2719 = vpop.f32.mrb[0].mxu0
    %v2720 = vadd.f32 0.0, %v2719
    %2721 = vmatprep.mubr.bf16.mxu0 %v2498
    %2722 = vmatmul.mubr.bf16.gmra.mrb[0].mxu0 %v2497
    %v2723 = vpop.f32.mrb[0].mxu0
    %v2724 = vadd.f32 0.0, %v2723
    %v2725 = vpop.f32.mrb[0].mxu0
    %v2726 = vadd.f32 0.0, %v2725
    %v2727 = vpop.f32.mrb[0].mxu0
    %v2728 = vadd.f32 0.0, %v2727
    %v2729 = vpop.f32.mrb[0].mxu0
    %v2730 = vadd.f32 0.0, %v2729
    %2731 = vmatprep.mubr.bf16.mxu0 %v2500
    %2732 = vmatmul.mubr.bf16.gmra.mrb[0].mxu0 %v2499
    %v2733 = vpop.f32.mrb[0].mxu0
    %v2734 = vadd.f32 0.0, %v2733
    %v2735 = vpop.f32.mrb[0].mxu0
    %v2736 = vadd.f32 0.0, %v2735
    %v2737 = vpop.f32.mrb[0].mxu0
    %v2738 = vadd.f32 0.0, %v2737
    %v2739 = vpop.f32.mrb[0].mxu0
    %v2740 = vadd.f32 0.0, %v2739
    %2741 = vdwg.mxu0
    %v2742 = vld [vmem:[#allocation3] sm:$0xff]
    %v2743 = vld [vmem:[#allocation3 + $0x8] sm:$0xff]
    %v2744 = vld [vmem:[#allocation3 + $0x10] sm:$0xff]
    %v2745 = vld [vmem:[#allocation3 + $0x18] sm:$0xff]
    %v2746 = vld [vmem:[#allocation3 + $0x20] sm:$0xff]
    %v2747 = vld [vmem:[#allocation3 + $0x28] sm:$0xff]
    %v2748 = vld [vmem:[#allocation3 + $0x30] sm:$0xff]
    %v2749 = vld [vmem:[#allocation3 + $0x38] sm:$0xff]
    %v2750 = vld [vmem:[#allocation3 + $0x40] sm:$0xff]
    %v2751 = vld [vmem:[#allocation3 + $0x48] sm:$0xff]
    %v2752 = vld [vmem:[#allocation3 + $0x50] sm:$0xff]
    %v2753 = vld [vmem:[#allocation3 + $0x58] sm:$0xff]
    %v2754 = vld [vmem:[#allocation3 + $0x60] sm:$0xff]
    %v2755 = vld [vmem:[#allocation3 + $0x68] sm:$0xff]
    %v2756 = vld [vmem:[#allocation3 + $0x70] sm:$0xff]
    %v2757 = vld [vmem:[#allocation3 + $0x78] sm:$0xff]
    %v2758 = vadd.f32 %v2742, %v2704
    %v2759 = vadd.f32 %v2743, %v2706
    %v2760 = vadd.f32 %v2744, %v2708
    %v2761 = vadd.f32 %v2745, %v2710
    %v2762 = vadd.f32 %v2746, %v2714
    %v2763 = vadd.f32 %v2747, %v2716
    %v2764 = vadd.f32 %v2748, %v2718
    %v2765 = vadd.f32 %v2749, %v2720
    %v2766 = vadd.f32 %v2750, %v2724
    %v2767 = vadd.f32 %v2751, %v2726
    %v2768 = vadd.f32 %v2752, %v2728
    %v2769 = vadd.f32 %v2753, %v2730
    %v2770 = vadd.f32 %v2754, %v2734
    %v2771 = vadd.f32 %v2755, %v2736
    %v2772 = vadd.f32 %v2756, %v2738
    %v2773 = vadd.f32 %v2757, %v2740
    %2774 = vst [vmem:[#allocation3] sm:$0xff] %v2758
    %2775 = vst [vmem:[#allocation3 + $0x8] sm:$0xff] %v2759
    %2776 = vst [vmem:[#allocation3 + $0x10] sm:$0xff] %v2760
    %2777 = vst [vmem:[#allocation3 + $0x18] sm:$0xff] %v2761
    %2778 = vst [vmem:[#allocation3 + $0x20] sm:$0xff] %v2762
    %2779 = vst [vmem:[#allocation3 + $0x28] sm:$0xff] %v2763
    %2780 = vst [vmem:[#allocation3 + $0x30] sm:$0xff] %v2764
    %2781 = vst [vmem:[#allocation3 + $0x38] sm:$0xff] %v2765
    %2782 = vst [vmem:[#allocation3 + $0x40] sm:$0xff] %v2766
    %2783 = vst [vmem:[#allocation3 + $0x48] sm:$0xff] %v2767
    %2784 = vst [vmem:[#allocation3 + $0x50] sm:$0xff] %v2768
    %2785 = vst [vmem:[#allocation3 + $0x58] sm:$0xff] %v2769
    %2786 = vst [vmem:[#allocation3 + $0x60] sm:$0xff] %v2770
    %2787 = vst [vmem:[#allocation3 + $0x68] sm:$0xff] %v2771
    %2788 = vst [vmem:[#allocation3 + $0x70] sm:$0xff] %v2772
    %2789 = vst [vmem:[#allocation3 + $0x78] sm:$0xff] %v2773
    %s2790 = scalar_lea.vmem [#allocation2], 32
    %v2791 = vld [vmem:[%s2790] sm:$0xff]
    %v2792 = vld [vmem:[%s2790 + $0x10] sm:$0xff]
    %v2793 = vld [vmem:[%s2790 + $0x20] sm:$0xff]
    %v2794 = vld [vmem:[%s2790 + $0x30] sm:$0xff]
    %v2795 = vld [vmem:[%s2790 + $0x60] sm:$0xff]
    %v2796 = vld [vmem:[%s2790 + $0x70] sm:$0xff]
    %v2797 = vld [vmem:[%s2790 + $0x80] sm:$0xff]
    %v2798 = vld [vmem:[%s2790 + $0x90] sm:$0xff]
    %s2799 = scalar_lea.vmem [#allocation7], 1536
    %v2800 = vld [vmem:[%s2799] sm:$0xff]
    %v2801 = vld [vmem:[%s2799 + $0x8] sm:$0xff]
    %v2802 = vld [vmem:[%s2799 + $0x10] sm:$0xff]
    %v2803 = vld [vmem:[%s2799 + $0x18] sm:$0xff]
    %v2804 = vld [vmem:[%s2799 + $0x20] sm:$0xff]
    %v2805 = vld [vmem:[%s2799 + $0x28] sm:$0xff]
    %v2806 = vld [vmem:[%s2799 + $0x30] sm:$0xff]
    %v2807 = vld [vmem:[%s2799 + $0x38] sm:$0xff]
    %v2808 = vld [vmem:[%s2799 + $0x40] sm:$0xff]
    %v2809 = vld [vmem:[%s2799 + $0x48] sm:$0xff]
    %v2810 = vld [vmem:[%s2799 + $0x50] sm:$0xff]
    %v2811 = vld [vmem:[%s2799 + $0x58] sm:$0xff]
    %v2812 = vld [vmem:[%s2799 + $0x60] sm:$0xff]
    %v2813 = vld [vmem:[%s2799 + $0x68] sm:$0xff]
    %v2814 = vld [vmem:[%s2799 + $0x70] sm:$0xff]
    %v2815 = vld [vmem:[%s2799 + $0x78] sm:$0xff]
    %v2816 = vld [vmem:[%s2799 + $0x80] sm:$0xff]
    %v2817 = vld [vmem:[%s2799 + $0x88] sm:$0xff]
    %v2818 = vld [vmem:[%s2799 + $0x90] sm:$0xff]
    %v2819 = vld [vmem:[%s2799 + $0x98] sm:$0xff]
    %v2820 = vld [vmem:[%s2799 + $0xa0] sm:$0xff]
    %v2821 = vld [vmem:[%s2799 + $0xa8] sm:$0xff]
    %v2822 = vld [vmem:[%s2799 + $0xb0] sm:$0xff]
    %v2823 = vld [vmem:[%s2799 + $0xb8] sm:$0xff]
    %v2824 = vld [vmem:[%s2799 + $0xc0] sm:$0xff]
    %v2825 = vld [vmem:[%s2799 + $0xc8] sm:$0xff]
    %v2826 = vld [vmem:[%s2799 + $0xd0] sm:$0xff]
    %v2827 = vld [vmem:[%s2799 + $0xd8] sm:$0xff]
    %v2828 = vld [vmem:[%s2799 + $0xe0] sm:$0xff]
    %v2829 = vld [vmem:[%s2799 + $0xe8] sm:$0xff]
    %v2830 = vld [vmem:[%s2799 + $0xf0] sm:$0xff]
    %v2831 = vld [vmem:[%s2799 + $0xf8] sm:$0xff]
    %v2840 = vunpack.c.l.b16 %v2791
    %v2841 = vunpack.c.h.b16 %v2791
    %v2842 = vunpack.c.l.b16 %v2792
    %v2843 = vunpack.c.h.b16 %v2792
    %v2844 = vunpack.c.l.b16 %v2793
    %v2845 = vunpack.c.h.b16 %v2793
    %v2846 = vunpack.c.l.b16 %v2794
    %v2847 = vunpack.c.h.b16 %v2794
    %v2848 = vunpack.c.l.b16 %v2795
    %v2849 = vunpack.c.h.b16 %v2795
    %v2850 = vunpack.c.l.b16 %v2796
    %v2851 = vunpack.c.h.b16 %v2796
    %v2852 = vunpack.c.l.b16 %v2797
    %v2853 = vunpack.c.h.b16 %v2797
    %v2854 = vunpack.c.l.b16 %v2798
    %v2855 = vunpack.c.h.b16 %v2798
    %v2856 = vpack.c.b16 %v2842, %v2840
    %v2857 = vpack.c.b16 %v2843, %v2841
    %v2858 = vpack.c.b16 %v2846, %v2844
    %v2859 = vpack.c.b16 %v2847, %v2845
    %v2860 = vpack.c.b16 %v2850, %v2848
    %v2861 = vpack.c.b16 %v2851, %v2849
    %v2862 = vpack.c.b16 %v2854, %v2852
    %v2863 = vpack.c.b16 %v2855, %v2853
    %v2904 = vunpack.c.l.b16 %v2800
    %v2905 = vunpack.c.h.b16 %v2800
    %v2906 = vunpack.c.l.b16 %v2801
    %v2907 = vunpack.c.h.b16 %v2801
    %v2908 = vunpack.c.l.b16 %v2802
    %v2909 = vunpack.c.h.b16 %v2802
    %v2910 = vunpack.c.l.b16 %v2803
    %v2911 = vunpack.c.h.b16 %v2803
    %v2912 = vunpack.c.l.b16 %v2804
    %v2913 = vunpack.c.h.b16 %v2804
    %v2914 = vunpack.c.l.b16 %v2805
    %v2915 = vunpack.c.h.b16 %v2805
    %v2916 = vunpack.c.l.b16 %v2806
    %v2917 = vunpack.c.h.b16 %v2806
    %v2918 = vunpack.c.l.b16 %v2807
    %v2919 = vunpack.c.h.b16 %v2807
    %v2920 = vunpack.c.l.b16 %v2808
    %v2921 = vunpack.c.h.b16 %v2808
    %v2922 = vunpack.c.l.b16 %v2809
    %v2923 = vunpack.c.h.b16 %v2809
    %v2924 = vunpack.c.l.b16 %v2810
    %v2925 = vunpack.c.h.b16 %v2810
    %v2926 = vunpack.c.l.b16 %v2811
    %v2927 = vunpack.c.h.b16 %v2811
    %v2928 = vunpack.c.l.b16 %v2812
    %v2929 = vunpack.c.h.b16 %v2812
    %v2930 = vunpack.c.l.b16 %v2813
    %v2931 = vunpack.c.h.b16 %v2813
    %v2932 = vunpack.c.l.b16 %v2814
    %v2933 = vunpack.c.h.b16 %v2814
    %v2934 = vunpack.c.l.b16 %v2815
    %v2935 = vunpack.c.h.b16 %v2815
    %v2936 = vunpack.c.l.b16 %v2816
    %v2937 = vunpack.c.h.b16 %v2816
    %v2938 = vunpack.c.l.b16 %v2817
    %v2939 = vunpack.c.h.b16 %v2817
    %v2940 = vunpack.c.l.b16 %v2818
    %v2941 = vunpack.c.h.b16 %v2818
    %v2942 = vunpack.c.l.b16 %v2819
    %v2943 = vunpack.c.h.b16 %v2819
    %v2944 = vunpack.c.l.b16 %v2820
    %v2945 = vunpack.c.h.b16 %v2820
    %v2946 = vunpack.c.l.b16 %v2821
    %v2947 = vunpack.c.h.b16 %v2821
    %v2948 = vunpack.c.l.b16 %v2822
    %v2949 = vunpack.c.h.b16 %v2822
    %v2950 = vunpack.c.l.b16 %v2823
    %v2951 = vunpack.c.h.b16 %v2823
    %v2952 = vunpack.c.l.b16 %v2824
    %v2953 = vunpack.c.h.b16 %v2824
    %v2954 = vunpack.c.l.b16 %v2825
    %v2955 = vunpack.c.h.b16 %v2825
    %v2956 = vunpack.c.l.b16 %v2826
    %v2957 = vunpack.c.h.b16 %v2826
    %v2958 = vunpack.c.l.b16 %v2827
    %v2959 = vunpack.c.h.b16 %v2827
    %v2960 = vunpack.c.l.b16 %v2828
    %v2961 = vunpack.c.h.b16 %v2828
    %v2962 = vunpack.c.l.b16 %v2829
    %v2963 = vunpack.c.h.b16 %v2829
    %v2964 = vunpack.c.l.b16 %v2830
    %v2965 = vunpack.c.h.b16 %v2830
    %v2966 = vunpack.c.l.b16 %v2831
    %v2967 = vunpack.c.h.b16 %v2831
    %v2968 = vpack.c.b16 %v2906, %v2904
    %v2969 = vpack.c.b16 %v2907, %v2905
    %v2970 = vpack.c.b16 %v2910, %v2908
    %v2971 = vpack.c.b16 %v2911, %v2909
    %v2972 = vpack.c.b16 %v2914, %v2912
    %v2973 = vpack.c.b16 %v2915, %v2913
    %v2974 = vpack.c.b16 %v2918, %v2916
    %v2975 = vpack.c.b16 %v2919, %v2917
    %v2976 = vpack.c.b16 %v2922, %v2920
    %v2977 = vpack.c.b16 %v2923, %v2921
    %v2978 = vpack.c.b16 %v2926, %v2924
    %v2979 = vpack.c.b16 %v2927, %v2925
    %v2980 = vpack.c.b16 %v2930, %v2928
    %v2981 = vpack.c.b16 %v2931, %v2929
    %v2982 = vpack.c.b16 %v2934, %v2932
    %v2983 = vpack.c.b16 %v2935, %v2933
    %v2984 = vpack.c.b16 %v2938, %v2936
    %v2985 = vpack.c.b16 %v2939, %v2937
    %v2986 = vpack.c.b16 %v2942, %v2940
    %v2987 = vpack.c.b16 %v2943, %v2941
    %v2988 = vpack.c.b16 %v2946, %v2944
    %v2989 = vpack.c.b16 %v2947, %v2945
    %v2990 = vpack.c.b16 %v2950, %v2948
    %v2991 = vpack.c.b16 %v2951, %v2949
    %v2992 = vpack.c.b16 %v2954, %v2952
    %v2993 = vpack.c.b16 %v2955, %v2953
    %v2994 = vpack.c.b16 %v2958, %v2956
    %v2995 = vpack.c.b16 %v2959, %v2957
    %v2996 = vpack.c.b16 %v2962, %v2960
    %v2997 = vpack.c.b16 %v2963, %v2961
    %v2998 = vpack.c.b16 %v2966, %v2964
    %v2999 = vpack.c.b16 %v2967, %v2965
    %3032 = vmatprep.subr.bf16.mxu0 %v2969
    %3033 = vmatpush1.bf16.msra.mxu0 %v2968
    %3034 = vmatprep.subr.bf16.mxu0 %v2971
    %3035 = vmatpush1.bf16.msra.mxu0 %v2970
    %3036 = vmatprep.subr.bf16.mxu0 %v2973
    %3037 = vmatpush1.bf16.msra.mxu0 %v2972
    %3038 = vmatprep.subr.bf16.mxu0 %v2975
    %3039 = vmatpush1.bf16.msra.mxu0 %v2974
    %3040 = vmatprep.subr.bf16.mxu0 %v2977
    %3041 = vmatpush1.bf16.msra.mxu0 %v2976
    %3042 = vmatprep.subr.bf16.mxu0 %v2979
    %3043 = vmatpush1.bf16.msra.mxu0 %v2978
    %3044 = vmatprep.subr.bf16.mxu0 %v2981
    %3045 = vmatpush1.bf16.msra.mxu0 %v2980
    %3046 = vmatprep.subr.bf16.mxu0 %v2983
    %3047 = vmatpush1.bf16.msra.mxu0 %v2982
    %3048 = vmatprep.subr.bf16.mxu0 %v2985
    %3049 = vmatpush1.bf16.msra.mxu0 %v2984
    %3050 = vmatprep.subr.bf16.mxu0 %v2987
    %3051 = vmatpush1.bf16.msra.mxu0 %v2986
    %3052 = vmatprep.subr.bf16.mxu0 %v2989
    %3053 = vmatpush1.bf16.msra.mxu0 %v2988
    %3054 = vmatprep.subr.bf16.mxu0 %v2991
    %3055 = vmatpush1.bf16.msra.mxu0 %v2990
    %3056 = vmatprep.subr.bf16.mxu0 %v2993
    %3057 = vmatpush1.bf16.msra.mxu0 %v2992
    %3058 = vmatprep.subr.bf16.mxu0 %v2995
    %3059 = vmatpush1.bf16.msra.mxu0 %v2994
    %3060 = vmatprep.subr.bf16.mxu0 %v2997
    %3061 = vmatpush1.bf16.msra.mxu0 %v2996
    %3062 = vmatprep.subr.bf16.mxu0 %v2999
    %3063 = vmatpush1.bf16.msra.mxu0 %v2998
    %3064 = vmatprep.mubr.bf16.mxu0 %v2857
    %3065 = vmatmul.mubr.bf16.gmra.mrb[0].mxu0 %v2856
    %v3066 = vpop.f32.mrb[0].mxu0
    %v3067 = vadd.f32 0.0, %v3066
    %v3068 = vpop.f32.mrb[0].mxu0
    %v3069 = vadd.f32 0.0, %v3068
    %v3070 = vpop.f32.mrb[0].mxu0
    %v3071 = vadd.f32 0.0, %v3070
    %v3072 = vpop.f32.mrb[0].mxu0
    %v3073 = vadd.f32 0.0, %v3072
    %3074 = vmatprep.mubr.bf16.mxu0 %v2859
    %3075 = vmatmul.mubr.bf16.gmra.mrb[0].mxu0 %v2858
    %v3076 = vpop.f32.mrb[0].mxu0
    %v3077 = vadd.f32 0.0, %v3076
    %v3078 = vpop.f32.mrb[0].mxu0
    %v3079 = vadd.f32 0.0, %v3078
    %v3080 = vpop.f32.mrb[0].mxu0
    %v3081 = vadd.f32 0.0, %v3080
    %v3082 = vpop.f32.mrb[0].mxu0
    %v3083 = vadd.f32 0.0, %v3082
    %3084 = vmatprep.mubr.bf16.mxu0 %v2861
    %3085 = vmatmul.mubr.bf16.gmra.mrb[0].mxu0 %v2860
    %v3086 = vpop.f32.mrb[0].mxu0
    %v3087 = vadd.f32 0.0, %v3086
    %v3088 = vpop.f32.mrb[0].mxu0
    %v3089 = vadd.f32 0.0, %v3088
    %v3090 = vpop.f32.mrb[0].mxu0
    %v3091 = vadd.f32 0.0, %v3090
    %v3092 = vpop.f32.mrb[0].mxu0
    %v3093 = vadd.f32 0.0, %v3092
    %3094 = vmatprep.mubr.bf16.mxu0 %v2863
    %3095 = vmatmul.mubr.bf16.gmra.mrb[0].mxu0 %v2862
    %v3096 = vpop.f32.mrb[0].mxu0
    %v3097 = vadd.f32 0.0, %v3096
    %v3098 = vpop.f32.mrb[0].mxu0
    %v3099 = vadd.f32 0.0, %v3098
    %v3100 = vpop.f32.mrb[0].mxu0
    %v3101 = vadd.f32 0.0, %v3100
    %v3102 = vpop.f32.mrb[0].mxu0
    %v3103 = vadd.f32 0.0, %v3102
    %3104 = vdwg.mxu0
    %v3105 = vld [vmem:[#allocation3] sm:$0xff]
    %v3106 = vld [vmem:[#allocation3 + $0x8] sm:$0xff]
    %v3107 = vld [vmem:[#allocation3 + $0x10] sm:$0xff]
    %v3108 = vld [vmem:[#allocation3 + $0x18] sm:$0xff]
    %v3109 = vld [vmem:[#allocation3 + $0x20] sm:$0xff]
    %v3110 = vld [vmem:[#allocation3 + $0x28] sm:$0xff]
    %v3111 = vld [vmem:[#allocation3 + $0x30] sm:$0xff]
    %v3112 = vld [vmem:[#allocation3 + $0x38] sm:$0xff]
    %v3113 = vld [vmem:[#allocation3 + $0x40] sm:$0xff]
    %v3114 = vld [vmem:[#allocation3 + $0x48] sm:$0xff]
    %v3115 = vld [vmem:[#allocation3 + $0x50] sm:$0xff]
    %v3116 = vld [vmem:[#allocation3 + $0x58] sm:$0xff]
    %v3117 = vld [vmem:[#allocation3 + $0x60] sm:$0xff]
    %v3118 = vld [vmem:[#allocation3 + $0x68] sm:$0xff]
    %v3119 = vld [vmem:[#allocation3 + $0x70] sm:$0xff]
    %v3120 = vld [vmem:[#allocation3 + $0x78] sm:$0xff]
    %v3121 = vadd.f32 %v3105, %v3067
    %v3122 = vadd.f32 %v3106, %v3069
    %v3123 = vadd.f32 %v3107, %v3071
    %v3124 = vadd.f32 %v3108, %v3073
    %v3125 = vadd.f32 %v3109, %v3077
    %v3126 = vadd.f32 %v3110, %v3079
    %v3127 = vadd.f32 %v3111, %v3081
    %v3128 = vadd.f32 %v3112, %v3083
    %v3129 = vadd.f32 %v3113, %v3087
    %v3130 = vadd.f32 %v3114, %v3089
    %v3131 = vadd.f32 %v3115, %v3091
    %v3132 = vadd.f32 %v3116, %v3093
    %v3133 = vadd.f32 %v3117, %v3097
    %v3134 = vadd.f32 %v3118, %v3099
    %v3135 = vadd.f32 %v3119, %v3101
    %v3136 = vadd.f32 %v3120, %v3103
    %3137 = vst [vmem:[#allocation3] sm:$0xff] %v3121
    %3138 = vst [vmem:[#allocation3 + $0x8] sm:$0xff] %v3122
    %3139 = vst [vmem:[#allocation3 + $0x10] sm:$0xff] %v3123
    %3140 = vst [vmem:[#allocation3 + $0x18] sm:$0xff] %v3124
    %3141 = vst [vmem:[#allocation3 + $0x20] sm:$0xff] %v3125
    %3142 = vst [vmem:[#allocation3 + $0x28] sm:$0xff] %v3126
    %3143 = vst [vmem:[#allocation3 + $0x30] sm:$0xff] %v3127
    %3144 = vst [vmem:[#allocation3 + $0x38] sm:$0xff] %v3128
    %3145 = vst [vmem:[#allocation3 + $0x40] sm:$0xff] %v3129
    %3146 = vst [vmem:[#allocation3 + $0x48] sm:$0xff] %v3130
    %3147 = vst [vmem:[#allocation3 + $0x50] sm:$0xff] %v3131
    %3148 = vst [vmem:[#allocation3 + $0x58] sm:$0xff] %v3132
    %3149 = vst [vmem:[#allocation3 + $0x60] sm:$0xff] %v3133
    %3150 = vst [vmem:[#allocation3 + $0x68] sm:$0xff] %v3134
    %3151 = vst [vmem:[#allocation3 + $0x70] sm:$0xff] %v3135
    %3152 = vst [vmem:[#allocation3 + $0x78] sm:$0xff] %v3136
    %v3153 = vld [vmem:[%s2790] sm:$0xff]
    %v3154 = vld [vmem:[%s2790 + $0x8] sm:$0x11]
    %v3155 = vld [vmem:[%s2790 + $0x10] sm:$0xff]
    %v3156 = vld [vmem:[%s2790 + $0x18] sm:$0x11]
    %v3157 = vld [vmem:[%s2790 + $0x20] sm:$0xff]
    %v3158 = vld [vmem:[%s2790 + $0x28] sm:$0x11]
    %v3159 = vld [vmem:[%s2790 + $0x30] sm:$0xff]
    %v3160 = vld [vmem:[%s2790 + $0x38] sm:$0x11]
    %v3161 = vld [vmem:[%s2790 + $0x60] sm:$0xff]
    %v3162 = vld [vmem:[%s2790 + $0x68] sm:$0x11]
    %v3163 = vld [vmem:[%s2790 + $0x70] sm:$0xff]
    %v3164 = vld [vmem:[%s2790 + $0x78] sm:$0x11]
    %v3165 = vld [vmem:[%s2790 + $0x80] sm:$0xff]
    %v3166 = vld [vmem:[%s2790 + $0x88] sm:$0x11]
    %v3167 = vld [vmem:[%s2790 + $0x90] sm:$0xff]
    %v3168 = vld [vmem:[%s2790 + $0x98] sm:$0x11]
    %v3170 = vshrl.u32 %v3153, 16
    %v3172 = vrot.slane %v3170, 4
    %v3173 = vshll.u32 %v3153, 16
    %v3175 = vrot.slane %v3173, 5
    %v3176 = vor.u32 %v3172, %v3175
    %v3177 = vrot.slane %v3176, 4
    %v3179 = vshll.u32 %v3154, 16
    %v3181 = vrot.slane %v3179, 5
    %v3182 = vsel %vm672, %v3177, %v3181
    %v3184 = vshrl.u32 %v3155, 16
    %v3186 = vrot.slane %v3184, 4
    %v3187 = vshll.u32 %v3155, 16
    %v3189 = vrot.slane %v3187, 5
    %v3190 = vor.u32 %v3186, %v3189
    %v3191 = vrot.slane %v3190, 4
    %v3193 = vshll.u32 %v3156, 16
    %v3195 = vrot.slane %v3193, 5
    %v3196 = vsel %vm672, %v3191, %v3195
    %v3198 = vshrl.u32 %v3157, 16
    %v3200 = vrot.slane %v3198, 4
    %v3201 = vshll.u32 %v3157, 16
    %v3203 = vrot.slane %v3201, 5
    %v3204 = vor.u32 %v3200, %v3203
    %v3205 = vrot.slane %v3204, 4
    %v3207 = vshll.u32 %v3158, 16
    %v3209 = vrot.slane %v3207, 5
    %v3210 = vsel %vm672, %v3205, %v3209
    %v3212 = vshrl.u32 %v3159, 16
    %v3214 = vrot.slane %v3212, 4
    %v3215 = vshll.u32 %v3159, 16
    %v3217 = vrot.slane %v3215, 5
    %v3218 = vor.u32 %v3214, %v3217
    %v3219 = vrot.slane %v3218, 4
    %v3221 = vshll.u32 %v3160, 16
    %v3223 = vrot.slane %v3221, 5
    %v3224 = vsel %vm672, %v3219, %v3223
    %v3226 = vshrl.u32 %v3161, 16
    %v3228 = vrot.slane %v3226, 4
    %v3229 = vshll.u32 %v3161, 16
    %v3231 = vrot.slane %v3229, 5
    %v3232 = vor.u32 %v3228, %v3231
    %v3233 = vrot.slane %v3232, 4
    %v3235 = vshll.u32 %v3162, 16
    %v3237 = vrot.slane %v3235, 5
    %v3238 = vsel %vm672, %v3233, %v3237
    %v3240 = vshrl.u32 %v3163, 16
    %v3242 = vrot.slane %v3240, 4
    %v3243 = vshll.u32 %v3163, 16
    %v3245 = vrot.slane %v3243, 5
    %v3246 = vor.u32 %v3242, %v3245
    %v3247 = vrot.slane %v3246, 4
    %v3249 = vshll.u32 %v3164, 16
    %v3251 = vrot.slane %v3249, 5
    %v3252 = vsel %vm672, %v3247, %v3251
    %v3254 = vshrl.u32 %v3165, 16
    %v3256 = vrot.slane %v3254, 4
    %v3257 = vshll.u32 %v3165, 16
    %v3259 = vrot.slane %v3257, 5
    %v3260 = vor.u32 %v3256, %v3259
    %v3261 = vrot.slane %v3260, 4
    %v3263 = vshll.u32 %v3166, 16
    %v3265 = vrot.slane %v3263, 5
    %v3266 = vsel %vm672, %v3261, %v3265
    %v3268 = vshrl.u32 %v3167, 16
    %v3270 = vrot.slane %v3268, 4
    %v3271 = vshll.u32 %v3167, 16
    %v3273 = vrot.slane %v3271, 5
    %v3274 = vor.u32 %v3270, %v3273
    %v3275 = vrot.slane %v3274, 4
    %v3277 = vshll.u32 %v3168, 16
    %v3279 = vrot.slane %v3277, 5
    %v3280 = vsel %vm672, %v3275, %v3279
    %s3281 = scalar_lea.vmem [#allocation7], 1792
    %v3282 = vld [vmem:[%s3281] sm:$0xff]
    %v3283 = vld [vmem:[%s3281 + $0x8] sm:$0xff]
    %v3284 = vld [vmem:[%s3281 + $0x10] sm:$0xff]
    %v3285 = vld [vmem:[%s3281 + $0x18] sm:$0xff]
    %v3286 = vld [vmem:[%s3281 + $0x20] sm:$0xff]
    %v3287 = vld [vmem:[%s3281 + $0x28] sm:$0xff]
    %v3288 = vld [vmem:[%s3281 + $0x30] sm:$0xff]
    %v3289 = vld [vmem:[%s3281 + $0x38] sm:$0xff]
    %v3290 = vld [vmem:[%s3281 + $0x40] sm:$0xff]
    %v3291 = vld [vmem:[%s3281 + $0x48] sm:$0xff]
    %v3292 = vld [vmem:[%s3281 + $0x50] sm:$0xff]
    %v3293 = vld [vmem:[%s3281 + $0x58] sm:$0xff]
    %v3294 = vld [vmem:[%s3281 + $0x60] sm:$0xff]
    %v3295 = vld [vmem:[%s3281 + $0x68] sm:$0xff]
    %v3296 = vld [vmem:[%s3281 + $0x70] sm:$0xff]
    %v3297 = vld [vmem:[%s3281 + $0x78] sm:$0xff]
    %v3298 = vld [vmem:[%s3281 + $0x80] sm:$0xff]
    %v3299 = vld [vmem:[%s3281 + $0x88] sm:$0xff]
    %v3300 = vld [vmem:[%s3281 + $0x90] sm:$0xff]
    %v3301 = vld [vmem:[%s3281 + $0x98] sm:$0xff]
    %v3302 = vld [vmem:[%s3281 + $0xa0] sm:$0xff]
    %v3303 = vld [vmem:[%s3281 + $0xa8] sm:$0xff]
    %v3304 = vld [vmem:[%s3281 + $0xb0] sm:$0xff]
    %v3305 = vld [vmem:[%s3281 + $0xb8] sm:$0xff]
    %v3306 = vld [vmem:[%s3281 + $0xc0] sm:$0xff]
    %v3307 = vld [vmem:[%s3281 + $0xc8] sm:$0xff]
    %v3308 = vld [vmem:[%s3281 + $0xd0] sm:$0xff]
    %v3309 = vld [vmem:[%s3281 + $0xd8] sm:$0xff]
    %v3310 = vld [vmem:[%s3281 + $0xe0] sm:$0xff]
    %v3311 = vld [vmem:[%s3281 + $0xe8] sm:$0xff]
    %v3312 = vld [vmem:[%s3281 + $0xf0] sm:$0xff]
    %v3313 = vld [vmem:[%s3281 + $0xf8] sm:$0xff]
    %v3314 = vunpack.c.l.b16 %v3182
    %v3315 = vunpack.c.h.b16 %v3182
    %v3316 = vunpack.c.l.b16 %v3196
    %v3317 = vunpack.c.h.b16 %v3196
    %v3318 = vunpack.c.l.b16 %v3210
    %v3319 = vunpack.c.h.b16 %v3210
    %v3320 = vunpack.c.l.b16 %v3224
    %v3321 = vunpack.c.h.b16 %v3224
    %v3322 = vunpack.c.l.b16 %v3238
    %v3323 = vunpack.c.h.b16 %v3238
    %v3324 = vunpack.c.l.b16 %v3252
    %v3325 = vunpack.c.h.b16 %v3252
    %v3326 = vunpack.c.l.b16 %v3266
    %v3327 = vunpack.c.h.b16 %v3266
    %v3328 = vunpack.c.l.b16 %v3280
    %v3329 = vunpack.c.h.b16 %v3280
    %v3330 = vpack.c.b16 %v3316, %v3314
    %v3331 = vpack.c.b16 %v3317, %v3315
    %v3332 = vpack.c.b16 %v3320, %v3318
    %v3333 = vpack.c.b16 %v3321, %v3319
    %v3334 = vpack.c.b16 %v3324, %v3322
    %v3335 = vpack.c.b16 %v3325, %v3323
    %v3336 = vpack.c.b16 %v3328, %v3326
    %v3337 = vpack.c.b16 %v3329, %v3327
    %v3378 = vunpack.c.l.b16 %v3282
    %v3379 = vunpack.c.h.b16 %v3282
    %v3380 = vunpack.c.l.b16 %v3283
    %v3381 = vunpack.c.h.b16 %v3283
    %v3382 = vunpack.c.l.b16 %v3284
    %v3383 = vunpack.c.h.b16 %v3284
    %v3384 = vunpack.c.l.b16 %v3285
    %v3385 = vunpack.c.h.b16 %v3285
    %v3386 = vunpack.c.l.b16 %v3286
    %v3387 = vunpack.c.h.b16 %v3286
    %v3388 = vunpack.c.l.b16 %v3287
    %v3389 = vunpack.c.h.b16 %v3287
    %v3390 = vunpack.c.l.b16 %v3288
    %v3391 = vunpack.c.h.b16 %v3288
    %v3392 = vunpack.c.l.b16 %v3289
    %v3393 = vunpack.c.h.b16 %v3289
    %v3394 = vunpack.c.l.b16 %v3290
    %v3395 = vunpack.c.h.b16 %v3290
    %v3396 = vunpack.c.l.b16 %v3291
    %v3397 = vunpack.c.h.b16 %v3291
    %v3398 = vunpack.c.l.b16 %v3292
    %v3399 = vunpack.c.h.b16 %v3292
    %v3400 = vunpack.c.l.b16 %v3293
    %v3401 = vunpack.c.h.b16 %v3293
    %v3402 = vunpack.c.l.b16 %v3294
    %v3403 = vunpack.c.h.b16 %v3294
    %v3404 = vunpack.c.l.b16 %v3295
    %v3405 = vunpack.c.h.b16 %v3295
    %v3406 = vunpack.c.l.b16 %v3296
    %v3407 = vunpack.c.h.b16 %v3296
    %v3408 = vunpack.c.l.b16 %v3297
    %v3409 = vunpack.c.h.b16 %v3297
    %v3410 = vunpack.c.l.b16 %v3298
    %v3411 = vunpack.c.h.b16 %v3298
    %v3412 = vunpack.c.l.b16 %v3299
    %v3413 = vunpack.c.h.b16 %v3299
    %v3414 = vunpack.c.l.b16 %v3300
    %v3415 = vunpack.c.h.b16 %v3300
    %v3416 = vunpack.c.l.b16 %v3301
    %v3417 = vunpack.c.h.b16 %v3301
    %v3418 = vunpack.c.l.b16 %v3302
    %v3419 = vunpack.c.h.b16 %v3302
    %v3420 = vunpack.c.l.b16 %v3303
    %v3421 = vunpack.c.h.b16 %v3303
    %v3422 = vunpack.c.l.b16 %v3304
    %v3423 = vunpack.c.h.b16 %v3304
    %v3424 = vunpack.c.l.b16 %v3305
    %v3425 = vunpack.c.h.b16 %v3305
    %v3426 = vunpack.c.l.b16 %v3306
    %v3427 = vunpack.c.h.b16 %v3306
    %v3428 = vunpack.c.l.b16 %v3307
    %v3429 = vunpack.c.h.b16 %v3307
    %v3430 = vunpack.c.l.b16 %v3308
    %v3431 = vunpack.c.h.b16 %v3308
    %v3432 = vunpack.c.l.b16 %v3309
    %v3433 = vunpack.c.h.b16 %v3309
    %v3434 = vunpack.c.l.b16 %v3310
    %v3435 = vunpack.c.h.b16 %v3310
    %v3436 = vunpack.c.l.b16 %v3311
    %v3437 = vunpack.c.h.b16 %v3311
    %v3438 = vunpack.c.l.b16 %v3312
    %v3439 = vunpack.c.h.b16 %v3312
    %v3440 = vunpack.c.l.b16 %v3313
    %v3441 = vunpack.c.h.b16 %v3313
    %v3442 = vpack.c.b16 %v3380, %v3378
    %v3443 = vpack.c.b16 %v3381, %v3379
    %v3444 = vpack.c.b16 %v3384, %v3382
    %v3445 = vpack.c.b16 %v3385, %v3383
    %v3446 = vpack.c.b16 %v3388, %v3386
    %v3447 = vpack.c.b16 %v3389, %v3387
    %v3448 = vpack.c.b16 %v3392, %v3390
    %v3449 = vpack.c.b16 %v3393, %v3391
    %v3450 = vpack.c.b16 %v3396, %v3394
    %v3451 = vpack.c.b16 %v3397, %v3395
    %v3452 = vpack.c.b16 %v3400, %v3398
    %v3453 = vpack.c.b16 %v3401, %v3399
    %v3454 = vpack.c.b16 %v3404, %v3402
    %v3455 = vpack.c.b16 %v3405, %v3403
    %v3456 = vpack.c.b16 %v3408, %v3406
    %v3457 = vpack.c.b16 %v3409, %v3407
    %v3458 = vpack.c.b16 %v3412, %v3410
    %v3459 = vpack.c.b16 %v3413, %v3411
    %v3460 = vpack.c.b16 %v3416, %v3414
    %v3461 = vpack.c.b16 %v3417, %v3415
    %v3462 = vpack.c.b16 %v3420, %v3418
    %v3463 = vpack.c.b16 %v3421, %v3419
    %v3464 = vpack.c.b16 %v3424, %v3422
    %v3465 = vpack.c.b16 %v3425, %v3423
    %v3466 = vpack.c.b16 %v3428, %v3426
    %v3467 = vpack.c.b16 %v3429, %v3427
    %v3468 = vpack.c.b16 %v3432, %v3430
    %v3469 = vpack.c.b16 %v3433, %v3431
    %v3470 = vpack.c.b16 %v3436, %v3434
    %v3471 = vpack.c.b16 %v3437, %v3435
    %v3472 = vpack.c.b16 %v3440, %v3438
    %v3473 = vpack.c.b16 %v3441, %v3439
    %3506 = vmatprep.subr.bf16.mxu0 %v3443
    %3507 = vmatpush1.bf16.msra.mxu0 %v3442
    %3508 = vmatprep.subr.bf16.mxu0 %v3445
    %3509 = vmatpush1.bf16.msra.mxu0 %v3444
    %3510 = vmatprep.subr.bf16.mxu0 %v3447
    %3511 = vmatpush1.bf16.msra.mxu0 %v3446
    %3512 = vmatprep.subr.bf16.mxu0 %v3449
    %3513 = vmatpush1.bf16.msra.mxu0 %v3448
    %3514 = vmatprep.subr.bf16.mxu0 %v3451
    %3515 = vmatpush1.bf16.msra.mxu0 %v3450
    %3516 = vmatprep.subr.bf16.mxu0 %v3453
    %3517 = vmatpush1.bf16.msra.mxu0 %v3452
    %3518 = vmatprep.subr.bf16.mxu0 %v3455
    %3519 = vmatpush1.bf16.msra.mxu0 %v3454
    %3520 = vmatprep.subr.bf16.mxu0 %v3457
    %3521 = vmatpush1.bf16.msra.mxu0 %v3456
    %3522 = vmatprep.subr.bf16.mxu0 %v3459
    %3523 = vmatpush1.bf16.msra.mxu0 %v3458
    %3524 = vmatprep.subr.bf16.mxu0 %v3461
    %3525 = vmatpush1.bf16.msra.mxu0 %v3460
    %3526 = vmatprep.subr.bf16.mxu0 %v3463
    %3527 = vmatpush1.bf16.msra.mxu0 %v3462
    %3528 = vmatprep.subr.bf16.mxu0 %v3465
    %3529 = vmatpush1.bf16.msra.mxu0 %v3464
    %3530 = vmatprep.subr.bf16.mxu0 %v3467
    %3531 = vmatpush1.bf16.msra.mxu0 %v3466
    %3532 = vmatprep.subr.bf16.mxu0 %v3469
    %3533 = vmatpush1.bf16.msra.mxu0 %v3468
    %3534 = vmatprep.subr.bf16.mxu0 %v3471
    %3535 = vmatpush1.bf16.msra.mxu0 %v3470
    %3536 = vmatprep.subr.bf16.mxu0 %v3473
    %3537 = vmatpush1.bf16.msra.mxu0 %v3472
    %3538 = vmatprep.mubr.bf16.mxu0 %v3331
    %3539 = vmatmul.mubr.bf16.gmra.mrb[0].mxu0 %v3330
    %v3540 = vpop.f32.mrb[0].mxu0
    %v3541 = vadd.f32 0.0, %v3540
    %v3542 = vpop.f32.mrb[0].mxu0
    %v3543 = vadd.f32 0.0, %v3542
    %v3544 = vpop.f32.mrb[0].mxu0
    %v3545 = vadd.f32 0.0, %v3544
    %v3546 = vpop.f32.mrb[0].mxu0
    %v3547 = vadd.f32 0.0, %v3546
    %3548 = vmatprep.mubr.bf16.mxu0 %v3333
    %3549 = vmatmul.mubr.bf16.gmra.mrb[0].mxu0 %v3332
    %v3550 = vpop.f32.mrb[0].mxu0
    %v3551 = vadd.f32 0.0, %v3550
    %v3552 = vpop.f32.mrb[0].mxu0
    %v3553 = vadd.f32 0.0, %v3552
    %v3554 = vpop.f32.mrb[0].mxu0
    %v3555 = vadd.f32 0.0, %v3554
    %v3556 = vpop.f32.mrb[0].mxu0
    %v3557 = vadd.f32 0.0, %v3556
    %3558 = vmatprep.mubr.bf16.mxu0 %v3335
    %3559 = vmatmul.mubr.bf16.gmra.mrb[0].mxu0 %v3334
    %v3560 = vpop.f32.mrb[0].mxu0
    %v3561 = vadd.f32 0.0, %v3560
    %v3562 = vpop.f32.mrb[0].mxu0
    %v3563 = vadd.f32 0.0, %v3562
    %v3564 = vpop.f32.mrb[0].mxu0
    %v3565 = vadd.f32 0.0, %v3564
    %v3566 = vpop.f32.mrb[0].mxu0
    %v3567 = vadd.f32 0.0, %v3566
    %3568 = vmatprep.mubr.bf16.mxu0 %v3337
    %3569 = vmatmul.mubr.bf16.gmra.mrb[0].mxu0 %v3336
    %v3570 = vpop.f32.mrb[0].mxu0
    %v3571 = vadd.f32 0.0, %v3570
    %v3572 = vpop.f32.mrb[0].mxu0
    %v3573 = vadd.f32 0.0, %v3572
    %v3574 = vpop.f32.mrb[0].mxu0
    %v3575 = vadd.f32 0.0, %v3574
    %v3576 = vpop.f32.mrb[0].mxu0
    %v3577 = vadd.f32 0.0, %v3576
    %3578 = vdwg.mxu0
    %v3579 = vld [vmem:[#allocation3] sm:$0xff]
    %v3580 = vld [vmem:[#allocation3 + $0x8] sm:$0xff]
    %v3581 = vld [vmem:[#allocation3 + $0x10] sm:$0xff]
    %v3582 = vld [vmem:[#allocation3 + $0x18] sm:$0xff]
    %v3583 = vld [vmem:[#allocation3 + $0x20] sm:$0xff]
    %v3584 = vld [vmem:[#allocation3 + $0x28] sm:$0xff]
    %v3585 = vld [vmem:[#allocation3 + $0x30] sm:$0xff]
    %v3586 = vld [vmem:[#allocation3 + $0x38] sm:$0xff]
    %v3587 = vld [vmem:[#allocation3 + $0x40] sm:$0xff]
    %v3588 = vld [vmem:[#allocation3 + $0x48] sm:$0xff]
    %v3589 = vld [vmem:[#allocation3 + $0x50] sm:$0xff]
    %v3590 = vld [vmem:[#allocation3 + $0x58] sm:$0xff]
    %v3591 = vld [vmem:[#allocation3 + $0x60] sm:$0xff]
    %v3592 = vld [vmem:[#allocation3 + $0x68] sm:$0xff]
    %v3593 = vld [vmem:[#allocation3 + $0x70] sm:$0xff]
    %v3594 = vld [vmem:[#allocation3 + $0x78] sm:$0xff]
    %v3595 = vadd.f32 %v3579, %v3541
    %v3596 = vadd.f32 %v3580, %v3543
    %v3597 = vadd.f32 %v3581, %v3545
    %v3598 = vadd.f32 %v3582, %v3547
    %v3599 = vadd.f32 %v3583, %v3551
    %v3600 = vadd.f32 %v3584, %v3553
    %v3601 = vadd.f32 %v3585, %v3555
    %v3602 = vadd.f32 %v3586, %v3557
    %v3603 = vadd.f32 %v3587, %v3561
    %v3604 = vadd.f32 %v3588, %v3563
    %v3605 = vadd.f32 %v3589, %v3565
    %v3606 = vadd.f32 %v3590, %v3567
    %v3607 = vadd.f32 %v3591, %v3571
    %v3608 = vadd.f32 %v3592, %v3573
    %v3609 = vadd.f32 %v3593, %v3575
    %v3610 = vadd.f32 %v3594, %v3577
    %3611 = vst [vmem:[#allocation3] sm:$0xff] %v3595
    %3612 = vst [vmem:[#allocation3 + $0x8] sm:$0xff] %v3596
    %3613 = vst [vmem:[#allocation3 + $0x10] sm:$0xff] %v3597
    %3614 = vst [vmem:[#allocation3 + $0x18] sm:$0xff] %v3598
    %3615 = vst [vmem:[#allocation3 + $0x20] sm:$0xff] %v3599
    %3616 = vst [vmem:[#allocation3 + $0x28] sm:$0xff] %v3600
    %3617 = vst [vmem:[#allocation3 + $0x30] sm:$0xff] %v3601
    %3618 = vst [vmem:[#allocation3 + $0x38] sm:$0xff] %v3602
    %3619 = vst [vmem:[#allocation3 + $0x40] sm:$0xff] %v3603
    %3620 = vst [vmem:[#allocation3 + $0x48] sm:$0xff] %v3604
    %3621 = vst [vmem:[#allocation3 + $0x50] sm:$0xff] %v3605
    %3622 = vst [vmem:[#allocation3 + $0x58] sm:$0xff] %v3606
    %3623 = vst [vmem:[#allocation3 + $0x60] sm:$0xff] %v3607
    %3624 = vst [vmem:[#allocation3 + $0x68] sm:$0xff] %v3608
    %3625 = vst [vmem:[#allocation3 + $0x70] sm:$0xff] %v3609
    %3626 = vst [vmem:[#allocation3 + $0x78] sm:$0xff] %v3610
    %v3627 = vld [vmem:[%s2790] sm:$0xee]
    %v3628 = vld [vmem:[%s2790 + $0x8] sm:$0x11]
    %v3629 = vld [vmem:[%s2790 + $0x10] sm:$0xee]
    %v3630 = vld [vmem:[%s2790 + $0x18] sm:$0x11]
    %v3631 = vld [vmem:[%s2790 + $0x20] sm:$0xee]
    %v3632 = vld [vmem:[%s2790 + $0x28] sm:$0x11]
    %v3633 = vld [vmem:[%s2790 + $0x30] sm:$0xee]
    %v3634 = vld [vmem:[%s2790 + $0x38] sm:$0x11]
    %v3635 = vld [vmem:[%s2790 + $0x60] sm:$0xee]
    %v3636 = vld [vmem:[%s2790 + $0x68] sm:$0x11]
    %v3637 = vld [vmem:[%s2790 + $0x70] sm:$0xee]
    %v3638 = vld [vmem:[%s2790 + $0x78] sm:$0x11]
    %v3639 = vld [vmem:[%s2790 + $0x80] sm:$0xee]
    %v3640 = vld [vmem:[%s2790 + $0x88] sm:$0x11]
    %v3641 = vld [vmem:[%s2790 + $0x90] sm:$0xee]
    %v3642 = vld [vmem:[%s2790 + $0x98] sm:$0x11]
    %v3659 = vrot.slane %v3627, 5
    %v3660 = vrot.slane %v3659, 4
    %v3661 = vrot.slane %v3628, 5
    %v3662 = vsel %vm1165, %v3660, %v3661
    %v3663 = vrot.slane %v3629, 5
    %v3664 = vrot.slane %v3663, 4
    %v3665 = vrot.slane %v3630, 5
    %v3666 = vsel %vm1165, %v3664, %v3665
    %v3667 = vrot.slane %v3631, 5
    %v3668 = vrot.slane %v3667, 4
    %v3669 = vrot.slane %v3632, 5
    %v3670 = vsel %vm1165, %v3668, %v3669
    %v3671 = vrot.slane %v3633, 5
    %v3672 = vrot.slane %v3671, 4
    %v3673 = vrot.slane %v3634, 5
    %v3674 = vsel %vm1165, %v3672, %v3673
    %v3675 = vrot.slane %v3635, 5
    %v3676 = vrot.slane %v3675, 4
    %v3677 = vrot.slane %v3636, 5
    %v3678 = vsel %vm1165, %v3676, %v3677
    %v3679 = vrot.slane %v3637, 5
    %v3680 = vrot.slane %v3679, 4
    %v3681 = vrot.slane %v3638, 5
    %v3682 = vsel %vm1165, %v3680, %v3681
    %v3683 = vrot.slane %v3639, 5
    %v3684 = vrot.slane %v3683, 4
    %v3685 = vrot.slane %v3640, 5
    %v3686 = vsel %vm1165, %v3684, %v3685
    %v3687 = vrot.slane %v3641, 5
    %v3688 = vrot.slane %v3687, 4
    %v3689 = vrot.slane %v3642, 5
    %v3690 = vsel %vm1165, %v3688, %v3689
    %s3691 = scalar_lea.vmem [#allocation7], 2048
    %v3692 = vld [vmem:[%s3691] sm:$0xff]
    %v3693 = vld [vmem:[%s3691 + $0x8] sm:$0xff]
    %v3694 = vld [vmem:[%s3691 + $0x10] sm:$0xff]
    %v3695 = vld [vmem:[%s3691 + $0x18] sm:$0xff]
    %v3696 = vld [vmem:[%s3691 + $0x20] sm:$0xff]
    %v3697 = vld [vmem:[%s3691 + $0x28] sm:$0xff]
    %v3698 = vld [vmem:[%s3691 + $0x30] sm:$0xff]
    %v3699 = vld [vmem:[%s3691 + $0x38] sm:$0xff]
    %v3700 = vld [vmem:[%s3691 + $0x40] sm:$0xff]
    %v3701 = vld [vmem:[%s3691 + $0x48] sm:$0xff]
    %v3702 = vld [vmem:[%s3691 + $0x50] sm:$0xff]
    %v3703 = vld [vmem:[%s3691 + $0x58] sm:$0xff]
    %v3704 = vld [vmem:[%s3691 + $0x60] sm:$0xff]
    %v3705 = vld [vmem:[%s3691 + $0x68] sm:$0xff]
    %v3706 = vld [vmem:[%s3691 + $0x70] sm:$0xff]
    %v3707 = vld [vmem:[%s3691 + $0x78] sm:$0xff]
    %v3708 = vld [vmem:[%s3691 + $0x80] sm:$0xff]
    %v3709 = vld [vmem:[%s3691 + $0x88] sm:$0xff]
    %v3710 = vld [vmem:[%s3691 + $0x90] sm:$0xff]
    %v3711 = vld [vmem:[%s3691 + $0x98] sm:$0xff]
    %v3712 = vld [vmem:[%s3691 + $0xa0] sm:$0xff]
    %v3713 = vld [vmem:[%s3691 + $0xa8] sm:$0xff]
    %v3714 = vld [vmem:[%s3691 + $0xb0] sm:$0xff]
    %v3715 = vld [vmem:[%s3691 + $0xb8] sm:$0xff]
    %v3716 = vld [vmem:[%s3691 + $0xc0] sm:$0xff]
    %v3717 = vld [vmem:[%s3691 + $0xc8] sm:$0xff]
    %v3718 = vld [vmem:[%s3691 + $0xd0] sm:$0xff]
    %v3719 = vld [vmem:[%s3691 + $0xd8] sm:$0xff]
    %v3720 = vld [vmem:[%s3691 + $0xe0] sm:$0xff]
    %v3721 = vld [vmem:[%s3691 + $0xe8] sm:$0xff]
    %v3722 = vld [vmem:[%s3691 + $0xf0] sm:$0xff]
    %v3723 = vld [vmem:[%s3691 + $0xf8] sm:$0xff]
    %v3724 = vunpack.c.l.b16 %v3662
    %v3725 = vunpack.c.h.b16 %v3662
    %v3726 = vunpack.c.l.b16 %v3666
    %v3727 = vunpack.c.h.b16 %v3666
    %v3728 = vunpack.c.l.b16 %v3670
    %v3729 = vunpack.c.h.b16 %v3670
    %v3730 = vunpack.c.l.b16 %v3674
    %v3731 = vunpack.c.h.b16 %v3674
    %v3732 = vunpack.c.l.b16 %v3678
    %v3733 = vunpack.c.h.b16 %v3678
    %v3734 = vunpack.c.l.b16 %v3682
    %v3735 = vunpack.c.h.b16 %v3682
    %v3736 = vunpack.c.l.b16 %v3686
    %v3737 = vunpack.c.h.b16 %v3686
    %v3738 = vunpack.c.l.b16 %v3690
    %v3739 = vunpack.c.h.b16 %v3690
    %v3740 = vpack.c.b16 %v3726, %v3724
    %v3741 = vpack.c.b16 %v3727, %v3725
    %v3742 = vpack.c.b16 %v3730, %v3728
    %v3743 = vpack.c.b16 %v3731, %v3729
    %v3744 = vpack.c.b16 %v3734, %v3732
    %v3745 = vpack.c.b16 %v3735, %v3733
    %v3746 = vpack.c.b16 %v3738, %v3736
    %v3747 = vpack.c.b16 %v3739, %v3737
    %v3788 = vunpack.c.l.b16 %v3692
    %v3789 = vunpack.c.h.b16 %v3692
    %v3790 = vunpack.c.l.b16 %v3693
    %v3791 = vunpack.c.h.b16 %v3693
    %v3792 = vunpack.c.l.b16 %v3694
    %v3793 = vunpack.c.h.b16 %v3694
    %v3794 = vunpack.c.l.b16 %v3695
    %v3795 = vunpack.c.h.b16 %v3695
    %v3796 = vunpack.c.l.b16 %v3696
    %v3797 = vunpack.c.h.b16 %v3696
    %v3798 = vunpack.c.l.b16 %v3697
    %v3799 = vunpack.c.h.b16 %v3697
    %v3800 = vunpack.c.l.b16 %v3698
    %v3801 = vunpack.c.h.b16 %v3698
    %v3802 = vunpack.c.l.b16 %v3699
    %v3803 = vunpack.c.h.b16 %v3699
    %v3804 = vunpack.c.l.b16 %v3700
    %v3805 = vunpack.c.h.b16 %v3700
    %v3806 = vunpack.c.l.b16 %v3701
    %v3807 = vunpack.c.h.b16 %v3701
    %v3808 = vunpack.c.l.b16 %v3702
    %v3809 = vunpack.c.h.b16 %v3702
    %v3810 = vunpack.c.l.b16 %v3703
    %v3811 = vunpack.c.h.b16 %v3703
    %v3812 = vunpack.c.l.b16 %v3704
    %v3813 = vunpack.c.h.b16 %v3704
    %v3814 = vunpack.c.l.b16 %v3705
    %v3815 = vunpack.c.h.b16 %v3705
    %v3816 = vunpack.c.l.b16 %v3706
    %v3817 = vunpack.c.h.b16 %v3706
    %v3818 = vunpack.c.l.b16 %v3707
    %v3819 = vunpack.c.h.b16 %v3707
    %v3820 = vunpack.c.l.b16 %v3708
    %v3821 = vunpack.c.h.b16 %v3708
    %v3822 = vunpack.c.l.b16 %v3709
    %v3823 = vunpack.c.h.b16 %v3709
    %v3824 = vunpack.c.l.b16 %v3710
    %v3825 = vunpack.c.h.b16 %v3710
    %v3826 = vunpack.c.l.b16 %v3711
    %v3827 = vunpack.c.h.b16 %v3711
    %v3828 = vunpack.c.l.b16 %v3712
    %v3829 = vunpack.c.h.b16 %v3712
    %v3830 = vunpack.c.l.b16 %v3713
    %v3831 = vunpack.c.h.b16 %v3713
    %v3832 = vunpack.c.l.b16 %v3714
    %v3833 = vunpack.c.h.b16 %v3714
    %v3834 = vunpack.c.l.b16 %v3715
    %v3835 = vunpack.c.h.b16 %v3715
    %v3836 = vunpack.c.l.b16 %v3716
    %v3837 = vunpack.c.h.b16 %v3716
    %v3838 = vunpack.c.l.b16 %v3717
    %v3839 = vunpack.c.h.b16 %v3717
    %v3840 = vunpack.c.l.b16 %v3718
    %v3841 = vunpack.c.h.b16 %v3718
    %v3842 = vunpack.c.l.b16 %v3719
    %v3843 = vunpack.c.h.b16 %v3719
    %v3844 = vunpack.c.l.b16 %v3720
    %v3845 = vunpack.c.h.b16 %v3720
    %v3846 = vunpack.c.l.b16 %v3721
    %v3847 = vunpack.c.h.b16 %v3721
    %v3848 = vunpack.c.l.b16 %v3722
    %v3849 = vunpack.c.h.b16 %v3722
    %v3850 = vunpack.c.l.b16 %v3723
    %v3851 = vunpack.c.h.b16 %v3723
    %v3852 = vpack.c.b16 %v3790, %v3788
    %v3853 = vpack.c.b16 %v3791, %v3789
    %v3854 = vpack.c.b16 %v3794, %v3792
    %v3855 = vpack.c.b16 %v3795, %v3793
    %v3856 = vpack.c.b16 %v3798, %v3796
    %v3857 = vpack.c.b16 %v3799, %v3797
    %v3858 = vpack.c.b16 %v3802, %v3800
    %v3859 = vpack.c.b16 %v3803, %v3801
    %v3860 = vpack.c.b16 %v3806, %v3804
    %v3861 = vpack.c.b16 %v3807, %v3805
    %v3862 = vpack.c.b16 %v3810, %v3808
    %v3863 = vpack.c.b16 %v3811, %v3809
    %v3864 = vpack.c.b16 %v3814, %v3812
    %v3865 = vpack.c.b16 %v3815, %v3813
    %v3866 = vpack.c.b16 %v3818, %v3816
    %v3867 = vpack.c.b16 %v3819, %v3817
    %v3868 = vpack.c.b16 %v3822, %v3820
    %v3869 = vpack.c.b16 %v3823, %v3821
    %v3870 = vpack.c.b16 %v3826, %v3824
    %v3871 = vpack.c.b16 %v3827, %v3825
    %v3872 = vpack.c.b16 %v3830, %v3828
    %v3873 = vpack.c.b16 %v3831, %v3829
    %v3874 = vpack.c.b16 %v3834, %v3832
    %v3875 = vpack.c.b16 %v3835, %v3833
    %v3876 = vpack.c.b16 %v3838, %v3836
    %v3877 = vpack.c.b16 %v3839, %v3837
    %v3878 = vpack.c.b16 %v3842, %v3840
    %v3879 = vpack.c.b16 %v3843, %v3841
    %v3880 = vpack.c.b16 %v3846, %v3844
    %v3881 = vpack.c.b16 %v3847, %v3845
    %v3882 = vpack.c.b16 %v3850, %v3848
    %v3883 = vpack.c.b16 %v3851, %v3849
    %3916 = vmatprep.subr.bf16.mxu0 %v3853
    %3917 = vmatpush1.bf16.msra.mxu0 %v3852
    %3918 = vmatprep.subr.bf16.mxu0 %v3855
    %3919 = vmatpush1.bf16.msra.mxu0 %v3854
    %3920 = vmatprep.subr.bf16.mxu0 %v3857
    %3921 = vmatpush1.bf16.msra.mxu0 %v3856
    %3922 = vmatprep.subr.bf16.mxu0 %v3859
    %3923 = vmatpush1.bf16.msra.mxu0 %v3858
    %3924 = vmatprep.subr.bf16.mxu0 %v3861
    %3925 = vmatpush1.bf16.msra.mxu0 %v3860
    %3926 = vmatprep.subr.bf16.mxu0 %v3863
    %3927 = vmatpush1.bf16.msra.mxu0 %v3862
    %3928 = vmatprep.subr.bf16.mxu0 %v3865
    %3929 = vmatpush1.bf16.msra.mxu0 %v3864
    %3930 = vmatprep.subr.bf16.mxu0 %v3867
    %3931 = vmatpush1.bf16.msra.mxu0 %v3866
    %3932 = vmatprep.subr.bf16.mxu0 %v3869
    %3933 = vmatpush1.bf16.msra.mxu0 %v3868
    %3934 = vmatprep.subr.bf16.mxu0 %v3871
    %3935 = vmatpush1.bf16.msra.mxu0 %v3870
    %3936 = vmatprep.subr.bf16.mxu0 %v3873
    %3937 = vmatpush1.bf16.msra.mxu0 %v3872
    %3938 = vmatprep.subr.bf16.mxu0 %v3875
    %3939 = vmatpush1.bf16.msra.mxu0 %v3874
    %3940 = vmatprep.subr.bf16.mxu0 %v3877
    %3941 = vmatpush1.bf16.msra.mxu0 %v3876
    %3942 = vmatprep.subr.bf16.mxu0 %v3879
    %3943 = vmatpush1.bf16.msra.mxu0 %v3878
    %3944 = vmatprep.subr.bf16.mxu0 %v3881
    %3945 = vmatpush1.bf16.msra.mxu0 %v3880
    %3946 = vmatprep.subr.bf16.mxu0 %v3883
    %3947 = vmatpush1.bf16.msra.mxu0 %v3882
    %3948 = vmatprep.mubr.bf16.mxu0 %v3741
    %3949 = vmatmul.mubr.bf16.gmra.mrb[0].mxu0 %v3740
    %v3950 = vpop.f32.mrb[0].mxu0
    %v3951 = vadd.f32 0.0, %v3950
    %v3952 = vpop.f32.mrb[0].mxu0
    %v3953 = vadd.f32 0.0, %v3952
    %v3954 = vpop.f32.mrb[0].mxu0
    %v3955 = vadd.f32 0.0, %v3954
    %v3956 = vpop.f32.mrb[0].mxu0
    %v3957 = vadd.f32 0.0, %v3956
    %3958 = vmatprep.mubr.bf16.mxu0 %v3743
    %3959 = vmatmul.mubr.bf16.gmra.mrb[0].mxu0 %v3742
    %v3960 = vpop.f32.mrb[0].mxu0
    %v3961 = vadd.f32 0.0, %v3960
    %v3962 = vpop.f32.mrb[0].mxu0
    %v3963 = vadd.f32 0.0, %v3962
    %v3964 = vpop.f32.mrb[0].mxu0
    %v3965 = vadd.f32 0.0, %v3964
    %v3966 = vpop.f32.mrb[0].mxu0
    %v3967 = vadd.f32 0.0, %v3966
    %3968 = vmatprep.mubr.bf16.mxu0 %v3745
    %3969 = vmatmul.mubr.bf16.gmra.mrb[0].mxu0 %v3744
    %v3970 = vpop.f32.mrb[0].mxu0
    %v3971 = vadd.f32 0.0, %v3970
    %v3972 = vpop.f32.mrb[0].mxu0
    %v3973 = vadd.f32 0.0, %v3972
    %v3974 = vpop.f32.mrb[0].mxu0
    %v3975 = vadd.f32 0.0, %v3974
    %v3976 = vpop.f32.mrb[0].mxu0
    %v3977 = vadd.f32 0.0, %v3976
    %3978 = vmatprep.mubr.bf16.mxu0 %v3747
    %3979 = vmatmul.mubr.bf16.gmra.mrb[0].mxu0 %v3746
    %v3980 = vpop.f32.mrb[0].mxu0
    %v3981 = vadd.f32 0.0, %v3980
    %v3982 = vpop.f32.mrb[0].mxu0
    %v3983 = vadd.f32 0.0, %v3982
    %v3984 = vpop.f32.mrb[0].mxu0
    %v3985 = vadd.f32 0.0, %v3984
    %v3986 = vpop.f32.mrb[0].mxu0
    %v3987 = vadd.f32 0.0, %v3986
    %3988 = vdwg.mxu0
    %v3989 = vld [vmem:[#allocation3] sm:$0xff]
    %v3990 = vld [vmem:[#allocation3 + $0x8] sm:$0xff]
    %v3991 = vld [vmem:[#allocation3 + $0x10] sm:$0xff]
    %v3992 = vld [vmem:[#allocation3 + $0x18] sm:$0xff]
    %v3993 = vld [vmem:[#allocation3 + $0x20] sm:$0xff]
    %v3994 = vld [vmem:[#allocation3 + $0x28] sm:$0xff]
    %v3995 = vld [vmem:[#allocation3 + $0x30] sm:$0xff]
    %v3996 = vld [vmem:[#allocation3 + $0x38] sm:$0xff]
    %v3997 = vld [vmem:[#allocation3 + $0x40] sm:$0xff]
    %v3998 = vld [vmem:[#allocation3 + $0x48] sm:$0xff]
    %v3999 = vld [vmem:[#allocation3 + $0x50] sm:$0xff]
    %v4000 = vld [vmem:[#allocation3 + $0x58] sm:$0xff]
    %v4001 = vld [vmem:[#allocation3 + $0x60] sm:$0xff]
    %v4002 = vld [vmem:[#allocation3 + $0x68] sm:$0xff]
    %v4003 = vld [vmem:[#allocation3 + $0x70] sm:$0xff]
    %v4004 = vld [vmem:[#allocation3 + $0x78] sm:$0xff]
    %v4005 = vadd.f32 %v3989, %v3951
    %v4006 = vadd.f32 %v3990, %v3953
    %v4007 = vadd.f32 %v3991, %v3955
    %v4008 = vadd.f32 %v3992, %v3957
    %v4009 = vadd.f32 %v3993, %v3961
    %v4010 = vadd.f32 %v3994, %v3963
    %v4011 = vadd.f32 %v3995, %v3965
    %v4012 = vadd.f32 %v3996, %v3967
    %v4013 = vadd.f32 %v3997, %v3971
    %v4014 = vadd.f32 %v3998, %v3973
    %v4015 = vadd.f32 %v3999, %v3975
    %v4016 = vadd.f32 %v4000, %v3977
    %v4017 = vadd.f32 %v4001, %v3981
    %v4018 = vadd.f32 %v4002, %v3983
    %v4019 = vadd.f32 %v4003, %v3985
    %v4020 = vadd.f32 %v4004, %v3987
    %4021 = vst [vmem:[#allocation3] sm:$0xff] %v4005
    %4022 = vst [vmem:[#allocation3 + $0x8] sm:$0xff] %v4006
    %4023 = vst [vmem:[#allocation3 + $0x10] sm:$0xff] %v4007
    %4024 = vst [vmem:[#allocation3 + $0x18] sm:$0xff] %v4008
    %4025 = vst [vmem:[#allocation3 + $0x20] sm:$0xff] %v4009
    %4026 = vst [vmem:[#allocation3 + $0x28] sm:$0xff] %v4010
    %4027 = vst [vmem:[#allocation3 + $0x30] sm:$0xff] %v4011
    %4028 = vst [vmem:[#allocation3 + $0x38] sm:$0xff] %v4012
    %4029 = vst [vmem:[#allocation3 + $0x40] sm:$0xff] %v4013
    %4030 = vst [vmem:[#allocation3 + $0x48] sm:$0xff] %v4014
    %4031 = vst [vmem:[#allocation3 + $0x50] sm:$0xff] %v4015
    %4032 = vst [vmem:[#allocation3 + $0x58] sm:$0xff] %v4016
    %4033 = vst [vmem:[#allocation3 + $0x60] sm:$0xff] %v4017
    %4034 = vst [vmem:[#allocation3 + $0x68] sm:$0xff] %v4018
    %4035 = vst [vmem:[#allocation3 + $0x70] sm:$0xff] %v4019
    %4036 = vst [vmem:[#allocation3 + $0x78] sm:$0xff] %v4020
    %v4037 = vld [vmem:[#allocation3] sm:$0xff]
    %v4038 = vld [vmem:[#allocation3 + $0x8] sm:$0xff]
    %v4039 = vld [vmem:[#allocation3 + $0x10] sm:$0xff]
    %v4040 = vld [vmem:[#allocation3 + $0x18] sm:$0xff]
    %v4041 = vld [vmem:[#allocation3 + $0x20] sm:$0xff]
    %v4042 = vld [vmem:[#allocation3 + $0x28] sm:$0xff]
    %v4043 = vld [vmem:[#allocation3 + $0x30] sm:$0xff]
    %v4044 = vld [vmem:[#allocation3 + $0x38] sm:$0xff]
    %v4045 = vld [vmem:[#allocation3 + $0x40] sm:$0xff]
    %v4046 = vld [vmem:[#allocation3 + $0x48] sm:$0xff]
    %v4047 = vld [vmem:[#allocation3 + $0x50] sm:$0xff]
    %v4048 = vld [vmem:[#allocation3 + $0x58] sm:$0xff]
    %v4049 = vld [vmem:[#allocation3 + $0x60] sm:$0xff]
    %v4050 = vld [vmem:[#allocation3 + $0x68] sm:$0xff]
    %v4051 = vld [vmem:[#allocation3 + $0x70] sm:$0xff]
    %v4052 = vld [vmem:[#allocation3 + $0x78] sm:$0xff]
    %v4053 = vld [vmem:[#allocation9] sm:$0x3]
    %v4055 = vlaneseq
    %v4056 = vshrl.u32 %v4055, 7
    %v4057 = vsub.s32 0, %v4056
    %v4058 = vrot.slane %v4053, %v4057
    %v4059 = vlaneseq
    %v4060 = vshrl.u32 %v4059, 7
    %v4061 = vsub.s32 1, %v4060
    %v4062 = vrot.slane %v4053, %v4061
    %v4065 = vadd.f32 %v4037, %v4058
    %v4066 = vadd.f32 %v4038, %v4062
    %v4067 = vadd.f32 %v4039, %v4058
    %v4068 = vadd.f32 %v4040, %v4062
    %v4069 = vadd.f32 %v4041, %v4058
    %v4070 = vadd.f32 %v4042, %v4062
    %v4071 = vadd.f32 %v4043, %v4058
    %v4072 = vadd.f32 %v4044, %v4062
    %v4073 = vadd.f32 %v4045, %v4058
    %v4074 = vadd.f32 %v4046, %v4062
    %v4075 = vadd.f32 %v4047, %v4058
    %v4076 = vadd.f32 %v4048, %v4062
    %v4077 = vadd.f32 %v4049, %v4058
    %v4078 = vadd.f32 %v4050, %v4062
    %v4079 = vadd.f32 %v4051, %v4058
    %v4080 = vadd.f32 %v4052, %v4062
    %v4081 = vmax.f32 %v4065, 0.0
    %v4082 = vmax.f32 %v4066, 0.0
    %v4083 = vmax.f32 %v4067, 0.0
    %v4084 = vmax.f32 %v4068, 0.0
    %v4085 = vmax.f32 %v4069, 0.0
    %v4086 = vmax.f32 %v4070, 0.0
    %v4087 = vmax.f32 %v4071, 0.0
    %v4088 = vmax.f32 %v4072, 0.0
    %v4089 = vmax.f32 %v4073, 0.0
    %v4090 = vmax.f32 %v4074, 0.0
    %v4091 = vmax.f32 %v4075, 0.0
    %v4092 = vmax.f32 %v4076, 0.0
    %v4093 = vmax.f32 %v4077, 0.0
    %v4094 = vmax.f32 %v4078, 0.0
    %v4095 = vmax.f32 %v4079, 0.0
    %v4096 = vmax.f32 %v4080, 0.0
    %v4097 = vpack.c.bf16 %v4081, %v4081
    %v4098 = vpack.c.bf16 %v4082, %v4082
    %v4099 = vpack.c.bf16 %v4083, %v4083
    %v4100 = vpack.c.bf16 %v4084, %v4084
    %v4101 = vpack.c.bf16 %v4085, %v4085
    %v4102 = vpack.c.bf16 %v4086, %v4086
    %v4103 = vpack.c.bf16 %v4087, %v4087
    %v4104 = vpack.c.bf16 %v4088, %v4088
    %v4105 = vpack.c.bf16 %v4089, %v4089
    %v4106 = vpack.c.bf16 %v4090, %v4090
    %v4107 = vpack.c.bf16 %v4091, %v4091
    %v4108 = vpack.c.bf16 %v4092, %v4092
    %v4109 = vpack.c.bf16 %v4093, %v4093
    %v4110 = vpack.c.bf16 %v4094, %v4094
    %v4111 = vpack.c.bf16 %v4095, %v4095
    %v4112 = vpack.c.bf16 %v4096, %v4096
    %v4129 = vunpack.c.l.b16 %v4097
    %v4130 = vunpack.c.l.b16 %v4098
    %v4131 = vunpack.c.l.b16 %v4099
    %v4132 = vunpack.c.l.b16 %v4100
    %v4133 = vunpack.c.l.b16 %v4101
    %v4134 = vunpack.c.l.b16 %v4102
    %v4135 = vunpack.c.l.b16 %v4103
    %v4136 = vunpack.c.l.b16 %v4104
    %v4137 = vunpack.c.l.b16 %v4105
    %v4138 = vunpack.c.l.b16 %v4106
    %v4139 = vunpack.c.l.b16 %v4107
    %v4140 = vunpack.c.l.b16 %v4108
    %v4141 = vunpack.c.l.b16 %v4109
    %v4142 = vunpack.c.l.b16 %v4110
    %v4143 = vunpack.c.l.b16 %v4111
    %v4144 = vunpack.c.l.b16 %v4112
    %v4145 = vpack.c.b16 %v4130, %v4129
    %v4146 = vpack.c.b16 %v4132, %v4131
    %v4147 = vpack.c.b16 %v4134, %v4133
    %v4148 = vpack.c.b16 %v4136, %v4135
    %v4149 = vpack.c.b16 %v4138, %v4137
    %v4150 = vpack.c.b16 %v4140, %v4139
    %v4151 = vpack.c.b16 %v4142, %v4141
    %v4152 = vpack.c.b16 %v4144, %v4143
    %v4154 = vshrl.u32 %v4145, 16
    %v4156 = vrot.slane %v4154, 7
    %v4157 = vshll.u32 %v4145, 16
    %v4159 = vor.u32 %v4156, %v4157
    %v4160 = vrot.slane %v4156, 4
    %v4162 = vshrl.u32 %v4146, 16
    %v4164 = vrot.slane %v4162, 7
    %v4165 = vshll.u32 %v4146, 16
    %v4167 = vor.u32 %v4164, %v4165
    %v4168 = vrot.slane %v4164, 4
    %v4170 = vshrl.u32 %v4147, 16
    %v4172 = vrot.slane %v4170, 7
    %v4173 = vshll.u32 %v4147, 16
    %v4175 = vor.u32 %v4172, %v4173
    %v4176 = vrot.slane %v4172, 4
    %v4178 = vshrl.u32 %v4148, 16
    %v4180 = vrot.slane %v4178, 7
    %v4181 = vshll.u32 %v4148, 16
    %v4183 = vor.u32 %v4180, %v4181
    %v4184 = vrot.slane %v4180, 4
    %v4186 = vshrl.u32 %v4149, 16
    %v4188 = vrot.slane %v4186, 7
    %v4189 = vshll.u32 %v4149, 16
    %v4191 = vor.u32 %v4188, %v4189
    %v4192 = vrot.slane %v4188, 4
    %v4194 = vshrl.u32 %v4150, 16
    %v4196 = vrot.slane %v4194, 7
    %v4197 = vshll.u32 %v4150, 16
    %v4199 = vor.u32 %v4196, %v4197
    %v4200 = vrot.slane %v4196, 4
    %v4202 = vshrl.u32 %v4151, 16
    %v4204 = vrot.slane %v4202, 7
    %v4205 = vshll.u32 %v4151, 16
    %v4207 = vor.u32 %v4204, %v4205
    %v4208 = vrot.slane %v4204, 4
    %v4210 = vshrl.u32 %v4152, 16
    %v4212 = vrot.slane %v4210, 7
    %v4213 = vshll.u32 %v4152, 16
    %v4215 = vor.u32 %v4212, %v4213
    %v4216 = vrot.slane %v4212, 4
    %v4233 = vld [vmem:[%s262] sm:$0xff]
    %v4234 = vsel %vm269, %v4159, %v4233
    %4235 = vst [vmem:[%s262] sm:$0xff] %v4234
    %v4236 = vld [vmem:[%s262 + $0x8] sm:$0x11]
    %v4237 = vsel %vm279, %v4160, %v4236
    %4238 = vst [vmem:[%s262 + $0x8] sm:$0x11] %v4237
    %v4239 = vld [vmem:[%s262 + $0x10] sm:$0xff]
    %v4240 = vsel %vm269, %v4167, %v4239
    %4241 = vst [vmem:[%s262 + $0x10] sm:$0xff] %v4240
    %v4242 = vld [vmem:[%s262 + $0x18] sm:$0x11]
    %v4243 = vsel %vm279, %v4168, %v4242
    %4244 = vst [vmem:[%s262 + $0x18] sm:$0x11] %v4243
    %v4245 = vld [vmem:[%s262 + $0x20] sm:$0xff]
    %v4246 = vsel %vm269, %v4175, %v4245
    %4247 = vst [vmem:[%s262 + $0x20] sm:$0xff] %v4246
    %v4248 = vld [vmem:[%s262 + $0x28] sm:$0x11]
    %v4249 = vsel %vm279, %v4176, %v4248
    %4250 = vst [vmem:[%s262 + $0x28] sm:$0x11] %v4249
    %v4251 = vld [vmem:[%s262 + $0x30] sm:$0xff]
    %v4252 = vsel %vm269, %v4183, %v4251
    %4253 = vst [vmem:[%s262 + $0x30] sm:$0xff] %v4252
    %v4254 = vld [vmem:[%s262 + $0x38] sm:$0x11]
    %v4255 = vsel %vm279, %v4184, %v4254
    %4256 = vst [vmem:[%s262 + $0x38] sm:$0x11] %v4255
    %v4257 = vld [vmem:[%s262 + $0x60] sm:$0xff]
    %v4258 = vsel %vm269, %v4191, %v4257
    %4259 = vst [vmem:[%s262 + $0x60] sm:$0xff] %v4258
    %v4260 = vld [vmem:[%s262 + $0x68] sm:$0x11]
    %v4261 = vsel %vm279, %v4192, %v4260
    %4262 = vst [vmem:[%s262 + $0x68] sm:$0x11] %v4261
    %v4263 = vld [vmem:[%s262 + $0x70] sm:$0xff]
    %v4264 = vsel %vm269, %v4199, %v4263
    %4265 = vst [vmem:[%s262 + $0x70] sm:$0xff] %v4264
    %v4266 = vld [vmem:[%s262 + $0x78] sm:$0x11]
    %v4267 = vsel %vm279, %v4200, %v4266
    %4268 = vst [vmem:[%s262 + $0x78] sm:$0x11] %v4267
    %v4269 = vld [vmem:[%s262 + $0x80] sm:$0xff]
    %v4270 = vsel %vm269, %v4207, %v4269
    %4271 = vst [vmem:[%s262 + $0x80] sm:$0xff] %v4270
    %v4272 = vld [vmem:[%s262 + $0x88] sm:$0x11]
    %v4273 = vsel %vm279, %v4208, %v4272
    %4274 = vst [vmem:[%s262 + $0x88] sm:$0x11] %v4273
    %v4275 = vld [vmem:[%s262 + $0x90] sm:$0xff]
    %v4276 = vsel %vm269, %v4215, %v4275
    %4277 = vst [vmem:[%s262 + $0x90] sm:$0xff] %v4276
    %v4278 = vld [vmem:[%s262 + $0x98] sm:$0x11]
    %v4279 = vsel %vm279, %v4216, %v4278
    %4280 = vst [vmem:[%s262 + $0x98] sm:$0x11] %v4279
    %v4281 = vld [vmem:[#allocation2] sm:$0xff]
    %v4282 = vld [vmem:[#allocation2 + $0x10] sm:$0xff]
    %v4283 = vld [vmem:[#allocation2 + $0x20] sm:$0xff]
    %v4284 = vld [vmem:[#allocation2 + $0x30] sm:$0xff]
    %v4285 = vld [vmem:[#allocation2 + $0x60] sm:$0xff]
    %v4286 = vld [vmem:[#allocation2 + $0x70] sm:$0xff]
    %v4287 = vld [vmem:[#allocation2 + $0x80] sm:$0xff]
    %v4288 = vld [vmem:[#allocation2 + $0x90] sm:$0xff]
    %v4289 = vld [vmem:[#allocation10] sm:$0xff]
    %v4290 = vld [vmem:[#allocation10 + $0x8] sm:$0xff]
    %v4291 = vld [vmem:[#allocation10 + $0x10] sm:$0xff]
    %v4292 = vld [vmem:[#allocation10 + $0x18] sm:$0xff]
    %v4293 = vld [vmem:[#allocation10 + $0x20] sm:$0xff]
    %v4294 = vld [vmem:[#allocation10 + $0x28] sm:$0xff]
    %v4295 = vld [vmem:[#allocation10 + $0x30] sm:$0xff]
    %v4296 = vld [vmem:[#allocation10 + $0x38] sm:$0xff]
    %v4297 = vld [vmem:[#allocation10 + $0x40] sm:$0xff]
    %v4298 = vld [vmem:[#allocation10 + $0x48] sm:$0xff]
    %v4299 = vld [vmem:[#allocation10 + $0x50] sm:$0xff]
    %v4300 = vld [vmem:[#allocation10 + $0x58] sm:$0xff]
    %v4301 = vld [vmem:[#allocation10 + $0x60] sm:$0xff]
    %v4302 = vld [vmem:[#allocation10 + $0x68] sm:$0xff]
    %v4303 = vld [vmem:[#allocation10 + $0x70] sm:$0xff]
    %v4304 = vld [vmem:[#allocation10 + $0x78] sm:$0xff]
    %v4305 = vld [vmem:[#allocation10 + $0x80] sm:$0xff]
    %v4306 = vld [vmem:[#allocation10 + $0x88] sm:$0xff]
    %v4307 = vld [vmem:[#allocation10 + $0x90] sm:$0xff]
    %v4308 = vld [vmem:[#allocation10 + $0x98] sm:$0xff]
    %v4309 = vld [vmem:[#allocation10 + $0xa0] sm:$0xff]
    %v4310 = vld [vmem:[#allocation10 + $0xa8] sm:$0xff]
    %v4311 = vld [vmem:[#allocation10 + $0xb0] sm:$0xff]
    %v4312 = vld [vmem:[#allocation10 + $0xb8] sm:$0xff]
    %v4313 = vld [vmem:[#allocation10 + $0xc0] sm:$0xff]
    %v4314 = vld [vmem:[#allocation10 + $0xc8] sm:$0xff]
    %v4315 = vld [vmem:[#allocation10 + $0xd0] sm:$0xff]
    %v4316 = vld [vmem:[#allocation10 + $0xd8] sm:$0xff]
    %v4317 = vld [vmem:[#allocation10 + $0xe0] sm:$0xff]
    %v4318 = vld [vmem:[#allocation10 + $0xe8] sm:$0xff]
    %v4319 = vld [vmem:[#allocation10 + $0xf0] sm:$0xff]
    %v4320 = vld [vmem:[#allocation10 + $0xf8] sm:$0xff]
    %v4329 = vunpack.c.l.b16 %v4281
    %v4330 = vunpack.c.h.b16 %v4281
    %v4331 = vunpack.c.l.b16 %v4282
    %v4332 = vunpack.c.h.b16 %v4282
    %v4333 = vunpack.c.l.b16 %v4283
    %v4334 = vunpack.c.h.b16 %v4283
    %v4335 = vunpack.c.l.b16 %v4284
    %v4336 = vunpack.c.h.b16 %v4284
    %v4337 = vunpack.c.l.b16 %v4285
    %v4338 = vunpack.c.h.b16 %v4285
    %v4339 = vunpack.c.l.b16 %v4286
    %v4340 = vunpack.c.h.b16 %v4286
    %v4341 = vunpack.c.l.b16 %v4287
    %v4342 = vunpack.c.h.b16 %v4287
    %v4343 = vunpack.c.l.b16 %v4288
    %v4344 = vunpack.c.h.b16 %v4288
    %v4345 = vpack.c.b16 %v4331, %v4329
    %v4346 = vpack.c.b16 %v4332, %v4330
    %v4347 = vpack.c.b16 %v4335, %v4333
    %v4348 = vpack.c.b16 %v4336, %v4334
    %v4349 = vpack.c.b16 %v4339, %v4337
    %v4350 = vpack.c.b16 %v4340, %v4338
    %v4351 = vpack.c.b16 %v4343, %v4341
    %v4352 = vpack.c.b16 %v4344, %v4342
    %v4393 = vunpack.c.l.b16 %v4289
    %v4394 = vunpack.c.h.b16 %v4289
    %v4395 = vunpack.c.l.b16 %v4290
    %v4396 = vunpack.c.h.b16 %v4290
    %v4397 = vunpack.c.l.b16 %v4291
    %v4398 = vunpack.c.h.b16 %v4291
    %v4399 = vunpack.c.l.b16 %v4292
    %v4400 = vunpack.c.h.b16 %v4292
    %v4401 = vunpack.c.l.b16 %v4293
    %v4402 = vunpack.c.h.b16 %v4293
    %v4403 = vunpack.c.l.b16 %v4294
    %v4404 = vunpack.c.h.b16 %v4294
    %v4405 = vunpack.c.l.b16 %v4295
    %v4406 = vunpack.c.h.b16 %v4295
    %v4407 = vunpack.c.l.b16 %v4296
    %v4408 = vunpack.c.h.b16 %v4296
    %v4409 = vunpack.c.l.b16 %v4297
    %v4410 = vunpack.c.h.b16 %v4297
    %v4411 = vunpack.c.l.b16 %v4298
    %v4412 = vunpack.c.h.b16 %v4298
    %v4413 = vunpack.c.l.b16 %v4299
    %v4414 = vunpack.c.h.b16 %v4299
    %v4415 = vunpack.c.l.b16 %v4300
    %v4416 = vunpack.c.h.b16 %v4300
    %v4417 = vunpack.c.l.b16 %v4301
    %v4418 = vunpack.c.h.b16 %v4301
    %v4419 = vunpack.c.l.b16 %v4302
    %v4420 = vunpack.c.h.b16 %v4302
    %v4421 = vunpack.c.l.b16 %v4303
    %v4422 = vunpack.c.h.b16 %v4303
    %v4423 = vunpack.c.l.b16 %v4304
    %v4424 = vunpack.c.h.b16 %v4304
    %v4425 = vunpack.c.l.b16 %v4305
    %v4426 = vunpack.c.h.b16 %v4305
    %v4427 = vunpack.c.l.b16 %v4306
    %v4428 = vunpack.c.h.b16 %v4306
    %v4429 = vunpack.c.l.b16 %v4307
    %v4430 = vunpack.c.h.b16 %v4307
    %v4431 = vunpack.c.l.b16 %v4308
    %v4432 = vunpack.c.h.b16 %v4308
    %v4433 = vunpack.c.l.b16 %v4309
    %v4434 = vunpack.c.h.b16 %v4309
    %v4435 = vunpack.c.l.b16 %v4310
    %v4436 = vunpack.c.h.b16 %v4310
    %v4437 = vunpack.c.l.b16 %v4311
    %v4438 = vunpack.c.h.b16 %v4311
    %v4439 = vunpack.c.l.b16 %v4312
    %v4440 = vunpack.c.h.b16 %v4312
    %v4441 = vunpack.c.l.b16 %v4313
    %v4442 = vunpack.c.h.b16 %v4313
    %v4443 = vunpack.c.l.b16 %v4314
    %v4444 = vunpack.c.h.b16 %v4314
    %v4445 = vunpack.c.l.b16 %v4315
    %v4446 = vunpack.c.h.b16 %v4315
    %v4447 = vunpack.c.l.b16 %v4316
    %v4448 = vunpack.c.h.b16 %v4316
    %v4449 = vunpack.c.l.b16 %v4317
    %v4450 = vunpack.c.h.b16 %v4317
    %v4451 = vunpack.c.l.b16 %v4318
    %v4452 = vunpack.c.h.b16 %v4318
    %v4453 = vunpack.c.l.b16 %v4319
    %v4454 = vunpack.c.h.b16 %v4319
    %v4455 = vunpack.c.l.b16 %v4320
    %v4456 = vunpack.c.h.b16 %v4320
    %v4457 = vpack.c.b16 %v4395, %v4393
    %v4458 = vpack.c.b16 %v4396, %v4394
    %v4459 = vpack.c.b16 %v4399, %v4397
    %v4460 = vpack.c.b16 %v4400, %v4398
    %v4461 = vpack.c.b16 %v4403, %v4401
    %v4462 = vpack.c.b16 %v4404, %v4402
    %v4463 = vpack.c.b16 %v4407, %v4405
    %v4464 = vpack.c.b16 %v4408, %v4406
    %v4465 = vpack.c.b16 %v4411, %v4409
    %v4466 = vpack.c.b16 %v4412, %v4410
    %v4467 = vpack.c.b16 %v4415, %v4413
    %v4468 = vpack.c.b16 %v4416, %v4414
    %v4469 = vpack.c.b16 %v4419, %v4417
    %v4470 = vpack.c.b16 %v4420, %v4418
    %v4471 = vpack.c.b16 %v4423, %v4421
    %v4472 = vpack.c.b16 %v4424, %v4422
    %v4473 = vpack.c.b16 %v4427, %v4425
    %v4474 = vpack.c.b16 %v4428, %v4426
    %v4475 = vpack.c.b16 %v4431, %v4429
    %v4476 = vpack.c.b16 %v4432, %v4430
    %v4477 = vpack.c.b16 %v4435, %v4433
    %v4478 = vpack.c.b16 %v4436, %v4434
    %v4479 = vpack.c.b16 %v4439, %v4437
    %v4480 = vpack.c.b16 %v4440, %v4438
    %v4481 = vpack.c.b16 %v4443, %v4441
    %v4482 = vpack.c.b16 %v4444, %v4442
    %v4483 = vpack.c.b16 %v4447, %v4445
    %v4484 = vpack.c.b16 %v4448, %v4446
    %v4485 = vpack.c.b16 %v4451, %v4449
    %v4486 = vpack.c.b16 %v4452, %v4450
    %v4487 = vpack.c.b16 %v4455, %v4453
    %v4488 = vpack.c.b16 %v4456, %v4454
    %4521 = vmatprep.subr.bf16.mxu0 %v4458
    %4522 = vmatpush1.bf16.msra.mxu0 %v4457
    %4523 = vmatprep.subr.bf16.mxu0 %v4460
    %4524 = vmatpush1.bf16.msra.mxu0 %v4459
    %4525 = vmatprep.subr.bf16.mxu0 %v4462
    %4526 = vmatpush1.bf16.msra.mxu0 %v4461
    %4527 = vmatprep.subr.bf16.mxu0 %v4464
    %4528 = vmatpush1.bf16.msra.mxu0 %v4463
    %4529 = vmatprep.subr.bf16.mxu0 %v4466
    %4530 = vmatpush1.bf16.msra.mxu0 %v4465
    %4531 = vmatprep.subr.bf16.mxu0 %v4468
    %4532 = vmatpush1.bf16.msra.mxu0 %v4467
    %4533 = vmatprep.subr.bf16.mxu0 %v4470
    %4534 = vmatpush1.bf16.msra.mxu0 %v4469
    %4535 = vmatprep.subr.bf16.mxu0 %v4472
    %4536 = vmatpush1.bf16.msra.mxu0 %v4471
    %4537 = vmatprep.subr.bf16.mxu0 %v4474
    %4538 = vmatpush1.bf16.msra.mxu0 %v4473
    %4539 = vmatprep.subr.bf16.mxu0 %v4476
    %4540 = vmatpush1.bf16.msra.mxu0 %v4475
    %4541 = vmatprep.subr.bf16.mxu0 %v4478
    %4542 = vmatpush1.bf16.msra.mxu0 %v4477
    %4543 = vmatprep.subr.bf16.mxu0 %v4480
    %4544 = vmatpush1.bf16.msra.mxu0 %v4479
    %4545 = vmatprep.subr.bf16.mxu0 %v4482
    %4546 = vmatpush1.bf16.msra.mxu0 %v4481
    %4547 = vmatprep.subr.bf16.mxu0 %v4484
    %4548 = vmatpush1.bf16.msra.mxu0 %v4483
    %4549 = vmatprep.subr.bf16.mxu0 %v4486
    %4550 = vmatpush1.bf16.msra.mxu0 %v4485
    %4551 = vmatprep.subr.bf16.mxu0 %v4488
    %4552 = vmatpush1.bf16.msra.mxu0 %v4487
    %4553 = vmatprep.mubr.bf16.mxu0 %v4346
    %4554 = vmatmul.mubr.bf16.gmra.mrb[0].mxu0 %v4345
    %v4555 = vpop.f32.mrb[0].mxu0
    %v4556 = vadd.f32 0.0, %v4555
    %v4557 = vpop.f32.mrb[0].mxu0
    %v4558 = vadd.f32 0.0, %v4557
    %v4559 = vpop.f32.mrb[0].mxu0
    %v4560 = vadd.f32 0.0, %v4559
    %v4561 = vpop.f32.mrb[0].mxu0
    %v4562 = vadd.f32 0.0, %v4561
    %4563 = vmatprep.mubr.bf16.mxu0 %v4348
    %4564 = vmatmul.mubr.bf16.gmra.mrb[0].mxu0 %v4347
    %v4565 = vpop.f32.mrb[0].mxu0
    %v4566 = vadd.f32 0.0, %v4565
    %v4567 = vpop.f32.mrb[0].mxu0
    %v4568 = vadd.f32 0.0, %v4567
    %v4569 = vpop.f32.mrb[0].mxu0
    %v4570 = vadd.f32 0.0, %v4569
    %v4571 = vpop.f32.mrb[0].mxu0
    %v4572 = vadd.f32 0.0, %v4571
    %4573 = vmatprep.mubr.bf16.mxu0 %v4350
    %4574 = vmatmul.mubr.bf16.gmra.mrb[0].mxu0 %v4349
    %v4575 = vpop.f32.mrb[0].mxu0
    %v4576 = vadd.f32 0.0, %v4575
    %v4577 = vpop.f32.mrb[0].mxu0
    %v4578 = vadd.f32 0.0, %v4577
    %v4579 = vpop.f32.mrb[0].mxu0
    %v4580 = vadd.f32 0.0, %v4579
    %v4581 = vpop.f32.mrb[0].mxu0
    %v4582 = vadd.f32 0.0, %v4581
    %4583 = vmatprep.mubr.bf16.mxu0 %v4352
    %4584 = vmatmul.mubr.bf16.gmra.mrb[0].mxu0 %v4351
    %v4585 = vpop.f32.mrb[0].mxu0
    %v4586 = vadd.f32 0.0, %v4585
    %v4587 = vpop.f32.mrb[0].mxu0
    %v4588 = vadd.f32 0.0, %v4587
    %v4589 = vpop.f32.mrb[0].mxu0
    %v4590 = vadd.f32 0.0, %v4589
    %v4591 = vpop.f32.mrb[0].mxu0
    %v4592 = vadd.f32 0.0, %v4591
    %4593 = vdwg.mxu0
    %4594 = vst [vmem:[#allocation3] sm:$0xff] %v4556
    %4595 = vst [vmem:[#allocation3 + $0x8] sm:$0xff] %v4558
    %4596 = vst [vmem:[#allocation3 + $0x10] sm:$0xff] %v4560
    %4597 = vst [vmem:[#allocation3 + $0x18] sm:$0xff] %v4562
    %4598 = vst [vmem:[#allocation3 + $0x20] sm:$0xff] %v4566
    %4599 = vst [vmem:[#allocation3 + $0x28] sm:$0xff] %v4568
    %4600 = vst [vmem:[#allocation3 + $0x30] sm:$0xff] %v4570
    %4601 = vst [vmem:[#allocation3 + $0x38] sm:$0xff] %v4572
    %4602 = vst [vmem:[#allocation3 + $0x40] sm:$0xff] %v4576
    %4603 = vst [vmem:[#allocation3 + $0x48] sm:$0xff] %v4578
    %4604 = vst [vmem:[#allocation3 + $0x50] sm:$0xff] %v4580
    %4605 = vst [vmem:[#allocation3 + $0x58] sm:$0xff] %v4582
    %4606 = vst [vmem:[#allocation3 + $0x60] sm:$0xff] %v4586
    %4607 = vst [vmem:[#allocation3 + $0x68] sm:$0xff] %v4588
    %4608 = vst [vmem:[#allocation3 + $0x70] sm:$0xff] %v4590
    %4609 = vst [vmem:[#allocation3 + $0x78] sm:$0xff] %v4592
    %v4610 = vld [vmem:[#allocation2] sm:$0xff]
    %v4611 = vld [vmem:[#allocation2 + $0x8] sm:$0x11]
    %v4612 = vld [vmem:[#allocation2 + $0x10] sm:$0xff]
    %v4613 = vld [vmem:[#allocation2 + $0x18] sm:$0x11]
    %v4614 = vld [vmem:[#allocation2 + $0x20] sm:$0xff]
    %v4615 = vld [vmem:[#allocation2 + $0x28] sm:$0x11]
    %v4616 = vld [vmem:[#allocation2 + $0x30] sm:$0xff]
    %v4617 = vld [vmem:[#allocation2 + $0x38] sm:$0x11]
    %v4618 = vld [vmem:[#allocation2 + $0x60] sm:$0xff]
    %v4619 = vld [vmem:[#allocation2 + $0x68] sm:$0x11]
    %v4620 = vld [vmem:[#allocation2 + $0x70] sm:$0xff]
    %v4621 = vld [vmem:[#allocation2 + $0x78] sm:$0x11]
    %v4622 = vld [vmem:[#allocation2 + $0x80] sm:$0xff]
    %v4623 = vld [vmem:[#allocation2 + $0x88] sm:$0x11]
    %v4624 = vld [vmem:[#allocation2 + $0x90] sm:$0xff]
    %v4625 = vld [vmem:[#allocation2 + $0x98] sm:$0x11]
    %v4627 = vshrl.u32 %v4610, 16
    %v4629 = vrot.slane %v4627, 4
    %v4630 = vshll.u32 %v4610, 16
    %v4632 = vrot.slane %v4630, 5
    %v4633 = vor.u32 %v4629, %v4632
    %v4634 = vrot.slane %v4633, 4
    %v4636 = vshll.u32 %v4611, 16
    %v4638 = vrot.slane %v4636, 5
    %v4639 = vsel %vm672, %v4634, %v4638
    %v4641 = vshrl.u32 %v4612, 16
    %v4643 = vrot.slane %v4641, 4
    %v4644 = vshll.u32 %v4612, 16
    %v4646 = vrot.slane %v4644, 5
    %v4647 = vor.u32 %v4643, %v4646
    %v4648 = vrot.slane %v4647, 4
    %v4650 = vshll.u32 %v4613, 16
    %v4652 = vrot.slane %v4650, 5
    %v4653 = vsel %vm672, %v4648, %v4652
    %v4655 = vshrl.u32 %v4614, 16
    %v4657 = vrot.slane %v4655, 4
    %v4658 = vshll.u32 %v4614, 16
    %v4660 = vrot.slane %v4658, 5
    %v4661 = vor.u32 %v4657, %v4660
    %v4662 = vrot.slane %v4661, 4
    %v4664 = vshll.u32 %v4615, 16
    %v4666 = vrot.slane %v4664, 5
    %v4667 = vsel %vm672, %v4662, %v4666
    %v4669 = vshrl.u32 %v4616, 16
    %v4671 = vrot.slane %v4669, 4
    %v4672 = vshll.u32 %v4616, 16
    %v4674 = vrot.slane %v4672, 5
    %v4675 = vor.u32 %v4671, %v4674
    %v4676 = vrot.slane %v4675, 4
    %v4678 = vshll.u32 %v4617, 16
    %v4680 = vrot.slane %v4678, 5
    %v4681 = vsel %vm672, %v4676, %v4680
    %v4683 = vshrl.u32 %v4618, 16
    %v4685 = vrot.slane %v4683, 4
    %v4686 = vshll.u32 %v4618, 16
    %v4688 = vrot.slane %v4686, 5
    %v4689 = vor.u32 %v4685, %v4688
    %v4690 = vrot.slane %v4689, 4
    %v4692 = vshll.u32 %v4619, 16
    %v4694 = vrot.slane %v4692, 5
    %v4695 = vsel %vm672, %v4690, %v4694
    %v4697 = vshrl.u32 %v4620, 16
    %v4699 = vrot.slane %v4697, 4
    %v4700 = vshll.u32 %v4620, 16
    %v4702 = vrot.slane %v4700, 5
    %v4703 = vor.u32 %v4699, %v4702
    %v4704 = vrot.slane %v4703, 4
    %v4706 = vshll.u32 %v4621, 16
    %v4708 = vrot.slane %v4706, 5
    %v4709 = vsel %vm672, %v4704, %v4708
    %v4711 = vshrl.u32 %v4622, 16
    %v4713 = vrot.slane %v4711, 4
    %v4714 = vshll.u32 %v4622, 16
    %v4716 = vrot.slane %v4714, 5
    %v4717 = vor.u32 %v4713, %v4716
    %v4718 = vrot.slane %v4717, 4
    %v4720 = vshll.u32 %v4623, 16
    %v4722 = vrot.slane %v4720, 5
    %v4723 = vsel %vm672, %v4718, %v4722
    %v4725 = vshrl.u32 %v4624, 16
    %v4727 = vrot.slane %v4725, 4
    %v4728 = vshll.u32 %v4624, 16
    %v4730 = vrot.slane %v4728, 5
    %v4731 = vor.u32 %v4727, %v4730
    %v4732 = vrot.slane %v4731, 4
    %v4734 = vshll.u32 %v4625, 16
    %v4736 = vrot.slane %v4734, 5
    %v4737 = vsel %vm672, %v4732, %v4736
    %s4738 = scalar_lea.vmem [#allocation10], 256
    %v4739 = vld [vmem:[%s4738] sm:$0xff]
    %v4740 = vld [vmem:[%s4738 + $0x8] sm:$0xff]
    %v4741 = vld [vmem:[%s4738 + $0x10] sm:$0xff]
    %v4742 = vld [vmem:[%s4738 + $0x18] sm:$0xff]
    %v4743 = vld [vmem:[%s4738 + $0x20] sm:$0xff]
    %v4744 = vld [vmem:[%s4738 + $0x28] sm:$0xff]
    %v4745 = vld [vmem:[%s4738 + $0x30] sm:$0xff]
    %v4746 = vld [vmem:[%s4738 + $0x38] sm:$0xff]
    %v4747 = vld [vmem:[%s4738 + $0x40] sm:$0xff]
    %v4748 = vld [vmem:[%s4738 + $0x48] sm:$0xff]
    %v4749 = vld [vmem:[%s4738 + $0x50] sm:$0xff]
    %v4750 = vld [vmem:[%s4738 + $0x58] sm:$0xff]
    %v4751 = vld [vmem:[%s4738 + $0x60] sm:$0xff]
    %v4752 = vld [vmem:[%s4738 + $0x68] sm:$0xff]
    %v4753 = vld [vmem:[%s4738 + $0x70] sm:$0xff]
    %v4754 = vld [vmem:[%s4738 + $0x78] sm:$0xff]
    %v4755 = vld [vmem:[%s4738 + $0x80] sm:$0xff]
    %v4756 = vld [vmem:[%s4738 + $0x88] sm:$0xff]
    %v4757 = vld [vmem:[%s4738 + $0x90] sm:$0xff]
    %v4758 = vld [vmem:[%s4738 + $0x98] sm:$0xff]
    %v4759 = vld [vmem:[%s4738 + $0xa0] sm:$0xff]
    %v4760 = vld [vmem:[%s4738 + $0xa8] sm:$0xff]
    %v4761 = vld [vmem:[%s4738 + $0xb0] sm:$0xff]
    %v4762 = vld [vmem:[%s4738 + $0xb8] sm:$0xff]
    %v4763 = vld [vmem:[%s4738 + $0xc0] sm:$0xff]
    %v4764 = vld [vmem:[%s4738 + $0xc8] sm:$0xff]
    %v4765 = vld [vmem:[%s4738 + $0xd0] sm:$0xff]
    %v4766 = vld [vmem:[%s4738 + $0xd8] sm:$0xff]
    %v4767 = vld [vmem:[%s4738 + $0xe0] sm:$0xff]
    %v4768 = vld [vmem:[%s4738 + $0xe8] sm:$0xff]
    %v4769 = vld [vmem:[%s4738 + $0xf0] sm:$0xff]
    %v4770 = vld [vmem:[%s4738 + $0xf8] sm:$0xff]
    %v4771 = vunpack.c.l.b16 %v4639
    %v4772 = vunpack.c.h.b16 %v4639
    %v4773 = vunpack.c.l.b16 %v4653
    %v4774 = vunpack.c.h.b16 %v4653
    %v4775 = vunpack.c.l.b16 %v4667
    %v4776 = vunpack.c.h.b16 %v4667
    %v4777 = vunpack.c.l.b16 %v4681
    %v4778 = vunpack.c.h.b16 %v4681
    %v4779 = vunpack.c.l.b16 %v4695
    %v4780 = vunpack.c.h.b16 %v4695
    %v4781 = vunpack.c.l.b16 %v4709
    %v4782 = vunpack.c.h.b16 %v4709
    %v4783 = vunpack.c.l.b16 %v4723
    %v4784 = vunpack.c.h.b16 %v4723
    %v4785 = vunpack.c.l.b16 %v4737
    %v4786 = vunpack.c.h.b16 %v4737
    %v4787 = vpack.c.b16 %v4773, %v4771
    %v4788 = vpack.c.b16 %v4774, %v4772
    %v4789 = vpack.c.b16 %v4777, %v4775
    %v4790 = vpack.c.b16 %v4778, %v4776
    %v4791 = vpack.c.b16 %v4781, %v4779
    %v4792 = vpack.c.b16 %v4782, %v4780
    %v4793 = vpack.c.b16 %v4785, %v4783
    %v4794 = vpack.c.b16 %v4786, %v4784
    %v4835 = vunpack.c.l.b16 %v4739
    %v4836 = vunpack.c.h.b16 %v4739
    %v4837 = vunpack.c.l.b16 %v4740
    %v4838 = vunpack.c.h.b16 %v4740
    %v4839 = vunpack.c.l.b16 %v4741
    %v4840 = vunpack.c.h.b16 %v4741
    %v4841 = vunpack.c.l.b16 %v4742
    %v4842 = vunpack.c.h.b16 %v4742
    %v4843 = vunpack.c.l.b16 %v4743
    %v4844 = vunpack.c.h.b16 %v4743
    %v4845 = vunpack.c.l.b16 %v4744
    %v4846 = vunpack.c.h.b16 %v4744
    %v4847 = vunpack.c.l.b16 %v4745
    %v4848 = vunpack.c.h.b16 %v4745
    %v4849 = vunpack.c.l.b16 %v4746
    %v4850 = vunpack.c.h.b16 %v4746
    %v4851 = vunpack.c.l.b16 %v4747
    %v4852 = vunpack.c.h.b16 %v4747
    %v4853 = vunpack.c.l.b16 %v4748
    %v4854 = vunpack.c.h.b16 %v4748
    %v4855 = vunpack.c.l.b16 %v4749
    %v4856 = vunpack.c.h.b16 %v4749
    %v4857 = vunpack.c.l.b16 %v4750
    %v4858 = vunpack.c.h.b16 %v4750
    %v4859 = vunpack.c.l.b16 %v4751
    %v4860 = vunpack.c.h.b16 %v4751
    %v4861 = vunpack.c.l.b16 %v4752
    %v4862 = vunpack.c.h.b16 %v4752
    %v4863 = vunpack.c.l.b16 %v4753
    %v4864 = vunpack.c.h.b16 %v4753
    %v4865 = vunpack.c.l.b16 %v4754
    %v4866 = vunpack.c.h.b16 %v4754
    %v4867 = vunpack.c.l.b16 %v4755
    %v4868 = vunpack.c.h.b16 %v4755
    %v4869 = vunpack.c.l.b16 %v4756
    %v4870 = vunpack.c.h.b16 %v4756
    %v4871 = vunpack.c.l.b16 %v4757
    %v4872 = vunpack.c.h.b16 %v4757
    %v4873 = vunpack.c.l.b16 %v4758
    %v4874 = vunpack.c.h.b16 %v4758
    %v4875 = vunpack.c.l.b16 %v4759
    %v4876 = vunpack.c.h.b16 %v4759
    %v4877 = vunpack.c.l.b16 %v4760
    %v4878 = vunpack.c.h.b16 %v4760
    %v4879 = vunpack.c.l.b16 %v4761
    %v4880 = vunpack.c.h.b16 %v4761
    %v4881 = vunpack.c.l.b16 %v4762
    %v4882 = vunpack.c.h.b16 %v4762
    %v4883 = vunpack.c.l.b16 %v4763
    %v4884 = vunpack.c.h.b16 %v4763
    %v4885 = vunpack.c.l.b16 %v4764
    %v4886 = vunpack.c.h.b16 %v4764
    %v4887 = vunpack.c.l.b16 %v4765
    %v4888 = vunpack.c.h.b16 %v4765
    %v4889 = vunpack.c.l.b16 %v4766
    %v4890 = vunpack.c.h.b16 %v4766
    %v4891 = vunpack.c.l.b16 %v4767
    %v4892 = vunpack.c.h.b16 %v4767
    %v4893 = vunpack.c.l.b16 %v4768
    %v4894 = vunpack.c.h.b16 %v4768
    %v4895 = vunpack.c.l.b16 %v4769
    %v4896 = vunpack.c.h.b16 %v4769
    %v4897 = vunpack.c.l.b16 %v4770
    %v4898 = vunpack.c.h.b16 %v4770
    %v4899 = vpack.c.b16 %v4837, %v4835
    %v4900 = vpack.c.b16 %v4838, %v4836
    %v4901 = vpack.c.b16 %v4841, %v4839
    %v4902 = vpack.c.b16 %v4842, %v4840
    %v4903 = vpack.c.b16 %v4845, %v4843
    %v4904 = vpack.c.b16 %v4846, %v4844
    %v4905 = vpack.c.b16 %v4849, %v4847
    %v4906 = vpack.c.b16 %v4850, %v4848
    %v4907 = vpack.c.b16 %v4853, %v4851
    %v4908 = vpack.c.b16 %v4854, %v4852
    %v4909 = vpack.c.b16 %v4857, %v4855
    %v4910 = vpack.c.b16 %v4858, %v4856
    %v4911 = vpack.c.b16 %v4861, %v4859
    %v4912 = vpack.c.b16 %v4862, %v4860
    %v4913 = vpack.c.b16 %v4865, %v4863
    %v4914 = vpack.c.b16 %v4866, %v4864
    %v4915 = vpack.c.b16 %v4869, %v4867
    %v4916 = vpack.c.b16 %v4870, %v4868
    %v4917 = vpack.c.b16 %v4873, %v4871
    %v4918 = vpack.c.b16 %v4874, %v4872
    %v4919 = vpack.c.b16 %v4877, %v4875
    %v4920 = vpack.c.b16 %v4878, %v4876
    %v4921 = vpack.c.b16 %v4881, %v4879
    %v4922 = vpack.c.b16 %v4882, %v4880
    %v4923 = vpack.c.b16 %v4885, %v4883
    %v4924 = vpack.c.b16 %v4886, %v4884
    %v4925 = vpack.c.b16 %v4889, %v4887
    %v4926 = vpack.c.b16 %v4890, %v4888
    %v4927 = vpack.c.b16 %v4893, %v4891
    %v4928 = vpack.c.b16 %v4894, %v4892
    %v4929 = vpack.c.b16 %v4897, %v4895
    %v4930 = vpack.c.b16 %v4898, %v4896
    %4963 = vmatprep.subr.bf16.mxu0 %v4900
    %4964 = vmatpush1.bf16.msra.mxu0 %v4899
    %4965 = vmatprep.subr.bf16.mxu0 %v4902
    %4966 = vmatpush1.bf16.msra.mxu0 %v4901
    %4967 = vmatprep.subr.bf16.mxu0 %v4904
    %4968 = vmatpush1.bf16.msra.mxu0 %v4903
    %4969 = vmatprep.subr.bf16.mxu0 %v4906
    %4970 = vmatpush1.bf16.msra.mxu0 %v4905
    %4971 = vmatprep.subr.bf16.mxu0 %v4908
    %4972 = vmatpush1.bf16.msra.mxu0 %v4907
    %4973 = vmatprep.subr.bf16.mxu0 %v4910
    %4974 = vmatpush1.bf16.msra.mxu0 %v4909
    %4975 = vmatprep.subr.bf16.mxu0 %v4912
    %4976 = vmatpush1.bf16.msra.mxu0 %v4911
    %4977 = vmatprep.subr.bf16.mxu0 %v4914
    %4978 = vmatpush1.bf16.msra.mxu0 %v4913
    %4979 = vmatprep.subr.bf16.mxu0 %v4916
    %4980 = vmatpush1.bf16.msra.mxu0 %v4915
    %4981 = vmatprep.subr.bf16.mxu0 %v4918
    %4982 = vmatpush1.bf16.msra.mxu0 %v4917
    %4983 = vmatprep.subr.bf16.mxu0 %v4920
    %4984 = vmatpush1.bf16.msra.mxu0 %v4919
    %4985 = vmatprep.subr.bf16.mxu0 %v4922
    %4986 = vmatpush1.bf16.msra.mxu0 %v4921
    %4987 = vmatprep.subr.bf16.mxu0 %v4924
    %4988 = vmatpush1.bf16.msra.mxu0 %v4923
    %4989 = vmatprep.subr.bf16.mxu0 %v4926
    %4990 = vmatpush1.bf16.msra.mxu0 %v4925
    %4991 = vmatprep.subr.bf16.mxu0 %v4928
    %4992 = vmatpush1.bf16.msra.mxu0 %v4927
    %4993 = vmatprep.subr.bf16.mxu0 %v4930
    %4994 = vmatpush1.bf16.msra.mxu0 %v4929
    %4995 = vmatprep.mubr.bf16.mxu0 %v4788
    %4996 = vmatmul.mubr.bf16.gmra.mrb[0].mxu0 %v4787
    %v4997 = vpop.f32.mrb[0].mxu0
    %v4998 = vadd.f32 0.0, %v4997
    %v4999 = vpop.f32.mrb[0].mxu0
    %v5000 = vadd.f32 0.0, %v4999
    %v5001 = vpop.f32.mrb[0].mxu0
    %v5002 = vadd.f32 0.0, %v5001
    %v5003 = vpop.f32.mrb[0].mxu0
    %v5004 = vadd.f32 0.0, %v5003
    %5005 = vmatprep.mubr.bf16.mxu0 %v4790
    %5006 = vmatmul.mubr.bf16.gmra.mrb[0].mxu0 %v4789
    %v5007 = vpop.f32.mrb[0].mxu0
    %v5008 = vadd.f32 0.0, %v5007
    %v5009 = vpop.f32.mrb[0].mxu0
    %v5010 = vadd.f32 0.0, %v5009
    %v5011 = vpop.f32.mrb[0].mxu0
    %v5012 = vadd.f32 0.0, %v5011
    %v5013 = vpop.f32.mrb[0].mxu0
    %v5014 = vadd.f32 0.0, %v5013
    %5015 = vmatprep.mubr.bf16.mxu0 %v4792
    %5016 = vmatmul.mubr.bf16.gmra.mrb[0].mxu0 %v4791
    %v5017 = vpop.f32.mrb[0].mxu0
    %v5018 = vadd.f32 0.0, %v5017
    %v5019 = vpop.f32.mrb[0].mxu0
    %v5020 = vadd.f32 0.0, %v5019
    %v5021 = vpop.f32.mrb[0].mxu0
    %v5022 = vadd.f32 0.0, %v5021
    %v5023 = vpop.f32.mrb[0].mxu0
    %v5024 = vadd.f32 0.0, %v5023
    %5025 = vmatprep.mubr.bf16.mxu0 %v4794
    %5026 = vmatmul.mubr.bf16.gmra.mrb[0].mxu0 %v4793
    %v5027 = vpop.f32.mrb[0].mxu0
    %v5028 = vadd.f32 0.0, %v5027
    %v5029 = vpop.f32.mrb[0].mxu0
    %v5030 = vadd.f32 0.0, %v5029
    %v5031 = vpop.f32.mrb[0].mxu0
    %v5032 = vadd.f32 0.0, %v5031
    %v5033 = vpop.f32.mrb[0].mxu0
    %v5034 = vadd.f32 0.0, %v5033
    %5035 = vdwg.mxu0
    %v5036 = vld [vmem:[#allocation3] sm:$0xff]
    %v5037 = vld [vmem:[#allocation3 + $0x8] sm:$0xff]
    %v5038 = vld [vmem:[#allocation3 + $0x10] sm:$0xff]
    %v5039 = vld [vmem:[#allocation3 + $0x18] sm:$0xff]
    %v5040 = vld [vmem:[#allocation3 + $0x20] sm:$0xff]
    %v5041 = vld [vmem:[#allocation3 + $0x28] sm:$0xff]
    %v5042 = vld [vmem:[#allocation3 + $0x30] sm:$0xff]
    %v5043 = vld [vmem:[#allocation3 + $0x38] sm:$0xff]
    %v5044 = vld [vmem:[#allocation3 + $0x40] sm:$0xff]
    %v5045 = vld [vmem:[#allocation3 + $0x48] sm:$0xff]
    %v5046 = vld [vmem:[#allocation3 + $0x50] sm:$0xff]
    %v5047 = vld [vmem:[#allocation3 + $0x58] sm:$0xff]
    %v5048 = vld [vmem:[#allocation3 + $0x60] sm:$0xff]
    %v5049 = vld [vmem:[#allocation3 + $0x68] sm:$0xff]
    %v5050 = vld [vmem:[#allocation3 + $0x70] sm:$0xff]
    %v5051 = vld [vmem:[#allocation3 + $0x78] sm:$0xff]
    %v5052 = vadd.f32 %v5036, %v4998
    %v5053 = vadd.f32 %v5037, %v5000
    %v5054 = vadd.f32 %v5038, %v5002
    %v5055 = vadd.f32 %v5039, %v5004
    %v5056 = vadd.f32 %v5040, %v5008
    %v5057 = vadd.f32 %v5041, %v5010
    %v5058 = vadd.f32 %v5042, %v5012
    %v5059 = vadd.f32 %v5043, %v5014
    %v5060 = vadd.f32 %v5044, %v5018
    %v5061 = vadd.f32 %v5045, %v5020
    %v5062 = vadd.f32 %v5046, %v5022
    %v5063 = vadd.f32 %v5047, %v5024
    %v5064 = vadd.f32 %v5048, %v5028
    %v5065 = vadd.f32 %v5049, %v5030
    %v5066 = vadd.f32 %v5050, %v5032
    %v5067 = vadd.f32 %v5051, %v5034
    %5068 = vst [vmem:[#allocation3] sm:$0xff] %v5052
    %5069 = vst [vmem:[#allocation3 + $0x8] sm:$0xff] %v5053
    %5070 = vst [vmem:[#allocation3 + $0x10] sm:$0xff] %v5054
    %5071 = vst [vmem:[#allocation3 + $0x18] sm:$0xff] %v5055
    %5072 = vst [vmem:[#allocation3 + $0x20] sm:$0xff] %v5056
    %5073 = vst [vmem:[#allocation3 + $0x28] sm:$0xff] %v5057
    %5074 = vst [vmem:[#allocation3 + $0x30] sm:$0xff] %v5058
    %5075 = vst [vmem:[#allocation3 + $0x38] sm:$0xff] %v5059
    %5076 = vst [vmem:[#allocation3 + $0x40] sm:$0xff] %v5060
    %5077 = vst [vmem:[#allocation3 + $0x48] sm:$0xff] %v5061
    %5078 = vst [vmem:[#allocation3 + $0x50] sm:$0xff] %v5062
    %5079 = vst [vmem:[#allocation3 + $0x58] sm:$0xff] %v5063
    %5080 = vst [vmem:[#allocation3 + $0x60] sm:$0xff] %v5064
    %5081 = vst [vmem:[#allocation3 + $0x68] sm:$0xff] %v5065
    %5082 = vst [vmem:[#allocation3 + $0x70] sm:$0xff] %v5066
    %5083 = vst [vmem:[#allocation3 + $0x78] sm:$0xff] %v5067
    %v5084 = vld [vmem:[#allocation2] sm:$0xee]
    %v5085 = vld [vmem:[#allocation2 + $0x8] sm:$0x11]
    %v5086 = vld [vmem:[#allocation2 + $0x10] sm:$0xee]
    %v5087 = vld [vmem:[#allocation2 + $0x18] sm:$0x11]
    %v5088 = vld [vmem:[#allocation2 + $0x20] sm:$0xee]
    %v5089 = vld [vmem:[#allocation2 + $0x28] sm:$0x11]
    %v5090 = vld [vmem:[#allocation2 + $0x30] sm:$0xee]
    %v5091 = vld [vmem:[#allocation2 + $0x38] sm:$0x11]
    %v5092 = vld [vmem:[#allocation2 + $0x60] sm:$0xee]
    %v5093 = vld [vmem:[#allocation2 + $0x68] sm:$0x11]
    %v5094 = vld [vmem:[#allocation2 + $0x70] sm:$0xee]
    %v5095 = vld [vmem:[#allocation2 + $0x78] sm:$0x11]
    %v5096 = vld [vmem:[#allocation2 + $0x80] sm:$0xee]
    %v5097 = vld [vmem:[#allocation2 + $0x88] sm:$0x11]
    %v5098 = vld [vmem:[#allocation2 + $0x90] sm:$0xee]
    %v5099 = vld [vmem:[#allocation2 + $0x98] sm:$0x11]
    %v5116 = vrot.slane %v5084, 5
    %v5117 = vrot.slane %v5116, 4
    %v5118 = vrot.slane %v5085, 5
    %v5119 = vsel %vm1165, %v5117, %v5118
    %v5120 = vrot.slane %v5086, 5
    %v5121 = vrot.slane %v5120, 4
    %v5122 = vrot.slane %v5087, 5
    %v5123 = vsel %vm1165, %v5121, %v5122
    %v5124 = vrot.slane %v5088, 5
    %v5125 = vrot.slane %v5124, 4
    %v5126 = vrot.slane %v5089, 5
    %v5127 = vsel %vm1165, %v5125, %v5126
    %v5128 = vrot.slane %v5090, 5
    %v5129 = vrot.slane %v5128, 4
    %v5130 = vrot.slane %v5091, 5
    %v5131 = vsel %vm1165, %v5129, %v5130
    %v5132 = vrot.slane %v5092, 5
    %v5133 = vrot.slane %v5132, 4
    %v5134 = vrot.slane %v5093, 5
    %v5135 = vsel %vm1165, %v5133, %v5134
    %v5136 = vrot.slane %v5094, 5
    %v5137 = vrot.slane %v5136, 4
    %v5138 = vrot.slane %v5095, 5
    %v5139 = vsel %vm1165, %v5137, %v5138
    %v5140 = vrot.slane %v5096, 5
    %v5141 = vrot.slane %v5140, 4
    %v5142 = vrot.slane %v5097, 5
    %v5143 = vsel %vm1165, %v5141, %v5142
    %v5144 = vrot.slane %v5098, 5
    %v5145 = vrot.slane %v5144, 4
    %v5146 = vrot.slane %v5099, 5
    %v5147 = vsel %vm1165, %v5145, %v5146
    %s5148 = scalar_lea.vmem [#allocation10], 512
    %v5149 = vld [vmem:[%s5148] sm:$0xff]
    %v5150 = vld [vmem:[%s5148 + $0x8] sm:$0xff]
    %v5151 = vld [vmem:[%s5148 + $0x10] sm:$0xff]
    %v5152 = vld [vmem:[%s5148 + $0x18] sm:$0xff]
    %v5153 = vld [vmem:[%s5148 + $0x20] sm:$0xff]
    %v5154 = vld [vmem:[%s5148 + $0x28] sm:$0xff]
    %v5155 = vld [vmem:[%s5148 + $0x30] sm:$0xff]
    %v5156 = vld [vmem:[%s5148 + $0x38] sm:$0xff]
    %v5157 = vld [vmem:[%s5148 + $0x40] sm:$0xff]
    %v5158 = vld [vmem:[%s5148 + $0x48] sm:$0xff]
    %v5159 = vld [vmem:[%s5148 + $0x50] sm:$0xff]
    %v5160 = vld [vmem:[%s5148 + $0x58] sm:$0xff]
    %v5161 = vld [vmem:[%s5148 + $0x60] sm:$0xff]
    %v5162 = vld [vmem:[%s5148 + $0x68] sm:$0xff]
    %v5163 = vld [vmem:[%s5148 + $0x70] sm:$0xff]
    %v5164 = vld [vmem:[%s5148 + $0x78] sm:$0xff]
    %v5165 = vld [vmem:[%s5148 + $0x80] sm:$0xff]
    %v5166 = vld [vmem:[%s5148 + $0x88] sm:$0xff]
    %v5167 = vld [vmem:[%s5148 + $0x90] sm:$0xff]
    %v5168 = vld [vmem:[%s5148 + $0x98] sm:$0xff]
    %v5169 = vld [vmem:[%s5148 + $0xa0] sm:$0xff]
    %v5170 = vld [vmem:[%s5148 + $0xa8] sm:$0xff]
    %v5171 = vld [vmem:[%s5148 + $0xb0] sm:$0xff]
    %v5172 = vld [vmem:[%s5148 + $0xb8] sm:$0xff]
    %v5173 = vld [vmem:[%s5148 + $0xc0] sm:$0xff]
    %v5174 = vld [vmem:[%s5148 + $0xc8] sm:$0xff]
    %v5175 = vld [vmem:[%s5148 + $0xd0] sm:$0xff]
    %v5176 = vld [vmem:[%s5148 + $0xd8] sm:$0xff]
    %v5177 = vld [vmem:[%s5148 + $0xe0] sm:$0xff]
    %v5178 = vld [vmem:[%s5148 + $0xe8] sm:$0xff]
    %v5179 = vld [vmem:[%s5148 + $0xf0] sm:$0xff]
    %v5180 = vld [vmem:[%s5148 + $0xf8] sm:$0xff]
    %v5181 = vunpack.c.l.b16 %v5119
    %v5182 = vunpack.c.h.b16 %v5119
    %v5183 = vunpack.c.l.b16 %v5123
    %v5184 = vunpack.c.h.b16 %v5123
    %v5185 = vunpack.c.l.b16 %v5127
    %v5186 = vunpack.c.h.b16 %v5127
    %v5187 = vunpack.c.l.b16 %v5131
    %v5188 = vunpack.c.h.b16 %v5131
    %v5189 = vunpack.c.l.b16 %v5135
    %v5190 = vunpack.c.h.b16 %v5135
    %v5191 = vunpack.c.l.b16 %v5139
    %v5192 = vunpack.c.h.b16 %v5139
    %v5193 = vunpack.c.l.b16 %v5143
    %v5194 = vunpack.c.h.b16 %v5143
    %v5195 = vunpack.c.l.b16 %v5147
    %v5196 = vunpack.c.h.b16 %v5147
    %v5197 = vpack.c.b16 %v5183, %v5181
    %v5198 = vpack.c.b16 %v5184, %v5182
    %v5199 = vpack.c.b16 %v5187, %v5185
    %v5200 = vpack.c.b16 %v5188, %v5186
    %v5201 = vpack.c.b16 %v5191, %v5189
    %v5202 = vpack.c.b16 %v5192, %v5190
    %v5203 = vpack.c.b16 %v5195, %v5193
    %v5204 = vpack.c.b16 %v5196, %v5194
    %v5245 = vunpack.c.l.b16 %v5149
    %v5246 = vunpack.c.h.b16 %v5149
    %v5247 = vunpack.c.l.b16 %v5150
    %v5248 = vunpack.c.h.b16 %v5150
    %v5249 = vunpack.c.l.b16 %v5151
    %v5250 = vunpack.c.h.b16 %v5151
    %v5251 = vunpack.c.l.b16 %v5152
    %v5252 = vunpack.c.h.b16 %v5152
    %v5253 = vunpack.c.l.b16 %v5153
    %v5254 = vunpack.c.h.b16 %v5153
    %v5255 = vunpack.c.l.b16 %v5154
    %v5256 = vunpack.c.h.b16 %v5154
    %v5257 = vunpack.c.l.b16 %v5155
    %v5258 = vunpack.c.h.b16 %v5155
    %v5259 = vunpack.c.l.b16 %v5156
    %v5260 = vunpack.c.h.b16 %v5156
    %v5261 = vunpack.c.l.b16 %v5157
    %v5262 = vunpack.c.h.b16 %v5157
    %v5263 = vunpack.c.l.b16 %v5158
    %v5264 = vunpack.c.h.b16 %v5158
    %v5265 = vunpack.c.l.b16 %v5159
    %v5266 = vunpack.c.h.b16 %v5159
    %v5267 = vunpack.c.l.b16 %v5160
    %v5268 = vunpack.c.h.b16 %v5160
    %v5269 = vunpack.c.l.b16 %v5161
    %v5270 = vunpack.c.h.b16 %v5161
    %v5271 = vunpack.c.l.b16 %v5162
    %v5272 = vunpack.c.h.b16 %v5162
    %v5273 = vunpack.c.l.b16 %v5163
    %v5274 = vunpack.c.h.b16 %v5163
    %v5275 = vunpack.c.l.b16 %v5164
    %v5276 = vunpack.c.h.b16 %v5164
    %v5277 = vunpack.c.l.b16 %v5165
    %v5278 = vunpack.c.h.b16 %v5165
    %v5279 = vunpack.c.l.b16 %v5166
    %v5280 = vunpack.c.h.b16 %v5166
    %v5281 = vunpack.c.l.b16 %v5167
    %v5282 = vunpack.c.h.b16 %v5167
    %v5283 = vunpack.c.l.b16 %v5168
    %v5284 = vunpack.c.h.b16 %v5168
    %v5285 = vunpack.c.l.b16 %v5169
    %v5286 = vunpack.c.h.b16 %v5169
    %v5287 = vunpack.c.l.b16 %v5170
    %v5288 = vunpack.c.h.b16 %v5170
    %v5289 = vunpack.c.l.b16 %v5171
    %v5290 = vunpack.c.h.b16 %v5171
    %v5291 = vunpack.c.l.b16 %v5172
    %v5292 = vunpack.c.h.b16 %v5172
    %v5293 = vunpack.c.l.b16 %v5173
    %v5294 = vunpack.c.h.b16 %v5173
    %v5295 = vunpack.c.l.b16 %v5174
    %v5296 = vunpack.c.h.b16 %v5174
    %v5297 = vunpack.c.l.b16 %v5175
    %v5298 = vunpack.c.h.b16 %v5175
    %v5299 = vunpack.c.l.b16 %v5176
    %v5300 = vunpack.c.h.b16 %v5176
    %v5301 = vunpack.c.l.b16 %v5177
    %v5302 = vunpack.c.h.b16 %v5177
    %v5303 = vunpack.c.l.b16 %v5178
    %v5304 = vunpack.c.h.b16 %v5178
    %v5305 = vunpack.c.l.b16 %v5179
    %v5306 = vunpack.c.h.b16 %v5179
    %v5307 = vunpack.c.l.b16 %v5180
    %v5308 = vunpack.c.h.b16 %v5180
    %v5309 = vpack.c.b16 %v5247, %v5245
    %v5310 = vpack.c.b16 %v5248, %v5246
    %v5311 = vpack.c.b16 %v5251, %v5249
    %v5312 = vpack.c.b16 %v5252, %v5250
    %v5313 = vpack.c.b16 %v5255, %v5253
    %v5314 = vpack.c.b16 %v5256, %v5254
    %v5315 = vpack.c.b16 %v5259, %v5257
    %v5316 = vpack.c.b16 %v5260, %v5258
    %v5317 = vpack.c.b16 %v5263, %v5261
    %v5318 = vpack.c.b16 %v5264, %v5262
    %v5319 = vpack.c.b16 %v5267, %v5265
    %v5320 = vpack.c.b16 %v5268, %v5266
    %v5321 = vpack.c.b16 %v5271, %v5269
    %v5322 = vpack.c.b16 %v5272, %v5270
    %v5323 = vpack.c.b16 %v5275, %v5273
    %v5324 = vpack.c.b16 %v5276, %v5274
    %v5325 = vpack.c.b16 %v5279, %v5277
    %v5326 = vpack.c.b16 %v5280, %v5278
    %v5327 = vpack.c.b16 %v5283, %v5281
    %v5328 = vpack.c.b16 %v5284, %v5282
    %v5329 = vpack.c.b16 %v5287, %v5285
    %v5330 = vpack.c.b16 %v5288, %v5286
    %v5331 = vpack.c.b16 %v5291, %v5289
    %v5332 = vpack.c.b16 %v5292, %v5290
    %v5333 = vpack.c.b16 %v5295, %v5293
    %v5334 = vpack.c.b16 %v5296, %v5294
    %v5335 = vpack.c.b16 %v5299, %v5297
    %v5336 = vpack.c.b16 %v5300, %v5298
    %v5337 = vpack.c.b16 %v5303, %v5301
    %v5338 = vpack.c.b16 %v5304, %v5302
    %v5339 = vpack.c.b16 %v5307, %v5305
    %v5340 = vpack.c.b16 %v5308, %v5306
    %5373 = vmatprep.subr.bf16.mxu0 %v5310
    %5374 = vmatpush1.bf16.msra.mxu0 %v5309
    %5375 = vmatprep.subr.bf16.mxu0 %v5312
    %5376 = vmatpush1.bf16.msra.mxu0 %v5311
    %5377 = vmatprep.subr.bf16.mxu0 %v5314
    %5378 = vmatpush1.bf16.msra.mxu0 %v5313
    %5379 = vmatprep.subr.bf16.mxu0 %v5316
    %5380 = vmatpush1.bf16.msra.mxu0 %v5315
    %5381 = vmatprep.subr.bf16.mxu0 %v5318
    %5382 = vmatpush1.bf16.msra.mxu0 %v5317
    %5383 = vmatprep.subr.bf16.mxu0 %v5320
    %5384 = vmatpush1.bf16.msra.mxu0 %v5319
    %5385 = vmatprep.subr.bf16.mxu0 %v5322
    %5386 = vmatpush1.bf16.msra.mxu0 %v5321
    %5387 = vmatprep.subr.bf16.mxu0 %v5324
    %5388 = vmatpush1.bf16.msra.mxu0 %v5323
    %5389 = vmatprep.subr.bf16.mxu0 %v5326
    %5390 = vmatpush1.bf16.msra.mxu0 %v5325
    %5391 = vmatprep.subr.bf16.mxu0 %v5328
    %5392 = vmatpush1.bf16.msra.mxu0 %v5327
    %5393 = vmatprep.subr.bf16.mxu0 %v5330
    %5394 = vmatpush1.bf16.msra.mxu0 %v5329
    %5395 = vmatprep.subr.bf16.mxu0 %v5332
    %5396 = vmatpush1.bf16.msra.mxu0 %v5331
    %5397 = vmatprep.subr.bf16.mxu0 %v5334
    %5398 = vmatpush1.bf16.msra.mxu0 %v5333
    %5399 = vmatprep.subr.bf16.mxu0 %v5336
    %5400 = vmatpush1.bf16.msra.mxu0 %v5335
    %5401 = vmatprep.subr.bf16.mxu0 %v5338
    %5402 = vmatpush1.bf16.msra.mxu0 %v5337
    %5403 = vmatprep.subr.bf16.mxu0 %v5340
    %5404 = vmatpush1.bf16.msra.mxu0 %v5339
    %5405 = vmatprep.mubr.bf16.mxu0 %v5198
    %5406 = vmatmul.mubr.bf16.gmra.mrb[0].mxu0 %v5197
    %v5407 = vpop.f32.mrb[0].mxu0
    %v5408 = vadd.f32 0.0, %v5407
    %v5409 = vpop.f32.mrb[0].mxu0
    %v5410 = vadd.f32 0.0, %v5409
    %v5411 = vpop.f32.mrb[0].mxu0
    %v5412 = vadd.f32 0.0, %v5411
    %v5413 = vpop.f32.mrb[0].mxu0
    %v5414 = vadd.f32 0.0, %v5413
    %5415 = vmatprep.mubr.bf16.mxu0 %v5200
    %5416 = vmatmul.mubr.bf16.gmra.mrb[0].mxu0 %v5199
    %v5417 = vpop.f32.mrb[0].mxu0
    %v5418 = vadd.f32 0.0, %v5417
    %v5419 = vpop.f32.mrb[0].mxu0
    %v5420 = vadd.f32 0.0, %v5419
    %v5421 = vpop.f32.mrb[0].mxu0
    %v5422 = vadd.f32 0.0, %v5421
    %v5423 = vpop.f32.mrb[0].mxu0
    %v5424 = vadd.f32 0.0, %v5423
    %5425 = vmatprep.mubr.bf16.mxu0 %v5202
    %5426 = vmatmul.mubr.bf16.gmra.mrb[0].mxu0 %v5201
    %v5427 = vpop.f32.mrb[0].mxu0
    %v5428 = vadd.f32 0.0, %v5427
    %v5429 = vpop.f32.mrb[0].mxu0
    %v5430 = vadd.f32 0.0, %v5429
    %v5431 = vpop.f32.mrb[0].mxu0
    %v5432 = vadd.f32 0.0, %v5431
    %v5433 = vpop.f32.mrb[0].mxu0
    %v5434 = vadd.f32 0.0, %v5433
    %5435 = vmatprep.mubr.bf16.mxu0 %v5204
    %5436 = vmatmul.mubr.bf16.gmra.mrb[0].mxu0 %v5203
    %v5437 = vpop.f32.mrb[0].mxu0
    %v5438 = vadd.f32 0.0, %v5437
    %v5439 = vpop.f32.mrb[0].mxu0
    %v5440 = vadd.f32 0.0, %v5439
    %v5441 = vpop.f32.mrb[0].mxu0
    %v5442 = vadd.f32 0.0, %v5441
    %v5443 = vpop.f32.mrb[0].mxu0
    %v5444 = vadd.f32 0.0, %v5443
    %5445 = vdwg.mxu0
    %v5446 = vld [vmem:[#allocation3] sm:$0xff]
    %v5447 = vld [vmem:[#allocation3 + $0x8] sm:$0xff]
    %v5448 = vld [vmem:[#allocation3 + $0x10] sm:$0xff]
    %v5449 = vld [vmem:[#allocation3 + $0x18] sm:$0xff]
    %v5450 = vld [vmem:[#allocation3 + $0x20] sm:$0xff]
    %v5451 = vld [vmem:[#allocation3 + $0x28] sm:$0xff]
    %v5452 = vld [vmem:[#allocation3 + $0x30] sm:$0xff]
    %v5453 = vld [vmem:[#allocation3 + $0x38] sm:$0xff]
    %v5454 = vld [vmem:[#allocation3 + $0x40] sm:$0xff]
    %v5455 = vld [vmem:[#allocation3 + $0x48] sm:$0xff]
    %v5456 = vld [vmem:[#allocation3 + $0x50] sm:$0xff]
    %v5457 = vld [vmem:[#allocation3 + $0x58] sm:$0xff]
    %v5458 = vld [vmem:[#allocation3 + $0x60] sm:$0xff]
    %v5459 = vld [vmem:[#allocation3 + $0x68] sm:$0xff]
    %v5460 = vld [vmem:[#allocation3 + $0x70] sm:$0xff]
    %v5461 = vld [vmem:[#allocation3 + $0x78] sm:$0xff]
    %v5462 = vadd.f32 %v5446, %v5408
    %v5463 = vadd.f32 %v5447, %v5410
    %v5464 = vadd.f32 %v5448, %v5412
    %v5465 = vadd.f32 %v5449, %v5414
    %v5466 = vadd.f32 %v5450, %v5418
    %v5467 = vadd.f32 %v5451, %v5420
    %v5468 = vadd.f32 %v5452, %v5422
    %v5469 = vadd.f32 %v5453, %v5424
    %v5470 = vadd.f32 %v5454, %v5428
    %v5471 = vadd.f32 %v5455, %v5430
    %v5472 = vadd.f32 %v5456, %v5432
    %v5473 = vadd.f32 %v5457, %v5434
    %v5474 = vadd.f32 %v5458, %v5438
    %v5475 = vadd.f32 %v5459, %v5440
    %v5476 = vadd.f32 %v5460, %v5442
    %v5477 = vadd.f32 %v5461, %v5444
    %5478 = vst [vmem:[#allocation3] sm:$0xff] %v5462
    %5479 = vst [vmem:[#allocation3 + $0x8] sm:$0xff] %v5463
    %5480 = vst [vmem:[#allocation3 + $0x10] sm:$0xff] %v5464
    %5481 = vst [vmem:[#allocation3 + $0x18] sm:$0xff] %v5465
    %5482 = vst [vmem:[#allocation3 + $0x20] sm:$0xff] %v5466
    %5483 = vst [vmem:[#allocation3 + $0x28] sm:$0xff] %v5467
    %5484 = vst [vmem:[#allocation3 + $0x30] sm:$0xff] %v5468
    %5485 = vst [vmem:[#allocation3 + $0x38] sm:$0xff] %v5469
    %5486 = vst [vmem:[#allocation3 + $0x40] sm:$0xff] %v5470
    %5487 = vst [vmem:[#allocation3 + $0x48] sm:$0xff] %v5471
    %5488 = vst [vmem:[#allocation3 + $0x50] sm:$0xff] %v5472
    %5489 = vst [vmem:[#allocation3 + $0x58] sm:$0xff] %v5473
    %5490 = vst [vmem:[#allocation3 + $0x60] sm:$0xff] %v5474
    %5491 = vst [vmem:[#allocation3 + $0x68] sm:$0xff] %v5475
    %5492 = vst [vmem:[#allocation3 + $0x70] sm:$0xff] %v5476
    %5493 = vst [vmem:[#allocation3 + $0x78] sm:$0xff] %v5477
    %v5494 = vld [vmem:[%s262] sm:$0xff]
    %v5495 = vld [vmem:[%s262 + $0x10] sm:$0xff]
    %v5496 = vld [vmem:[%s262 + $0x20] sm:$0xff]
    %v5497 = vld [vmem:[%s262 + $0x30] sm:$0xff]
    %v5498 = vld [vmem:[%s262 + $0x60] sm:$0xff]
    %v5499 = vld [vmem:[%s262 + $0x70] sm:$0xff]
    %v5500 = vld [vmem:[%s262 + $0x80] sm:$0xff]
    %v5501 = vld [vmem:[%s262 + $0x90] sm:$0xff]
    %s5502 = scalar_lea.vmem [#allocation10], 768
    %v5503 = vld [vmem:[%s5502] sm:$0xff]
    %v5504 = vld [vmem:[%s5502 + $0x8] sm:$0xff]
    %v5505 = vld [vmem:[%s5502 + $0x10] sm:$0xff]
    %v5506 = vld [vmem:[%s5502 + $0x18] sm:$0xff]
    %v5507 = vld [vmem:[%s5502 + $0x20] sm:$0xff]
    %v5508 = vld [vmem:[%s5502 + $0x28] sm:$0xff]
    %v5509 = vld [vmem:[%s5502 + $0x30] sm:$0xff]
    %v5510 = vld [vmem:[%s5502 + $0x38] sm:$0xff]
    %v5511 = vld [vmem:[%s5502 + $0x40] sm:$0xff]
    %v5512 = vld [vmem:[%s5502 + $0x48] sm:$0xff]
    %v5513 = vld [vmem:[%s5502 + $0x50] sm:$0xff]
    %v5514 = vld [vmem:[%s5502 + $0x58] sm:$0xff]
    %v5515 = vld [vmem:[%s5502 + $0x60] sm:$0xff]
    %v5516 = vld [vmem:[%s5502 + $0x68] sm:$0xff]
    %v5517 = vld [vmem:[%s5502 + $0x70] sm:$0xff]
    %v5518 = vld [vmem:[%s5502 + $0x78] sm:$0xff]
    %v5519 = vld [vmem:[%s5502 + $0x80] sm:$0xff]
    %v5520 = vld [vmem:[%s5502 + $0x88] sm:$0xff]
    %v5521 = vld [vmem:[%s5502 + $0x90] sm:$0xff]
    %v5522 = vld [vmem:[%s5502 + $0x98] sm:$0xff]
    %v5523 = vld [vmem:[%s5502 + $0xa0] sm:$0xff]
    %v5524 = vld [vmem:[%s5502 + $0xa8] sm:$0xff]
    %v5525 = vld [vmem:[%s5502 + $0xb0] sm:$0xff]
    %v5526 = vld [vmem:[%s5502 + $0xb8] sm:$0xff]
    %v5527 = vld [vmem:[%s5502 + $0xc0] sm:$0xff]
    %v5528 = vld [vmem:[%s5502 + $0xc8] sm:$0xff]
    %v5529 = vld [vmem:[%s5502 + $0xd0] sm:$0xff]
    %v5530 = vld [vmem:[%s5502 + $0xd8] sm:$0xff]
    %v5531 = vld [vmem:[%s5502 + $0xe0] sm:$0xff]
    %v5532 = vld [vmem:[%s5502 + $0xe8] sm:$0xff]
    %v5533 = vld [vmem:[%s5502 + $0xf0] sm:$0xff]
    %v5534 = vld [vmem:[%s5502 + $0xf8] sm:$0xff]
    %v5543 = vunpack.c.l.b16 %v5494
    %v5544 = vunpack.c.h.b16 %v5494
    %v5545 = vunpack.c.l.b16 %v5495
    %v5546 = vunpack.c.h.b16 %v5495
    %v5547 = vunpack.c.l.b16 %v5496
    %v5548 = vunpack.c.h.b16 %v5496
    %v5549 = vunpack.c.l.b16 %v5497
    %v5550 = vunpack.c.h.b16 %v5497
    %v5551 = vunpack.c.l.b16 %v5498
    %v5552 = vunpack.c.h.b16 %v5498
    %v5553 = vunpack.c.l.b16 %v5499
    %v5554 = vunpack.c.h.b16 %v5499
    %v5555 = vunpack.c.l.b16 %v5500
    %v5556 = vunpack.c.h.b16 %v5500
    %v5557 = vunpack.c.l.b16 %v5501
    %v5558 = vunpack.c.h.b16 %v5501
    %v5559 = vpack.c.b16 %v5545, %v5543
    %v5560 = vpack.c.b16 %v5546, %v5544
    %v5561 = vpack.c.b16 %v5549, %v5547
    %v5562 = vpack.c.b16 %v5550, %v5548
    %v5563 = vpack.c.b16 %v5553, %v5551
    %v5564 = vpack.c.b16 %v5554, %v5552
    %v5565 = vpack.c.b16 %v5557, %v5555
    %v5566 = vpack.c.b16 %v5558, %v5556
    %v5607 = vunpack.c.l.b16 %v5503
    %v5608 = vunpack.c.h.b16 %v5503
    %v5609 = vunpack.c.l.b16 %v5504
    %v5610 = vunpack.c.h.b16 %v5504
    %v5611 = vunpack.c.l.b16 %v5505
    %v5612 = vunpack.c.h.b16 %v5505
    %v5613 = vunpack.c.l.b16 %v5506
    %v5614 = vunpack.c.h.b16 %v5506
    %v5615 = vunpack.c.l.b16 %v5507
    %v5616 = vunpack.c.h.b16 %v5507
    %v5617 = vunpack.c.l.b16 %v5508
    %v5618 = vunpack.c.h.b16 %v5508
    %v5619 = vunpack.c.l.b16 %v5509
    %v5620 = vunpack.c.h.b16 %v5509
    %v5621 = vunpack.c.l.b16 %v5510
    %v5622 = vunpack.c.h.b16 %v5510
    %v5623 = vunpack.c.l.b16 %v5511
    %v5624 = vunpack.c.h.b16 %v5511
    %v5625 = vunpack.c.l.b16 %v5512
    %v5626 = vunpack.c.h.b16 %v5512
    %v5627 = vunpack.c.l.b16 %v5513
    %v5628 = vunpack.c.h.b16 %v5513
    %v5629 = vunpack.c.l.b16 %v5514
    %v5630 = vunpack.c.h.b16 %v5514
    %v5631 = vunpack.c.l.b16 %v5515
    %v5632 = vunpack.c.h.b16 %v5515
    %v5633 = vunpack.c.l.b16 %v5516
    %v5634 = vunpack.c.h.b16 %v5516
    %v5635 = vunpack.c.l.b16 %v5517
    %v5636 = vunpack.c.h.b16 %v5517
    %v5637 = vunpack.c.l.b16 %v5518
    %v5638 = vunpack.c.h.b16 %v5518
    %v5639 = vunpack.c.l.b16 %v5519
    %v5640 = vunpack.c.h.b16 %v5519
    %v5641 = vunpack.c.l.b16 %v5520
    %v5642 = vunpack.c.h.b16 %v5520
    %v5643 = vunpack.c.l.b16 %v5521
    %v5644 = vunpack.c.h.b16 %v5521
    %v5645 = vunpack.c.l.b16 %v5522
    %v5646 = vunpack.c.h.b16 %v5522
    %v5647 = vunpack.c.l.b16 %v5523
    %v5648 = vunpack.c.h.b16 %v5523
    %v5649 = vunpack.c.l.b16 %v5524
    %v5650 = vunpack.c.h.b16 %v5524
    %v5651 = vunpack.c.l.b16 %v5525
    %v5652 = vunpack.c.h.b16 %v5525
    %v5653 = vunpack.c.l.b16 %v5526
    %v5654 = vunpack.c.h.b16 %v5526
    %v5655 = vunpack.c.l.b16 %v5527
    %v5656 = vunpack.c.h.b16 %v5527
    %v5657 = vunpack.c.l.b16 %v5528
    %v5658 = vunpack.c.h.b16 %v5528
    %v5659 = vunpack.c.l.b16 %v5529
    %v5660 = vunpack.c.h.b16 %v5529
    %v5661 = vunpack.c.l.b16 %v5530
    %v5662 = vunpack.c.h.b16 %v5530
    %v5663 = vunpack.c.l.b16 %v5531
    %v5664 = vunpack.c.h.b16 %v5531
    %v5665 = vunpack.c.l.b16 %v5532
    %v5666 = vunpack.c.h.b16 %v5532
    %v5667 = vunpack.c.l.b16 %v5533
    %v5668 = vunpack.c.h.b16 %v5533
    %v5669 = vunpack.c.l.b16 %v5534
    %v5670 = vunpack.c.h.b16 %v5534
    %v5671 = vpack.c.b16 %v5609, %v5607
    %v5672 = vpack.c.b16 %v5610, %v5608
    %v5673 = vpack.c.b16 %v5613, %v5611
    %v5674 = vpack.c.b16 %v5614, %v5612
    %v5675 = vpack.c.b16 %v5617, %v5615
    %v5676 = vpack.c.b16 %v5618, %v5616
    %v5677 = vpack.c.b16 %v5621, %v5619
    %v5678 = vpack.c.b16 %v5622, %v5620
    %v5679 = vpack.c.b16 %v5625, %v5623
    %v5680 = vpack.c.b16 %v5626, %v5624
    %v5681 = vpack.c.b16 %v5629, %v5627
    %v5682 = vpack.c.b16 %v5630, %v5628
    %v5683 = vpack.c.b16 %v5633, %v5631
    %v5684 = vpack.c.b16 %v5634, %v5632
    %v5685 = vpack.c.b16 %v5637, %v5635
    %v5686 = vpack.c.b16 %v5638, %v5636
    %v5687 = vpack.c.b16 %v5641, %v5639
    %v5688 = vpack.c.b16 %v5642, %v5640
    %v5689 = vpack.c.b16 %v5645, %v5643
    %v5690 = vpack.c.b16 %v5646, %v5644
    %v5691 = vpack.c.b16 %v5649, %v5647
    %v5692 = vpack.c.b16 %v5650, %v5648
    %v5693 = vpack.c.b16 %v5653, %v5651
    %v5694 = vpack.c.b16 %v5654, %v5652
    %v5695 = vpack.c.b16 %v5657, %v5655
    %v5696 = vpack.c.b16 %v5658, %v5656
    %v5697 = vpack.c.b16 %v5661, %v5659
    %v5698 = vpack.c.b16 %v5662, %v5660
    %v5699 = vpack.c.b16 %v5665, %v5663
    %v5700 = vpack.c.b16 %v5666, %v5664
    %v5701 = vpack.c.b16 %v5669, %v5667
    %v5702 = vpack.c.b16 %v5670, %v5668
    %5735 = vmatprep.subr.bf16.mxu0 %v5672
    %5736 = vmatpush1.bf16.msra.mxu0 %v5671
    %5737 = vmatprep.subr.bf16.mxu0 %v5674
    %5738 = vmatpush1.bf16.msra.mxu0 %v5673
    %5739 = vmatprep.subr.bf16.mxu0 %v5676
    %5740 = vmatpush1.bf16.msra.mxu0 %v5675
    %5741 = vmatprep.subr.bf16.mxu0 %v5678
    %5742 = vmatpush1.bf16.msra.mxu0 %v5677
    %5743 = vmatprep.subr.bf16.mxu0 %v5680
    %5744 = vmatpush1.bf16.msra.mxu0 %v5679
    %5745 = vmatprep.subr.bf16.mxu0 %v5682
    %5746 = vmatpush1.bf16.msra.mxu0 %v5681
    %5747 = vmatprep.subr.bf16.mxu0 %v5684
    %5748 = vmatpush1.bf16.msra.mxu0 %v5683
    %5749 = vmatprep.subr.bf16.mxu0 %v5686
    %5750 = vmatpush1.bf16.msra.mxu0 %v5685
    %5751 = vmatprep.subr.bf16.mxu0 %v5688
    %5752 = vmatpush1.bf16.msra.mxu0 %v5687
    %5753 = vmatprep.subr.bf16.mxu0 %v5690
    %5754 = vmatpush1.bf16.msra.mxu0 %v5689
    %5755 = vmatprep.subr.bf16.mxu0 %v5692
    %5756 = vmatpush1.bf16.msra.mxu0 %v5691
    %5757 = vmatprep.subr.bf16.mxu0 %v5694
    %5758 = vmatpush1.bf16.msra.mxu0 %v5693
    %5759 = vmatprep.subr.bf16.mxu0 %v5696
    %5760 = vmatpush1.bf16.msra.mxu0 %v5695
    %5761 = vmatprep.subr.bf16.mxu0 %v5698
    %5762 = vmatpush1.bf16.msra.mxu0 %v5697
    %5763 = vmatprep.subr.bf16.mxu0 %v5700
    %5764 = vmatpush1.bf16.msra.mxu0 %v5699
    %5765 = vmatprep.subr.bf16.mxu0 %v5702
    %5766 = vmatpush1.bf16.msra.mxu0 %v5701
    %5767 = vmatprep.mubr.bf16.mxu0 %v5560
    %5768 = vmatmul.mubr.bf16.gmra.mrb[0].mxu0 %v5559
    %v5769 = vpop.f32.mrb[0].mxu0
    %v5770 = vadd.f32 0.0, %v5769
    %v5771 = vpop.f32.mrb[0].mxu0
    %v5772 = vadd.f32 0.0, %v5771
    %v5773 = vpop.f32.mrb[0].mxu0
    %v5774 = vadd.f32 0.0, %v5773
    %v5775 = vpop.f32.mrb[0].mxu0
    %v5776 = vadd.f32 0.0, %v5775
    %5777 = vmatprep.mubr.bf16.mxu0 %v5562
    %5778 = vmatmul.mubr.bf16.gmra.mrb[0].mxu0 %v5561
    %v5779 = vpop.f32.mrb[0].mxu0
    %v5780 = vadd.f32 0.0, %v5779
    %v5781 = vpop.f32.mrb[0].mxu0
    %v5782 = vadd.f32 0.0, %v5781
    %v5783 = vpop.f32.mrb[0].mxu0
    %v5784 = vadd.f32 0.0, %v5783
    %v5785 = vpop.f32.mrb[0].mxu0
    %v5786 = vadd.f32 0.0, %v5785
    %5787 = vmatprep.mubr.bf16.mxu0 %v5564
    %5788 = vmatmul.mubr.bf16.gmra.mrb[0].mxu0 %v5563
    %v5789 = vpop.f32.mrb[0].mxu0
    %v5790 = vadd.f32 0.0, %v5789
    %v5791 = vpop.f32.mrb[0].mxu0
    %v5792 = vadd.f32 0.0, %v5791
    %v5793 = vpop.f32.mrb[0].mxu0
    %v5794 = vadd.f32 0.0, %v5793
    %v5795 = vpop.f32.mrb[0].mxu0
    %v5796 = vadd.f32 0.0, %v5795
    %5797 = vmatprep.mubr.bf16.mxu0 %v5566
    %5798 = vmatmul.mubr.bf16.gmra.mrb[0].mxu0 %v5565
    %v5799 = vpop.f32.mrb[0].mxu0
    %v5800 = vadd.f32 0.0, %v5799
    %v5801 = vpop.f32.mrb[0].mxu0
    %v5802 = vadd.f32 0.0, %v5801
    %v5803 = vpop.f32.mrb[0].mxu0
    %v5804 = vadd.f32 0.0, %v5803
    %v5805 = vpop.f32.mrb[0].mxu0
    %v5806 = vadd.f32 0.0, %v5805
    %5807 = vdwg.mxu0
    %v5808 = vld [vmem:[#allocation3] sm:$0xff]
    %v5809 = vld [vmem:[#allocation3 + $0x8] sm:$0xff]
    %v5810 = vld [vmem:[#allocation3 + $0x10] sm:$0xff]
    %v5811 = vld [vmem:[#allocation3 + $0x18] sm:$0xff]
    %v5812 = vld [vmem:[#allocation3 + $0x20] sm:$0xff]
    %v5813 = vld [vmem:[#allocation3 + $0x28] sm:$0xff]
    %v5814 = vld [vmem:[#allocation3 + $0x30] sm:$0xff]
    %v5815 = vld [vmem:[#allocation3 + $0x38] sm:$0xff]
    %v5816 = vld [vmem:[#allocation3 + $0x40] sm:$0xff]
    %v5817 = vld [vmem:[#allocation3 + $0x48] sm:$0xff]
    %v5818 = vld [vmem:[#allocation3 + $0x50] sm:$0xff]
    %v5819 = vld [vmem:[#allocation3 + $0x58] sm:$0xff]
    %v5820 = vld [vmem:[#allocation3 + $0x60] sm:$0xff]
    %v5821 = vld [vmem:[#allocation3 + $0x68] sm:$0xff]
    %v5822 = vld [vmem:[#allocation3 + $0x70] sm:$0xff]
    %v5823 = vld [vmem:[#allocation3 + $0x78] sm:$0xff]
    %v5824 = vadd.f32 %v5808, %v5770
    %v5825 = vadd.f32 %v5809, %v5772
    %v5826 = vadd.f32 %v5810, %v5774
    %v5827 = vadd.f32 %v5811, %v5776
    %v5828 = vadd.f32 %v5812, %v5780
    %v5829 = vadd.f32 %v5813, %v5782
    %v5830 = vadd.f32 %v5814, %v5784
    %v5831 = vadd.f32 %v5815, %v5786
    %v5832 = vadd.f32 %v5816, %v5790
    %v5833 = vadd.f32 %v5817, %v5792
    %v5834 = vadd.f32 %v5818, %v5794
    %v5835 = vadd.f32 %v5819, %v5796
    %v5836 = vadd.f32 %v5820, %v5800
    %v5837 = vadd.f32 %v5821, %v5802
    %v5838 = vadd.f32 %v5822, %v5804
    %v5839 = vadd.f32 %v5823, %v5806
    %5840 = vst [vmem:[#allocation3] sm:$0xff] %v5824
    %5841 = vst [vmem:[#allocation3 + $0x8] sm:$0xff] %v5825
    %5842 = vst [vmem:[#allocation3 + $0x10] sm:$0xff] %v5826
    %5843 = vst [vmem:[#allocation3 + $0x18] sm:$0xff] %v5827
    %5844 = vst [vmem:[#allocation3 + $0x20] sm:$0xff] %v5828
    %5845 = vst [vmem:[#allocation3 + $0x28] sm:$0xff] %v5829
    %5846 = vst [vmem:[#allocation3 + $0x30] sm:$0xff] %v5830
    %5847 = vst [vmem:[#allocation3 + $0x38] sm:$0xff] %v5831
    %5848 = vst [vmem:[#allocation3 + $0x40] sm:$0xff] %v5832
    %5849 = vst [vmem:[#allocation3 + $0x48] sm:$0xff] %v5833
    %5850 = vst [vmem:[#allocation3 + $0x50] sm:$0xff] %v5834
    %5851 = vst [vmem:[#allocation3 + $0x58] sm:$0xff] %v5835
    %5852 = vst [vmem:[#allocation3 + $0x60] sm:$0xff] %v5836
    %5853 = vst [vmem:[#allocation3 + $0x68] sm:$0xff] %v5837
    %5854 = vst [vmem:[#allocation3 + $0x70] sm:$0xff] %v5838
    %5855 = vst [vmem:[#allocation3 + $0x78] sm:$0xff] %v5839
    %v5856 = vld [vmem:[%s262] sm:$0xff]
    %v5857 = vld [vmem:[%s262 + $0x8] sm:$0x11]
    %v5858 = vld [vmem:[%s262 + $0x10] sm:$0xff]
    %v5859 = vld [vmem:[%s262 + $0x18] sm:$0x11]
    %v5860 = vld [vmem:[%s262 + $0x20] sm:$0xff]
    %v5861 = vld [vmem:[%s262 + $0x28] sm:$0x11]
    %v5862 = vld [vmem:[%s262 + $0x30] sm:$0xff]
    %v5863 = vld [vmem:[%s262 + $0x38] sm:$0x11]
    %v5864 = vld [vmem:[%s262 + $0x60] sm:$0xff]
    %v5865 = vld [vmem:[%s262 + $0x68] sm:$0x11]
    %v5866 = vld [vmem:[%s262 + $0x70] sm:$0xff]
    %v5867 = vld [vmem:[%s262 + $0x78] sm:$0x11]
    %v5868 = vld [vmem:[%s262 + $0x80] sm:$0xff]
    %v5869 = vld [vmem:[%s262 + $0x88] sm:$0x11]
    %v5870 = vld [vmem:[%s262 + $0x90] sm:$0xff]
    %v5871 = vld [vmem:[%s262 + $0x98] sm:$0x11]
    %v5873 = vshrl.u32 %v5856, 16
    %v5875 = vrot.slane %v5873, 4
    %v5876 = vshll.u32 %v5856, 16
    %v5878 = vrot.slane %v5876, 5
    %v5879 = vor.u32 %v5875, %v5878
    %v5880 = vrot.slane %v5879, 4
    %v5882 = vshll.u32 %v5857, 16
    %v5884 = vrot.slane %v5882, 5
    %v5885 = vsel %vm672, %v5880, %v5884
    %v5887 = vshrl.u32 %v5858, 16
    %v5889 = vrot.slane %v5887, 4
    %v5890 = vshll.u32 %v5858, 16
    %v5892 = vrot.slane %v5890, 5
    %v5893 = vor.u32 %v5889, %v5892
    %v5894 = vrot.slane %v5893, 4
    %v5896 = vshll.u32 %v5859, 16
    %v5898 = vrot.slane %v5896, 5
    %v5899 = vsel %vm672, %v5894, %v5898
    %v5901 = vshrl.u32 %v5860, 16
    %v5903 = vrot.slane %v5901, 4
    %v5904 = vshll.u32 %v5860, 16
    %v5906 = vrot.slane %v5904, 5
    %v5907 = vor.u32 %v5903, %v5906
    %v5908 = vrot.slane %v5907, 4
    %v5910 = vshll.u32 %v5861, 16
    %v5912 = vrot.slane %v5910, 5
    %v5913 = vsel %vm672, %v5908, %v5912
    %v5915 = vshrl.u32 %v5862, 16
    %v5917 = vrot.slane %v5915, 4
    %v5918 = vshll.u32 %v5862, 16
    %v5920 = vrot.slane %v5918, 5
    %v5921 = vor.u32 %v5917, %v5920
    %v5922 = vrot.slane %v5921, 4
    %v5924 = vshll.u32 %v5863, 16
    %v5926 = vrot.slane %v5924, 5
    %v5927 = vsel %vm672, %v5922, %v5926
    %v5929 = vshrl.u32 %v5864, 16
    %v5931 = vrot.slane %v5929, 4
    %v5932 = vshll.u32 %v5864, 16
    %v5934 = vrot.slane %v5932, 5
    %v5935 = vor.u32 %v5931, %v5934
    %v5936 = vrot.slane %v5935, 4
    %v5938 = vshll.u32 %v5865, 16
    %v5940 = vrot.slane %v5938, 5
    %v5941 = vsel %vm672, %v5936, %v5940
    %v5943 = vshrl.u32 %v5866, 16
    %v5945 = vrot.slane %v5943, 4
    %v5946 = vshll.u32 %v5866, 16
    %v5948 = vrot.slane %v5946, 5
    %v5949 = vor.u32 %v5945, %v5948
    %v5950 = vrot.slane %v5949, 4
    %v5952 = vshll.u32 %v5867, 16
    %v5954 = vrot.slane %v5952, 5
    %v5955 = vsel %vm672, %v5950, %v5954
    %v5957 = vshrl.u32 %v5868, 16
    %v5959 = vrot.slane %v5957, 4
    %v5960 = vshll.u32 %v5868, 16
    %v5962 = vrot.slane %v5960, 5
    %v5963 = vor.u32 %v5959, %v5962
    %v5964 = vrot.slane %v5963, 4
    %v5966 = vshll.u32 %v5869, 16
    %v5968 = vrot.slane %v5966, 5
    %v5969 = vsel %vm672, %v5964, %v5968
    %v5971 = vshrl.u32 %v5870, 16
    %v5973 = vrot.slane %v5971, 4
    %v5974 = vshll.u32 %v5870, 16
    %v5976 = vrot.slane %v5974, 5
    %v5977 = vor.u32 %v5973, %v5976
    %v5978 = vrot.slane %v5977, 4
    %v5980 = vshll.u32 %v5871, 16
    %v5982 = vrot.slane %v5980, 5
    %v5983 = vsel %vm672, %v5978, %v5982
    %s5984 = scalar_lea.vmem [#allocation10], 1024
    %v5985 = vld [vmem:[%s5984] sm:$0xff]
    %v5986 = vld [vmem:[%s5984 + $0x8] sm:$0xff]
    %v5987 = vld [vmem:[%s5984 + $0x10] sm:$0xff]
    %v5988 = vld [vmem:[%s5984 + $0x18] sm:$0xff]
    %v5989 = vld [vmem:[%s5984 + $0x20] sm:$0xff]
    %v5990 = vld [vmem:[%s5984 + $0x28] sm:$0xff]
    %v5991 = vld [vmem:[%s5984 + $0x30] sm:$0xff]
    %v5992 = vld [vmem:[%s5984 + $0x38] sm:$0xff]
    %v5993 = vld [vmem:[%s5984 + $0x40] sm:$0xff]
    %v5994 = vld [vmem:[%s5984 + $0x48] sm:$0xff]
    %v5995 = vld [vmem:[%s5984 + $0x50] sm:$0xff]
    %v5996 = vld [vmem:[%s5984 + $0x58] sm:$0xff]
    %v5997 = vld [vmem:[%s5984 + $0x60] sm:$0xff]
    %v5998 = vld [vmem:[%s5984 + $0x68] sm:$0xff]
    %v5999 = vld [vmem:[%s5984 + $0x70] sm:$0xff]
    %v6000 = vld [vmem:[%s5984 + $0x78] sm:$0xff]
    %v6001 = vld [vmem:[%s5984 + $0x80] sm:$0xff]
    %v6002 = vld [vmem:[%s5984 + $0x88] sm:$0xff]
    %v6003 = vld [vmem:[%s5984 + $0x90] sm:$0xff]
    %v6004 = vld [vmem:[%s5984 + $0x98] sm:$0xff]
    %v6005 = vld [vmem:[%s5984 + $0xa0] sm:$0xff]
    %v6006 = vld [vmem:[%s5984 + $0xa8] sm:$0xff]
    %v6007 = vld [vmem:[%s5984 + $0xb0] sm:$0xff]
    %v6008 = vld [vmem:[%s5984 + $0xb8] sm:$0xff]
    %v6009 = vld [vmem:[%s5984 + $0xc0] sm:$0xff]
    %v6010 = vld [vmem:[%s5984 + $0xc8] sm:$0xff]
    %v6011 = vld [vmem:[%s5984 + $0xd0] sm:$0xff]
    %v6012 = vld [vmem:[%s5984 + $0xd8] sm:$0xff]
    %v6013 = vld [vmem:[%s5984 + $0xe0] sm:$0xff]
    %v6014 = vld [vmem:[%s5984 + $0xe8] sm:$0xff]
    %v6015 = vld [vmem:[%s5984 + $0xf0] sm:$0xff]
    %v6016 = vld [vmem:[%s5984 + $0xf8] sm:$0xff]
    %v6017 = vunpack.c.l.b16 %v5885
    %v6018 = vunpack.c.h.b16 %v5885
    %v6019 = vunpack.c.l.b16 %v5899
    %v6020 = vunpack.c.h.b16 %v5899
    %v6021 = vunpack.c.l.b16 %v5913
    %v6022 = vunpack.c.h.b16 %v5913
    %v6023 = vunpack.c.l.b16 %v5927
    %v6024 = vunpack.c.h.b16 %v5927
    %v6025 = vunpack.c.l.b16 %v5941
    %v6026 = vunpack.c.h.b16 %v5941
    %v6027 = vunpack.c.l.b16 %v5955
    %v6028 = vunpack.c.h.b16 %v5955
    %v6029 = vunpack.c.l.b16 %v5969
    %v6030 = vunpack.c.h.b16 %v5969
    %v6031 = vunpack.c.l.b16 %v5983
    %v6032 = vunpack.c.h.b16 %v5983
    %v6033 = vpack.c.b16 %v6019, %v6017
    %v6034 = vpack.c.b16 %v6020, %v6018
    %v6035 = vpack.c.b16 %v6023, %v6021
    %v6036 = vpack.c.b16 %v6024, %v6022
    %v6037 = vpack.c.b16 %v6027, %v6025
    %v6038 = vpack.c.b16 %v6028, %v6026
    %v6039 = vpack.c.b16 %v6031, %v6029
    %v6040 = vpack.c.b16 %v6032, %v6030
    %v6081 = vunpack.c.l.b16 %v5985
    %v6082 = vunpack.c.h.b16 %v5985
    %v6083 = vunpack.c.l.b16 %v5986
    %v6084 = vunpack.c.h.b16 %v5986
    %v6085 = vunpack.c.l.b16 %v5987
    %v6086 = vunpack.c.h.b16 %v5987
    %v6087 = vunpack.c.l.b16 %v5988
    %v6088 = vunpack.c.h.b16 %v5988
    %v6089 = vunpack.c.l.b16 %v5989
    %v6090 = vunpack.c.h.b16 %v5989
    %v6091 = vunpack.c.l.b16 %v5990
    %v6092 = vunpack.c.h.b16 %v5990
    %v6093 = vunpack.c.l.b16 %v5991
    %v6094 = vunpack.c.h.b16 %v5991
    %v6095 = vunpack.c.l.b16 %v5992
    %v6096 = vunpack.c.h.b16 %v5992
    %v6097 = vunpack.c.l.b16 %v5993
    %v6098 = vunpack.c.h.b16 %v5993
    %v6099 = vunpack.c.l.b16 %v5994
    %v6100 = vunpack.c.h.b16 %v5994
    %v6101 = vunpack.c.l.b16 %v5995
    %v6102 = vunpack.c.h.b16 %v5995
    %v6103 = vunpack.c.l.b16 %v5996
    %v6104 = vunpack.c.h.b16 %v5996
    %v6105 = vunpack.c.l.b16 %v5997
    %v6106 = vunpack.c.h.b16 %v5997
    %v6107 = vunpack.c.l.b16 %v5998
    %v6108 = vunpack.c.h.b16 %v5998
    %v6109 = vunpack.c.l.b16 %v5999
    %v6110 = vunpack.c.h.b16 %v5999
    %v6111 = vunpack.c.l.b16 %v6000
    %v6112 = vunpack.c.h.b16 %v6000
    %v6113 = vunpack.c.l.b16 %v6001
    %v6114 = vunpack.c.h.b16 %v6001
    %v6115 = vunpack.c.l.b16 %v6002
    %v6116 = vunpack.c.h.b16 %v6002
    %v6117 = vunpack.c.l.b16 %v6003
    %v6118 = vunpack.c.h.b16 %v6003
    %v6119 = vunpack.c.l.b16 %v6004
    %v6120 = vunpack.c.h.b16 %v6004
    %v6121 = vunpack.c.l.b16 %v6005
    %v6122 = vunpack.c.h.b16 %v6005
    %v6123 = vunpack.c.l.b16 %v6006
    %v6124 = vunpack.c.h.b16 %v6006
    %v6125 = vunpack.c.l.b16 %v6007
    %v6126 = vunpack.c.h.b16 %v6007
    %v6127 = vunpack.c.l.b16 %v6008
    %v6128 = vunpack.c.h.b16 %v6008
    %v6129 = vunpack.c.l.b16 %v6009
    %v6130 = vunpack.c.h.b16 %v6009
    %v6131 = vunpack.c.l.b16 %v6010
    %v6132 = vunpack.c.h.b16 %v6010
    %v6133 = vunpack.c.l.b16 %v6011
    %v6134 = vunpack.c.h.b16 %v6011
    %v6135 = vunpack.c.l.b16 %v6012
    %v6136 = vunpack.c.h.b16 %v6012
    %v6137 = vunpack.c.l.b16 %v6013
    %v6138 = vunpack.c.h.b16 %v6013
    %v6139 = vunpack.c.l.b16 %v6014
    %v6140 = vunpack.c.h.b16 %v6014
    %v6141 = vunpack.c.l.b16 %v6015
    %v6142 = vunpack.c.h.b16 %v6015
    %v6143 = vunpack.c.l.b16 %v6016
    %v6144 = vunpack.c.h.b16 %v6016
    %v6145 = vpack.c.b16 %v6083, %v6081
    %v6146 = vpack.c.b16 %v6084, %v6082
    %v6147 = vpack.c.b16 %v6087, %v6085
    %v6148 = vpack.c.b16 %v6088, %v6086
    %v6149 = vpack.c.b16 %v6091, %v6089
    %v6150 = vpack.c.b16 %v6092, %v6090
    %v6151 = vpack.c.b16 %v6095, %v6093
    %v6152 = vpack.c.b16 %v6096, %v6094
    %v6153 = vpack.c.b16 %v6099, %v6097
    %v6154 = vpack.c.b16 %v6100, %v6098
    %v6155 = vpack.c.b16 %v6103, %v6101
    %v6156 = vpack.c.b16 %v6104, %v6102
    %v6157 = vpack.c.b16 %v6107, %v6105
    %v6158 = vpack.c.b16 %v6108, %v6106
    %v6159 = vpack.c.b16 %v6111, %v6109
    %v6160 = vpack.c.b16 %v6112, %v6110
    %v6161 = vpack.c.b16 %v6115, %v6113
    %v6162 = vpack.c.b16 %v6116, %v6114
    %v6163 = vpack.c.b16 %v6119, %v6117
    %v6164 = vpack.c.b16 %v6120, %v6118
    %v6165 = vpack.c.b16 %v6123, %v6121
    %v6166 = vpack.c.b16 %v6124, %v6122
    %v6167 = vpack.c.b16 %v6127, %v6125
    %v6168 = vpack.c.b16 %v6128, %v6126
    %v6169 = vpack.c.b16 %v6131, %v6129
    %v6170 = vpack.c.b16 %v6132, %v6130
    %v6171 = vpack.c.b16 %v6135, %v6133
    %v6172 = vpack.c.b16 %v6136, %v6134
    %v6173 = vpack.c.b16 %v6139, %v6137
    %v6174 = vpack.c.b16 %v6140, %v6138
    %v6175 = vpack.c.b16 %v6143, %v6141
    %v6176 = vpack.c.b16 %v6144, %v6142
    %6209 = vmatprep.subr.bf16.mxu0 %v6146
    %6210 = vmatpush1.bf16.msra.mxu0 %v6145
    %6211 = vmatprep.subr.bf16.mxu0 %v6148
    %6212 = vmatpush1.bf16.msra.mxu0 %v6147
    %6213 = vmatprep.subr.bf16.mxu0 %v6150
    %6214 = vmatpush1.bf16.msra.mxu0 %v6149
    %6215 = vmatprep.subr.bf16.mxu0 %v6152
    %6216 = vmatpush1.bf16.msra.mxu0 %v6151
    %6217 = vmatprep.subr.bf16.mxu0 %v6154
    %6218 = vmatpush1.bf16.msra.mxu0 %v6153
    %6219 = vmatprep.subr.bf16.mxu0 %v6156
    %6220 = vmatpush1.bf16.msra.mxu0 %v6155
    %6221 = vmatprep.subr.bf16.mxu0 %v6158
    %6222 = vmatpush1.bf16.msra.mxu0 %v6157
    %6223 = vmatprep.subr.bf16.mxu0 %v6160
    %6224 = vmatpush1.bf16.msra.mxu0 %v6159
    %6225 = vmatprep.subr.bf16.mxu0 %v6162
    %6226 = vmatpush1.bf16.msra.mxu0 %v6161
    %6227 = vmatprep.subr.bf16.mxu0 %v6164
    %6228 = vmatpush1.bf16.msra.mxu0 %v6163
    %6229 = vmatprep.subr.bf16.mxu0 %v6166
    %6230 = vmatpush1.bf16.msra.mxu0 %v6165
    %6231 = vmatprep.subr.bf16.mxu0 %v6168
    %6232 = vmatpush1.bf16.msra.mxu0 %v6167
    %6233 = vmatprep.subr.bf16.mxu0 %v6170
    %6234 = vmatpush1.bf16.msra.mxu0 %v6169
    %6235 = vmatprep.subr.bf16.mxu0 %v6172
    %6236 = vmatpush1.bf16.msra.mxu0 %v6171
    %6237 = vmatprep.subr.bf16.mxu0 %v6174
    %6238 = vmatpush1.bf16.msra.mxu0 %v6173
    %6239 = vmatprep.subr.bf16.mxu0 %v6176
    %6240 = vmatpush1.bf16.msra.mxu0 %v6175
    %6241 = vmatprep.mubr.bf16.mxu0 %v6034
    %6242 = vmatmul.mubr.bf16.gmra.mrb[0].mxu0 %v6033
    %v6243 = vpop.f32.mrb[0].mxu0
    %v6244 = vadd.f32 0.0, %v6243
    %v6245 = vpop.f32.mrb[0].mxu0
    %v6246 = vadd.f32 0.0, %v6245
    %v6247 = vpop.f32.mrb[0].mxu0
    %v6248 = vadd.f32 0.0, %v6247
    %v6249 = vpop.f32.mrb[0].mxu0
    %v6250 = vadd.f32 0.0, %v6249
    %6251 = vmatprep.mubr.bf16.mxu0 %v6036
    %6252 = vmatmul.mubr.bf16.gmra.mrb[0].mxu0 %v6035
    %v6253 = vpop.f32.mrb[0].mxu0
    %v6254 = vadd.f32 0.0, %v6253
    %v6255 = vpop.f32.mrb[0].mxu0
    %v6256 = vadd.f32 0.0, %v6255
    %v6257 = vpop.f32.mrb[0].mxu0
    %v6258 = vadd.f32 0.0, %v6257
    %v6259 = vpop.f32.mrb[0].mxu0
    %v6260 = vadd.f32 0.0, %v6259
    %6261 = vmatprep.mubr.bf16.mxu0 %v6038
    %6262 = vmatmul.mubr.bf16.gmra.mrb[0].mxu0 %v6037
    %v6263 = vpop.f32.mrb[0].mxu0
    %v6264 = vadd.f32 0.0, %v6263
    %v6265 = vpop.f32.mrb[0].mxu0
    %v6266 = vadd.f32 0.0, %v6265
    %v6267 = vpop.f32.mrb[0].mxu0
    %v6268 = vadd.f32 0.0, %v6267
    %v6269 = vpop.f32.mrb[0].mxu0
    %v6270 = vadd.f32 0.0, %v6269
    %6271 = vmatprep.mubr.bf16.mxu0 %v6040
    %6272 = vmatmul.mubr.bf16.gmra.mrb[0].mxu0 %v6039
    %v6273 = vpop.f32.mrb[0].mxu0
    %v6274 = vadd.f32 0.0, %v6273
    %v6275 = vpop.f32.mrb[0].mxu0
    %v6276 = vadd.f32 0.0, %v6275
    %v6277 = vpop.f32.mrb[0].mxu0
    %v6278 = vadd.f32 0.0, %v6277
    %v6279 = vpop.f32.mrb[0].mxu0
    %v6280 = vadd.f32 0.0, %v6279
    %6281 = vdwg.mxu0
    %v6282 = vld [vmem:[#allocation3] sm:$0xff]
    %v6283 = vld [vmem:[#allocation3 + $0x8] sm:$0xff]
    %v6284 = vld [vmem:[#allocation3 + $0x10] sm:$0xff]
    %v6285 = vld [vmem:[#allocation3 + $0x18] sm:$0xff]
    %v6286 = vld [vmem:[#allocation3 + $0x20] sm:$0xff]
    %v6287 = vld [vmem:[#allocation3 + $0x28] sm:$0xff]
    %v6288 = vld [vmem:[#allocation3 + $0x30] sm:$0xff]
    %v6289 = vld [vmem:[#allocation3 + $0x38] sm:$0xff]
    %v6290 = vld [vmem:[#allocation3 + $0x40] sm:$0xff]
    %v6291 = vld [vmem:[#allocation3 + $0x48] sm:$0xff]
    %v6292 = vld [vmem:[#allocation3 + $0x50] sm:$0xff]
    %v6293 = vld [vmem:[#allocation3 + $0x58] sm:$0xff]
    %v6294 = vld [vmem:[#allocation3 + $0x60] sm:$0xff]
    %v6295 = vld [vmem:[#allocation3 + $0x68] sm:$0xff]
    %v6296 = vld [vmem:[#allocation3 + $0x70] sm:$0xff]
    %v6297 = vld [vmem:[#allocation3 + $0x78] sm:$0xff]
    %v6298 = vadd.f32 %v6282, %v6244
    %v6299 = vadd.f32 %v6283, %v6246
    %v6300 = vadd.f32 %v6284, %v6248
    %v6301 = vadd.f32 %v6285, %v6250
    %v6302 = vadd.f32 %v6286, %v6254
    %v6303 = vadd.f32 %v6287, %v6256
    %v6304 = vadd.f32 %v6288, %v6258
    %v6305 = vadd.f32 %v6289, %v6260
    %v6306 = vadd.f32 %v6290, %v6264
    %v6307 = vadd.f32 %v6291, %v6266
    %v6308 = vadd.f32 %v6292, %v6268
    %v6309 = vadd.f32 %v6293, %v6270
    %v6310 = vadd.f32 %v6294, %v6274
    %v6311 = vadd.f32 %v6295, %v6276
    %v6312 = vadd.f32 %v6296, %v6278
    %v6313 = vadd.f32 %v6297, %v6280
    %6314 = vst [vmem:[#allocation3] sm:$0xff] %v6298
    %6315 = vst [vmem:[#allocation3 + $0x8] sm:$0xff] %v6299
    %6316 = vst [vmem:[#allocation3 + $0x10] sm:$0xff] %v6300
    %6317 = vst [vmem:[#allocation3 + $0x18] sm:$0xff] %v6301
    %6318 = vst [vmem:[#allocation3 + $0x20] sm:$0xff] %v6302
    %6319 = vst [vmem:[#allocation3 + $0x28] sm:$0xff] %v6303
    %6320 = vst [vmem:[#allocation3 + $0x30] sm:$0xff] %v6304
    %6321 = vst [vmem:[#allocation3 + $0x38] sm:$0xff] %v6305
    %6322 = vst [vmem:[#allocation3 + $0x40] sm:$0xff] %v6306
    %6323 = vst [vmem:[#allocation3 + $0x48] sm:$0xff] %v6307
    %6324 = vst [vmem:[#allocation3 + $0x50] sm:$0xff] %v6308
    %6325 = vst [vmem:[#allocation3 + $0x58] sm:$0xff] %v6309
    %6326 = vst [vmem:[#allocation3 + $0x60] sm:$0xff] %v6310
    %6327 = vst [vmem:[#allocation3 + $0x68] sm:$0xff] %v6311
    %6328 = vst [vmem:[#allocation3 + $0x70] sm:$0xff] %v6312
    %6329 = vst [vmem:[#allocation3 + $0x78] sm:$0xff] %v6313
    %v6330 = vld [vmem:[%s262] sm:$0xee]
    %v6331 = vld [vmem:[%s262 + $0x8] sm:$0x11]
    %v6332 = vld [vmem:[%s262 + $0x10] sm:$0xee]
    %v6333 = vld [vmem:[%s262 + $0x18] sm:$0x11]
    %v6334 = vld [vmem:[%s262 + $0x20] sm:$0xee]
    %v6335 = vld [vmem:[%s262 + $0x28] sm:$0x11]
    %v6336 = vld [vmem:[%s262 + $0x30] sm:$0xee]
    %v6337 = vld [vmem:[%s262 + $0x38] sm:$0x11]
    %v6338 = vld [vmem:[%s262 + $0x60] sm:$0xee]
    %v6339 = vld [vmem:[%s262 + $0x68] sm:$0x11]
    %v6340 = vld [vmem:[%s262 + $0x70] sm:$0xee]
    %v6341 = vld [vmem:[%s262 + $0x78] sm:$0x11]
    %v6342 = vld [vmem:[%s262 + $0x80] sm:$0xee]
    %v6343 = vld [vmem:[%s262 + $0x88] sm:$0x11]
    %v6344 = vld [vmem:[%s262 + $0x90] sm:$0xee]
    %v6345 = vld [vmem:[%s262 + $0x98] sm:$0x11]
    %v6362 = vrot.slane %v6330, 5
    %v6363 = vrot.slane %v6362, 4
    %v6364 = vrot.slane %v6331, 5
    %v6365 = vsel %vm1165, %v6363, %v6364
    %v6366 = vrot.slane %v6332, 5
    %v6367 = vrot.slane %v6366, 4
    %v6368 = vrot.slane %v6333, 5
    %v6369 = vsel %vm1165, %v6367, %v6368
    %v6370 = vrot.slane %v6334, 5
    %v6371 = vrot.slane %v6370, 4
    %v6372 = vrot.slane %v6335, 5
    %v6373 = vsel %vm1165, %v6371, %v6372
    %v6374 = vrot.slane %v6336, 5
    %v6375 = vrot.slane %v6374, 4
    %v6376 = vrot.slane %v6337, 5
    %v6377 = vsel %vm1165, %v6375, %v6376
    %v6378 = vrot.slane %v6338, 5
    %v6379 = vrot.slane %v6378, 4
    %v6380 = vrot.slane %v6339, 5
    %v6381 = vsel %vm1165, %v6379, %v6380
    %v6382 = vrot.slane %v6340, 5
    %v6383 = vrot.slane %v6382, 4
    %v6384 = vrot.slane %v6341, 5
    %v6385 = vsel %vm1165, %v6383, %v6384
    %v6386 = vrot.slane %v6342, 5
    %v6387 = vrot.slane %v6386, 4
    %v6388 = vrot.slane %v6343, 5
    %v6389 = vsel %vm1165, %v6387, %v6388
    %v6390 = vrot.slane %v6344, 5
    %v6391 = vrot.slane %v6390, 4
    %v6392 = vrot.slane %v6345, 5
    %v6393 = vsel %vm1165, %v6391, %v6392
    %s6394 = scalar_lea.vmem [#allocation10], 1280
    %v6395 = vld [vmem:[%s6394] sm:$0xff]
    %v6396 = vld [vmem:[%s6394 + $0x8] sm:$0xff]
    %v6397 = vld [vmem:[%s6394 + $0x10] sm:$0xff]
    %v6398 = vld [vmem:[%s6394 + $0x18] sm:$0xff]
    %v6399 = vld [vmem:[%s6394 + $0x20] sm:$0xff]
    %v6400 = vld [vmem:[%s6394 + $0x28] sm:$0xff]
    %v6401 = vld [vmem:[%s6394 + $0x30] sm:$0xff]
    %v6402 = vld [vmem:[%s6394 + $0x38] sm:$0xff]
    %v6403 = vld [vmem:[%s6394 + $0x40] sm:$0xff]
    %v6404 = vld [vmem:[%s6394 + $0x48] sm:$0xff]
    %v6405 = vld [vmem:[%s6394 + $0x50] sm:$0xff]
    %v6406 = vld [vmem:[%s6394 + $0x58] sm:$0xff]
    %v6407 = vld [vmem:[%s6394 + $0x60] sm:$0xff]
    %v6408 = vld [vmem:[%s6394 + $0x68] sm:$0xff]
    %v6409 = vld [vmem:[%s6394 + $0x70] sm:$0xff]
    %v6410 = vld [vmem:[%s6394 + $0x78] sm:$0xff]
    %v6411 = vld [vmem:[%s6394 + $0x80] sm:$0xff]
    %v6412 = vld [vmem:[%s6394 + $0x88] sm:$0xff]
    %v6413 = vld [vmem:[%s6394 + $0x90] sm:$0xff]
    %v6414 = vld [vmem:[%s6394 + $0x98] sm:$0xff]
    %v6415 = vld [vmem:[%s6394 + $0xa0] sm:$0xff]
    %v6416 = vld [vmem:[%s6394 + $0xa8] sm:$0xff]
    %v6417 = vld [vmem:[%s6394 + $0xb0] sm:$0xff]
    %v6418 = vld [vmem:[%s6394 + $0xb8] sm:$0xff]
    %v6419 = vld [vmem:[%s6394 + $0xc0] sm:$0xff]
    %v6420 = vld [vmem:[%s6394 + $0xc8] sm:$0xff]
    %v6421 = vld [vmem:[%s6394 + $0xd0] sm:$0xff]
    %v6422 = vld [vmem:[%s6394 + $0xd8] sm:$0xff]
    %v6423 = vld [vmem:[%s6394 + $0xe0] sm:$0xff]
    %v6424 = vld [vmem:[%s6394 + $0xe8] sm:$0xff]
    %v6425 = vld [vmem:[%s6394 + $0xf0] sm:$0xff]
    %v6426 = vld [vmem:[%s6394 + $0xf8] sm:$0xff]
    %v6427 = vunpack.c.l.b16 %v6365
    %v6428 = vunpack.c.h.b16 %v6365
    %v6429 = vunpack.c.l.b16 %v6369
    %v6430 = vunpack.c.h.b16 %v6369
    %v6431 = vunpack.c.l.b16 %v6373
    %v6432 = vunpack.c.h.b16 %v6373
    %v6433 = vunpack.c.l.b16 %v6377
    %v6434 = vunpack.c.h.b16 %v6377
    %v6435 = vunpack.c.l.b16 %v6381
    %v6436 = vunpack.c.h.b16 %v6381
    %v6437 = vunpack.c.l.b16 %v6385
    %v6438 = vunpack.c.h.b16 %v6385
    %v6439 = vunpack.c.l.b16 %v6389
    %v6440 = vunpack.c.h.b16 %v6389
    %v6441 = vunpack.c.l.b16 %v6393
    %v6442 = vunpack.c.h.b16 %v6393
    %v6443 = vpack.c.b16 %v6429, %v6427
    %v6444 = vpack.c.b16 %v6430, %v6428
    %v6445 = vpack.c.b16 %v6433, %v6431
    %v6446 = vpack.c.b16 %v6434, %v6432
    %v6447 = vpack.c.b16 %v6437, %v6435
    %v6448 = vpack.c.b16 %v6438, %v6436
    %v6449 = vpack.c.b16 %v6441, %v6439
    %v6450 = vpack.c.b16 %v6442, %v6440
    %v6491 = vunpack.c.l.b16 %v6395
    %v6492 = vunpack.c.h.b16 %v6395
    %v6493 = vunpack.c.l.b16 %v6396
    %v6494 = vunpack.c.h.b16 %v6396
    %v6495 = vunpack.c.l.b16 %v6397
    %v6496 = vunpack.c.h.b16 %v6397
    %v6497 = vunpack.c.l.b16 %v6398
    %v6498 = vunpack.c.h.b16 %v6398
    %v6499 = vunpack.c.l.b16 %v6399
    %v6500 = vunpack.c.h.b16 %v6399
    %v6501 = vunpack.c.l.b16 %v6400
    %v6502 = vunpack.c.h.b16 %v6400
    %v6503 = vunpack.c.l.b16 %v6401
    %v6504 = vunpack.c.h.b16 %v6401
    %v6505 = vunpack.c.l.b16 %v6402
    %v6506 = vunpack.c.h.b16 %v6402
    %v6507 = vunpack.c.l.b16 %v6403
    %v6508 = vunpack.c.h.b16 %v6403
    %v6509 = vunpack.c.l.b16 %v6404
    %v6510 = vunpack.c.h.b16 %v6404
    %v6511 = vunpack.c.l.b16 %v6405
    %v6512 = vunpack.c.h.b16 %v6405
    %v6513 = vunpack.c.l.b16 %v6406
    %v6514 = vunpack.c.h.b16 %v6406
    %v6515 = vunpack.c.l.b16 %v6407
    %v6516 = vunpack.c.h.b16 %v6407
    %v6517 = vunpack.c.l.b16 %v6408
    %v6518 = vunpack.c.h.b16 %v6408
    %v6519 = vunpack.c.l.b16 %v6409
    %v6520 = vunpack.c.h.b16 %v6409
    %v6521 = vunpack.c.l.b16 %v6410
    %v6522 = vunpack.c.h.b16 %v6410
    %v6523 = vunpack.c.l.b16 %v6411
    %v6524 = vunpack.c.h.b16 %v6411
    %v6525 = vunpack.c.l.b16 %v6412
    %v6526 = vunpack.c.h.b16 %v6412
    %v6527 = vunpack.c.l.b16 %v6413
    %v6528 = vunpack.c.h.b16 %v6413
    %v6529 = vunpack.c.l.b16 %v6414
    %v6530 = vunpack.c.h.b16 %v6414
    %v6531 = vunpack.c.l.b16 %v6415
    %v6532 = vunpack.c.h.b16 %v6415
    %v6533 = vunpack.c.l.b16 %v6416
    %v6534 = vunpack.c.h.b16 %v6416
    %v6535 = vunpack.c.l.b16 %v6417
    %v6536 = vunpack.c.h.b16 %v6417
    %v6537 = vunpack.c.l.b16 %v6418
    %v6538 = vunpack.c.h.b16 %v6418
    %v6539 = vunpack.c.l.b16 %v6419
    %v6540 = vunpack.c.h.b16 %v6419
    %v6541 = vunpack.c.l.b16 %v6420
    %v6542 = vunpack.c.h.b16 %v6420
    %v6543 = vunpack.c.l.b16 %v6421
    %v6544 = vunpack.c.h.b16 %v6421
    %v6545 = vunpack.c.l.b16 %v6422
    %v6546 = vunpack.c.h.b16 %v6422
    %v6547 = vunpack.c.l.b16 %v6423
    %v6548 = vunpack.c.h.b16 %v6423
    %v6549 = vunpack.c.l.b16 %v6424
    %v6550 = vunpack.c.h.b16 %v6424
    %v6551 = vunpack.c.l.b16 %v6425
    %v6552 = vunpack.c.h.b16 %v6425
    %v6553 = vunpack.c.l.b16 %v6426
    %v6554 = vunpack.c.h.b16 %v6426
    %v6555 = vpack.c.b16 %v6493, %v6491
    %v6556 = vpack.c.b16 %v6494, %v6492
    %v6557 = vpack.c.b16 %v6497, %v6495
    %v6558 = vpack.c.b16 %v6498, %v6496
    %v6559 = vpack.c.b16 %v6501, %v6499
    %v6560 = vpack.c.b16 %v6502, %v6500
    %v6561 = vpack.c.b16 %v6505, %v6503
    %v6562 = vpack.c.b16 %v6506, %v6504
    %v6563 = vpack.c.b16 %v6509, %v6507
    %v6564 = vpack.c.b16 %v6510, %v6508
    %v6565 = vpack.c.b16 %v6513, %v6511
    %v6566 = vpack.c.b16 %v6514, %v6512
    %v6567 = vpack.c.b16 %v6517, %v6515
    %v6568 = vpack.c.b16 %v6518, %v6516
    %v6569 = vpack.c.b16 %v6521, %v6519
    %v6570 = vpack.c.b16 %v6522, %v6520
    %v6571 = vpack.c.b16 %v6525, %v6523
    %v6572 = vpack.c.b16 %v6526, %v6524
    %v6573 = vpack.c.b16 %v6529, %v6527
    %v6574 = vpack.c.b16 %v6530, %v6528
    %v6575 = vpack.c.b16 %v6533, %v6531
    %v6576 = vpack.c.b16 %v6534, %v6532
    %v6577 = vpack.c.b16 %v6537, %v6535
    %v6578 = vpack.c.b16 %v6538, %v6536
    %v6579 = vpack.c.b16 %v6541, %v6539
    %v6580 = vpack.c.b16 %v6542, %v6540
    %v6581 = vpack.c.b16 %v6545, %v6543
    %v6582 = vpack.c.b16 %v6546, %v6544
    %v6583 = vpack.c.b16 %v6549, %v6547
    %v6584 = vpack.c.b16 %v6550, %v6548
    %v6585 = vpack.c.b16 %v6553, %v6551
    %v6586 = vpack.c.b16 %v6554, %v6552
    %6619 = vmatprep.subr.bf16.mxu0 %v6556
    %6620 = vmatpush1.bf16.msra.mxu0 %v6555
    %6621 = vmatprep.subr.bf16.mxu0 %v6558
    %6622 = vmatpush1.bf16.msra.mxu0 %v6557
    %6623 = vmatprep.subr.bf16.mxu0 %v6560
    %6624 = vmatpush1.bf16.msra.mxu0 %v6559
    %6625 = vmatprep.subr.bf16.mxu0 %v6562
    %6626 = vmatpush1.bf16.msra.mxu0 %v6561
    %6627 = vmatprep.subr.bf16.mxu0 %v6564
    %6628 = vmatpush1.bf16.msra.mxu0 %v6563
    %6629 = vmatprep.subr.bf16.mxu0 %v6566
    %6630 = vmatpush1.bf16.msra.mxu0 %v6565
    %6631 = vmatprep.subr.bf16.mxu0 %v6568
    %6632 = vmatpush1.bf16.msra.mxu0 %v6567
    %6633 = vmatprep.subr.bf16.mxu0 %v6570
    %6634 = vmatpush1.bf16.msra.mxu0 %v6569
    %6635 = vmatprep.subr.bf16.mxu0 %v6572
    %6636 = vmatpush1.bf16.msra.mxu0 %v6571
    %6637 = vmatprep.subr.bf16.mxu0 %v6574
    %6638 = vmatpush1.bf16.msra.mxu0 %v6573
    %6639 = vmatprep.subr.bf16.mxu0 %v6576
    %6640 = vmatpush1.bf16.msra.mxu0 %v6575
    %6641 = vmatprep.subr.bf16.mxu0 %v6578
    %6642 = vmatpush1.bf16.msra.mxu0 %v6577
    %6643 = vmatprep.subr.bf16.mxu0 %v6580
    %6644 = vmatpush1.bf16.msra.mxu0 %v6579
    %6645 = vmatprep.subr.bf16.mxu0 %v6582
    %6646 = vmatpush1.bf16.msra.mxu0 %v6581
    %6647 = vmatprep.subr.bf16.mxu0 %v6584
    %6648 = vmatpush1.bf16.msra.mxu0 %v6583
    %6649 = vmatprep.subr.bf16.mxu0 %v6586
    %6650 = vmatpush1.bf16.msra.mxu0 %v6585
    %6651 = vmatprep.mubr.bf16.mxu0 %v6444
    %6652 = vmatmul.mubr.bf16.gmra.mrb[0].mxu0 %v6443
    %v6653 = vpop.f32.mrb[0].mxu0
    %v6654 = vadd.f32 0.0, %v6653
    %v6655 = vpop.f32.mrb[0].mxu0
    %v6656 = vadd.f32 0.0, %v6655
    %v6657 = vpop.f32.mrb[0].mxu0
    %v6658 = vadd.f32 0.0, %v6657
    %v6659 = vpop.f32.mrb[0].mxu0
    %v6660 = vadd.f32 0.0, %v6659
    %6661 = vmatprep.mubr.bf16.mxu0 %v6446
    %6662 = vmatmul.mubr.bf16.gmra.mrb[0].mxu0 %v6445
    %v6663 = vpop.f32.mrb[0].mxu0
    %v6664 = vadd.f32 0.0, %v6663
    %v6665 = vpop.f32.mrb[0].mxu0
    %v6666 = vadd.f32 0.0, %v6665
    %v6667 = vpop.f32.mrb[0].mxu0
    %v6668 = vadd.f32 0.0, %v6667
    %v6669 = vpop.f32.mrb[0].mxu0
    %v6670 = vadd.f32 0.0, %v6669
    %6671 = vmatprep.mubr.bf16.mxu0 %v6448
    %6672 = vmatmul.mubr.bf16.gmra.mrb[0].mxu0 %v6447
    %v6673 = vpop.f32.mrb[0].mxu0
    %v6674 = vadd.f32 0.0, %v6673
    %v6675 = vpop.f32.mrb[0].mxu0
    %v6676 = vadd.f32 0.0, %v6675
    %v6677 = vpop.f32.mrb[0].mxu0
    %v6678 = vadd.f32 0.0, %v6677
    %v6679 = vpop.f32.mrb[0].mxu0
    %v6680 = vadd.f32 0.0, %v6679
    %6681 = vmatprep.mubr.bf16.mxu0 %v6450
    %6682 = vmatmul.mubr.bf16.gmra.mrb[0].mxu0 %v6449
    %v6683 = vpop.f32.mrb[0].mxu0
    %v6684 = vadd.f32 0.0, %v6683
    %v6685 = vpop.f32.mrb[0].mxu0
    %v6686 = vadd.f32 0.0, %v6685
    %v6687 = vpop.f32.mrb[0].mxu0
    %v6688 = vadd.f32 0.0, %v6687
    %v6689 = vpop.f32.mrb[0].mxu0
    %v6690 = vadd.f32 0.0, %v6689
    %6691 = vdwg.mxu0
    %v6692 = vld [vmem:[#allocation3] sm:$0xff]
    %v6693 = vld [vmem:[#allocation3 + $0x8] sm:$0xff]
    %v6694 = vld [vmem:[#allocation3 + $0x10] sm:$0xff]
    %v6695 = vld [vmem:[#allocation3 + $0x18] sm:$0xff]
    %v6696 = vld [vmem:[#allocation3 + $0x20] sm:$0xff]
    %v6697 = vld [vmem:[#allocation3 + $0x28] sm:$0xff]
    %v6698 = vld [vmem:[#allocation3 + $0x30] sm:$0xff]
    %v6699 = vld [vmem:[#allocation3 + $0x38] sm:$0xff]
    %v6700 = vld [vmem:[#allocation3 + $0x40] sm:$0xff]
    %v6701 = vld [vmem:[#allocation3 + $0x48] sm:$0xff]
    %v6702 = vld [vmem:[#allocation3 + $0x50] sm:$0xff]
    %v6703 = vld [vmem:[#allocation3 + $0x58] sm:$0xff]
    %v6704 = vld [vmem:[#allocation3 + $0x60] sm:$0xff]
    %v6705 = vld [vmem:[#allocation3 + $0x68] sm:$0xff]
    %v6706 = vld [vmem:[#allocation3 + $0x70] sm:$0xff]
    %v6707 = vld [vmem:[#allocation3 + $0x78] sm:$0xff]
    %v6708 = vadd.f32 %v6692, %v6654
    %v6709 = vadd.f32 %v6693, %v6656
    %v6710 = vadd.f32 %v6694, %v6658
    %v6711 = vadd.f32 %v6695, %v6660
    %v6712 = vadd.f32 %v6696, %v6664
    %v6713 = vadd.f32 %v6697, %v6666
    %v6714 = vadd.f32 %v6698, %v6668
    %v6715 = vadd.f32 %v6699, %v6670
    %v6716 = vadd.f32 %v6700, %v6674
    %v6717 = vadd.f32 %v6701, %v6676
    %v6718 = vadd.f32 %v6702, %v6678
    %v6719 = vadd.f32 %v6703, %v6680
    %v6720 = vadd.f32 %v6704, %v6684
    %v6721 = vadd.f32 %v6705, %v6686
    %v6722 = vadd.f32 %v6706, %v6688
    %v6723 = vadd.f32 %v6707, %v6690
    %6724 = vst [vmem:[#allocation3] sm:$0xff] %v6708
    %6725 = vst [vmem:[#allocation3 + $0x8] sm:$0xff] %v6709
    %6726 = vst [vmem:[#allocation3 + $0x10] sm:$0xff] %v6710
    %6727 = vst [vmem:[#allocation3 + $0x18] sm:$0xff] %v6711
    %6728 = vst [vmem:[#allocation3 + $0x20] sm:$0xff] %v6712
    %6729 = vst [vmem:[#allocation3 + $0x28] sm:$0xff] %v6713
    %6730 = vst [vmem:[#allocation3 + $0x30] sm:$0xff] %v6714
    %6731 = vst [vmem:[#allocation3 + $0x38] sm:$0xff] %v6715
    %6732 = vst [vmem:[#allocation3 + $0x40] sm:$0xff] %v6716
    %6733 = vst [vmem:[#allocation3 + $0x48] sm:$0xff] %v6717
    %6734 = vst [vmem:[#allocation3 + $0x50] sm:$0xff] %v6718
    %6735 = vst [vmem:[#allocation3 + $0x58] sm:$0xff] %v6719
    %6736 = vst [vmem:[#allocation3 + $0x60] sm:$0xff] %v6720
    %6737 = vst [vmem:[#allocation3 + $0x68] sm:$0xff] %v6721
    %6738 = vst [vmem:[#allocation3 + $0x70] sm:$0xff] %v6722
    %6739 = vst [vmem:[#allocation3 + $0x78] sm:$0xff] %v6723
    %v6740 = vld [vmem:[%s2790] sm:$0xff]
    %v6741 = vld [vmem:[%s2790 + $0x10] sm:$0xff]
    %v6742 = vld [vmem:[%s2790 + $0x20] sm:$0xff]
    %v6743 = vld [vmem:[%s2790 + $0x30] sm:$0xff]
    %v6744 = vld [vmem:[%s2790 + $0x60] sm:$0xff]
    %v6745 = vld [vmem:[%s2790 + $0x70] sm:$0xff]
    %v6746 = vld [vmem:[%s2790 + $0x80] sm:$0xff]
    %v6747 = vld [vmem:[%s2790 + $0x90] sm:$0xff]
    %s6748 = scalar_lea.vmem [#allocation10], 1536
    %v6749 = vld [vmem:[%s6748] sm:$0xff]
    %v6750 = vld [vmem:[%s6748 + $0x8] sm:$0xff]
    %v6751 = vld [vmem:[%s6748 + $0x10] sm:$0xff]
    %v6752 = vld [vmem:[%s6748 + $0x18] sm:$0xff]
    %v6753 = vld [vmem:[%s6748 + $0x20] sm:$0xff]
    %v6754 = vld [vmem:[%s6748 + $0x28] sm:$0xff]
    %v6755 = vld [vmem:[%s6748 + $0x30] sm:$0xff]
    %v6756 = vld [vmem:[%s6748 + $0x38] sm:$0xff]
    %v6757 = vld [vmem:[%s6748 + $0x40] sm:$0xff]
    %v6758 = vld [vmem:[%s6748 + $0x48] sm:$0xff]
    %v6759 = vld [vmem:[%s6748 + $0x50] sm:$0xff]
    %v6760 = vld [vmem:[%s6748 + $0x58] sm:$0xff]
    %v6761 = vld [vmem:[%s6748 + $0x60] sm:$0xff]
    %v6762 = vld [vmem:[%s6748 + $0x68] sm:$0xff]
    %v6763 = vld [vmem:[%s6748 + $0x70] sm:$0xff]
    %v6764 = vld [vmem:[%s6748 + $0x78] sm:$0xff]
    %v6765 = vld [vmem:[%s6748 + $0x80] sm:$0xff]
    %v6766 = vld [vmem:[%s6748 + $0x88] sm:$0xff]
    %v6767 = vld [vmem:[%s6748 + $0x90] sm:$0xff]
    %v6768 = vld [vmem:[%s6748 + $0x98] sm:$0xff]
    %v6769 = vld [vmem:[%s6748 + $0xa0] sm:$0xff]
    %v6770 = vld [vmem:[%s6748 + $0xa8] sm:$0xff]
    %v6771 = vld [vmem:[%s6748 + $0xb0] sm:$0xff]
    %v6772 = vld [vmem:[%s6748 + $0xb8] sm:$0xff]
    %v6773 = vld [vmem:[%s6748 + $0xc0] sm:$0xff]
    %v6774 = vld [vmem:[%s6748 + $0xc8] sm:$0xff]
    %v6775 = vld [vmem:[%s6748 + $0xd0] sm:$0xff]
    %v6776 = vld [vmem:[%s6748 + $0xd8] sm:$0xff]
    %v6777 = vld [vmem:[%s6748 + $0xe0] sm:$0xff]
    %v6778 = vld [vmem:[%s6748 + $0xe8] sm:$0xff]
    %v6779 = vld [vmem:[%s6748 + $0xf0] sm:$0xff]
    %v6780 = vld [vmem:[%s6748 + $0xf8] sm:$0xff]
    %v6789 = vunpack.c.l.b16 %v6740
    %v6790 = vunpack.c.h.b16 %v6740
    %v6791 = vunpack.c.l.b16 %v6741
    %v6792 = vunpack.c.h.b16 %v6741
    %v6793 = vunpack.c.l.b16 %v6742
    %v6794 = vunpack.c.h.b16 %v6742
    %v6795 = vunpack.c.l.b16 %v6743
    %v6796 = vunpack.c.h.b16 %v6743
    %v6797 = vunpack.c.l.b16 %v6744
    %v6798 = vunpack.c.h.b16 %v6744
    %v6799 = vunpack.c.l.b16 %v6745
    %v6800 = vunpack.c.h.b16 %v6745
    %v6801 = vunpack.c.l.b16 %v6746
    %v6802 = vunpack.c.h.b16 %v6746
    %v6803 = vunpack.c.l.b16 %v6747
    %v6804 = vunpack.c.h.b16 %v6747
    %v6805 = vpack.c.b16 %v6791, %v6789
    %v6806 = vpack.c.b16 %v6792, %v6790
    %v6807 = vpack.c.b16 %v6795, %v6793
    %v6808 = vpack.c.b16 %v6796, %v6794
    %v6809 = vpack.c.b16 %v6799, %v6797
    %v6810 = vpack.c.b16 %v6800, %v6798
    %v6811 = vpack.c.b16 %v6803, %v6801
    %v6812 = vpack.c.b16 %v6804, %v6802
    %v6853 = vunpack.c.l.b16 %v6749
    %v6854 = vunpack.c.h.b16 %v6749
    %v6855 = vunpack.c.l.b16 %v6750
    %v6856 = vunpack.c.h.b16 %v6750
    %v6857 = vunpack.c.l.b16 %v6751
    %v6858 = vunpack.c.h.b16 %v6751
    %v6859 = vunpack.c.l.b16 %v6752
    %v6860 = vunpack.c.h.b16 %v6752
    %v6861 = vunpack.c.l.b16 %v6753
    %v6862 = vunpack.c.h.b16 %v6753
    %v6863 = vunpack.c.l.b16 %v6754
    %v6864 = vunpack.c.h.b16 %v6754
    %v6865 = vunpack.c.l.b16 %v6755
    %v6866 = vunpack.c.h.b16 %v6755
    %v6867 = vunpack.c.l.b16 %v6756
    %v6868 = vunpack.c.h.b16 %v6756
    %v6869 = vunpack.c.l.b16 %v6757
    %v6870 = vunpack.c.h.b16 %v6757
    %v6871 = vunpack.c.l.b16 %v6758
    %v6872 = vunpack.c.h.b16 %v6758
    %v6873 = vunpack.c.l.b16 %v6759
    %v6874 = vunpack.c.h.b16 %v6759
    %v6875 = vunpack.c.l.b16 %v6760
    %v6876 = vunpack.c.h.b16 %v6760
    %v6877 = vunpack.c.l.b16 %v6761
    %v6878 = vunpack.c.h.b16 %v6761
    %v6879 = vunpack.c.l.b16 %v6762
    %v6880 = vunpack.c.h.b16 %v6762
    %v6881 = vunpack.c.l.b16 %v6763
    %v6882 = vunpack.c.h.b16 %v6763
    %v6883 = vunpack.c.l.b16 %v6764
    %v6884 = vunpack.c.h.b16 %v6764
    %v6885 = vunpack.c.l.b16 %v6765
    %v6886 = vunpack.c.h.b16 %v6765
    %v6887 = vunpack.c.l.b16 %v6766
    %v6888 = vunpack.c.h.b16 %v6766
    %v6889 = vunpack.c.l.b16 %v6767
    %v6890 = vunpack.c.h.b16 %v6767
    %v6891 = vunpack.c.l.b16 %v6768
    %v6892 = vunpack.c.h.b16 %v6768
    %v6893 = vunpack.c.l.b16 %v6769
    %v6894 = vunpack.c.h.b16 %v6769
    %v6895 = vunpack.c.l.b16 %v6770
    %v6896 = vunpack.c.h.b16 %v6770
    %v6897 = vunpack.c.l.b16 %v6771
    %v6898 = vunpack.c.h.b16 %v6771
    %v6899 = vunpack.c.l.b16 %v6772
    %v6900 = vunpack.c.h.b16 %v6772
    %v6901 = vunpack.c.l.b16 %v6773
    %v6902 = vunpack.c.h.b16 %v6773
    %v6903 = vunpack.c.l.b16 %v6774
    %v6904 = vunpack.c.h.b16 %v6774
    %v6905 = vunpack.c.l.b16 %v6775
    %v6906 = vunpack.c.h.b16 %v6775
    %v6907 = vunpack.c.l.b16 %v6776
    %v6908 = vunpack.c.h.b16 %v6776
    %v6909 = vunpack.c.l.b16 %v6777
    %v6910 = vunpack.c.h.b16 %v6777
    %v6911 = vunpack.c.l.b16 %v6778
    %v6912 = vunpack.c.h.b16 %v6778
    %v6913 = vunpack.c.l.b16 %v6779
    %v6914 = vunpack.c.h.b16 %v6779
    %v6915 = vunpack.c.l.b16 %v6780
    %v6916 = vunpack.c.h.b16 %v6780
    %v6917 = vpack.c.b16 %v6855, %v6853
    %v6918 = vpack.c.b16 %v6856, %v6854
    %v6919 = vpack.c.b16 %v6859, %v6857
    %v6920 = vpack.c.b16 %v6860, %v6858
    %v6921 = vpack.c.b16 %v6863, %v6861
    %v6922 = vpack.c.b16 %v6864, %v6862
    %v6923 = vpack.c.b16 %v6867, %v6865
    %v6924 = vpack.c.b16 %v6868, %v6866
    %v6925 = vpack.c.b16 %v6871, %v6869
    %v6926 = vpack.c.b16 %v6872, %v6870
    %v6927 = vpack.c.b16 %v6875, %v6873
    %v6928 = vpack.c.b16 %v6876, %v6874
    %v6929 = vpack.c.b16 %v6879, %v6877
    %v6930 = vpack.c.b16 %v6880, %v6878
    %v6931 = vpack.c.b16 %v6883, %v6881
    %v6932 = vpack.c.b16 %v6884, %v6882
    %v6933 = vpack.c.b16 %v6887, %v6885
    %v6934 = vpack.c.b16 %v6888, %v6886
    %v6935 = vpack.c.b16 %v6891, %v6889
    %v6936 = vpack.c.b16 %v6892, %v6890
    %v6937 = vpack.c.b16 %v6895, %v6893
    %v6938 = vpack.c.b16 %v6896, %v6894
    %v6939 = vpack.c.b16 %v6899, %v6897
    %v6940 = vpack.c.b16 %v6900, %v6898
    %v6941 = vpack.c.b16 %v6903, %v6901
    %v6942 = vpack.c.b16 %v6904, %v6902
    %v6943 = vpack.c.b16 %v6907, %v6905
    %v6944 = vpack.c.b16 %v6908, %v6906
    %v6945 = vpack.c.b16 %v6911, %v6909
    %v6946 = vpack.c.b16 %v6912, %v6910
    %v6947 = vpack.c.b16 %v6915, %v6913
    %v6948 = vpack.c.b16 %v6916, %v6914
    %6981 = vmatprep.subr.bf16.mxu0 %v6918
    %6982 = vmatpush1.bf16.msra.mxu0 %v6917
    %6983 = vmatprep.subr.bf16.mxu0 %v6920
    %6984 = vmatpush1.bf16.msra.mxu0 %v6919
    %6985 = vmatprep.subr.bf16.mxu0 %v6922
    %6986 = vmatpush1.bf16.msra.mxu0 %v6921
    %6987 = vmatprep.subr.bf16.mxu0 %v6924
    %6988 = vmatpush1.bf16.msra.mxu0 %v6923
    %6989 = vmatprep.subr.bf16.mxu0 %v6926
    %6990 = vmatpush1.bf16.msra.mxu0 %v6925
    %6991 = vmatprep.subr.bf16.mxu0 %v6928
    %6992 = vmatpush1.bf16.msra.mxu0 %v6927
    %6993 = vmatprep.subr.bf16.mxu0 %v6930
    %6994 = vmatpush1.bf16.msra.mxu0 %v6929
    %6995 = vmatprep.subr.bf16.mxu0 %v6932
    %6996 = vmatpush1.bf16.msra.mxu0 %v6931
    %6997 = vmatprep.subr.bf16.mxu0 %v6934
    %6998 = vmatpush1.bf16.msra.mxu0 %v6933
    %6999 = vmatprep.subr.bf16.mxu0 %v6936
    %7000 = vmatpush1.bf16.msra.mxu0 %v6935
    %7001 = vmatprep.subr.bf16.mxu0 %v6938
    %7002 = vmatpush1.bf16.msra.mxu0 %v6937
    %7003 = vmatprep.subr.bf16.mxu0 %v6940
    %7004 = vmatpush1.bf16.msra.mxu0 %v6939
    %7005 = vmatprep.subr.bf16.mxu0 %v6942
    %7006 = vmatpush1.bf16.msra.mxu0 %v6941
    %7007 = vmatprep.subr.bf16.mxu0 %v6944
    %7008 = vmatpush1.bf16.msra.mxu0 %v6943
    %7009 = vmatprep.subr.bf16.mxu0 %v6946
    %7010 = vmatpush1.bf16.msra.mxu0 %v6945
    %7011 = vmatprep.subr.bf16.mxu0 %v6948
    %7012 = vmatpush1.bf16.msra.mxu0 %v6947
    %7013 = vmatprep.mubr.bf16.mxu0 %v6806
    %7014 = vmatmul.mubr.bf16.gmra.mrb[0].mxu0 %v6805
    %v7015 = vpop.f32.mrb[0].mxu0
    %v7016 = vadd.f32 0.0, %v7015
    %v7017 = vpop.f32.mrb[0].mxu0
    %v7018 = vadd.f32 0.0, %v7017
    %v7019 = vpop.f32.mrb[0].mxu0
    %v7020 = vadd.f32 0.0, %v7019
    %v7021 = vpop.f32.mrb[0].mxu0
    %v7022 = vadd.f32 0.0, %v7021
    %7023 = vmatprep.mubr.bf16.mxu0 %v6808
    %7024 = vmatmul.mubr.bf16.gmra.mrb[0].mxu0 %v6807
    %v7025 = vpop.f32.mrb[0].mxu0
    %v7026 = vadd.f32 0.0, %v7025
    %v7027 = vpop.f32.mrb[0].mxu0
    %v7028 = vadd.f32 0.0, %v7027
    %v7029 = vpop.f32.mrb[0].mxu0
    %v7030 = vadd.f32 0.0, %v7029
    %v7031 = vpop.f32.mrb[0].mxu0
    %v7032 = vadd.f32 0.0, %v7031
    %7033 = vmatprep.mubr.bf16.mxu0 %v6810
    %7034 = vmatmul.mubr.bf16.gmra.mrb[0].mxu0 %v6809
    %v7035 = vpop.f32.mrb[0].mxu0
    %v7036 = vadd.f32 0.0, %v7035
    %v7037 = vpop.f32.mrb[0].mxu0
    %v7038 = vadd.f32 0.0, %v7037
    %v7039 = vpop.f32.mrb[0].mxu0
    %v7040 = vadd.f32 0.0, %v7039
    %v7041 = vpop.f32.mrb[0].mxu0
    %v7042 = vadd.f32 0.0, %v7041
    %7043 = vmatprep.mubr.bf16.mxu0 %v6812
    %7044 = vmatmul.mubr.bf16.gmra.mrb[0].mxu0 %v6811
    %v7045 = vpop.f32.mrb[0].mxu0
    %v7046 = vadd.f32 0.0, %v7045
    %v7047 = vpop.f32.mrb[0].mxu0
    %v7048 = vadd.f32 0.0, %v7047
    %v7049 = vpop.f32.mrb[0].mxu0
    %v7050 = vadd.f32 0.0, %v7049
    %v7051 = vpop.f32.mrb[0].mxu0
    %v7052 = vadd.f32 0.0, %v7051
    %7053 = vdwg.mxu0
    %v7054 = vld [vmem:[#allocation3] sm:$0xff]
    %v7055 = vld [vmem:[#allocation3 + $0x8] sm:$0xff]
    %v7056 = vld [vmem:[#allocation3 + $0x10] sm:$0xff]
    %v7057 = vld [vmem:[#allocation3 + $0x18] sm:$0xff]
    %v7058 = vld [vmem:[#allocation3 + $0x20] sm:$0xff]
    %v7059 = vld [vmem:[#allocation3 + $0x28] sm:$0xff]
    %v7060 = vld [vmem:[#allocation3 + $0x30] sm:$0xff]
    %v7061 = vld [vmem:[#allocation3 + $0x38] sm:$0xff]
    %v7062 = vld [vmem:[#allocation3 + $0x40] sm:$0xff]
    %v7063 = vld [vmem:[#allocation3 + $0x48] sm:$0xff]
    %v7064 = vld [vmem:[#allocation3 + $0x50] sm:$0xff]
    %v7065 = vld [vmem:[#allocation3 + $0x58] sm:$0xff]
    %v7066 = vld [vmem:[#allocation3 + $0x60] sm:$0xff]
    %v7067 = vld [vmem:[#allocation3 + $0x68] sm:$0xff]
    %v7068 = vld [vmem:[#allocation3 + $0x70] sm:$0xff]
    %v7069 = vld [vmem:[#allocation3 + $0x78] sm:$0xff]
    %v7070 = vadd.f32 %v7054, %v7016
    %v7071 = vadd.f32 %v7055, %v7018
    %v7072 = vadd.f32 %v7056, %v7020
    %v7073 = vadd.f32 %v7057, %v7022
    %v7074 = vadd.f32 %v7058, %v7026
    %v7075 = vadd.f32 %v7059, %v7028
    %v7076 = vadd.f32 %v7060, %v7030
    %v7077 = vadd.f32 %v7061, %v7032
    %v7078 = vadd.f32 %v7062, %v7036
    %v7079 = vadd.f32 %v7063, %v7038
    %v7080 = vadd.f32 %v7064, %v7040
    %v7081 = vadd.f32 %v7065, %v7042
    %v7082 = vadd.f32 %v7066, %v7046
    %v7083 = vadd.f32 %v7067, %v7048
    %v7084 = vadd.f32 %v7068, %v7050
    %v7085 = vadd.f32 %v7069, %v7052
    %7086 = vst [vmem:[#allocation3] sm:$0xff] %v7070
    %7087 = vst [vmem:[#allocation3 + $0x8] sm:$0xff] %v7071
    %7088 = vst [vmem:[#allocation3 + $0x10] sm:$0xff] %v7072
    %7089 = vst [vmem:[#allocation3 + $0x18] sm:$0xff] %v7073
    %7090 = vst [vmem:[#allocation3 + $0x20] sm:$0xff] %v7074
    %7091 = vst [vmem:[#allocation3 + $0x28] sm:$0xff] %v7075
    %7092 = vst [vmem:[#allocation3 + $0x30] sm:$0xff] %v7076
    %7093 = vst [vmem:[#allocation3 + $0x38] sm:$0xff] %v7077
    %7094 = vst [vmem:[#allocation3 + $0x40] sm:$0xff] %v7078
    %7095 = vst [vmem:[#allocation3 + $0x48] sm:$0xff] %v7079
    %7096 = vst [vmem:[#allocation3 + $0x50] sm:$0xff] %v7080
    %7097 = vst [vmem:[#allocation3 + $0x58] sm:$0xff] %v7081
    %7098 = vst [vmem:[#allocation3 + $0x60] sm:$0xff] %v7082
    %7099 = vst [vmem:[#allocation3 + $0x68] sm:$0xff] %v7083
    %7100 = vst [vmem:[#allocation3 + $0x70] sm:$0xff] %v7084
    %7101 = vst [vmem:[#allocation3 + $0x78] sm:$0xff] %v7085
    %v7102 = vld [vmem:[%s2790] sm:$0xff]
    %v7103 = vld [vmem:[%s2790 + $0x8] sm:$0x11]
    %v7104 = vld [vmem:[%s2790 + $0x10] sm:$0xff]
    %v7105 = vld [vmem:[%s2790 + $0x18] sm:$0x11]
    %v7106 = vld [vmem:[%s2790 + $0x20] sm:$0xff]
    %v7107 = vld [vmem:[%s2790 + $0x28] sm:$0x11]
    %v7108 = vld [vmem:[%s2790 + $0x30] sm:$0xff]
    %v7109 = vld [vmem:[%s2790 + $0x38] sm:$0x11]
    %v7110 = vld [vmem:[%s2790 + $0x60] sm:$0xff]
    %v7111 = vld [vmem:[%s2790 + $0x68] sm:$0x11]
    %v7112 = vld [vmem:[%s2790 + $0x70] sm:$0xff]
    %v7113 = vld [vmem:[%s2790 + $0x78] sm:$0x11]
    %v7114 = vld [vmem:[%s2790 + $0x80] sm:$0xff]
    %v7115 = vld [vmem:[%s2790 + $0x88] sm:$0x11]
    %v7116 = vld [vmem:[%s2790 + $0x90] sm:$0xff]
    %v7117 = vld [vmem:[%s2790 + $0x98] sm:$0x11]
    %v7119 = vshrl.u32 %v7102, 16
    %v7121 = vrot.slane %v7119, 4
    %v7122 = vshll.u32 %v7102, 16
    %v7124 = vrot.slane %v7122, 5
    %v7125 = vor.u32 %v7121, %v7124
    %v7126 = vrot.slane %v7125, 4
    %v7128 = vshll.u32 %v7103, 16
    %v7130 = vrot.slane %v7128, 5
    %v7131 = vsel %vm672, %v7126, %v7130
    %v7133 = vshrl.u32 %v7104, 16
    %v7135 = vrot.slane %v7133, 4
    %v7136 = vshll.u32 %v7104, 16
    %v7138 = vrot.slane %v7136, 5
    %v7139 = vor.u32 %v7135, %v7138
    %v7140 = vrot.slane %v7139, 4
    %v7142 = vshll.u32 %v7105, 16
    %v7144 = vrot.slane %v7142, 5
    %v7145 = vsel %vm672, %v7140, %v7144
    %v7147 = vshrl.u32 %v7106, 16
    %v7149 = vrot.slane %v7147, 4
    %v7150 = vshll.u32 %v7106, 16
    %v7152 = vrot.slane %v7150, 5
    %v7153 = vor.u32 %v7149, %v7152
    %v7154 = vrot.slane %v7153, 4
    %v7156 = vshll.u32 %v7107, 16
    %v7158 = vrot.slane %v7156, 5
    %v7159 = vsel %vm672, %v7154, %v7158
    %v7161 = vshrl.u32 %v7108, 16
    %v7163 = vrot.slane %v7161, 4
    %v7164 = vshll.u32 %v7108, 16
    %v7166 = vrot.slane %v7164, 5
    %v7167 = vor.u32 %v7163, %v7166
    %v7168 = vrot.slane %v7167, 4
    %v7170 = vshll.u32 %v7109, 16
    %v7172 = vrot.slane %v7170, 5
    %v7173 = vsel %vm672, %v7168, %v7172
    %v7175 = vshrl.u32 %v7110, 16
    %v7177 = vrot.slane %v7175, 4
    %v7178 = vshll.u32 %v7110, 16
    %v7180 = vrot.slane %v7178, 5
    %v7181 = vor.u32 %v7177, %v7180
    %v7182 = vrot.slane %v7181, 4
    %v7184 = vshll.u32 %v7111, 16
    %v7186 = vrot.slane %v7184, 5
    %v7187 = vsel %vm672, %v7182, %v7186
    %v7189 = vshrl.u32 %v7112, 16
    %v7191 = vrot.slane %v7189, 4
    %v7192 = vshll.u32 %v7112, 16
    %v7194 = vrot.slane %v7192, 5
    %v7195 = vor.u32 %v7191, %v7194
    %v7196 = vrot.slane %v7195, 4
    %v7198 = vshll.u32 %v7113, 16
    %v7200 = vrot.slane %v7198, 5
    %v7201 = vsel %vm672, %v7196, %v7200
    %v7203 = vshrl.u32 %v7114, 16
    %v7205 = vrot.slane %v7203, 4
    %v7206 = vshll.u32 %v7114, 16
    %v7208 = vrot.slane %v7206, 5
    %v7209 = vor.u32 %v7205, %v7208
    %v7210 = vrot.slane %v7209, 4
    %v7212 = vshll.u32 %v7115, 16
    %v7214 = vrot.slane %v7212, 5
    %v7215 = vsel %vm672, %v7210, %v7214
    %v7217 = vshrl.u32 %v7116, 16
    %v7219 = vrot.slane %v7217, 4
    %v7220 = vshll.u32 %v7116, 16
    %v7222 = vrot.slane %v7220, 5
    %v7223 = vor.u32 %v7219, %v7222
    %v7224 = vrot.slane %v7223, 4
    %v7226 = vshll.u32 %v7117, 16
    %v7228 = vrot.slane %v7226, 5
    %v7229 = vsel %vm672, %v7224, %v7228
    %s7230 = scalar_lea.vmem [#allocation10], 1792
    %v7231 = vld [vmem:[%s7230] sm:$0xff]
    %v7232 = vld [vmem:[%s7230 + $0x8] sm:$0xff]
    %v7233 = vld [vmem:[%s7230 + $0x10] sm:$0xff]
    %v7234 = vld [vmem:[%s7230 + $0x18] sm:$0xff]
    %v7235 = vld [vmem:[%s7230 + $0x20] sm:$0xff]
    %v7236 = vld [vmem:[%s7230 + $0x28] sm:$0xff]
    %v7237 = vld [vmem:[%s7230 + $0x30] sm:$0xff]
    %v7238 = vld [vmem:[%s7230 + $0x38] sm:$0xff]
    %v7239 = vld [vmem:[%s7230 + $0x40] sm:$0xff]
    %v7240 = vld [vmem:[%s7230 + $0x48] sm:$0xff]
    %v7241 = vld [vmem:[%s7230 + $0x50] sm:$0xff]
    %v7242 = vld [vmem:[%s7230 + $0x58] sm:$0xff]
    %v7243 = vld [vmem:[%s7230 + $0x60] sm:$0xff]
    %v7244 = vld [vmem:[%s7230 + $0x68] sm:$0xff]
    %v7245 = vld [vmem:[%s7230 + $0x70] sm:$0xff]
    %v7246 = vld [vmem:[%s7230 + $0x78] sm:$0xff]
    %v7247 = vld [vmem:[%s7230 + $0x80] sm:$0xff]
    %v7248 = vld [vmem:[%s7230 + $0x88] sm:$0xff]
    %v7249 = vld [vmem:[%s7230 + $0x90] sm:$0xff]
    %v7250 = vld [vmem:[%s7230 + $0x98] sm:$0xff]
    %v7251 = vld [vmem:[%s7230 + $0xa0] sm:$0xff]
    %v7252 = vld [vmem:[%s7230 + $0xa8] sm:$0xff]
    %v7253 = vld [vmem:[%s7230 + $0xb0] sm:$0xff]
    %v7254 = vld [vmem:[%s7230 + $0xb8] sm:$0xff]
    %v7255 = vld [vmem:[%s7230 + $0xc0] sm:$0xff]
    %v7256 = vld [vmem:[%s7230 + $0xc8] sm:$0xff]
    %v7257 = vld [vmem:[%s7230 + $0xd0] sm:$0xff]
    %v7258 = vld [vmem:[%s7230 + $0xd8] sm:$0xff]
    %v7259 = vld [vmem:[%s7230 + $0xe0] sm:$0xff]
    %v7260 = vld [vmem:[%s7230 + $0xe8] sm:$0xff]
    %v7261 = vld [vmem:[%s7230 + $0xf0] sm:$0xff]
    %v7262 = vld [vmem:[%s7230 + $0xf8] sm:$0xff]
    %v7263 = vunpack.c.l.b16 %v7131
    %v7264 = vunpack.c.h.b16 %v7131
    %v7265 = vunpack.c.l.b16 %v7145
    %v7266 = vunpack.c.h.b16 %v7145
    %v7267 = vunpack.c.l.b16 %v7159
    %v7268 = vunpack.c.h.b16 %v7159
    %v7269 = vunpack.c.l.b16 %v7173
    %v7270 = vunpack.c.h.b16 %v7173
    %v7271 = vunpack.c.l.b16 %v7187
    %v7272 = vunpack.c.h.b16 %v7187
    %v7273 = vunpack.c.l.b16 %v7201
    %v7274 = vunpack.c.h.b16 %v7201
    %v7275 = vunpack.c.l.b16 %v7215
    %v7276 = vunpack.c.h.b16 %v7215
    %v7277 = vunpack.c.l.b16 %v7229
    %v7278 = vunpack.c.h.b16 %v7229
    %v7279 = vpack.c.b16 %v7265, %v7263
    %v7280 = vpack.c.b16 %v7266, %v7264
    %v7281 = vpack.c.b16 %v7269, %v7267
    %v7282 = vpack.c.b16 %v7270, %v7268
    %v7283 = vpack.c.b16 %v7273, %v7271
    %v7284 = vpack.c.b16 %v7274, %v7272
    %v7285 = vpack.c.b16 %v7277, %v7275
    %v7286 = vpack.c.b16 %v7278, %v7276
    %v7327 = vunpack.c.l.b16 %v7231
    %v7328 = vunpack.c.h.b16 %v7231
    %v7329 = vunpack.c.l.b16 %v7232
    %v7330 = vunpack.c.h.b16 %v7232
    %v7331 = vunpack.c.l.b16 %v7233
    %v7332 = vunpack.c.h.b16 %v7233
    %v7333 = vunpack.c.l.b16 %v7234
    %v7334 = vunpack.c.h.b16 %v7234
    %v7335 = vunpack.c.l.b16 %v7235
    %v7336 = vunpack.c.h.b16 %v7235
    %v7337 = vunpack.c.l.b16 %v7236
    %v7338 = vunpack.c.h.b16 %v7236
    %v7339 = vunpack.c.l.b16 %v7237
    %v7340 = vunpack.c.h.b16 %v7237
    %v7341 = vunpack.c.l.b16 %v7238
    %v7342 = vunpack.c.h.b16 %v7238
    %v7343 = vunpack.c.l.b16 %v7239
    %v7344 = vunpack.c.h.b16 %v7239
    %v7345 = vunpack.c.l.b16 %v7240
    %v7346 = vunpack.c.h.b16 %v7240
    %v7347 = vunpack.c.l.b16 %v7241
    %v7348 = vunpack.c.h.b16 %v7241
    %v7349 = vunpack.c.l.b16 %v7242
    %v7350 = vunpack.c.h.b16 %v7242
    %v7351 = vunpack.c.l.b16 %v7243
    %v7352 = vunpack.c.h.b16 %v7243
    %v7353 = vunpack.c.l.b16 %v7244
    %v7354 = vunpack.c.h.b16 %v7244
    %v7355 = vunpack.c.l.b16 %v7245
    %v7356 = vunpack.c.h.b16 %v7245
    %v7357 = vunpack.c.l.b16 %v7246
    %v7358 = vunpack.c.h.b16 %v7246
    %v7359 = vunpack.c.l.b16 %v7247
    %v7360 = vunpack.c.h.b16 %v7247
    %v7361 = vunpack.c.l.b16 %v7248
    %v7362 = vunpack.c.h.b16 %v7248
    %v7363 = vunpack.c.l.b16 %v7249
    %v7364 = vunpack.c.h.b16 %v7249
    %v7365 = vunpack.c.l.b16 %v7250
    %v7366 = vunpack.c.h.b16 %v7250
    %v7367 = vunpack.c.l.b16 %v7251
    %v7368 = vunpack.c.h.b16 %v7251
    %v7369 = vunpack.c.l.b16 %v7252
    %v7370 = vunpack.c.h.b16 %v7252
    %v7371 = vunpack.c.l.b16 %v7253
    %v7372 = vunpack.c.h.b16 %v7253
    %v7373 = vunpack.c.l.b16 %v7254
    %v7374 = vunpack.c.h.b16 %v7254
    %v7375 = vunpack.c.l.b16 %v7255
    %v7376 = vunpack.c.h.b16 %v7255
    %v7377 = vunpack.c.l.b16 %v7256
    %v7378 = vunpack.c.h.b16 %v7256
    %v7379 = vunpack.c.l.b16 %v7257
    %v7380 = vunpack.c.h.b16 %v7257
    %v7381 = vunpack.c.l.b16 %v7258
    %v7382 = vunpack.c.h.b16 %v7258
    %v7383 = vunpack.c.l.b16 %v7259
    %v7384 = vunpack.c.h.b16 %v7259
    %v7385 = vunpack.c.l.b16 %v7260
    %v7386 = vunpack.c.h.b16 %v7260
    %v7387 = vunpack.c.l.b16 %v7261
    %v7388 = vunpack.c.h.b16 %v7261
    %v7389 = vunpack.c.l.b16 %v7262
    %v7390 = vunpack.c.h.b16 %v7262
    %v7391 = vpack.c.b16 %v7329, %v7327
    %v7392 = vpack.c.b16 %v7330, %v7328
    %v7393 = vpack.c.b16 %v7333, %v7331
    %v7394 = vpack.c.b16 %v7334, %v7332
    %v7395 = vpack.c.b16 %v7337, %v7335
    %v7396 = vpack.c.b16 %v7338, %v7336
    %v7397 = vpack.c.b16 %v7341, %v7339
    %v7398 = vpack.c.b16 %v7342, %v7340
    %v7399 = vpack.c.b16 %v7345, %v7343
    %v7400 = vpack.c.b16 %v7346, %v7344
    %v7401 = vpack.c.b16 %v7349, %v7347
    %v7402 = vpack.c.b16 %v7350, %v7348
    %v7403 = vpack.c.b16 %v7353, %v7351
    %v7404 = vpack.c.b16 %v7354, %v7352
    %v7405 = vpack.c.b16 %v7357, %v7355
    %v7406 = vpack.c.b16 %v7358, %v7356
    %v7407 = vpack.c.b16 %v7361, %v7359
    %v7408 = vpack.c.b16 %v7362, %v7360
    %v7409 = vpack.c.b16 %v7365, %v7363
    %v7410 = vpack.c.b16 %v7366, %v7364
    %v7411 = vpack.c.b16 %v7369, %v7367
    %v7412 = vpack.c.b16 %v7370, %v7368
    %v7413 = vpack.c.b16 %v7373, %v7371
    %v7414 = vpack.c.b16 %v7374, %v7372
    %v7415 = vpack.c.b16 %v7377, %v7375
    %v7416 = vpack.c.b16 %v7378, %v7376
    %v7417 = vpack.c.b16 %v7381, %v7379
    %v7418 = vpack.c.b16 %v7382, %v7380
    %v7419 = vpack.c.b16 %v7385, %v7383
    %v7420 = vpack.c.b16 %v7386, %v7384
    %v7421 = vpack.c.b16 %v7389, %v7387
    %v7422 = vpack.c.b16 %v7390, %v7388
    %7455 = vmatprep.subr.bf16.mxu0 %v7392
    %7456 = vmatpush1.bf16.msra.mxu0 %v7391
    %7457 = vmatprep.subr.bf16.mxu0 %v7394
    %7458 = vmatpush1.bf16.msra.mxu0 %v7393
    %7459 = vmatprep.subr.bf16.mxu0 %v7396
    %7460 = vmatpush1.bf16.msra.mxu0 %v7395
    %7461 = vmatprep.subr.bf16.mxu0 %v7398
    %7462 = vmatpush1.bf16.msra.mxu0 %v7397
    %7463 = vmatprep.subr.bf16.mxu0 %v7400
    %7464 = vmatpush1.bf16.msra.mxu0 %v7399
    %7465 = vmatprep.subr.bf16.mxu0 %v7402
    %7466 = vmatpush1.bf16.msra.mxu0 %v7401
    %7467 = vmatprep.subr.bf16.mxu0 %v7404
    %7468 = vmatpush1.bf16.msra.mxu0 %v7403
    %7469 = vmatprep.subr.bf16.mxu0 %v7406
    %7470 = vmatpush1.bf16.msra.mxu0 %v7405
    %7471 = vmatprep.subr.bf16.mxu0 %v7408
    %7472 = vmatpush1.bf16.msra.mxu0 %v7407
    %7473 = vmatprep.subr.bf16.mxu0 %v7410
    %7474 = vmatpush1.bf16.msra.mxu0 %v7409
    %7475 = vmatprep.subr.bf16.mxu0 %v7412
    %7476 = vmatpush1.bf16.msra.mxu0 %v7411
    %7477 = vmatprep.subr.bf16.mxu0 %v7414
    %7478 = vmatpush1.bf16.msra.mxu0 %v7413
    %7479 = vmatprep.subr.bf16.mxu0 %v7416
    %7480 = vmatpush1.bf16.msra.mxu0 %v7415
    %7481 = vmatprep.subr.bf16.mxu0 %v7418
    %7482 = vmatpush1.bf16.msra.mxu0 %v7417
    %7483 = vmatprep.subr.bf16.mxu0 %v7420
    %7484 = vmatpush1.bf16.msra.mxu0 %v7419
    %7485 = vmatprep.subr.bf16.mxu0 %v7422
    %7486 = vmatpush1.bf16.msra.mxu0 %v7421
    %7487 = vmatprep.mubr.bf16.mxu0 %v7280
    %7488 = vmatmul.mubr.bf16.gmra.mrb[0].mxu0 %v7279
    %v7489 = vpop.f32.mrb[0].mxu0
    %v7490 = vadd.f32 0.0, %v7489
    %v7491 = vpop.f32.mrb[0].mxu0
    %v7492 = vadd.f32 0.0, %v7491
    %v7493 = vpop.f32.mrb[0].mxu0
    %v7494 = vadd.f32 0.0, %v7493
    %v7495 = vpop.f32.mrb[0].mxu0
    %v7496 = vadd.f32 0.0, %v7495
    %7497 = vmatprep.mubr.bf16.mxu0 %v7282
    %7498 = vmatmul.mubr.bf16.gmra.mrb[0].mxu0 %v7281
    %v7499 = vpop.f32.mrb[0].mxu0
    %v7500 = vadd.f32 0.0, %v7499
    %v7501 = vpop.f32.mrb[0].mxu0
    %v7502 = vadd.f32 0.0, %v7501
    %v7503 = vpop.f32.mrb[0].mxu0
    %v7504 = vadd.f32 0.0, %v7503
    %v7505 = vpop.f32.mrb[0].mxu0
    %v7506 = vadd.f32 0.0, %v7505
    %7507 = vmatprep.mubr.bf16.mxu0 %v7284
    %7508 = vmatmul.mubr.bf16.gmra.mrb[0].mxu0 %v7283
    %v7509 = vpop.f32.mrb[0].mxu0
    %v7510 = vadd.f32 0.0, %v7509
    %v7511 = vpop.f32.mrb[0].mxu0
    %v7512 = vadd.f32 0.0, %v7511
    %v7513 = vpop.f32.mrb[0].mxu0
    %v7514 = vadd.f32 0.0, %v7513
    %v7515 = vpop.f32.mrb[0].mxu0
    %v7516 = vadd.f32 0.0, %v7515
    %7517 = vmatprep.mubr.bf16.mxu0 %v7286
    %7518 = vmatmul.mubr.bf16.gmra.mrb[0].mxu0 %v7285
    %v7519 = vpop.f32.mrb[0].mxu0
    %v7520 = vadd.f32 0.0, %v7519
    %v7521 = vpop.f32.mrb[0].mxu0
    %v7522 = vadd.f32 0.0, %v7521
    %v7523 = vpop.f32.mrb[0].mxu0
    %v7524 = vadd.f32 0.0, %v7523
    %v7525 = vpop.f32.mrb[0].mxu0
    %v7526 = vadd.f32 0.0, %v7525
    %7527 = vdwg.mxu0
    %v7528 = vld [vmem:[#allocation3] sm:$0xff]
    %v7529 = vld [vmem:[#allocation3 + $0x8] sm:$0xff]
    %v7530 = vld [vmem:[#allocation3 + $0x10] sm:$0xff]
    %v7531 = vld [vmem:[#allocation3 + $0x18] sm:$0xff]
    %v7532 = vld [vmem:[#allocation3 + $0x20] sm:$0xff]
    %v7533 = vld [vmem:[#allocation3 + $0x28] sm:$0xff]
    %v7534 = vld [vmem:[#allocation3 + $0x30] sm:$0xff]
    %v7535 = vld [vmem:[#allocation3 + $0x38] sm:$0xff]
    %v7536 = vld [vmem:[#allocation3 + $0x40] sm:$0xff]
    %v7537 = vld [vmem:[#allocation3 + $0x48] sm:$0xff]
    %v7538 = vld [vmem:[#allocation3 + $0x50] sm:$0xff]
    %v7539 = vld [vmem:[#allocation3 + $0x58] sm:$0xff]
    %v7540 = vld [vmem:[#allocation3 + $0x60] sm:$0xff]
    %v7541 = vld [vmem:[#allocation3 + $0x68] sm:$0xff]
    %v7542 = vld [vmem:[#allocation3 + $0x70] sm:$0xff]
    %v7543 = vld [vmem:[#allocation3 + $0x78] sm:$0xff]
    %v7544 = vadd.f32 %v7528, %v7490
    %v7545 = vadd.f32 %v7529, %v7492
    %v7546 = vadd.f32 %v7530, %v7494
    %v7547 = vadd.f32 %v7531, %v7496
    %v7548 = vadd.f32 %v7532, %v7500
    %v7549 = vadd.f32 %v7533, %v7502
    %v7550 = vadd.f32 %v7534, %v7504
    %v7551 = vadd.f32 %v7535, %v7506
    %v7552 = vadd.f32 %v7536, %v7510
    %v7553 = vadd.f32 %v7537, %v7512
    %v7554 = vadd.f32 %v7538, %v7514
    %v7555 = vadd.f32 %v7539, %v7516
    %v7556 = vadd.f32 %v7540, %v7520
    %v7557 = vadd.f32 %v7541, %v7522
    %v7558 = vadd.f32 %v7542, %v7524
    %v7559 = vadd.f32 %v7543, %v7526
    %7560 = vst [vmem:[#allocation3] sm:$0xff] %v7544
    %7561 = vst [vmem:[#allocation3 + $0x8] sm:$0xff] %v7545
    %7562 = vst [vmem:[#allocation3 + $0x10] sm:$0xff] %v7546
    %7563 = vst [vmem:[#allocation3 + $0x18] sm:$0xff] %v7547
    %7564 = vst [vmem:[#allocation3 + $0x20] sm:$0xff] %v7548
    %7565 = vst [vmem:[#allocation3 + $0x28] sm:$0xff] %v7549
    %7566 = vst [vmem:[#allocation3 + $0x30] sm:$0xff] %v7550
    %7567 = vst [vmem:[#allocation3 + $0x38] sm:$0xff] %v7551
    %7568 = vst [vmem:[#allocation3 + $0x40] sm:$0xff] %v7552
    %7569 = vst [vmem:[#allocation3 + $0x48] sm:$0xff] %v7553
    %7570 = vst [vmem:[#allocation3 + $0x50] sm:$0xff] %v7554
    %7571 = vst [vmem:[#allocation3 + $0x58] sm:$0xff] %v7555
    %7572 = vst [vmem:[#allocation3 + $0x60] sm:$0xff] %v7556
    %7573 = vst [vmem:[#allocation3 + $0x68] sm:$0xff] %v7557
    %7574 = vst [vmem:[#allocation3 + $0x70] sm:$0xff] %v7558
    %7575 = vst [vmem:[#allocation3 + $0x78] sm:$0xff] %v7559
    %v7576 = vld [vmem:[%s2790] sm:$0xee]
    %v7577 = vld [vmem:[%s2790 + $0x8] sm:$0x11]
    %v7578 = vld [vmem:[%s2790 + $0x10] sm:$0xee]
    %v7579 = vld [vmem:[%s2790 + $0x18] sm:$0x11]
    %v7580 = vld [vmem:[%s2790 + $0x20] sm:$0xee]
    %v7581 = vld [vmem:[%s2790 + $0x28] sm:$0x11]
    %v7582 = vld [vmem:[%s2790 + $0x30] sm:$0xee]
    %v7583 = vld [vmem:[%s2790 + $0x38] sm:$0x11]
    %v7584 = vld [vmem:[%s2790 + $0x60] sm:$0xee]
    %v7585 = vld [vmem:[%s2790 + $0x68] sm:$0x11]
    %v7586 = vld [vmem:[%s2790 + $0x70] sm:$0xee]
    %v7587 = vld [vmem:[%s2790 + $0x78] sm:$0x11]
    %v7588 = vld [vmem:[%s2790 + $0x80] sm:$0xee]
    %v7589 = vld [vmem:[%s2790 + $0x88] sm:$0x11]
    %v7590 = vld [vmem:[%s2790 + $0x90] sm:$0xee]
    %v7591 = vld [vmem:[%s2790 + $0x98] sm:$0x11]
    %v7608 = vrot.slane %v7576, 5
    %v7609 = vrot.slane %v7608, 4
    %v7610 = vrot.slane %v7577, 5
    %v7611 = vsel %vm1165, %v7609, %v7610
    %v7612 = vrot.slane %v7578, 5
    %v7613 = vrot.slane %v7612, 4
    %v7614 = vrot.slane %v7579, 5
    %v7615 = vsel %vm1165, %v7613, %v7614
    %v7616 = vrot.slane %v7580, 5
    %v7617 = vrot.slane %v7616, 4
    %v7618 = vrot.slane %v7581, 5
    %v7619 = vsel %vm1165, %v7617, %v7618
    %v7620 = vrot.slane %v7582, 5
    %v7621 = vrot.slane %v7620, 4
    %v7622 = vrot.slane %v7583, 5
    %v7623 = vsel %vm1165, %v7621, %v7622
    %v7624 = vrot.slane %v7584, 5
    %v7625 = vrot.slane %v7624, 4
    %v7626 = vrot.slane %v7585, 5
    %v7627 = vsel %vm1165, %v7625, %v7626
    %v7628 = vrot.slane %v7586, 5
    %v7629 = vrot.slane %v7628, 4
    %v7630 = vrot.slane %v7587, 5
    %v7631 = vsel %vm1165, %v7629, %v7630
    %v7632 = vrot.slane %v7588, 5
    %v7633 = vrot.slane %v7632, 4
    %v7634 = vrot.slane %v7589, 5
    %v7635 = vsel %vm1165, %v7633, %v7634
    %v7636 = vrot.slane %v7590, 5
    %v7637 = vrot.slane %v7636, 4
    %v7638 = vrot.slane %v7591, 5
    %v7639 = vsel %vm1165, %v7637, %v7638
    %s7640 = scalar_lea.vmem [#allocation10], 2048
    %v7641 = vld [vmem:[%s7640] sm:$0xff]
    %v7642 = vld [vmem:[%s7640 + $0x8] sm:$0xff]
    %v7643 = vld [vmem:[%s7640 + $0x10] sm:$0xff]
    %v7644 = vld [vmem:[%s7640 + $0x18] sm:$0xff]
    %v7645 = vld [vmem:[%s7640 + $0x20] sm:$0xff]
    %v7646 = vld [vmem:[%s7640 + $0x28] sm:$0xff]
    %v7647 = vld [vmem:[%s7640 + $0x30] sm:$0xff]
    %v7648 = vld [vmem:[%s7640 + $0x38] sm:$0xff]
    %v7649 = vld [vmem:[%s7640 + $0x40] sm:$0xff]
    %v7650 = vld [vmem:[%s7640 + $0x48] sm:$0xff]
    %v7651 = vld [vmem:[%s7640 + $0x50] sm:$0xff]
    %v7652 = vld [vmem:[%s7640 + $0x58] sm:$0xff]
    %v7653 = vld [vmem:[%s7640 + $0x60] sm:$0xff]
    %v7654 = vld [vmem:[%s7640 + $0x68] sm:$0xff]
    %v7655 = vld [vmem:[%s7640 + $0x70] sm:$0xff]
    %v7656 = vld [vmem:[%s7640 + $0x78] sm:$0xff]
    %v7657 = vld [vmem:[%s7640 + $0x80] sm:$0xff]
    %v7658 = vld [vmem:[%s7640 + $0x88] sm:$0xff]
    %v7659 = vld [vmem:[%s7640 + $0x90] sm:$0xff]
    %v7660 = vld [vmem:[%s7640 + $0x98] sm:$0xff]
    %v7661 = vld [vmem:[%s7640 + $0xa0] sm:$0xff]
    %v7662 = vld [vmem:[%s7640 + $0xa8] sm:$0xff]
    %v7663 = vld [vmem:[%s7640 + $0xb0] sm:$0xff]
    %v7664 = vld [vmem:[%s7640 + $0xb8] sm:$0xff]
    %v7665 = vld [vmem:[%s7640 + $0xc0] sm:$0xff]
    %v7666 = vld [vmem:[%s7640 + $0xc8] sm:$0xff]
    %v7667 = vld [vmem:[%s7640 + $0xd0] sm:$0xff]
    %v7668 = vld [vmem:[%s7640 + $0xd8] sm:$0xff]
    %v7669 = vld [vmem:[%s7640 + $0xe0] sm:$0xff]
    %v7670 = vld [vmem:[%s7640 + $0xe8] sm:$0xff]
    %v7671 = vld [vmem:[%s7640 + $0xf0] sm:$0xff]
    %v7672 = vld [vmem:[%s7640 + $0xf8] sm:$0xff]
    %v7673 = vunpack.c.l.b16 %v7611
    %v7674 = vunpack.c.h.b16 %v7611
    %v7675 = vunpack.c.l.b16 %v7615
    %v7676 = vunpack.c.h.b16 %v7615
    %v7677 = vunpack.c.l.b16 %v7619
    %v7678 = vunpack.c.h.b16 %v7619
    %v7679 = vunpack.c.l.b16 %v7623
    %v7680 = vunpack.c.h.b16 %v7623
    %v7681 = vunpack.c.l.b16 %v7627
    %v7682 = vunpack.c.h.b16 %v7627
    %v7683 = vunpack.c.l.b16 %v7631
    %v7684 = vunpack.c.h.b16 %v7631
    %v7685 = vunpack.c.l.b16 %v7635
    %v7686 = vunpack.c.h.b16 %v7635
    %v7687 = vunpack.c.l.b16 %v7639
    %v7688 = vunpack.c.h.b16 %v7639
    %v7689 = vpack.c.b16 %v7675, %v7673
    %v7690 = vpack.c.b16 %v7676, %v7674
    %v7691 = vpack.c.b16 %v7679, %v7677
    %v7692 = vpack.c.b16 %v7680, %v7678
    %v7693 = vpack.c.b16 %v7683, %v7681
    %v7694 = vpack.c.b16 %v7684, %v7682
    %v7695 = vpack.c.b16 %v7687, %v7685
    %v7696 = vpack.c.b16 %v7688, %v7686
    %v7737 = vunpack.c.l.b16 %v7641
    %v7738 = vunpack.c.h.b16 %v7641
    %v7739 = vunpack.c.l.b16 %v7642
    %v7740 = vunpack.c.h.b16 %v7642
    %v7741 = vunpack.c.l.b16 %v7643
    %v7742 = vunpack.c.h.b16 %v7643
    %v7743 = vunpack.c.l.b16 %v7644
    %v7744 = vunpack.c.h.b16 %v7644
    %v7745 = vunpack.c.l.b16 %v7645
    %v7746 = vunpack.c.h.b16 %v7645
    %v7747 = vunpack.c.l.b16 %v7646
    %v7748 = vunpack.c.h.b16 %v7646
    %v7749 = vunpack.c.l.b16 %v7647
    %v7750 = vunpack.c.h.b16 %v7647
    %v7751 = vunpack.c.l.b16 %v7648
    %v7752 = vunpack.c.h.b16 %v7648
    %v7753 = vunpack.c.l.b16 %v7649
    %v7754 = vunpack.c.h.b16 %v7649
    %v7755 = vunpack.c.l.b16 %v7650
    %v7756 = vunpack.c.h.b16 %v7650
    %v7757 = vunpack.c.l.b16 %v7651
    %v7758 = vunpack.c.h.b16 %v7651
    %v7759 = vunpack.c.l.b16 %v7652
    %v7760 = vunpack.c.h.b16 %v7652
    %v7761 = vunpack.c.l.b16 %v7653
    %v7762 = vunpack.c.h.b16 %v7653
    %v7763 = vunpack.c.l.b16 %v7654
    %v7764 = vunpack.c.h.b16 %v7654
    %v7765 = vunpack.c.l.b16 %v7655
    %v7766 = vunpack.c.h.b16 %v7655
    %v7767 = vunpack.c.l.b16 %v7656
    %v7768 = vunpack.c.h.b16 %v7656
    %v7769 = vunpack.c.l.b16 %v7657
    %v7770 = vunpack.c.h.b16 %v7657
    %v7771 = vunpack.c.l.b16 %v7658
    %v7772 = vunpack.c.h.b16 %v7658
    %v7773 = vunpack.c.l.b16 %v7659
    %v7774 = vunpack.c.h.b16 %v7659
    %v7775 = vunpack.c.l.b16 %v7660
    %v7776 = vunpack.c.h.b16 %v7660
    %v7777 = vunpack.c.l.b16 %v7661
    %v7778 = vunpack.c.h.b16 %v7661
    %v7779 = vunpack.c.l.b16 %v7662
    %v7780 = vunpack.c.h.b16 %v7662
    %v7781 = vunpack.c.l.b16 %v7663
    %v7782 = vunpack.c.h.b16 %v7663
    %v7783 = vunpack.c.l.b16 %v7664
    %v7784 = vunpack.c.h.b16 %v7664
    %v7785 = vunpack.c.l.b16 %v7665
    %v7786 = vunpack.c.h.b16 %v7665
    %v7787 = vunpack.c.l.b16 %v7666
    %v7788 = vunpack.c.h.b16 %v7666
    %v7789 = vunpack.c.l.b16 %v7667
    %v7790 = vunpack.c.h.b16 %v7667
    %v7791 = vunpack.c.l.b16 %v7668
    %v7792 = vunpack.c.h.b16 %v7668
    %v7793 = vunpack.c.l.b16 %v7669
    %v7794 = vunpack.c.h.b16 %v7669
    %v7795 = vunpack.c.l.b16 %v7670
    %v7796 = vunpack.c.h.b16 %v7670
    %v7797 = vunpack.c.l.b16 %v7671
    %v7798 = vunpack.c.h.b16 %v7671
    %v7799 = vunpack.c.l.b16 %v7672
    %v7800 = vunpack.c.h.b16 %v7672
    %v7801 = vpack.c.b16 %v7739, %v7737
    %v7802 = vpack.c.b16 %v7740, %v7738
    %v7803 = vpack.c.b16 %v7743, %v7741
    %v7804 = vpack.c.b16 %v7744, %v7742
    %v7805 = vpack.c.b16 %v7747, %v7745
    %v7806 = vpack.c.b16 %v7748, %v7746
    %v7807 = vpack.c.b16 %v7751, %v7749
    %v7808 = vpack.c.b16 %v7752, %v7750
    %v7809 = vpack.c.b16 %v7755, %v7753
    %v7810 = vpack.c.b16 %v7756, %v7754
    %v7811 = vpack.c.b16 %v7759, %v7757
    %v7812 = vpack.c.b16 %v7760, %v7758
    %v7813 = vpack.c.b16 %v7763, %v7761
    %v7814 = vpack.c.b16 %v7764, %v7762
    %v7815 = vpack.c.b16 %v7767, %v7765
    %v7816 = vpack.c.b16 %v7768, %v7766
    %v7817 = vpack.c.b16 %v7771, %v7769
    %v7818 = vpack.c.b16 %v7772, %v7770
    %v7819 = vpack.c.b16 %v7775, %v7773
    %v7820 = vpack.c.b16 %v7776, %v7774
    %v7821 = vpack.c.b16 %v7779, %v7777
    %v7822 = vpack.c.b16 %v7780, %v7778
    %v7823 = vpack.c.b16 %v7783, %v7781
    %v7824 = vpack.c.b16 %v7784, %v7782
    %v7825 = vpack.c.b16 %v7787, %v7785
    %v7826 = vpack.c.b16 %v7788, %v7786
    %v7827 = vpack.c.b16 %v7791, %v7789
    %v7828 = vpack.c.b16 %v7792, %v7790
    %v7829 = vpack.c.b16 %v7795, %v7793
    %v7830 = vpack.c.b16 %v7796, %v7794
    %v7831 = vpack.c.b16 %v7799, %v7797
    %v7832 = vpack.c.b16 %v7800, %v7798
    %7865 = vmatprep.subr.bf16.mxu0 %v7802
    %7866 = vmatpush1.bf16.msra.mxu0 %v7801
    %7867 = vmatprep.subr.bf16.mxu0 %v7804
    %7868 = vmatpush1.bf16.msra.mxu0 %v7803
    %7869 = vmatprep.subr.bf16.mxu0 %v7806
    %7870 = vmatpush1.bf16.msra.mxu0 %v7805
    %7871 = vmatprep.subr.bf16.mxu0 %v7808
    %7872 = vmatpush1.bf16.msra.mxu0 %v7807
    %7873 = vmatprep.subr.bf16.mxu0 %v7810
    %7874 = vmatpush1.bf16.msra.mxu0 %v7809
    %7875 = vmatprep.subr.bf16.mxu0 %v7812
    %7876 = vmatpush1.bf16.msra.mxu0 %v7811
    %7877 = vmatprep.subr.bf16.mxu0 %v7814
    %7878 = vmatpush1.bf16.msra.mxu0 %v7813
    %7879 = vmatprep.subr.bf16.mxu0 %v7816
    %7880 = vmatpush1.bf16.msra.mxu0 %v7815
    %7881 = vmatprep.subr.bf16.mxu0 %v7818
    %7882 = vmatpush1.bf16.msra.mxu0 %v7817
    %7883 = vmatprep.subr.bf16.mxu0 %v7820
    %7884 = vmatpush1.bf16.msra.mxu0 %v7819
    %7885 = vmatprep.subr.bf16.mxu0 %v7822
    %7886 = vmatpush1.bf16.msra.mxu0 %v7821
    %7887 = vmatprep.subr.bf16.mxu0 %v7824
    %7888 = vmatpush1.bf16.msra.mxu0 %v7823
    %7889 = vmatprep.subr.bf16.mxu0 %v7826
    %7890 = vmatpush1.bf16.msra.mxu0 %v7825
    %7891 = vmatprep.subr.bf16.mxu0 %v7828
    %7892 = vmatpush1.bf16.msra.mxu0 %v7827
    %7893 = vmatprep.subr.bf16.mxu0 %v7830
    %7894 = vmatpush1.bf16.msra.mxu0 %v7829
    %7895 = vmatprep.subr.bf16.mxu0 %v7832
    %7896 = vmatpush1.bf16.msra.mxu0 %v7831
    %7897 = vmatprep.mubr.bf16.mxu0 %v7690
    %7898 = vmatmul.mubr.bf16.gmra.mrb[0].mxu0 %v7689
    %v7899 = vpop.f32.mrb[0].mxu0
    %v7900 = vadd.f32 0.0, %v7899
    %v7901 = vpop.f32.mrb[0].mxu0
    %v7902 = vadd.f32 0.0, %v7901
    %v7903 = vpop.f32.mrb[0].mxu0
    %v7904 = vadd.f32 0.0, %v7903
    %v7905 = vpop.f32.mrb[0].mxu0
    %v7906 = vadd.f32 0.0, %v7905
    %7907 = vmatprep.mubr.bf16.mxu0 %v7692
    %7908 = vmatmul.mubr.bf16.gmra.mrb[0].mxu0 %v7691
    %v7909 = vpop.f32.mrb[0].mxu0
    %v7910 = vadd.f32 0.0, %v7909
    %v7911 = vpop.f32.mrb[0].mxu0
    %v7912 = vadd.f32 0.0, %v7911
    %v7913 = vpop.f32.mrb[0].mxu0
    %v7914 = vadd.f32 0.0, %v7913
    %v7915 = vpop.f32.mrb[0].mxu0
    %v7916 = vadd.f32 0.0, %v7915
    %7917 = vmatprep.mubr.bf16.mxu0 %v7694
    %7918 = vmatmul.mubr.bf16.gmra.mrb[0].mxu0 %v7693
    %v7919 = vpop.f32.mrb[0].mxu0
    %v7920 = vadd.f32 0.0, %v7919
    %v7921 = vpop.f32.mrb[0].mxu0
    %v7922 = vadd.f32 0.0, %v7921
    %v7923 = vpop.f32.mrb[0].mxu0
    %v7924 = vadd.f32 0.0, %v7923
    %v7925 = vpop.f32.mrb[0].mxu0
    %v7926 = vadd.f32 0.0, %v7925
    %7927 = vmatprep.mubr.bf16.mxu0 %v7696
    %7928 = vmatmul.mubr.bf16.gmra.mrb[0].mxu0 %v7695
    %v7929 = vpop.f32.mrb[0].mxu0
    %v7930 = vadd.f32 0.0, %v7929
    %v7931 = vpop.f32.mrb[0].mxu0
    %v7932 = vadd.f32 0.0, %v7931
    %v7933 = vpop.f32.mrb[0].mxu0
    %v7934 = vadd.f32 0.0, %v7933
    %v7935 = vpop.f32.mrb[0].mxu0
    %v7936 = vadd.f32 0.0, %v7935
    %7937 = vdwg.mxu0
    %v7938 = vld [vmem:[#allocation3] sm:$0xff]
    %v7939 = vld [vmem:[#allocation3 + $0x8] sm:$0xff]
    %v7940 = vld [vmem:[#allocation3 + $0x10] sm:$0xff]
    %v7941 = vld [vmem:[#allocation3 + $0x18] sm:$0xff]
    %v7942 = vld [vmem:[#allocation3 + $0x20] sm:$0xff]
    %v7943 = vld [vmem:[#allocation3 + $0x28] sm:$0xff]
    %v7944 = vld [vmem:[#allocation3 + $0x30] sm:$0xff]
    %v7945 = vld [vmem:[#allocation3 + $0x38] sm:$0xff]
    %v7946 = vld [vmem:[#allocation3 + $0x40] sm:$0xff]
    %v7947 = vld [vmem:[#allocation3 + $0x48] sm:$0xff]
    %v7948 = vld [vmem:[#allocation3 + $0x50] sm:$0xff]
    %v7949 = vld [vmem:[#allocation3 + $0x58] sm:$0xff]
    %v7950 = vld [vmem:[#allocation3 + $0x60] sm:$0xff]
    %v7951 = vld [vmem:[#allocation3 + $0x68] sm:$0xff]
    %v7952 = vld [vmem:[#allocation3 + $0x70] sm:$0xff]
    %v7953 = vld [vmem:[#allocation3 + $0x78] sm:$0xff]
    %v7954 = vadd.f32 %v7938, %v7900
    %v7955 = vadd.f32 %v7939, %v7902
    %v7956 = vadd.f32 %v7940, %v7904
    %v7957 = vadd.f32 %v7941, %v7906
    %v7958 = vadd.f32 %v7942, %v7910
    %v7959 = vadd.f32 %v7943, %v7912
    %v7960 = vadd.f32 %v7944, %v7914
    %v7961 = vadd.f32 %v7945, %v7916
    %v7962 = vadd.f32 %v7946, %v7920
    %v7963 = vadd.f32 %v7947, %v7922
    %v7964 = vadd.f32 %v7948, %v7924
    %v7965 = vadd.f32 %v7949, %v7926
    %v7966 = vadd.f32 %v7950, %v7930
    %v7967 = vadd.f32 %v7951, %v7932
    %v7968 = vadd.f32 %v7952, %v7934
    %v7969 = vadd.f32 %v7953, %v7936
    %7970 = vst [vmem:[#allocation3] sm:$0xff] %v7954
    %7971 = vst [vmem:[#allocation3 + $0x8] sm:$0xff] %v7955
    %7972 = vst [vmem:[#allocation3 + $0x10] sm:$0xff] %v7956
    %7973 = vst [vmem:[#allocation3 + $0x18] sm:$0xff] %v7957
    %7974 = vst [vmem:[#allocation3 + $0x20] sm:$0xff] %v7958
    %7975 = vst [vmem:[#allocation3 + $0x28] sm:$0xff] %v7959
    %7976 = vst [vmem:[#allocation3 + $0x30] sm:$0xff] %v7960
    %7977 = vst [vmem:[#allocation3 + $0x38] sm:$0xff] %v7961
    %7978 = vst [vmem:[#allocation3 + $0x40] sm:$0xff] %v7962
    %7979 = vst [vmem:[#allocation3 + $0x48] sm:$0xff] %v7963
    %7980 = vst [vmem:[#allocation3 + $0x50] sm:$0xff] %v7964
    %7981 = vst [vmem:[#allocation3 + $0x58] sm:$0xff] %v7965
    %7982 = vst [vmem:[#allocation3 + $0x60] sm:$0xff] %v7966
    %7983 = vst [vmem:[#allocation3 + $0x68] sm:$0xff] %v7967
    %7984 = vst [vmem:[#allocation3 + $0x70] sm:$0xff] %v7968
    %7985 = vst [vmem:[#allocation3 + $0x78] sm:$0xff] %v7969
    %v7986 = vld [vmem:[#allocation3] sm:$0xff]
    %v7987 = vld [vmem:[#allocation3 + $0x8] sm:$0xff]
    %v7988 = vld [vmem:[#allocation3 + $0x10] sm:$0xff]
    %v7989 = vld [vmem:[#allocation3 + $0x18] sm:$0xff]
    %v7990 = vld [vmem:[#allocation3 + $0x20] sm:$0xff]
    %v7991 = vld [vmem:[#allocation3 + $0x28] sm:$0xff]
    %v7992 = vld [vmem:[#allocation3 + $0x30] sm:$0xff]
    %v7993 = vld [vmem:[#allocation3 + $0x38] sm:$0xff]
    %v7994 = vld [vmem:[#allocation3 + $0x40] sm:$0xff]
    %v7995 = vld [vmem:[#allocation3 + $0x48] sm:$0xff]
    %v7996 = vld [vmem:[#allocation3 + $0x50] sm:$0xff]
    %v7997 = vld [vmem:[#allocation3 + $0x58] sm:$0xff]
    %v7998 = vld [vmem:[#allocation3 + $0x60] sm:$0xff]
    %v7999 = vld [vmem:[#allocation3 + $0x68] sm:$0xff]
    %v8000 = vld [vmem:[#allocation3 + $0x70] sm:$0xff]
    %v8001 = vld [vmem:[#allocation3 + $0x78] sm:$0xff]
    %v8002 = vld [vmem:[#allocation12] sm:$0x3]
    %v8004 = vlaneseq
    %v8005 = vshrl.u32 %v8004, 7
    %v8006 = vsub.s32 0, %v8005
    %v8007 = vrot.slane %v8002, %v8006
    %v8008 = vlaneseq
    %v8009 = vshrl.u32 %v8008, 7
    %v8010 = vsub.s32 1, %v8009
    %v8011 = vrot.slane %v8002, %v8010
    %v8014 = vadd.f32 %v7986, %v8007
    %v8015 = vadd.f32 %v7987, %v8011
    %v8016 = vadd.f32 %v7988, %v8007
    %v8017 = vadd.f32 %v7989, %v8011
    %v8018 = vadd.f32 %v7990, %v8007
    %v8019 = vadd.f32 %v7991, %v8011
    %v8020 = vadd.f32 %v7992, %v8007
    %v8021 = vadd.f32 %v7993, %v8011
    %v8022 = vadd.f32 %v7994, %v8007
    %v8023 = vadd.f32 %v7995, %v8011
    %v8024 = vadd.f32 %v7996, %v8007
    %v8025 = vadd.f32 %v7997, %v8011
    %v8026 = vadd.f32 %v7998, %v8007
    %v8027 = vadd.f32 %v7999, %v8011
    %v8028 = vadd.f32 %v8000, %v8007
    %v8029 = vadd.f32 %v8001, %v8011
    %v8030 = vld [vmem:[#allocation4] sm:$0xff]
    %v8031 = vld [vmem:[#allocation4 + $0x8] sm:$0xff]
    %v8032 = vld [vmem:[#allocation4 + $0x10] sm:$0xff]
    %v8033 = vld [vmem:[#allocation4 + $0x18] sm:$0xff]
    %v8034 = vld [vmem:[#allocation4 + $0x20] sm:$0xff]
    %v8035 = vld [vmem:[#allocation4 + $0x28] sm:$0xff]
    %v8036 = vld [vmem:[#allocation4 + $0x30] sm:$0xff]
    %v8037 = vld [vmem:[#allocation4 + $0x38] sm:$0xff]
    %v8038 = vld [vmem:[#allocation4 + $0x40] sm:$0xff]
    %v8039 = vld [vmem:[#allocation4 + $0x48] sm:$0xff]
    %v8040 = vld [vmem:[#allocation4 + $0x50] sm:$0xff]
    %v8041 = vld [vmem:[#allocation4 + $0x58] sm:$0xff]
    %v8042 = vld [vmem:[#allocation4 + $0x60] sm:$0xff]
    %v8043 = vld [vmem:[#allocation4 + $0x68] sm:$0xff]
    %v8044 = vld [vmem:[#allocation4 + $0x70] sm:$0xff]
    %v8045 = vld [vmem:[#allocation4 + $0x78] sm:$0xff]
    %v8046 = vadd.f32 %v8014, %v8030
    %v8047 = vadd.f32 %v8015, %v8031
    %v8048 = vadd.f32 %v8016, %v8032
    %v8049 = vadd.f32 %v8017, %v8033
    %v8050 = vadd.f32 %v8018, %v8034
    %v8051 = vadd.f32 %v8019, %v8035
    %v8052 = vadd.f32 %v8020, %v8036
    %v8053 = vadd.f32 %v8021, %v8037
    %v8054 = vadd.f32 %v8022, %v8038
    %v8055 = vadd.f32 %v8023, %v8039
    %v8056 = vadd.f32 %v8024, %v8040
    %v8057 = vadd.f32 %v8025, %v8041
    %v8058 = vadd.f32 %v8026, %v8042
    %v8059 = vadd.f32 %v8027, %v8043
    %v8060 = vadd.f32 %v8028, %v8044
    %v8061 = vadd.f32 %v8029, %v8045
    %v8062 = vmax.f32 %v8046, 0.0
    %v8063 = vmax.f32 %v8047, 0.0
    %v8064 = vmax.f32 %v8048, 0.0
    %v8065 = vmax.f32 %v8049, 0.0
    %v8066 = vmax.f32 %v8050, 0.0
    %v8067 = vmax.f32 %v8051, 0.0
    %v8068 = vmax.f32 %v8052, 0.0
    %v8069 = vmax.f32 %v8053, 0.0
    %v8070 = vmax.f32 %v8054, 0.0
    %v8071 = vmax.f32 %v8055, 0.0
    %v8072 = vmax.f32 %v8056, 0.0
    %v8073 = vmax.f32 %v8057, 0.0
    %v8074 = vmax.f32 %v8058, 0.0
    %v8075 = vmax.f32 %v8059, 0.0
    %v8076 = vmax.f32 %v8060, 0.0
    %v8077 = vmax.f32 %v8061, 0.0
    %8078 = vst [vmem:[#allocation13] sm:$0xff] %v8062
    %8079 = vst [vmem:[#allocation13 + $0x8] sm:$0xff] %v8063
    %8080 = vst [vmem:[#allocation13 + $0x10] sm:$0xff] %v8064
    %8081 = vst [vmem:[#allocation13 + $0x18] sm:$0xff] %v8065
    %8082 = vst [vmem:[#allocation13 + $0x20] sm:$0xff] %v8066
    %8083 = vst [vmem:[#allocation13 + $0x28] sm:$0xff] %v8067
    %8084 = vst [vmem:[#allocation13 + $0x30] sm:$0xff] %v8068
    %8085 = vst [vmem:[#allocation13 + $0x38] sm:$0xff] %v8069
    %8086 = vst [vmem:[#allocation13 + $0x40] sm:$0xff] %v8070
    %8087 = vst [vmem:[#allocation13 + $0x48] sm:$0xff] %v8071
    %8088 = vst [vmem:[#allocation13 + $0x50] sm:$0xff] %v8072
    %8089 = vst [vmem:[#allocation13 + $0x58] sm:$0xff] %v8073
    %8090 = vst [vmem:[#allocation13 + $0x60] sm:$0xff] %v8074
    %8091 = vst [vmem:[#allocation13 + $0x68] sm:$0xff] %v8075
    %8092 = vst [vmem:[#allocation13 + $0x70] sm:$0xff] %v8076
    %8093 = vst [vmem:[#allocation13 + $0x78] sm:$0xff] %v8077
    // Predicated region
    $region42: #{tpu_custom_call.1} parent=1 // pred_check
      _
    $region43: #{tpu_custom_call.1} parent=1 // pred_check_branch
      %8095 = sbr.rel (0) target = $region45
    $region44: #{tpu_custom_call.1} parent=1 // pred_region
      %s8097 = ssub.s32 2048, 2048
      %8098 = vsyncadd [#allocation6], %s8097
      %s8099 = sshll.u32 [#allocation13], 4
      %s8100 = int_to_ptr.vmem [resolvable:$true] %s8099
      %8105 = dma.vmem_to_hbm [thread:$0]  %s8100, 2048, %s5, [#allocation6], 256, 256, 16
    $region45: #{tpu_custom_call.1} parent=1 // pred_fallthru
      _
    // Predicated region
    $region46: #{tpu_custom_call.1} parent=1 // pred_check
      _
    $region47: #{tpu_custom_call.1} parent=1 // pred_check_branch
      %8107 = sbr.rel (0) target = $region49
    $region48: #{tpu_custom_call.1} parent=1 // pred_region
      %8108 = dma.done [#allocation6], 2048
    $region49: #{tpu_custom_call.1} parent=1 // pred_fallthru
      _
    %8109 = vsyncpa [#allocation5], 1
    %8110 = vsyncpa [#allocation8], 1
    %8111 = vsyncpa [#allocation11], 1
    %8112 = vsyncpa [#allocation6], 1

</llo_original>
